<compile_context>
chip_gen: v6e
topology: v6e:2x2x1
jax: 0.10.0
libtpu: 0.0.40
codegen_flags: <defaults>
</compile_context>

<pallas_src>
import functools

import jax
import jax.numpy as jnp
from jax import lax
from jax.experimental import pallas as pl
from jax.experimental.pallas import tpu as pltpu


def _round_up(x, m):
    return (x + m - 1) // m * m


def _foreach_chunk(total, chunk, fn):
    """Call fn(start, rows) over [0, total) in `chunk`-row pieces.

    `total` and `chunk` are static multiples of 8.  Short loops are unrolled
    (static starts); long loops use lax.fori_loop with aligned dynamic starts.
    """
    n_full = total // chunk
    tail = total - n_full * chunk
    if n_full > 0:
        if n_full <= 8:
            for ci in range(n_full):
                fn(ci * chunk, chunk)
        else:
            def body(ci, carry):
                fn(pl.multiple_of(ci * chunk, 8), chunk)
                return carry
            lax.fori_loop(0, n_full, body, 0)
    if tail > 0:
        fn(n_full * chunk, tail)


def _conv1x1_relu_kernel(x_ref, w_ref, b_ref, o_ref, *, chunk_m):
    """1x1 fast path: pipelined GEMM + bias + ReLU (no halo, no staging).

    x_ref: (1, M, C_in_p)   w_ref: (1, C_in_p, C_out_p)
    b_ref: (1, C_out_p) f32 o_ref: (1, M, C_out_p)
    """
    m = o_ref.shape[1]
    bias = b_ref[...].astype(jnp.float32)

    def do_chunk(start, rows):
        patch = x_ref[0, pl.ds(start, rows), :]
        acc = jnp.dot(patch, w_ref[0], preferred_element_type=jnp.float32)
        acc = jnp.maximum(acc + bias, 0.0)
        o_ref[0, pl.ds(start, rows), :] = acc.astype(o_ref.dtype)

    _foreach_chunk(m, chunk_m, do_chunk)


def _conv_relu_kernel(x_ref, xh_ref, w_ref, b_ref, o_ref, xflat_ref, *,
                      kh, kw, w_p, chunk_m, extra_rows):
    """General KHxKW path: stage rows+halo contiguously, flat-shift taps.

    x_ref:     (1, M, C_in_p)          main rows, M = TILE_H * W_p
    xh_ref:    (1, HALO*W_p, C_in_p)   next HALO input rows
    w_ref:     (KH*KW, C_in_p, C_out_p)
    b_ref:     (1, C_out_p) f32
    o_ref:     (1, M, C_out_p)
    xflat_ref: (M + HALO*W_p + extra, C_in_p) staging scratch
    """
    m = o_ref.shape[1]
    halo_m = xh_ref.shape[1]
    c_out = o_ref.shape[2]
    bias = b_ref[...].astype(jnp.float32)

    # Stage main rows in bounded pieces (flat vreg pressure), then the halo.
    # TODO(synk): only the last kh-1 rows actually need staging; interior
    # chunks could read x_ref directly to save a VMEM read+write per step.
    def stage(start, rows):
        xflat_ref[pl.ds(start, rows), :] = x_ref[0, pl.ds(start, rows), :]
    _foreach_chunk(m, chunk_m, stage)
    xflat_ref[pl.ds(m, halo_m), :] = xh_ref[0]
    if extra_rows:
        # Slack rows are only ever read into padded (discarded) output
        # columns; zero them so no uninitialized VMEM is consumed.
        xflat_ref[pl.ds(m + halo_m, extra_rows), :] = jnp.zeros(
            (extra_rows, xflat_ref.shape[1]), xflat_ref.dtype)

    def do_chunk(start, rows):
        # Accumulator starts from the broadcast bias (saves an epilogue pass).
        acc = jnp.broadcast_to(bias, (rows, c_out))
        tap = 0
        for r in range(kh):
            for c in range(kw):
                off = r * w_p + c
                # TODO(synk): c > 0 starts are sublane-misaligned; if the
                # bundle dump shows relayout copies, pre-shift with pltpu.roll.
                patch = xflat_ref[pl.ds(start + off, rows), :]
                acc = acc + jnp.dot(patch, w_ref[tap],
                                    preferred_element_type=jnp.float32)
                tap += 1
        o_ref[0, pl.ds(start, rows), :] = jnp.maximum(acc, 0.0).astype(
            o_ref.dtype)

    _foreach_chunk(m, chunk_m, do_chunk)


def _vmem_capacity_bytes():
    try:
        cap = int(pltpu.get_tpu_info().vmem_capacity_bytes)
        if cap > 0:
            return cap
    except Exception:
        pass
    return 64 * 1024 * 1024  # conservative fallback (v7x has the least VMEM)


def basic_conv2d(x_nchw, weight_oihw, bias, *, stride=1, padding=0,
                 compute_dtype=None):
    """Conv2d(stride=1, dilation=1, groups=1) + ReLU with nn.Conv2d semantics."""
    if isinstance(stride, (tuple, list)):
        assert all(s == 1 for s in stride), "only stride=1 is supported"
    else:
        assert stride == 1, "only stride=1 is supported"
    # TODO(synk): stride>1 (GoogLeNet stem convs) needs a strided output map.
    if isinstance(padding, (tuple, list)):
        pad_h, pad_w = padding
    else:
        pad_h = pad_w = padding

    n, c_in, h, w = x_nchw.shape
    c_out, c_in_w, kh, kw = weight_oihw.shape
    assert c_in == c_in_w, "groups != 1 is not supported"

    out_dtype = x_nchw.dtype
    if compute_dtype is None:
        # bf16 MXU path by default for f32 inputs (f32 accumulation/epilogue).
        # TODO(synk): pass precision=lax.Precision.HIGHEST in the kernel dots
        # if bit-strict f32 matmuls are ever required.
        compute_dtype = (jnp.bfloat16 if x_nchw.dtype == jnp.float32
                         else x_nchw.dtype)
    in_bytes = jnp.dtype(compute_dtype).itemsize
    out_bytes = jnp.dtype(out_dtype).itemsize

    h_out = h + 2 * pad_h - kh + 1
    w_out = w + 2 * pad_w - kw + 1
    assert h_out > 0 and w_out > 0

    # Padded geometry: lane-dense channels, sublane-aligned width.
    # TODO(synk): for tiny c_in (stem conv) keep the unpadded channel dim in
    # HBM and pad only inside VMEM to avoid the 32-42x activation overfetch.
    c_in_p = _round_up(c_in, 128)
    c_out_p = _round_up(c_out, 128)
    w_p = _round_up(w + 2 * pad_w, 8)
    # Flat-shift trick relies on the window never wrapping past the padded row.
    assert w_out + kw - 1 <= w_p

    is_1x1 = (kh == 1 and kw == 1)
    halo = 0 if is_1x1 else max(kh - 1, 1)   # bottom halo rows
    extra = 0 if (is_1x1 or kw == 1) else 8  # flat-shift slack rows (padded cols)
    gran = max(halo, 1)                      # tile_h granularity

    # Per-chunk accumulator sized to ~16 f32 vregs (64 KiB).
    chunk_m = max(8, (64 * 1024 // (c_out_p * 4)) // 8 * 8)

    # Generation-aware VMEM budget (v5e/v6e 128 MiB, v7x 64 MiB physical).
    vmem_phys = _vmem_capacity_bytes()
    vmem_limit = int(vmem_phys * 0.70)
    budget = int(vmem_limit * 0.75)

    # TODO(synk): single-buffer the constant weight/bias blocks with
    # pipeline_mode=pl.Buffered(1) to reclaim their second buffer.
    wt_bytes = 2 * kh * kw * c_in_p * c_out_p * in_bytes + 2 * c_out_p * 4

    def est(tile):
        x_in = 2 * tile * w_p * c_in_p * in_bytes
        x_hl = 2 * halo * w_p * c_in_p * in_bytes
        x_out = 2 * tile * w_p * c_out_p * out_bytes
        scratch = 0 if is_1x1 else (
            (tile + halo) * w_p + extra) * c_in_p * in_bytes
        acc = chunk_m * c_out_p * 4
        return x_in + x_hl + x_out + wt_bytes + scratch + acc

    tile_h = _round_up(h_out, gran)
    while tile_h > gran and est(tile_h) > budget:
        tile_h -= gran
    # Keep at least 2 grid steps so both v7x TensorCores get work.
    if n * ((h_out + tile_h - 1) // tile_h) < 2 and tile_h > gran:
        tile_h = max(gran, _round_up((h_out + 1) // 2, gran))

    n_h = (h_out + tile_h - 1) // tile_h
    h_out_p = n_h * tile_h
    h_in_p = h_out_p + halo
    m = tile_h * w_p
    chunk_m = min(chunk_m, m)

    # Wrapper glue: NCHW->NHWC, zero pad, channel/width pad, flatten H*W.
    # TODO(synk): keep activations NHWC+padded across consecutive layers and
    # fold the spatial zero pad into the kernel to cut these HBM passes.
    x_nhwc = jnp.transpose(x_nchw, (0, 2, 3, 1)).astype(compute_dtype)
    x_p = jnp.pad(x_nhwc, ((0, 0),
                           (pad_h, h_in_p - h - pad_h),
                           (pad_w, w_p - w - pad_w),
                           (0, c_in_p - c_in)))
    x_flat = x_p.reshape(n, h_in_p * w_p, c_in_p)

    w_hwio = jnp.transpose(weight_oihw, (2, 3, 1, 0)).astype(compute_dtype)
    w_pk = jnp.pad(w_hwio, ((0, 0), (0, 0),
                            (0, c_in_p - c_in), (0, c_out_p - c_out)))
    w_flat = w_pk.reshape(kh * kw, c_in_p, c_out_p)
    b_p = jnp.pad(bias.astype(jnp.float32),
                  (0, c_out_p - c_out)).reshape(1, c_out_p)

    out_shape = jax.ShapeDtypeStruct((n, h_out_p * w_p, c_out_p), out_dtype)
    compiler_params = pltpu.CompilerParams(
        dimension_semantics=("parallel", "parallel"),
        vmem_limit_bytes=vmem_limit)

    if is_1x1:
        kernel = functools.partial(_conv1x1_relu_kernel, chunk_m=chunk_m)
        out_p = pl.pallas_call(
            kernel,
            out_shape=out_shape,
            grid_spec=pltpu.PrefetchScalarGridSpec(
                num_scalar_prefetch=0,
                grid=(n, n_h),
                in_specs=[
                    pl.BlockSpec((1, m, c_in_p), lambda b, i: (b, i, 0)),
                    pl.BlockSpec((1, c_in_p, c_out_p),
                                 lambda b, i: (0, 0, 0)),
                    pl.BlockSpec((1, c_out_p), lambda b, i: (0, 0)),
                ],
                out_specs=pl.BlockSpec((1, m, c_out_p),
                                       lambda b, i: (b, i, 0)),
            ),
            compiler_params=compiler_params,
        )(x_flat, w_flat, b_p)
    else:
        hb = tile_h // halo  # halo-block units per row tile
        kernel = functools.partial(_conv_relu_kernel, kh=kh, kw=kw, w_p=w_p,
                                   chunk_m=chunk_m, extra_rows=extra)
        out_p = pl.pallas_call(
            kernel,
            out_shape=out_shape,
            grid_spec=pltpu.PrefetchScalarGridSpec(
                num_scalar_prefetch=0,
                grid=(n, n_h),
                in_specs=[
                    # Main pixel-row tile.
                    pl.BlockSpec((1, m, c_in_p), lambda b, i: (b, i, 0)),
                    # Halo: the next `halo` input rows of the same array.
                    pl.BlockSpec((1, halo * w_p, c_in_p),
                                 lambda b, i: (b, (i + 1) * hb, 0)),
                    pl.BlockSpec((kh * kw, c_in_p, c_out_p),
                                 lambda b, i: (0, 0, 0)),
                    pl.BlockSpec((1, c_out_p), lambda b, i: (0, 0)),
                ],
                out_specs=pl.BlockSpec((1, m, c_out_p),
                                       lambda b, i: (b, i, 0)),
                scratch_shapes=[
                    pltpu.VMEM((m + halo * w_p + extra, c_in_p),
                               compute_dtype),
                ],
            ),
            compiler_params=compiler_params,
        )(x_flat, x_flat, w_flat, b_p)

    out = out_p.reshape(n, h_out_p, w_p, c_out_p)[:, :h_out, :w_out, :c_out]
    return jnp.transpose(out, (0, 3, 1, 2))


if __name__ == "__main__":
    # Small shapes consistent with BasicConv2d usage.
    N, C_IN, H, W = 2, 4, 16, 16
    C_OUT, KH, KW = 8, 3, 3
    PADDING = 1

    key = jax.random.PRNGKey(0)
    kx, kw3, kb3, kw1, kb1 = jax.random.split(key, 5)
    x = jax.random.normal(kx, (N, C_IN, H, W), dtype=jnp.float32)
    w3 = jax.random.normal(kw3, (C_OUT, C_IN, KH, KW), jnp.float32) * 0.1
    b3 = jax.random.normal(kb3, (C_OUT,), jnp.float32) * 0.1
    w1 = jax.random.normal(kw1, (C_OUT, C_IN, 1, 1), jnp.float32) * 0.1
    b1 = jax.random.normal(kb1, (C_OUT,), jnp.float32) * 0.1

    def ref_conv_relu(xv, wv, bv, pad):
        r = lax.conv_general_dilated(
            xv, wv, window_strides=(1, 1), padding=((pad, pad), (pad, pad)),
            dimension_numbers=("NCHW", "OIHW", "NCHW"))
        return jnp.maximum(r + bv[None, :, None, None], 0.0)

    ref3 = ref_conv_relu(x, w3, b3, PADDING)
    ref1 = ref_conv_relu(x, w1, b1, 0)

    # Default path: bf16 MXU compute with f32 accumulation + f32 epilogue.
    out3 = jax.block_until_ready(basic_conv2d(x, w3, b3, padding=PADDING))
    assert out3.shape == ref3.shape == (N, C_OUT, H, W)
    assert jnp.allclose(out3, ref3, atol=5e-2, rtol=5e-2)

    # Strict f32 compute path: exact semantics of the PyTorch module.
    out3_f32 = jax.block_until_ready(
        basic_conv2d(x, w3, b3, padding=PADDING, compute_dtype=jnp.float32))
    assert jnp.allclose(out3_f32, ref3, atol=1e-4, rtol=1e-4)

    # 1x1 fast path (no halo fetch, no staging copy).
    out1 = jax.block_until_ready(
        basic_conv2d(x, w1, b1, padding=0, compute_dtype=jnp.float32))
    assert out1.shape == ref1.shape == (N, C_OUT, H, W)
    assert jnp.allclose(out1, ref1, atol=1e-4, rtol=1e-4)

    print("KERNEL_OK")
</pallas_src>

<mosaic_0001>
module attributes {stable_mosaic.version = 11 : i64} {
  func.func @_conv_relu_kernel(%arg0: i32, %arg1: i32, %arg2: memref<1x384x128xbf16, #tpu.memory_space<vmem>>, %arg3: memref<1x48x128xbf16, #tpu.memory_space<vmem>>, %arg4: memref<9x128x128xbf16, #tpu.memory_space<vmem>>, %arg5: memref<1x128xf32, #tpu.memory_space<vmem>>, %arg6: memref<1x384x128xf32, #tpu.memory_space<vmem>>, %arg7: memref<440x128xbf16, #tpu.memory_space<vmem>>) attributes {dimension_semantics = [#tpu.dimension_semantics<parallel>, #tpu.dimension_semantics<parallel>], iteration_bounds = array<i64: 2, 1>, scalar_prefetch = 0 : i64, scratch_operands = 1 : i64, tpu.core_type = #tpu.core_type<tc>, window_params = [{transform_indices = @transform_0, window_bounds = array<i64: 1, 384, 128>}, {transform_indices = @transform_1, window_bounds = array<i64: 1, 48, 128>}, {pipeline_mode = #tpu.pipeline_mode<synchronous>, transform_indices = @transform_2, window_bounds = array<i64: 9, 128, 128>}, {pipeline_mode = #tpu.pipeline_mode<synchronous>, transform_indices = @transform_3, window_bounds = array<i64: 1, 128>}, {transform_indices = @transform_4, window_bounds = array<i64: 1, 384, 128>}]} {
    %c0 = arith.constant 0 : index
    %c0_0 = arith.constant 0 : index
    %0 = vector.load %arg5[%c0, %c0_0] : memref<1x128xf32, #tpu.memory_space<vmem>>, vector<1x128xf32>
    %c0_1 = arith.constant 0 : index
    %c0_2 = arith.constant 0 : index
    %c0_3 = arith.constant 0 : index
    %1 = vector.load %arg2[%c0_1, %c0_2, %c0_3] : memref<1x384x128xbf16, #tpu.memory_space<vmem>>, vector<1x128x128xbf16>
    %2 = vector.shape_cast %1 : vector<1x128x128xbf16> to vector<128x128xbf16>
    %c0_4 = arith.constant 0 : index
    %c0_5 = arith.constant 0 : index
    %3 = vector.load %arg7[%c0_4, %c0_5] : memref<440x128xbf16, #tpu.memory_space<vmem>>, vector<128x128xbf16>
    tpu.vector_store %arg7[%c0_4, %c0_5], %2 {strides = array<i32>} : memref<440x128xbf16, #tpu.memory_space<vmem>>, vector<128x128xbf16>,
    %c0_6 = arith.constant 0 : index
    %c128 = arith.constant 128 : index
    %c0_7 = arith.constant 0 : index
    %4 = vector.load %arg2[%c0_6, %c128, %c0_7] : memref<1x384x128xbf16, #tpu.memory_space<vmem>>, vector<1x128x128xbf16>
    %5 = vector.shape_cast %4 : vector<1x128x128xbf16> to vector<128x128xbf16>
    %c128_8 = arith.constant 128 : index
    %c0_9 = arith.constant 0 : index
    %6 = vector.load %arg7[%c128_8, %c0_9] : memref<440x128xbf16, #tpu.memory_space<vmem>>, vector<128x128xbf16>
    tpu.vector_store %arg7[%c128_8, %c0_9], %5 {strides = array<i32>} : memref<440x128xbf16, #tpu.memory_space<vmem>>, vector<128x128xbf16>,
    %c0_10 = arith.constant 0 : index
    %c256 = arith.constant 256 : index
    %c0_11 = arith.constant 0 : index
    %7 = vector.load %arg2[%c0_10, %c256, %c0_11] : memref<1x384x128xbf16, #tpu.memory_space<vmem>>, vector<1x128x128xbf16>
    %8 = vector.shape_cast %7 : vector<1x128x128xbf16> to vector<128x128xbf16>
    %c256_12 = arith.constant 256 : index
    %c0_13 = arith.constant 0 : index
    %9 = vector.load %arg7[%c256_12, %c0_13] : memref<440x128xbf16, #tpu.memory_space<vmem>>, vector<128x128xbf16>
    tpu.vector_store %arg7[%c256_12, %c0_13], %8 {strides = array<i32>} : memref<440x128xbf16, #tpu.memory_space<vmem>>, vector<128x128xbf16>,
    %c0_14 = arith.constant 0 : index
    %c0_15 = arith.constant 0 : index
    %c0_16 = arith.constant 0 : index
    %10 = vector.load %arg3[%c0_14, %c0_15, %c0_16] : memref<1x48x128xbf16, #tpu.memory_space<vmem>>, vector<1x48x128xbf16>
    %11 = vector.shape_cast %10 : vector<1x48x128xbf16> to vector<48x128xbf16>
    %c384 = arith.constant 384 : index
    %c0_17 = arith.constant 0 : index
    %12 = vector.load %arg7[%c384, %c0_17] : memref<440x128xbf16, #tpu.memory_space<vmem>>, vector<48x128xbf16>
    tpu.vector_store %arg7[%c384, %c0_17], %11 {strides = array<i32>} : memref<440x128xbf16, #tpu.memory_space<vmem>>, vector<48x128xbf16>,
    %cst = arith.constant 0.000000e+00 : bf16
    %13 = vector.broadcast %cst : bf16 to vector<8x128xbf16>
    %c432 = arith.constant 432 : index
    %c0_18 = arith.constant 0 : index
    %14 = vector.load %arg7[%c432, %c0_18] : memref<440x128xbf16, #tpu.memory_space<vmem>>, vector<8x128xbf16>
    tpu.vector_store %arg7[%c432, %c0_18], %13 {strides = array<i32>} : memref<440x128xbf16, #tpu.memory_space<vmem>>, vector<8x128xbf16>,
    %15 = vector.shape_cast %0 : vector<1x128xf32> to vector<1x128xf32>
    %16 = vector.broadcast %15 : vector<1x128xf32> to vector<128x128xf32>
    %c0_19 = arith.constant 0 : index
    %c0_20 = arith.constant 0 : index
    %17 = vector.load %arg7[%c0_19, %c0_20] : memref<440x128xbf16, #tpu.memory_space<vmem>>, vector<128x128xbf16>
    %c0_21 = arith.constant 0 : index
    %c0_22 = arith.constant 0 : index
    %c0_23 = arith.constant 0 : index
    %18 = vector.load %arg4[%c0_21, %c0_22, %c0_23] : memref<9x128x128xbf16, #tpu.memory_space<vmem>>, vector<1x128x128xbf16>
    %19 = vector.shape_cast %18 : vector<1x128x128xbf16> to vector<128x128xbf16>
    %cst_24 = arith.constant dense<0.000000e+00> : vector<128x128xf32>
    %20 = tpu.matmul %17, %19, %cst_24 {dimension_numbers = #tpu.dot_dimension_numbers<[1], [0], [0], [1], [0, 0, 1, 1], [], []>} : vector<128x128xbf16>, vector<128x128xbf16>, vector<128x128xf32> -> vector<128x128xf32>
    %21 = arith.addf %16, %20 : vector<128x128xf32>
    %c1 = arith.constant 1 : index
    %c0_25 = arith.constant 0 : index
    %22 = vector.load %arg7[%c1, %c0_25] : memref<440x128xbf16, #tpu.memory_space<vmem>>, vector<128x128xbf16>
    %c1_26 = arith.constant 1 : index
    %c0_27 = arith.constant 0 : index
    %c0_28 = arith.constant 0 : index
    %23 = vector.load %arg4[%c1_26, %c0_27, %c0_28] : memref<9x128x128xbf16, #tpu.memory_space<vmem>>, vector<1x128x128xbf16>
    %24 = vector.shape_cast %23 : vector<1x128x128xbf16> to vector<128x128xbf16>
    %cst_29 = arith.constant dense<0.000000e+00> : vector<128x128xf32>
    %25 = tpu.matmul %22, %24, %cst_29 {dimension_numbers = #tpu.dot_dimension_numbers<[1], [0], [0], [1], [0, 0, 1, 1], [], []>} : vector<128x128xbf16>, vector<128x128xbf16>, vector<128x128xf32> -> vector<128x128xf32>
    %26 = arith.addf %21, %25 : vector<128x128xf32>
    %c2 = arith.constant 2 : index
    %c0_30 = arith.constant 0 : index
    %27 = vector.load %arg7[%c2, %c0_30] : memref<440x128xbf16, #tpu.memory_space<vmem>>, vector<128x128xbf16>
    %c2_31 = arith.constant 2 : index
    %c0_32 = arith.constant 0 : index
    %c0_33 = arith.constant 0 : index
    %28 = vector.load %arg4[%c2_31, %c0_32, %c0_33] : memref<9x128x128xbf16, #tpu.memory_space<vmem>>, vector<1x128x128xbf16>
    %29 = vector.shape_cast %28 : vector<1x128x128xbf16> to vector<128x128xbf16>
    %cst_34 = arith.constant dense<0.000000e+00> : vector<128x128xf32>
    %30 = tpu.matmul %27, %29, %cst_34 {dimension_numbers = #tpu.dot_dimension_numbers<[1], [0], [0], [1], [0, 0, 1, 1], [], []>} : vector<128x128xbf16>, vector<128x128xbf16>, vector<128x128xf32> -> vector<128x128xf32>
    %31 = arith.addf %26, %30 : vector<128x128xf32>
    %c24 = arith.constant 24 : index
    %c0_35 = arith.constant 0 : index
    %32 = vector.load %arg7[%c24, %c0_35] : memref<440x128xbf16, #tpu.memory_space<vmem>>, vector<128x128xbf16>
    %c3 = arith.constant 3 : index
    %c0_36 = arith.constant 0 : index
    %c0_37 = arith.constant 0 : index
    %33 = vector.load %arg4[%c3, %c0_36, %c0_37] : memref<9x128x128xbf16, #tpu.memory_space<vmem>>, vector<1x128x128xbf16>
    %34 = vector.shape_cast %33 : vector<1x128x128xbf16> to vector<128x128xbf16>
    %cst_38 = arith.constant dense<0.000000e+00> : vector<128x128xf32>
    %35 = tpu.matmul %32, %34, %cst_38 {dimension_numbers = #tpu.dot_dimension_numbers<[1], [0], [0], [1], [0, 0, 1, 1], [], []>} : vector<128x128xbf16>, vector<128x128xbf16>, vector<128x128xf32> -> vector<128x128xf32>
    %36 = arith.addf %31, %35 : vector<128x128xf32>
    %c25 = arith.constant 25 : index
    %c0_39 = arith.constant 0 : index
    %37 = vector.load %arg7[%c25, %c0_39] : memref<440x128xbf16, #tpu.memory_space<vmem>>, vector<128x128xbf16>
    %c4 = arith.constant 4 : index
    %c0_40 = arith.constant 0 : index
    %c0_41 = arith.constant 0 : index
    %38 = vector.load %arg4[%c4, %c0_40, %c0_41] : memref<9x128x128xbf16, #tpu.memory_space<vmem>>, vector<1x128x128xbf16>
    %39 = vector.shape_cast %38 : vector<1x128x128xbf16> to vector<128x128xbf16>
    %cst_42 = arith.constant dense<0.000000e+00> : vector<128x128xf32>
    %40 = tpu.matmul %37, %39, %cst_42 {dimension_numbers = #tpu.dot_dimension_numbers<[1], [0], [0], [1], [0, 0, 1, 1], [], []>} : vector<128x128xbf16>, vector<128x128xbf16>, vector<128x128xf32> -> vector<128x128xf32>
    %41 = arith.addf %36, %40 : vector<128x128xf32>
    %c26 = arith.constant 26 : index
    %c0_43 = arith.constant 0 : index
    %42 = vector.load %arg7[%c26, %c0_43] : memref<440x128xbf16, #tpu.memory_space<vmem>>, vector<128x128xbf16>
    %c5 = arith.constant 5 : index
    %c0_44 = arith.constant 0 : index
    %c0_45 = arith.constant 0 : index
    %43 = vector.load %arg4[%c5, %c0_44, %c0_45] : memref<9x128x128xbf16, #tpu.memory_space<vmem>>, vector<1x128x128xbf16>
    %44 = vector.shape_cast %43 : vector<1x128x128xbf16> to vector<128x128xbf16>
    %cst_46 = arith.constant dense<0.000000e+00> : vector<128x128xf32>
    %45 = tpu.matmul %42, %44, %cst_46 {dimension_numbers = #tpu.dot_dimension_numbers<[1], [0], [0], [1], [0, 0, 1, 1], [], []>} : vector<128x128xbf16>, vector<128x128xbf16>, vector<128x128xf32> -> vector<128x128xf32>
    %46 = arith.addf %41, %45 : vector<128x128xf32>
    %c48 = arith.constant 48 : index
    %c0_47 = arith.constant 0 : index
    %47 = vector.load %arg7[%c48, %c0_47] : memref<440x128xbf16, #tpu.memory_space<vmem>>, vector<128x128xbf16>
    %c6 = arith.constant 6 : index
    %c0_48 = arith.constant 0 : index
    %c0_49 = arith.constant 0 : index
    %48 = vector.load %arg4[%c6, %c0_48, %c0_49] : memref<9x128x128xbf16, #tpu.memory_space<vmem>>, vector<1x128x128xbf16>
    %49 = vector.shape_cast %48 : vector<1x128x128xbf16> to vector<128x128xbf16>
    %cst_50 = arith.constant dense<0.000000e+00> : vector<128x128xf32>
    %50 = tpu.matmul %47, %49, %cst_50 {dimension_numbers = #tpu.dot_dimension_numbers<[1], [0], [0], [1], [0, 0, 1, 1], [], []>} : vector<128x128xbf16>, vector<128x128xbf16>, vector<128x128xf32> -> vector<128x128xf32>
    %51 = arith.addf %46, %50 : vector<128x128xf32>
    %c49 = arith.constant 49 : index
    %c0_51 = arith.constant 0 : index
    %52 = vector.load %arg7[%c49, %c0_51] : memref<440x128xbf16, #tpu.memory_space<vmem>>, vector<128x128xbf16>
    %c7 = arith.constant 7 : index
    %c0_52 = arith.constant 0 : index
    %c0_53 = arith.constant 0 : index
    %53 = vector.load %arg4[%c7, %c0_52, %c0_53] : memref<9x128x128xbf16, #tpu.memory_space<vmem>>, vector<1x128x128xbf16>
    %54 = vector.shape_cast %53 : vector<1x128x128xbf16> to vector<128x128xbf16>
    %cst_54 = arith.constant dense<0.000000e+00> : vector<128x128xf32>
    %55 = tpu.matmul %52, %54, %cst_54 {dimension_numbers = #tpu.dot_dimension_numbers<[1], [0], [0], [1], [0, 0, 1, 1], [], []>} : vector<128x128xbf16>, vector<128x128xbf16>, vector<128x128xf32> -> vector<128x128xf32>
    %56 = arith.addf %51, %55 : vector<128x128xf32>
    %c50 = arith.constant 50 : index
    %c0_55 = arith.constant 0 : index
    %57 = vector.load %arg7[%c50, %c0_55] : memref<440x128xbf16, #tpu.memory_space<vmem>>, vector<128x128xbf16>
    %c8 = arith.constant 8 : index
    %c0_56 = arith.constant 0 : index
    %c0_57 = arith.constant 0 : index
    %58 = vector.load %arg4[%c8, %c0_56, %c0_57] : memref<9x128x128xbf16, #tpu.memory_space<vmem>>, vector<1x128x128xbf16>
    %59 = vector.shape_cast %58 : vector<1x128x128xbf16> to vector<128x128xbf16>
    %cst_58 = arith.constant dense<0.000000e+00> : vector<128x128xf32>
    %60 = tpu.matmul %57, %59, %cst_58 {dimension_numbers = #tpu.dot_dimension_numbers<[1], [0], [0], [1], [0, 0, 1, 1], [], []>} : vector<128x128xbf16>, vector<128x128xbf16>, vector<128x128xf32> -> vector<128x128xf32>
    %61 = arith.addf %56, %60 : vector<128x128xf32>
    %cst_59 = arith.constant 0.000000e+00 : f32
    %62 = vector.broadcast %cst_59 : f32 to vector<128x128xf32>
    %63 = arith.maximumf %61, %62 : vector<128x128xf32>
    %c0_60 = arith.constant 0 : index
    %c0_61 = arith.constant 0 : index
    %c0_62 = arith.constant 0 : index
    %64 = vector.load %arg6[%c0_60, %c0_61, %c0_62] : memref<1x384x128xf32, #tpu.memory_space<vmem>>, vector<1x128x128xf32>
    %65 = vector.shape_cast %64 : vector<1x128x128xf32> to vector<128x128xf32>
    %66 = vector.shape_cast %63 : vector<128x128xf32> to vector<1x128x128xf32>
    tpu.vector_store %arg6[%c0_60, %c0_61, %c0_62], %66 {strides = array<i32>} : memref<1x384x128xf32, #tpu.memory_space<vmem>>, vector<1x128x128xf32>,
    %67 = vector.shape_cast %0 : vector<1x128xf32> to vector<1x128xf32>
    %68 = vector.broadcast %67 : vector<1x128xf32> to vector<128x128xf32>
    %c128_63 = arith.constant 128 : index
    %c0_64 = arith.constant 0 : index
    %69 = vector.load %arg7[%c128_63, %c0_64] : memref<440x128xbf16, #tpu.memory_space<vmem>>, vector<128x128xbf16>
    %c0_65 = arith.constant 0 : index
    %c0_66 = arith.constant 0 : index
    %c0_67 = arith.constant 0 : index
    %70 = vector.load %arg4[%c0_65, %c0_66, %c0_67] : memref<9x128x128xbf16, #tpu.memory_space<vmem>>, vector<1x128x128xbf16>
    %71 = vector.shape_cast %70 : vector<1x128x128xbf16> to vector<128x128xbf16>
    %cst_68 = arith.constant dense<0.000000e+00> : vector<128x128xf32>
    %72 = tpu.matmul %69, %71, %cst_68 {dimension_numbers = #tpu.dot_dimension_numbers<[1], [0], [0], [1], [0, 0, 1, 1], [], []>} : vector<128x128xbf16>, vector<128x128xbf16>, vector<128x128xf32> -> vector<128x128xf32>
    %73 = arith.addf %68, %72 : vector<128x128xf32>
    %c129 = arith.constant 129 : index
    %c0_69 = arith.constant 0 : index
    %74 = vector.load %arg7[%c129, %c0_69] : memref<440x128xbf16, #tpu.memory_space<vmem>>, vector<128x128xbf16>
    %c1_70 = arith.constant 1 : index
    %c0_71 = arith.constant 0 : index
    %c0_72 = arith.constant 0 : index
    %75 = vector.load %arg4[%c1_70, %c0_71, %c0_72] : memref<9x128x128xbf16, #tpu.memory_space<vmem>>, vector<1x128x128xbf16>
    %76 = vector.shape_cast %75 : vector<1x128x128xbf16> to vector<128x128xbf16>
    %cst_73 = arith.constant dense<0.000000e+00> : vector<128x128xf32>
    %77 = tpu.matmul %74, %76, %cst_73 {dimension_numbers = #tpu.dot_dimension_numbers<[1], [0], [0], [1], [0, 0, 1, 1], [], []>} : vector<128x128xbf16>, vector<128x128xbf16>, vector<128x128xf32> -> vector<128x128xf32>
    %78 = arith.addf %73, %77 : vector<128x128xf32>
    %c130 = arith.constant 130 : index
    %c0_74 = arith.constant 0 : index
    %79 = vector.load %arg7[%c130, %c0_74] : memref<440x128xbf16, #tpu.memory_space<vmem>>, vector<128x128xbf16>
    %c2_75 = arith.constant 2 : index
    %c0_76 = arith.constant 0 : index
    %c0_77 = arith.constant 0 : index
    %80 = vector.load %arg4[%c2_75, %c0_76, %c0_77] : memref<9x128x128xbf16, #tpu.memory_space<vmem>>, vector<1x128x128xbf16>
    %81 = vector.shape_cast %80 : vector<1x128x128xbf16> to vector<128x128xbf16>
    %cst_78 = arith.constant dense<0.000000e+00> : vector<128x128xf32>
    %82 = tpu.matmul %79, %81, %cst_78 {dimension_numbers = #tpu.dot_dimension_numbers<[1], [0], [0], [1], [0, 0, 1, 1], [], []>} : vector<128x128xbf16>, vector<128x128xbf16>, vector<128x128xf32> -> vector<128x128xf32>
    %83 = arith.addf %78, %82 : vector<128x128xf32>
    %c152 = arith.constant 152 : index
    %c0_79 = arith.constant 0 : index
    %84 = vector.load %arg7[%c152, %c0_79] : memref<440x128xbf16, #tpu.memory_space<vmem>>, vector<128x128xbf16>
    %c3_80 = arith.constant 3 : index
    %c0_81 = arith.constant 0 : index
    %c0_82 = arith.constant 0 : index
    %85 = vector.load %arg4[%c3_80, %c0_81, %c0_82] : memref<9x128x128xbf16, #tpu.memory_space<vmem>>, vector<1x128x128xbf16>
    %86 = vector.shape_cast %85 : vector<1x128x128xbf16> to vector<128x128xbf16>
    %cst_83 = arith.constant dense<0.000000e+00> : vector<128x128xf32>
    %87 = tpu.matmul %84, %86, %cst_83 {dimension_numbers = #tpu.dot_dimension_numbers<[1], [0], [0], [1], [0, 0, 1, 1], [], []>} : vector<128x128xbf16>, vector<128x128xbf16>, vector<128x128xf32> -> vector<128x128xf32>
    %88 = arith.addf %83, %87 : vector<128x128xf32>
    %c153 = arith.constant 153 : index
    %c0_84 = arith.constant 0 : index
    %89 = vector.load %arg7[%c153, %c0_84] : memref<440x128xbf16, #tpu.memory_space<vmem>>, vector<128x128xbf16>
    %c4_85 = arith.constant 4 : index
    %c0_86 = arith.constant 0 : index
    %c0_87 = arith.constant 0 : index
    %90 = vector.load %arg4[%c4_85, %c0_86, %c0_87] : memref<9x128x128xbf16, #tpu.memory_space<vmem>>, vector<1x128x128xbf16>
    %91 = vector.shape_cast %90 : vector<1x128x128xbf16> to vector<128x128xbf16>
    %cst_88 = arith.constant dense<0.000000e+00> : vector<128x128xf32>
    %92 = tpu.matmul %89, %91, %cst_88 {dimension_numbers = #tpu.dot_dimension_numbers<[1], [0], [0], [1], [0, 0, 1, 1], [], []>} : vector<128x128xbf16>, vector<128x128xbf16>, vector<128x128xf32> -> vector<128x128xf32>
    %93 = arith.addf %88, %92 : vector<128x128xf32>
    %c154 = arith.constant 154 : index
    %c0_89 = arith.constant 0 : index
    %94 = vector.load %arg7[%c154, %c0_89] : memref<440x128xbf16, #tpu.memory_space<vmem>>, vector<128x128xbf16>
    %c5_90 = arith.constant 5 : index
    %c0_91 = arith.constant 0 : index
    %c0_92 = arith.constant 0 : index
    %95 = vector.load %arg4[%c5_90, %c0_91, %c0_92] : memref<9x128x128xbf16, #tpu.memory_space<vmem>>, vector<1x128x128xbf16>
    %96 = vector.shape_cast %95 : vector<1x128x128xbf16> to vector<128x128xbf16>
    %cst_93 = arith.constant dense<0.000000e+00> : vector<128x128xf32>
    %97 = tpu.matmul %94, %96, %cst_93 {dimension_numbers = #tpu.dot_dimension_numbers<[1], [0], [0], [1], [0, 0, 1, 1], [], []>} : vector<128x128xbf16>, vector<128x128xbf16>, vector<128x128xf32> -> vector<128x128xf32>
    %98 = arith.addf %93, %97 : vector<128x128xf32>
    %c176 = arith.constant 176 : index
    %c0_94 = arith.constant 0 : index
    %99 = vector.load %arg7[%c176, %c0_94] : memref<440x128xbf16, #tpu.memory_space<vmem>>, vector<128x128xbf16>
    %c6_95 = arith.constant 6 : index
    %c0_96 = arith.constant 0 : index
    %c0_97 = arith.constant 0 : index
    %100 = vector.load %arg4[%c6_95, %c0_96, %c0_97] : memref<9x128x128xbf16, #tpu.memory_space<vmem>>, vector<1x128x128xbf16>
    %101 = vector.shape_cast %100 : vector<1x128x128xbf16> to vector<128x128xbf16>
    %cst_98 = arith.constant dense<0.000000e+00> : vector<128x128xf32>
    %102 = tpu.matmul %99, %101, %cst_98 {dimension_numbers = #tpu.dot_dimension_numbers<[1], [0], [0], [1], [0, 0, 1, 1], [], []>} : vector<128x128xbf16>, vector<128x128xbf16>, vector<128x128xf32> -> vector<128x128xf32>
    %103 = arith.addf %98, %102 : vector<128x128xf32>
    %c177 = arith.constant 177 : index
    %c0_99 = arith.constant 0 : index
    %104 = vector.load %arg7[%c177, %c0_99] : memref<440x128xbf16, #tpu.memory_space<vmem>>, vector<128x128xbf16>
    %c7_100 = arith.constant 7 : index
    %c0_101 = arith.constant 0 : index
    %c0_102 = arith.constant 0 : index
    %105 = vector.load %arg4[%c7_100, %c0_101, %c0_102] : memref<9x128x128xbf16, #tpu.memory_space<vmem>>, vector<1x128x128xbf16>
    %106 = vector.shape_cast %105 : vector<1x128x128xbf16> to vector<128x128xbf16>
    %cst_103 = arith.constant dense<0.000000e+00> : vector<128x128xf32>
    %107 = tpu.matmul %104, %106, %cst_103 {dimension_numbers = #tpu.dot_dimension_numbers<[1], [0], [0], [1], [0, 0, 1, 1], [], []>} : vector<128x128xbf16>, vector<128x128xbf16>, vector<128x128xf32> -> vector<128x128xf32>
    %108 = arith.addf %103, %107 : vector<128x128xf32>
    %c178 = arith.constant 178 : index
    %c0_104 = arith.constant 0 : index
    %109 = vector.load %arg7[%c178, %c0_104] : memref<440x128xbf16, #tpu.memory_space<vmem>>, vector<128x128xbf16>
    %c8_105 = arith.constant 8 : index
    %c0_106 = arith.constant 0 : index
    %c0_107 = arith.constant 0 : index
    %110 = vector.load %arg4[%c8_105, %c0_106, %c0_107] : memref<9x128x128xbf16, #tpu.memory_space<vmem>>, vector<1x128x128xbf16>
    %111 = vector.shape_cast %110 : vector<1x128x128xbf16> to vector<128x128xbf16>
    %cst_108 = arith.constant dense<0.000000e+00> : vector<128x128xf32>
    %112 = tpu.matmul %109, %111, %cst_108 {dimension_numbers = #tpu.dot_dimension_numbers<[1], [0], [0], [1], [0, 0, 1, 1], [], []>} : vector<128x128xbf16>, vector<128x128xbf16>, vector<128x128xf32> -> vector<128x128xf32>
    %113 = arith.addf %108, %112 : vector<128x128xf32>
    %cst_109 = arith.constant 0.000000e+00 : f32
    %114 = vector.broadcast %cst_109 : f32 to vector<128x128xf32>
    %115 = arith.maximumf %113, %114 : vector<128x128xf32>
    %c0_110 = arith.constant 0 : index
    %c128_111 = arith.constant 128 : index
    %c0_112 = arith.constant 0 : index
    %116 = vector.load %arg6[%c0_110, %c128_111, %c0_112] : memref<1x384x128xf32, #tpu.memory_space<vmem>>, vector<1x128x128xf32>
    %117 = vector.shape_cast %116 : vector<1x128x128xf32> to vector<128x128xf32>
    %118 = vector.shape_cast %115 : vector<128x128xf32> to vector<1x128x128xf32>
    tpu.vector_store %arg6[%c0_110, %c128_111, %c0_112], %118 {strides = array<i32>} : memref<1x384x128xf32, #tpu.memory_space<vmem>>, vector<1x128x128xf32>,
    %119 = vector.shape_cast %0 : vector<1x128xf32> to vector<1x128xf32>
    %120 = vector.broadcast %119 : vector<1x128xf32> to vector<128x128xf32>
    %c256_113 = arith.constant 256 : index
    %c0_114 = arith.constant 0 : index
    %121 = vector.load %arg7[%c256_113, %c0_114] : memref<440x128xbf16, #tpu.memory_space<vmem>>, vector<128x128xbf16>
    %c0_115 = arith.constant 0 : index
    %c0_116 = arith.constant 0 : index
    %c0_117 = arith.constant 0 : index
    %122 = vector.load %arg4[%c0_115, %c0_116, %c0_117] : memref<9x128x128xbf16, #tpu.memory_space<vmem>>, vector<1x128x128xbf16>
    %123 = vector.shape_cast %122 : vector<1x128x128xbf16> to vector<128x128xbf16>
    %cst_118 = arith.constant dense<0.000000e+00> : vector<128x128xf32>
    %124 = tpu.matmul %121, %123, %cst_118 {dimension_numbers = #tpu.dot_dimension_numbers<[1], [0], [0], [1], [0, 0, 1, 1], [], []>} : vector<128x128xbf16>, vector<128x128xbf16>, vector<128x128xf32> -> vector<128x128xf32>
    %125 = arith.addf %120, %124 : vector<128x128xf32>
    %c257 = arith.constant 257 : index
    %c0_119 = arith.constant 0 : index
    %126 = vector.load %arg7[%c257, %c0_119] : memref<440x128xbf16, #tpu.memory_space<vmem>>, vector<128x128xbf16>
    %c1_120 = arith.constant 1 : index
    %c0_121 = arith.constant 0 : index
    %c0_122 = arith.constant 0 : index
    %127 = vector.load %arg4[%c1_120, %c0_121, %c0_122] : memref<9x128x128xbf16, #tpu.memory_space<vmem>>, vector<1x128x128xbf16>
    %128 = vector.shape_cast %127 : vector<1x128x128xbf16> to vector<128x128xbf16>
    %cst_123 = arith.constant dense<0.000000e+00> : vector<128x128xf32>
    %129 = tpu.matmul %126, %128, %cst_123 {dimension_numbers = #tpu.dot_dimension_numbers<[1], [0], [0], [1], [0, 0, 1, 1], [], []>} : vector<128x128xbf16>, vector<128x128xbf16>, vector<128x128xf32> -> vector<128x128xf32>
    %130 = arith.addf %125, %129 : vector<128x128xf32>
    %c258 = arith.constant 258 : index
    %c0_124 = arith.constant 0 : index
    %131 = vector.load %arg7[%c258, %c0_124] : memref<440x128xbf16, #tpu.memory_space<vmem>>, vector<128x128xbf16>
    %c2_125 = arith.constant 2 : index
    %c0_126 = arith.constant 0 : index
    %c0_127 = arith.constant 0 : index
    %132 = vector.load %arg4[%c2_125, %c0_126, %c0_127] : memref<9x128x128xbf16, #tpu.memory_space<vmem>>, vector<1x128x128xbf16>
    %133 = vector.shape_cast %132 : vector<1x128x128xbf16> to vector<128x128xbf16>
    %cst_128 = arith.constant dense<0.000000e+00> : vector<128x128xf32>
    %134 = tpu.matmul %131, %133, %cst_128 {dimension_numbers = #tpu.dot_dimension_numbers<[1], [0], [0], [1], [0, 0, 1, 1], [], []>} : vector<128x128xbf16>, vector<128x128xbf16>, vector<128x128xf32> -> vector<128x128xf32>
    %135 = arith.addf %130, %134 : vector<128x128xf32>
    %c280 = arith.constant 280 : index
    %c0_129 = arith.constant 0 : index
    %136 = vector.load %arg7[%c280, %c0_129] : memref<440x128xbf16, #tpu.memory_space<vmem>>, vector<128x128xbf16>
    %c3_130 = arith.constant 3 : index
    %c0_131 = arith.constant 0 : index
    %c0_132 = arith.constant 0 : index
    %137 = vector.load %arg4[%c3_130, %c0_131, %c0_132] : memref<9x128x128xbf16, #tpu.memory_space<vmem>>, vector<1x128x128xbf16>
    %138 = vector.shape_cast %137 : vector<1x128x128xbf16> to vector<128x128xbf16>
    %cst_133 = arith.constant dense<0.000000e+00> : vector<128x128xf32>
    %139 = tpu.matmul %136, %138, %cst_133 {dimension_numbers = #tpu.dot_dimension_numbers<[1], [0], [0], [1], [0, 0, 1, 1], [], []>} : vector<128x128xbf16>, vector<128x128xbf16>, vector<128x128xf32> -> vector<128x128xf32>
    %140 = arith.addf %135, %139 : vector<128x128xf32>
    %c281 = arith.constant 281 : index
    %c0_134 = arith.constant 0 : index
    %141 = vector.load %arg7[%c281, %c0_134] : memref<440x128xbf16, #tpu.memory_space<vmem>>, vector<128x128xbf16>
    %c4_135 = arith.constant 4 : index
    %c0_136 = arith.constant 0 : index
    %c0_137 = arith.constant 0 : index
    %142 = vector.load %arg4[%c4_135, %c0_136, %c0_137] : memref<9x128x128xbf16, #tpu.memory_space<vmem>>, vector<1x128x128xbf16>
    %143 = vector.shape_cast %142 : vector<1x128x128xbf16> to vector<128x128xbf16>
    %cst_138 = arith.constant dense<0.000000e+00> : vector<128x128xf32>
    %144 = tpu.matmul %141, %143, %cst_138 {dimension_numbers = #tpu.dot_dimension_numbers<[1], [0], [0], [1], [0, 0, 1, 1], [], []>} : vector<128x128xbf16>, vector<128x128xbf16>, vector<128x128xf32> -> vector<128x128xf32>
    %145 = arith.addf %140, %144 : vector<128x128xf32>
    %c282 = arith.constant 282 : index
    %c0_139 = arith.constant 0 : index
    %146 = vector.load %arg7[%c282, %c0_139] : memref<440x128xbf16, #tpu.memory_space<vmem>>, vector<128x128xbf16>
    %c5_140 = arith.constant 5 : index
    %c0_141 = arith.constant 0 : index
    %c0_142 = arith.constant 0 : index
    %147 = vector.load %arg4[%c5_140, %c0_141, %c0_142] : memref<9x128x128xbf16, #tpu.memory_space<vmem>>, vector<1x128x128xbf16>
    %148 = vector.shape_cast %147 : vector<1x128x128xbf16> to vector<128x128xbf16>
    %cst_143 = arith.constant dense<0.000000e+00> : vector<128x128xf32>
    %149 = tpu.matmul %146, %148, %cst_143 {dimension_numbers = #tpu.dot_dimension_numbers<[1], [0], [0], [1], [0, 0, 1, 1], [], []>} : vector<128x128xbf16>, vector<128x128xbf16>, vector<128x128xf32> -> vector<128x128xf32>
    %150 = arith.addf %145, %149 : vector<128x128xf32>
    %c304 = arith.constant 304 : index
    %c0_144 = arith.constant 0 : index
    %151 = vector.load %arg7[%c304, %c0_144] : memref<440x128xbf16, #tpu.memory_space<vmem>>, vector<128x128xbf16>
    %c6_145 = arith.constant 6 : index
    %c0_146 = arith.constant 0 : index
    %c0_147 = arith.constant 0 : index
    %152 = vector.load %arg4[%c6_145, %c0_146, %c0_147] : memref<9x128x128xbf16, #tpu.memory_space<vmem>>, vector<1x128x128xbf16>
    %153 = vector.shape_cast %152 : vector<1x128x128xbf16> to vector<128x128xbf16>
    %cst_148 = arith.constant dense<0.000000e+00> : vector<128x128xf32>
    %154 = tpu.matmul %151, %153, %cst_148 {dimension_numbers = #tpu.dot_dimension_numbers<[1], [0], [0], [1], [0, 0, 1, 1], [], []>} : vector<128x128xbf16>, vector<128x128xbf16>, vector<128x128xf32> -> vector<128x128xf32>
    %155 = arith.addf %150, %154 : vector<128x128xf32>
    %c305 = arith.constant 305 : index
    %c0_149 = arith.constant 0 : index
    %156 = vector.load %arg7[%c305, %c0_149] : memref<440x128xbf16, #tpu.memory_space<vmem>>, vector<128x128xbf16>
    %c7_150 = arith.constant 7 : index
    %c0_151 = arith.constant 0 : index
    %c0_152 = arith.constant 0 : index
    %157 = vector.load %arg4[%c7_150, %c0_151, %c0_152] : memref<9x128x128xbf16, #tpu.memory_space<vmem>>, vector<1x128x128xbf16>
    %158 = vector.shape_cast %157 : vector<1x128x128xbf16> to vector<128x128xbf16>
    %cst_153 = arith.constant dense<0.000000e+00> : vector<128x128xf32>
    %159 = tpu.matmul %156, %158, %cst_153 {dimension_numbers = #tpu.dot_dimension_numbers<[1], [0], [0], [1], [0, 0, 1, 1], [], []>} : vector<128x128xbf16>, vector<128x128xbf16>, vector<128x128xf32> -> vector<128x128xf32>
    %160 = arith.addf %155, %159 : vector<128x128xf32>
    %c306 = arith.constant 306 : index
    %c0_154 = arith.constant 0 : index
    %161 = vector.load %arg7[%c306, %c0_154] : memref<440x128xbf16, #tpu.memory_space<vmem>>, vector<128x128xbf16>
    %c8_155 = arith.constant 8 : index
    %c0_156 = arith.constant 0 : index
    %c0_157 = arith.constant 0 : index
    %162 = vector.load %arg4[%c8_155, %c0_156, %c0_157] : memref<9x128x128xbf16, #tpu.memory_space<vmem>>, vector<1x128x128xbf16>
    %163 = vector.shape_cast %162 : vector<1x128x128xbf16> to vector<128x128xbf16>
    %cst_158 = arith.constant dense<0.000000e+00> : vector<128x128xf32>
    %164 = tpu.matmul %161, %163, %cst_158 {dimension_numbers = #tpu.dot_dimension_numbers<[1], [0], [0], [1], [0, 0, 1, 1], [], []>} : vector<128x128xbf16>, vector<128x128xbf16>, vector<128x128xf32> -> vector<128x128xf32>
    %165 = arith.addf %160, %164 : vector<128x128xf32>
    %cst_159 = arith.constant 0.000000e+00 : f32
    %166 = vector.broadcast %cst_159 : f32 to vector<128x128xf32>
    %167 = arith.maximumf %165, %166 : vector<128x128xf32>
    %c0_160 = arith.constant 0 : index
    %c256_161 = arith.constant 256 : index
    %c0_162 = arith.constant 0 : index
    %168 = vector.load %arg6[%c0_160, %c256_161, %c0_162] : memref<1x384x128xf32, #tpu.memory_space<vmem>>, vector<1x128x128xf32>
    %169 = vector.shape_cast %168 : vector<1x128x128xf32> to vector<128x128xf32>
    %170 = vector.shape_cast %167 : vector<128x128xf32> to vector<1x128x128xf32>
    tpu.vector_store %arg6[%c0_160, %c256_161, %c0_162], %170 {strides = array<i32>} : memref<1x384x128xf32, #tpu.memory_space<vmem>>, vector<1x128x128xf32>,
    return
  }
  func.func @transform_0(%arg0: i32, %arg1: i32) -> (i32, i32, i32) {
    %c0_i32 = arith.constant 0 : i32
    %c0_i32_0 = arith.constant 0 : i32
    return %arg0, %arg1, %c0_i32 : i32, i32, i32
  }
  func.func @transform_1(%arg0: i32, %arg1: i32) -> (i32, i32, i32) {
    %c1_i32 = arith.constant 1 : i32
    %0 = arith.addi %arg1, %c1_i32 : i32
    %c8_i32 = arith.constant 8 : i32
    %1 = arith.muli %0, %c8_i32 : i32
    %c0_i32 = arith.constant 0 : i32
    %c0_i32_0 = arith.constant 0 : i32
    return %arg0, %1, %c0_i32 : i32, i32, i32
  }
  func.func @transform_2(%arg0: i32, %arg1: i32) -> (i32, i32, i32) {
    %c0_i32 = arith.constant 0 : i32
    %c0_i32_0 = arith.constant 0 : i32
    %c0_i32_1 = arith.constant 0 : i32
    %c0_i32_2 = arith.constant 0 : i32
    return %c0_i32, %c0_i32_0, %c0_i32_1 : i32, i32, i32
  }
  func.func @transform_3(%arg0: i32, %arg1: i32) -> (i32, i32) {
    %c0_i32 = arith.constant 0 : i32
    %c0_i32_0 = arith.constant 0 : i32
    %c0_i32_1 = arith.constant 0 : i32
    return %c0_i32, %c0_i32_0 : i32, i32
  }
  func.func @transform_4(%arg0: i32, %arg1: i32) -> (i32, i32, i32) {
    %c0_i32 = arith.constant 0 : i32
    %c0_i32_0 = arith.constant 0 : i32
    return %arg0, %arg1, %c0_i32 : i32, i32, i32
  }
}

</mosaic_0001>

<llo_original>
// kernel: tpu_custom_call.1
$region0: #{tpu_custom_call.1}
  #allocation0 [shape = 'u32[]', space=smem, size = 0x4, offset = 0x4, fixed_abs, tag = 'smem constant byte address 0x4 - core index']
  #allocation1 [shape = 'u32[144,128]{1,0:T(1,128)}', space=vmem, size = 0x12000, scoped, tag = 'internal scratch']
  #allocation2 [shape = 'bf16[440,128]{1,0:T(8,128)(2,1)}', space=vmem, size = 0x1b800, scoped, tag = 'scratch operand']
  %s0 = inlined_call_operand.hbm [shape: bf16[2,432,128], index: 0, kind: input, shape index: {}]
  %s1 = inlined_call_operand.hbm [shape: bf16[2,432,128], index: 1, kind: input, shape index: {}]
  %s2 = inlined_call_operand.hbm [shape: bf16[9,128,128], index: 2, kind: input, shape index: {}]
  %s3 = inlined_call_operand.vmem [shape: f32[1,128], index: 3, kind: input, shape index: {}]
  %s4 = inlined_call_operand.hbm [shape: f32[2,384,128], index: 4, kind: output, shape index: {}]
  %s5 = sld [smem:[#allocation0]]
  $region61: #{tpu_custom_call.1} parent=0
    _
  %s7 = ssub.s32 1, %s5
  %s8 = scalar_select 0, %s7, %s5
  $region1: #{tpu_custom_call.1} parent=0
    #allocation3 [shape = 'u8[196608]{0}', space=vmem, size = 0x30000, scoped, tag = 'input window, operand 0']
    #allocation4 [shape = 's32[2]{0}', space=sflag, size = 0x8, scoped, tag = 'scoped memory for tpu_custom_call.1']
    #allocation5 [shape = 's32[2]{0}', space=sflag, size = 0x8, scoped, tag = 'scoped memory for tpu_custom_call.1']
    #allocation6 [shape = 'u8[24576]{0}', space=vmem, size = 0x6000, scoped, tag = 'input window, operand 1']
    #allocation7 [shape = 's32[2]{0}', space=sflag, size = 0x8, scoped, tag = 'scoped memory for tpu_custom_call.1']
    #allocation8 [shape = 'u8[294912]{0}', space=vmem, size = 0x48000, scoped, tag = 'input window, operand 2, single buffered']
    #allocation9 [shape = 'u8[393216]{0}', space=vmem, size = 0x60000, scoped, tag = 'output window, operand 0']
    %9 = vsyncpa [#allocation4], 0
    %s10 = scalar_lea.sflag [#allocation4], 1
    %11 = vsyncpa %s10, 0
    %12 = vsyncpa [#allocation7], 0
    %s13 = scalar_lea.sflag [#allocation7], 1
    %14 = vsyncpa %s13, 0
    %15 = vsyncpa [#allocation5], 0
    %s16 = scalar_lea.sflag [#allocation5], 1
    %17 = vsyncpa %s16, 0
    loop: start=0, step=1, limit=4
    $region2: #{tpu_custom_call.1} parent=1 // loop_pre_header
      _
    $region3: #{tpu_custom_call.1} parent=1 // loop_header
      %s19 = sphi 0, %s23
      %p20 = scmp.ge.s32.totalorder %s19, 4
      %s26 = sphi 0, %s38
      %s27 = sphi 0, %s34
      %s28 = sphi 0, %s26
      %s29 = sphi 0, %s27
      %s30 = sphi 0, %s28
      %s31 = sphi 0, %s29
      %s43 = sphi 0, %s45
      %s46 = sphi 0, %s43
      %s47 = sphi 0, %s46
      %s63 = sphi 0, %s47
      %s75 = sphi 0, %s77
      %s78 = sphi 0, %s75
      %s79 = sphi 0, %s78
      %s95 = sphi 0, %s79
      %s99 = sphi 0, %s99
      %s101 = sphi 0, %s99
      %s102 = sphi 0, %s101
      %s116 = sphi 0, %s102
      %s120 = sphi 0, %s120
      %s122 = sphi 0, %s120
      %s123 = sphi 0, %s122
      %s137 = sphi 0, %s123
      %s145 = sphi 0, %s147
      %s148 = sphi 0, %s145
      %s149 = sphi 0, %s148
      %s165 = sphi 0, %s149
    $region4: #{tpu_custom_call.1} parent=1 // loop_header_branch
      %22 = sbr.rel (%p20) target = $region8
    $region5: #{tpu_custom_call.1} parent=1 // loop_body
      %s24 = ssub.s32 %s19, 1
      %s25 = ssub.s32 %s19, 2
      %s32 = sadd.s32 1, %s27
      %p33 = scmp.ge.s32.totalorder %s32, 1
      %s34 = scalar_select %p33, 0, %s32
      %s35 = sadd.s32 1, %s26
      %s36 = scalar_select %p33, %s35, %s26
      %p37 = scmp.ge.s32.totalorder %s36, 2
      %s38 = scalar_select %p37, 0, %s36
      %s39 = ssub.s32 %s26, %s38
      %s40 = ssub.s32 %s27, %s34
      %s41 = sor.u32 %s39, %s40
      %p42 = scmp.eq.s32.totalorder %s41, 0
      %s44 = sadd.s32 %s43, 1
      %s45 = scalar_select %p42, %s43, %s44
      %p48 = pneg %p42
      %p49 = scmp.eq.s32.totalorder %s19, 1
      %p50 = por %p48, %p49
      %p51 = scmp.ne.s32.totalorder %s43, %s46
      %p52 = scmp.eq.s32.totalorder %s19, 0
      %p53 = por %p51, %p52
      %p54 = scmp.ne.s32.totalorder %s43, %s46
      %p55 = scmp.eq.s32.totalorder %s24, 1
      %p56 = por %p54, %p55
      %p57 = scmp.ne.s32.totalorder %s46, %s47
      %p58 = scmp.eq.s32.totalorder %s24, 0
      %p59 = por %p57, %p58
      %p60 = scmp.ne.s32.totalorder %s46, %s47
      %p61 = scmp.eq.s32.totalorder %s25, 1
      %p62 = por %p60, %p61
      %p64 = scmp.ne.s32.totalorder %s47, %s63
      %p65 = scmp.eq.s32.totalorder %s25, 0
      %p66 = por %p64, %p65
      %s67 = sadd.s32 %s27, 1
      %s68 = smul.u32 %s67, 8
      %s69 = sadd.s32 %s34, 1
      %s70 = smul.u32 %s69, 8
      %s71 = ssub.s32 %s26, %s38
      %s72 = ssub.s32 %s68, %s70
      %s73 = sor.u32 %s71, %s72
      %p74 = scmp.eq.s32.totalorder %s73, 0
      %s76 = sadd.s32 %s75, 1
      %s77 = scalar_select %p74, %s75, %s76
      %p80 = pneg %p74
      %p81 = scmp.eq.s32.totalorder %s19, 1
      %p82 = por %p80, %p81
      %p83 = scmp.ne.s32.totalorder %s75, %s78
      %p84 = scmp.eq.s32.totalorder %s19, 0
      %p85 = por %p83, %p84
      %p86 = scmp.ne.s32.totalorder %s75, %s78
      %p87 = scmp.eq.s32.totalorder %s24, 1
      %p88 = por %p86, %p87
      %p89 = scmp.ne.s32.totalorder %s78, %s79
      %p90 = scmp.eq.s32.totalorder %s24, 0
      %p91 = por %p89, %p90
      %p92 = scmp.ne.s32.totalorder %s78, %s79
      %p93 = scmp.eq.s32.totalorder %s25, 1
      %p94 = por %p92, %p93
      %p96 = scmp.ne.s32.totalorder %s79, %s95
      %p97 = scmp.eq.s32.totalorder %s25, 0
      %p98 = por %p96, %p97
      %s100 = sadd.s32 %s99, 1
      %p103 = scmp.eq.s32.totalorder %s19, 1
      %p104 = scmp.ne.s32.totalorder %s99, %s101
      %p105 = scmp.eq.s32.totalorder %s19, 0
      %p106 = por %p104, %p105
      %p107 = scmp.ne.s32.totalorder %s99, %s101
      %p108 = scmp.eq.s32.totalorder %s24, 1
      %p109 = por %p107, %p108
      %p110 = scmp.ne.s32.totalorder %s101, %s102
      %p111 = scmp.eq.s32.totalorder %s24, 0
      %p112 = por %p110, %p111
      %p113 = scmp.ne.s32.totalorder %s101, %s102
      %p114 = scmp.eq.s32.totalorder %s25, 1
      %p115 = por %p113, %p114
      %p117 = scmp.ne.s32.totalorder %s102, %s116
      %p118 = scmp.eq.s32.totalorder %s25, 0
      %p119 = por %p117, %p118
      %s121 = sadd.s32 %s120, 1
      %p124 = scmp.eq.s32.totalorder %s19, 1
      %p125 = scmp.ne.s32.totalorder %s120, %s122
      %p126 = scmp.eq.s32.totalorder %s19, 0
      %p127 = por %p125, %p126
      %p128 = scmp.ne.s32.totalorder %s120, %s122
      %p129 = scmp.eq.s32.totalorder %s24, 1
      %p130 = por %p128, %p129
      %p131 = scmp.ne.s32.totalorder %s122, %s123
      %p132 = scmp.eq.s32.totalorder %s24, 0
      %p133 = por %p131, %p132
      %p134 = scmp.ne.s32.totalorder %s122, %s123
      %p135 = scmp.eq.s32.totalorder %s25, 1
      %p136 = por %p134, %p135
      %p138 = scmp.ne.s32.totalorder %s123, %s137
      %p139 = scmp.eq.s32.totalorder %s25, 0
      %p140 = por %p138, %p139
      %s141 = ssub.s32 %s26, %s38
      %s142 = ssub.s32 %s27, %s34
      %s143 = sor.u32 %s141, %s142
      %p144 = scmp.eq.s32.totalorder %s143, 0
      %s146 = sadd.s32 %s145, 1
      %s147 = scalar_select %p144, %s145, %s146
      %p150 = pneg %p144
      %p151 = scmp.eq.s32.totalorder %s19, 1
      %p152 = por %p150, %p151
      %p153 = scmp.ne.s32.totalorder %s145, %s148
      %p154 = scmp.eq.s32.totalorder %s19, 0
      %p155 = por %p153, %p154
      %p156 = scmp.ne.s32.totalorder %s145, %s148
      %p157 = scmp.eq.s32.totalorder %s24, 1
      %p158 = por %p156, %p157
      %p159 = scmp.ne.s32.totalorder %s148, %s149
      %p160 = scmp.eq.s32.totalorder %s24, 0
      %p161 = por %p159, %p160
      %p162 = scmp.ne.s32.totalorder %s148, %s149
      %p163 = scmp.eq.s32.totalorder %s25, 1
      %p164 = por %p162, %p163
      %p166 = scmp.ne.s32.totalorder %s149, %s165
      %p167 = scmp.eq.s32.totalorder %s25, 0
      %p168 = por %p166, %p167
      %p169 = scmp.le.s32.totalorder 1, %s19
      %p170 = scmp.lt.s32.totalorder %s19, 3
      %p171 = pnand %p169, %p170
      %p172 = pneg %p171
      // Predicated region
      $region9: #{tpu_custom_call.1} parent=5 // pred_check
        _
      $region10: #{tpu_custom_call.1} parent=5 // pred_check_branch
        %174 = sbr.rel (%p171) target = $region12
      $region11: #{tpu_custom_call.1} parent=5 // pred_region
        %s175 = ssub.s32 %s19, 1
        // Predicated region
        $region13: #{tpu_custom_call.1} parent=11 // pred_check
          %p176 = pneg %p112
        $region14: #{tpu_custom_call.1} parent=11 // pred_check_branch
          %178 = sbr.rel (%p176) target = $region16
        $region15: #{tpu_custom_call.1} parent=11 // pred_region
          %s180 = ssub.s32 9216, 9216
          %181 = vsyncadd [#allocation7], %s180
          %s182 = sshll.u32 [#allocation8], 4
          %s183 = int_to_ptr.vmem [resolvable:$true] %s182
          %188 = dma.hbm_to_vmem [thread:$0]  %s2, 9216, %s183, [#allocation7], 64, 64, 4
        $region16: #{tpu_custom_call.1} parent=11 // pred_fallthru
          _
        // Predicated region
        $region17: #{tpu_custom_call.1} parent=11 // pred_check
          %p189 = pneg %p133
        $region18: #{tpu_custom_call.1} parent=11 // pred_check_branch
          %191 = sbr.rel (%p189) target = $region20
        $region19: #{tpu_custom_call.1} parent=11 // pred_region
          _
        $region20: #{tpu_custom_call.1} parent=11 // pred_fallthru
          _
      $region12: #{tpu_custom_call.1} parent=5 // pred_fallthru
        _
      %p192 = scmp.lt.s32.totalorder %s19, 2
      // Predicated region
      $region21: #{tpu_custom_call.1} parent=5 // pred_check
        %p193 = pneg %p192
      $region22: #{tpu_custom_call.1} parent=5 // pred_check_branch
        %195 = sbr.rel (%p193) target = $region24
      $region23: #{tpu_custom_call.1} parent=5 // pred_region
        // Predicated region
        $region25: #{tpu_custom_call.1} parent=23 // pred_check
          %p196 = pneg %p53
        $region26: #{tpu_custom_call.1} parent=23 // pred_check_branch
          %198 = sbr.rel (%p196) target = $region28
        $region27: #{tpu_custom_call.1} parent=23 // pred_region
          %s199 = sand.u32 %s43, 1
          %s200 = scalar_lea.sflag [#allocation4], %s199
          %s201 = sand.u32 %s43, 1
          %s202 = smul.addr %s201, 192
          %s203 = scalar_lea.vmem [#allocation3], %s202
          %s204 = smul.u32 48, %s27
          %s205 = ssub.s32 54, %s204
          %p206 = scmp.lt.s32.totalorder %s205, 48
          %s207 = scalar_select %p206, %s205, 48
          %s208 = smul.u32 64, %s207
          %s210 = ssub.s32 3072, %s208
          %211 = vsyncadd %s200, %s210
          %p212 = scmp.ne.s32.totalorder 0, %s208
          %s213 = smul.addr %s26, 54
          %s214 = sadd.s32 %s204, %s213
          %s215 = smul.addr %s214, 64
          %s216 = scalar_lea.hbm %s0, %s215
          %s217 = smul.u32 4, %s207
          %s218 = sshll.u32 %s203, 4
          %s219 = int_to_ptr.vmem [resolvable:$true] %s218
          %s220 = sshll.u32 %s217, 4
          %224 = dma.hbm_to_vmem [thread:$0]  (%p212), %s216, %s220, %s219, %s200, 64, 64, 4
        $region28: #{tpu_custom_call.1} parent=23 // pred_fallthru
          _
        // Predicated region
        $region29: #{tpu_custom_call.1} parent=23 // pred_check
          %p225 = pneg %p85
        $region30: #{tpu_custom_call.1} parent=23 // pred_check_branch
          %227 = sbr.rel (%p225) target = $region32
        $region31: #{tpu_custom_call.1} parent=23 // pred_region
          %s228 = sand.u32 %s19, 1
          %s229 = scalar_lea.sflag [#allocation7], %s228
          %s230 = sand.u32 %s75, 1
          %s231 = smul.addr %s230, 24
          %s232 = scalar_lea.vmem [#allocation6], %s231
          %s233 = sadd.s32 %s27, 1
          %s234 = smul.u32 %s233, 8
          %s235 = smul.u32 6, %s234
          %s237 = ssub.s32 384, 384
          %238 = vsyncadd %s229, %s237
          %s239 = smul.addr %s26, 54
          %s240 = sadd.s32 %s235, %s239
          %s241 = smul.addr %s240, 64
          %s242 = scalar_lea.hbm %s1, %s241
          %s243 = sshll.u32 %s232, 4
          %s244 = int_to_ptr.vmem [resolvable:$true] %s243
          %249 = dma.hbm_to_vmem [thread:$0]  %s242, 384, %s244, %s229, 64, 64, 4
        $region32: #{tpu_custom_call.1} parent=23 // pred_fallthru
          _
      $region24: #{tpu_custom_call.1} parent=5 // pred_fallthru
        _
      %p250 = scmp.le.s32.totalorder 1, %s19
      %p251 = scmp.lt.s32.totalorder %s19, 3
      %p252 = pnand %p250, %p251
      %p253 = pneg %p252
      // Predicated region
      $region33: #{tpu_custom_call.1} parent=5 // pred_check
        _
      $region34: #{tpu_custom_call.1} parent=5 // pred_check_branch
        %255 = sbr.rel (%p252) target = $region36
      $region35: #{tpu_custom_call.1} parent=5 // pred_region
        %s256 = ssub.s32 %s19, 1
        %s257 = sand.u32 %s46, 1
        %s258 = scalar_lea.sflag [#allocation4], %s257
        %s259 = sand.u32 %s46, 1
        %s260 = smul.addr %s259, 192
        %s261 = scalar_lea.vmem [#allocation3], %s260
        // Predicated region
        $region37: #{tpu_custom_call.1} parent=35 // pred_check
          %p262 = pneg %p59
        $region38: #{tpu_custom_call.1} parent=35 // pred_check_branch
          %264 = sbr.rel (%p262) target = $region40
        $region39: #{tpu_custom_call.1} parent=35 // pred_region
          %265 = dma.done %s258, 3072
        $region40: #{tpu_custom_call.1} parent=35 // pred_fallthru
          _
        %s266 = sand.u32 %s24, 1
        %s267 = scalar_lea.sflag [#allocation7], %s266
        %s268 = sand.u32 %s78, 1
        %s269 = smul.addr %s268, 24
        %s270 = scalar_lea.vmem [#allocation6], %s269
        // Predicated region
        $region41: #{tpu_custom_call.1} parent=35 // pred_check
          %p271 = pneg %p91
        $region42: #{tpu_custom_call.1} parent=35 // pred_check_branch
          %273 = sbr.rel (%p271) target = $region44
        $region43: #{tpu_custom_call.1} parent=35 // pred_region
          %274 = dma.done %s267, 384
        $region44: #{tpu_custom_call.1} parent=35 // pred_fallthru
          _
        // Predicated region
        $region45: #{tpu_custom_call.1} parent=35 // pred_check
          %p275 = pneg %p112
        $region46: #{tpu_custom_call.1} parent=35 // pred_check_branch
          %277 = sbr.rel (%p275) target = $region48
        $region47: #{tpu_custom_call.1} parent=35 // pred_region
          %278 = dma.done [#allocation7], 9216
        $region48: #{tpu_custom_call.1} parent=35 // pred_fallthru
          _
        %s279 = sand.u32 %s46, 1
        %s280 = scalar_lea.sflag [#allocation4], %s279
        %s281 = sand.u32 %s46, 1
        %s282 = smul.addr %s281, 192
        %s283 = scalar_lea.vmem [#allocation3], %s282
        %p284 = pneg %p59
        %p285 = pneg %p56
        %s286 = sand.u32 %s24, 1
        %s287 = scalar_lea.sflag [#allocation7], %s286
        %s288 = sand.u32 %s78, 1
        %s289 = smul.addr %s288, 24
        %s290 = scalar_lea.vmem [#allocation6], %s289
        %p291 = pneg %p91
        %p292 = pneg %p88
        %p293 = pneg %p112
        %p294 = pneg %p109
        %p295 = pneg %p133
        %p296 = pneg %p130
        %p297 = pneg %p161
        %p298 = pneg %p158
        %s299 = sand.u32 %s148, 1
        %s300 = scalar_lea.sflag [#allocation5], %s299
        %s301 = sand.u32 %s148, 1
        %s302 = smul.addr %s301, 384
        %s303 = scalar_lea.vmem [#allocation9], %s302
        %s304 = smul.u32 48, %s29
        %s305 = ssub.s32 54, %s304
        %p306 = scmp.lt.s32.totalorder %s305, 48
        %s307 = scalar_select %p306, %s305, 48
        %s308 = smul.u32 64, %s307
        %s309 = sadd.s32 %s29, 1
        %s310 = smul.u32 %s309, 8
        %s311 = smul.u32 6, %s310
        %s312 = smul.u32 48, %s29
        %v314 = vld [vmem:[%s3] sm:$0x1]
        %v315 = vld [vmem:[%s261] sm:$0xf]
        %v316 = vld [vmem:[%s261 + $0x4] sm:$0xf]
        %v317 = vld [vmem:[%s261 + $0x8] sm:$0xf]
        %v318 = vld [vmem:[%s261 + $0xc] sm:$0xf]
        %v319 = vld [vmem:[%s261 + $0x10] sm:$0xf]
        %v320 = vld [vmem:[%s261 + $0x14] sm:$0xf]
        %v321 = vld [vmem:[%s261 + $0x18] sm:$0xf]
        %v322 = vld [vmem:[%s261 + $0x1c] sm:$0xf]
        %v323 = vld [vmem:[%s261 + $0x20] sm:$0xf]
        %v324 = vld [vmem:[%s261 + $0x24] sm:$0xf]
        %v325 = vld [vmem:[%s261 + $0x28] sm:$0xf]
        %v326 = vld [vmem:[%s261 + $0x2c] sm:$0xf]
        %v327 = vld [vmem:[%s261 + $0x30] sm:$0xf]
        %v328 = vld [vmem:[%s261 + $0x34] sm:$0xf]
        %v329 = vld [vmem:[%s261 + $0x38] sm:$0xf]
        %v330 = vld [vmem:[%s261 + $0x3c] sm:$0xf]
        %331 = vst [vmem:[#allocation2] sm:$0xf] %v315
        %332 = vst [vmem:[#allocation2 + $0x4] sm:$0xf] %v316
        %333 = vst [vmem:[#allocation2 + $0x8] sm:$0xf] %v317
        %334 = vst [vmem:[#allocation2 + $0xc] sm:$0xf] %v318
        %335 = vst [vmem:[#allocation2 + $0x10] sm:$0xf] %v319
        %336 = vst [vmem:[#allocation2 + $0x14] sm:$0xf] %v320
        %337 = vst [vmem:[#allocation2 + $0x18] sm:$0xf] %v321
        %338 = vst [vmem:[#allocation2 + $0x1c] sm:$0xf] %v322
        %339 = vst [vmem:[#allocation2 + $0x20] sm:$0xf] %v323
        %340 = vst [vmem:[#allocation2 + $0x24] sm:$0xf] %v324
        %341 = vst [vmem:[#allocation2 + $0x28] sm:$0xf] %v325
        %342 = vst [vmem:[#allocation2 + $0x2c] sm:$0xf] %v326
        %343 = vst [vmem:[#allocation2 + $0x30] sm:$0xf] %v327
        %344 = vst [vmem:[#allocation2 + $0x34] sm:$0xf] %v328
        %345 = vst [vmem:[#allocation2 + $0x38] sm:$0xf] %v329
        %346 = vst [vmem:[#allocation2 + $0x3c] sm:$0xf] %v330
        %v347 = vld [vmem:[%s261 + $0x40] sm:$0xf]
        %v348 = vld [vmem:[%s261 + $0x44] sm:$0xf]
        %v349 = vld [vmem:[%s261 + $0x48] sm:$0xf]
        %v350 = vld [vmem:[%s261 + $0x4c] sm:$0xf]
        %v351 = vld [vmem:[%s261 + $0x50] sm:$0xf]
        %v352 = vld [vmem:[%s261 + $0x54] sm:$0xf]
        %v353 = vld [vmem:[%s261 + $0x58] sm:$0xf]
        %v354 = vld [vmem:[%s261 + $0x5c] sm:$0xf]
        %v355 = vld [vmem:[%s261 + $0x60] sm:$0xf]
        %v356 = vld [vmem:[%s261 + $0x64] sm:$0xf]
        %v357 = vld [vmem:[%s261 + $0x68] sm:$0xf]
        %v358 = vld [vmem:[%s261 + $0x6c] sm:$0xf]
        %v359 = vld [vmem:[%s261 + $0x70] sm:$0xf]
        %v360 = vld [vmem:[%s261 + $0x74] sm:$0xf]
        %v361 = vld [vmem:[%s261 + $0x78] sm:$0xf]
        %v362 = vld [vmem:[%s261 + $0x7c] sm:$0xf]
        %363 = vst [vmem:[#allocation2 + $0x40] sm:$0xf] %v347
        %364 = vst [vmem:[#allocation2 + $0x44] sm:$0xf] %v348
        %365 = vst [vmem:[#allocation2 + $0x48] sm:$0xf] %v349
        %366 = vst [vmem:[#allocation2 + $0x4c] sm:$0xf] %v350
        %367 = vst [vmem:[#allocation2 + $0x50] sm:$0xf] %v351
        %368 = vst [vmem:[#allocation2 + $0x54] sm:$0xf] %v352
        %369 = vst [vmem:[#allocation2 + $0x58] sm:$0xf] %v353
        %370 = vst [vmem:[#allocation2 + $0x5c] sm:$0xf] %v354
        %371 = vst [vmem:[#allocation2 + $0x60] sm:$0xf] %v355
        %372 = vst [vmem:[#allocation2 + $0x64] sm:$0xf] %v356
        %373 = vst [vmem:[#allocation2 + $0x68] sm:$0xf] %v357
        %374 = vst [vmem:[#allocation2 + $0x6c] sm:$0xf] %v358
        %375 = vst [vmem:[#allocation2 + $0x70] sm:$0xf] %v359
        %376 = vst [vmem:[#allocation2 + $0x74] sm:$0xf] %v360
        %377 = vst [vmem:[#allocation2 + $0x78] sm:$0xf] %v361
        %378 = vst [vmem:[#allocation2 + $0x7c] sm:$0xf] %v362
        %v379 = vld [vmem:[%s261 + $0x80] sm:$0xf]
        %v380 = vld [vmem:[%s261 + $0x84] sm:$0xf]
        %v381 = vld [vmem:[%s261 + $0x88] sm:$0xf]
        %v382 = vld [vmem:[%s261 + $0x8c] sm:$0xf]
        %v383 = vld [vmem:[%s261 + $0x90] sm:$0xf]
        %v384 = vld [vmem:[%s261 + $0x94] sm:$0xf]
        %v385 = vld [vmem:[%s261 + $0x98] sm:$0xf]
        %v386 = vld [vmem:[%s261 + $0x9c] sm:$0xf]
        %v387 = vld [vmem:[%s261 + $0xa0] sm:$0xf]
        %v388 = vld [vmem:[%s261 + $0xa4] sm:$0xf]
        %v389 = vld [vmem:[%s261 + $0xa8] sm:$0xf]
        %v390 = vld [vmem:[%s261 + $0xac] sm:$0xf]
        %v391 = vld [vmem:[%s261 + $0xb0] sm:$0xf]
        %v392 = vld [vmem:[%s261 + $0xb4] sm:$0xf]
        %v393 = vld [vmem:[%s261 + $0xb8] sm:$0xf]
        %v394 = vld [vmem:[%s261 + $0xbc] sm:$0xf]
        %395 = vst [vmem:[#allocation2 + $0x80] sm:$0xf] %v379
        %396 = vst [vmem:[#allocation2 + $0x84] sm:$0xf] %v380
        %397 = vst [vmem:[#allocation2 + $0x88] sm:$0xf] %v381
        %398 = vst [vmem:[#allocation2 + $0x8c] sm:$0xf] %v382
        %399 = vst [vmem:[#allocation2 + $0x90] sm:$0xf] %v383
        %400 = vst [vmem:[#allocation2 + $0x94] sm:$0xf] %v384
        %401 = vst [vmem:[#allocation2 + $0x98] sm:$0xf] %v385
        %402 = vst [vmem:[#allocation2 + $0x9c] sm:$0xf] %v386
        %403 = vst [vmem:[#allocation2 + $0xa0] sm:$0xf] %v387
        %404 = vst [vmem:[#allocation2 + $0xa4] sm:$0xf] %v388
        %405 = vst [vmem:[#allocation2 + $0xa8] sm:$0xf] %v389
        %406 = vst [vmem:[#allocation2 + $0xac] sm:$0xf] %v390
        %407 = vst [vmem:[#allocation2 + $0xb0] sm:$0xf] %v391
        %408 = vst [vmem:[#allocation2 + $0xb4] sm:$0xf] %v392
        %409 = vst [vmem:[#allocation2 + $0xb8] sm:$0xf] %v393
        %410 = vst [vmem:[#allocation2 + $0xbc] sm:$0xf] %v394
        %v411 = vld [vmem:[%s270] sm:$0xf]
        %v412 = vld [vmem:[%s270 + $0x4] sm:$0xf]
        %v413 = vld [vmem:[%s270 + $0x8] sm:$0xf]
        %v414 = vld [vmem:[%s270 + $0xc] sm:$0xf]
        %v415 = vld [vmem:[%s270 + $0x10] sm:$0xf]
        %v416 = vld [vmem:[%s270 + $0x14] sm:$0xf]
        %417 = vst [vmem:[#allocation2 + $0xc0] sm:$0xf] %v411
        %418 = vst [vmem:[#allocation2 + $0xc4] sm:$0xf] %v412
        %419 = vst [vmem:[#allocation2 + $0xc8] sm:$0xf] %v413
        %420 = vst [vmem:[#allocation2 + $0xcc] sm:$0xf] %v414
        %421 = vst [vmem:[#allocation2 + $0xd0] sm:$0xf] %v415
        %422 = vst [vmem:[#allocation2 + $0xd4] sm:$0xf] %v416
        %423 = vst [vmem:[#allocation2 + $0xd8] sm:$0xf] 0
        %v425 = vlaneseq
        %v426 = vshrl.u32 %v425, 7
        %v427 = vsub.s32 0, %v426
        %v428 = vrot.slane %v314, %v427
        %v430 = vld [vmem:[#allocation2] sm:$0xf]
        %v431 = vld [vmem:[#allocation2 + $0x4] sm:$0xf]
        %v432 = vld [vmem:[#allocation2 + $0x8] sm:$0xf]
        %v433 = vld [vmem:[#allocation2 + $0xc] sm:$0xf]
        %v434 = vld [vmem:[#allocation2 + $0x10] sm:$0xf]
        %v435 = vld [vmem:[#allocation2 + $0x14] sm:$0xf]
        %v436 = vld [vmem:[#allocation2 + $0x18] sm:$0xf]
        %v437 = vld [vmem:[#allocation2 + $0x1c] sm:$0xf]
        %v438 = vld [vmem:[#allocation2 + $0x20] sm:$0xf]
        %v439 = vld [vmem:[#allocation2 + $0x24] sm:$0xf]
        %v440 = vld [vmem:[#allocation2 + $0x28] sm:$0xf]
        %v441 = vld [vmem:[#allocation2 + $0x2c] sm:$0xf]
        %v442 = vld [vmem:[#allocation2 + $0x30] sm:$0xf]
        %v443 = vld [vmem:[#allocation2 + $0x34] sm:$0xf]
        %v444 = vld [vmem:[#allocation2 + $0x38] sm:$0xf]
        %v445 = vld [vmem:[#allocation2 + $0x3c] sm:$0xf]
        %v446 = vld [vmem:[#allocation8] sm:$0xf]
        %v447 = vld [vmem:[#allocation8 + $0x4] sm:$0xf]
        %v448 = vld [vmem:[#allocation8 + $0x8] sm:$0xf]
        %v449 = vld [vmem:[#allocation8 + $0xc] sm:$0xf]
        %v450 = vld [vmem:[#allocation8 + $0x10] sm:$0xf]
        %v451 = vld [vmem:[#allocation8 + $0x14] sm:$0xf]
        %v452 = vld [vmem:[#allocation8 + $0x18] sm:$0xf]
        %v453 = vld [vmem:[#allocation8 + $0x1c] sm:$0xf]
        %v454 = vld [vmem:[#allocation8 + $0x20] sm:$0xf]
        %v455 = vld [vmem:[#allocation8 + $0x24] sm:$0xf]
        %v456 = vld [vmem:[#allocation8 + $0x28] sm:$0xf]
        %v457 = vld [vmem:[#allocation8 + $0x2c] sm:$0xf]
        %v458 = vld [vmem:[#allocation8 + $0x30] sm:$0xf]
        %v459 = vld [vmem:[#allocation8 + $0x34] sm:$0xf]
        %v460 = vld [vmem:[#allocation8 + $0x38] sm:$0xf]
        %v461 = vld [vmem:[#allocation8 + $0x3c] sm:$0xf]
        %v478 = vunpack.c.l.b16 %v430
        %v479 = vunpack.c.l.b16 %v431
        %v480 = vunpack.c.l.b16 %v432
        %v481 = vunpack.c.l.b16 %v433
        %v482 = vunpack.c.l.b16 %v434
        %v483 = vunpack.c.l.b16 %v435
        %v484 = vunpack.c.l.b16 %v436
        %v485 = vunpack.c.l.b16 %v437
        %v486 = vunpack.c.l.b16 %v438
        %v487 = vunpack.c.l.b16 %v439
        %v488 = vunpack.c.l.b16 %v440
        %v489 = vunpack.c.l.b16 %v441
        %v490 = vunpack.c.l.b16 %v442
        %v491 = vunpack.c.l.b16 %v443
        %v492 = vunpack.c.l.b16 %v444
        %v493 = vunpack.c.l.b16 %v445
        %v494 = vpack.c.b16 %v479, %v478
        %v495 = vpack.c.b16 %v481, %v480
        %v496 = vpack.c.b16 %v483, %v482
        %v497 = vpack.c.b16 %v485, %v484
        %v498 = vpack.c.b16 %v487, %v486
        %v499 = vpack.c.b16 %v489, %v488
        %v500 = vpack.c.b16 %v491, %v490
        %v501 = vpack.c.b16 %v493, %v492
        %v526 = vunpack.c.l.b16 %v446
        %v527 = vunpack.c.l.b16 %v447
        %v528 = vunpack.c.l.b16 %v448
        %v529 = vunpack.c.l.b16 %v449
        %v530 = vunpack.c.l.b16 %v450
        %v531 = vunpack.c.l.b16 %v451
        %v532 = vunpack.c.l.b16 %v452
        %v533 = vunpack.c.l.b16 %v453
        %v534 = vunpack.c.l.b16 %v454
        %v535 = vunpack.c.l.b16 %v455
        %v536 = vunpack.c.l.b16 %v456
        %v537 = vunpack.c.l.b16 %v457
        %v538 = vunpack.c.l.b16 %v458
        %v539 = vunpack.c.l.b16 %v459
        %v540 = vunpack.c.l.b16 %v460
        %v541 = vunpack.c.l.b16 %v461
        %v542 = vpack.c.b16 %v527, %v526
        %v543 = vpack.c.b16 %v529, %v528
        %v544 = vpack.c.b16 %v531, %v530
        %v545 = vpack.c.b16 %v533, %v532
        %v546 = vpack.c.b16 %v535, %v534
        %v547 = vpack.c.b16 %v537, %v536
        %v548 = vpack.c.b16 %v539, %v538
        %v549 = vpack.c.b16 %v541, %v540
        %558 = vmatprep.subr.bf16.mxu0 0
        %559 = vmatpush1.bf16.msra.mxu0 %v549
        %560 = vmatprep.subr.bf16.mxu0 0
        %561 = vmatpush1.bf16.msra.mxu0 %v548
        %562 = vmatprep.subr.bf16.mxu0 0
        %563 = vmatpush1.bf16.msra.mxu0 %v547
        %564 = vmatprep.subr.bf16.mxu0 0
        %565 = vmatpush1.bf16.msra.mxu0 %v546
        %566 = vmatprep.subr.bf16.mxu0 0
        %567 = vmatpush1.bf16.msra.mxu0 %v545
        %568 = vmatprep.subr.bf16.mxu0 0
        %569 = vmatpush1.bf16.msra.mxu0 %v544
        %570 = vmatprep.subr.bf16.mxu0 0
        %571 = vmatpush1.bf16.msra.mxu0 %v543
        %572 = vmatprep.subr.bf16.mxu0 0
        %573 = vmatpush1.bf16.msra.mxu0 %v542
        %574 = vmatprep.subr.bf16.mxu0 0
        %575 = vmatpush2.bf16.msra.mxu0 0
        %576 = vmatprep.subr.bf16.mxu0 0
        %577 = vmatpush2.bf16.msra.mxu0 0
        %578 = vmatprep.subr.bf16.mxu0 0
        %579 = vmatpush2.bf16.msra.mxu0 0
        %580 = vmatprep.subr.bf16.mxu0 0
        %581 = vmatpush2.bf16.msra.mxu0 0
        %582 = vmatprep.subr.bf16.mxu0 0
        %583 = vmatpush2.bf16.msra.mxu0 0
        %584 = vmatprep.subr.bf16.mxu0 0
        %585 = vmatpush2.bf16.msra.mxu0 0
        %586 = vmatprep.subr.bf16.mxu0 0
        %587 = vmatpush2.bf16.msra.mxu0 0
        %588 = vmatprep.subr.bf16.mxu0 0
        %589 = vmatpush2.bf16.msra.mxu0 0
        %590 = vmatprep.mubr.bf16.mxu0 0
        %591 = vmatmul.mubr.bf16.gmra.mxu0 %v494
        %v592 = vpop.f32.mrf.mxu0
        %v593 = vadd.f32 0.0, %v592
        %v594 = vpop.f32.mrf.mxu0
        %v595 = vpop.f32.mrf.mxu0
        %v596 = vadd.f32 0.0, %v595
        %v597 = vpop.f32.mrf.mxu0
        %598 = vmatprep.mubr.bf16.mxu0 0
        %599 = vmatmul.mubr.bf16.gmra.mxu0 %v495
        %v600 = vpop.f32.mrf.mxu0
        %v601 = vadd.f32 0.0, %v600
        %v602 = vpop.f32.mrf.mxu0
        %v603 = vpop.f32.mrf.mxu0
        %v604 = vadd.f32 0.0, %v603
        %v605 = vpop.f32.mrf.mxu0
        %606 = vmatprep.mubr.bf16.mxu0 0
        %607 = vmatmul.mubr.bf16.gmra.mxu0 %v496
        %v608 = vpop.f32.mrf.mxu0
        %v609 = vadd.f32 0.0, %v608
        %v610 = vpop.f32.mrf.mxu0
        %v611 = vpop.f32.mrf.mxu0
        %v612 = vadd.f32 0.0, %v611
        %v613 = vpop.f32.mrf.mxu0
        %614 = vmatprep.mubr.bf16.mxu0 0
        %615 = vmatmul.mubr.bf16.gmra.mxu0 %v497
        %v616 = vpop.f32.mrf.mxu0
        %v617 = vadd.f32 0.0, %v616
        %v618 = vpop.f32.mrf.mxu0
        %v619 = vpop.f32.mrf.mxu0
        %v620 = vadd.f32 0.0, %v619
        %v621 = vpop.f32.mrf.mxu0
        %622 = vmatprep.mubr.bf16.mxu0 0
        %623 = vmatmul.mubr.bf16.gmra.mxu0 %v498
        %v624 = vpop.f32.mrf.mxu0
        %v625 = vadd.f32 0.0, %v624
        %v626 = vpop.f32.mrf.mxu0
        %v627 = vpop.f32.mrf.mxu0
        %v628 = vadd.f32 0.0, %v627
        %v629 = vpop.f32.mrf.mxu0
        %630 = vmatprep.mubr.bf16.mxu0 0
        %631 = vmatmul.mubr.bf16.gmra.mxu0 %v499
        %v632 = vpop.f32.mrf.mxu0
        %v633 = vadd.f32 0.0, %v632
        %v634 = vpop.f32.mrf.mxu0
        %v635 = vpop.f32.mrf.mxu0
        %v636 = vadd.f32 0.0, %v635
        %v637 = vpop.f32.mrf.mxu0
        %638 = vmatprep.mubr.bf16.mxu0 0
        %639 = vmatmul.mubr.bf16.gmra.mxu0 %v500
        %v640 = vpop.f32.mrf.mxu0
        %v641 = vadd.f32 0.0, %v640
        %v642 = vpop.f32.mrf.mxu0
        %v643 = vpop.f32.mrf.mxu0
        %v644 = vadd.f32 0.0, %v643
        %v645 = vpop.f32.mrf.mxu0
        %646 = vmatprep.mubr.bf16.mxu0 0
        %647 = vmatmul.mubr.bf16.gmra.mxu0 %v501
        %v648 = vpop.f32.mrf.mxu0
        %v649 = vadd.f32 0.0, %v648
        %v650 = vpop.f32.mrf.mxu0
        %v651 = vpop.f32.mrf.mxu0
        %v652 = vadd.f32 0.0, %v651
        %v653 = vpop.f32.mrf.mxu0
        %654 = vdwg.mxu0
        %v655 = vadd.f32 %v428, %v593
        %v656 = vadd.f32 %v428, %v596
        %v657 = vadd.f32 %v428, %v601
        %v658 = vadd.f32 %v428, %v604
        %v659 = vadd.f32 %v428, %v609
        %v660 = vadd.f32 %v428, %v612
        %v661 = vadd.f32 %v428, %v617
        %v662 = vadd.f32 %v428, %v620
        %v663 = vadd.f32 %v428, %v625
        %v664 = vadd.f32 %v428, %v628
        %v665 = vadd.f32 %v428, %v633
        %v666 = vadd.f32 %v428, %v636
        %v667 = vadd.f32 %v428, %v641
        %v668 = vadd.f32 %v428, %v644
        %v669 = vadd.f32 %v428, %v649
        %v670 = vadd.f32 %v428, %v652
        %v671 = vld [vmem:[#allocation2] sm:$0xf]
        %v672 = vld [vmem:[#allocation2 + $0x4] sm:$0xf]
        %v673 = vld [vmem:[#allocation2 + $0x8] sm:$0xf]
        %v674 = vld [vmem:[#allocation2 + $0xc] sm:$0xf]
        %v675 = vld [vmem:[#allocation2 + $0x10] sm:$0xf]
        %v676 = vld [vmem:[#allocation2 + $0x14] sm:$0xf]
        %v677 = vld [vmem:[#allocation2 + $0x18] sm:$0xf]
        %v678 = vld [vmem:[#allocation2 + $0x1c] sm:$0xf]
        %v679 = vld [vmem:[#allocation2 + $0x20] sm:$0xf]
        %v680 = vld [vmem:[#allocation2 + $0x24] sm:$0xf]
        %v681 = vld [vmem:[#allocation2 + $0x28] sm:$0xf]
        %v682 = vld [vmem:[#allocation2 + $0x2c] sm:$0xf]
        %v683 = vld [vmem:[#allocation2 + $0x30] sm:$0xf]
        %v684 = vld [vmem:[#allocation2 + $0x34] sm:$0xf]
        %v685 = vld [vmem:[#allocation2 + $0x38] sm:$0xf]
        %v686 = vld [vmem:[#allocation2 + $0x3c] sm:$0xf]
        %v687 = vld [vmem:[#allocation2 + $0x40] sm:$0x1]
        %s688 = scalar_lea.vmem [#allocation8], 64
        %v689 = vld [vmem:[%s688] sm:$0xf]
        %v690 = vld [vmem:[%s688 + $0x4] sm:$0xf]
        %v691 = vld [vmem:[%s688 + $0x8] sm:$0xf]
        %v692 = vld [vmem:[%s688 + $0xc] sm:$0xf]
        %v693 = vld [vmem:[%s688 + $0x10] sm:$0xf]
        %v694 = vld [vmem:[%s688 + $0x14] sm:$0xf]
        %v695 = vld [vmem:[%s688 + $0x18] sm:$0xf]
        %v696 = vld [vmem:[%s688 + $0x1c] sm:$0xf]
        %v697 = vld [vmem:[%s688 + $0x20] sm:$0xf]
        %v698 = vld [vmem:[%s688 + $0x24] sm:$0xf]
        %v699 = vld [vmem:[%s688 + $0x28] sm:$0xf]
        %v700 = vld [vmem:[%s688 + $0x2c] sm:$0xf]
        %v701 = vld [vmem:[%s688 + $0x30] sm:$0xf]
        %v702 = vld [vmem:[%s688 + $0x34] sm:$0xf]
        %v703 = vld [vmem:[%s688 + $0x38] sm:$0xf]
        %v704 = vld [vmem:[%s688 + $0x3c] sm:$0xf]
        %v722 = vunpack.c.l.b16 %v671
        %v723 = vunpack.c.l.b16 %v672
        %v724 = vunpack.c.l.b16 %v673
        %v725 = vunpack.c.l.b16 %v674
        %v726 = vunpack.c.l.b16 %v675
        %v727 = vunpack.c.l.b16 %v676
        %v728 = vunpack.c.l.b16 %v677
        %v729 = vunpack.c.l.b16 %v678
        %v730 = vunpack.c.l.b16 %v679
        %v731 = vunpack.c.l.b16 %v680
        %v732 = vunpack.c.l.b16 %v681
        %v733 = vunpack.c.l.b16 %v682
        %v734 = vunpack.c.l.b16 %v683
        %v735 = vunpack.c.l.b16 %v684
        %v736 = vunpack.c.l.b16 %v685
        %v737 = vunpack.c.l.b16 %v686
        %v738 = vunpack.c.l.b16 %v687
        %v739 = vpack.c.b16 %v723, %v722
        %v740 = vpack.c.b16 %v725, %v724
        %v741 = vpack.c.b16 %v727, %v726
        %v742 = vpack.c.b16 %v729, %v728
        %v743 = vpack.c.b16 %v731, %v730
        %v744 = vpack.c.b16 %v733, %v732
        %v745 = vpack.c.b16 %v735, %v734
        %v746 = vpack.c.b16 %v737, %v736
        %v747 = vpack.c.b16 %v738, %v738
        %vm748 = vsmask.f32 7424
        %v750 = vshrl.u32 %v739, 16
        %v752 = vshll.u32 %v739, 16
        %v754 = vrot.slane %v752, 1
        %v755 = vor.u32 %v750, %v754
        %v757 = vshll.u32 %v740, 16
        %v759 = vrot.slane %v757, 1
        %v760 = vsel %vm748, %v755, %v759
        %v761 = vshrl.u32 %v740, 16
        %v763 = vor.u32 %v761, %v759
        %v765 = vshll.u32 %v741, 16
        %v767 = vrot.slane %v765, 1
        %v768 = vsel %vm748, %v763, %v767
        %v769 = vshrl.u32 %v741, 16
        %v771 = vor.u32 %v769, %v767
        %v773 = vshll.u32 %v742, 16
        %v775 = vrot.slane %v773, 1
        %v776 = vsel %vm748, %v771, %v775
        %v777 = vshrl.u32 %v742, 16
        %v779 = vor.u32 %v777, %v775
        %v781 = vshll.u32 %v743, 16
        %v783 = vrot.slane %v781, 1
        %v784 = vsel %vm748, %v779, %v783
        %v785 = vshrl.u32 %v743, 16
        %v787 = vor.u32 %v785, %v783
        %v789 = vshll.u32 %v744, 16
        %v791 = vrot.slane %v789, 1
        %v792 = vsel %vm748, %v787, %v791
        %v793 = vshrl.u32 %v744, 16
        %v795 = vor.u32 %v793, %v791
        %v797 = vshll.u32 %v745, 16
        %v799 = vrot.slane %v797, 1
        %v800 = vsel %vm748, %v795, %v799
        %v801 = vshrl.u32 %v745, 16
        %v803 = vor.u32 %v801, %v799
        %v805 = vshll.u32 %v746, 16
        %v807 = vrot.slane %v805, 1
        %v808 = vsel %vm748, %v803, %v807
        %v809 = vshrl.u32 %v746, 16
        %v811 = vor.u32 %v809, %v807
        %v813 = vshll.u32 %v747, 16
        %v815 = vrot.slane %v813, 1
        %v816 = vsel %vm748, %v811, %v815
        %v841 = vunpack.c.l.b16 %v689
        %v842 = vunpack.c.l.b16 %v690
        %v843 = vunpack.c.l.b16 %v691
        %v844 = vunpack.c.l.b16 %v692
        %v845 = vunpack.c.l.b16 %v693
        %v846 = vunpack.c.l.b16 %v694
        %v847 = vunpack.c.l.b16 %v695
        %v848 = vunpack.c.l.b16 %v696
        %v849 = vunpack.c.l.b16 %v697
        %v850 = vunpack.c.l.b16 %v698
        %v851 = vunpack.c.l.b16 %v699
        %v852 = vunpack.c.l.b16 %v700
        %v853 = vunpack.c.l.b16 %v701
        %v854 = vunpack.c.l.b16 %v702
        %v855 = vunpack.c.l.b16 %v703
        %v856 = vunpack.c.l.b16 %v704
        %v857 = vpack.c.b16 %v842, %v841
        %v858 = vpack.c.b16 %v844, %v843
        %v859 = vpack.c.b16 %v846, %v845
        %v860 = vpack.c.b16 %v848, %v847
        %v861 = vpack.c.b16 %v850, %v849
        %v862 = vpack.c.b16 %v852, %v851
        %v863 = vpack.c.b16 %v854, %v853
        %v864 = vpack.c.b16 %v856, %v855
        %873 = vmatprep.subr.bf16.mxu0 0
        %874 = vmatpush1.bf16.msra.mxu0 %v864
        %875 = vmatprep.subr.bf16.mxu0 0
        %876 = vmatpush1.bf16.msra.mxu0 %v863
        %877 = vmatprep.subr.bf16.mxu0 0
        %878 = vmatpush1.bf16.msra.mxu0 %v862
        %879 = vmatprep.subr.bf16.mxu0 0
        %880 = vmatpush1.bf16.msra.mxu0 %v861
        %881 = vmatprep.subr.bf16.mxu0 0
        %882 = vmatpush1.bf16.msra.mxu0 %v860
        %883 = vmatprep.subr.bf16.mxu0 0
        %884 = vmatpush1.bf16.msra.mxu0 %v859
        %885 = vmatprep.subr.bf16.mxu0 0
        %886 = vmatpush1.bf16.msra.mxu0 %v858
        %887 = vmatprep.subr.bf16.mxu0 0
        %888 = vmatpush1.bf16.msra.mxu0 %v857
        %889 = vmatprep.subr.bf16.mxu0 0
        %890 = vmatpush2.bf16.msra.mxu0 0
        %891 = vmatprep.subr.bf16.mxu0 0
        %892 = vmatpush2.bf16.msra.mxu0 0
        %893 = vmatprep.subr.bf16.mxu0 0
        %894 = vmatpush2.bf16.msra.mxu0 0
        %895 = vmatprep.subr.bf16.mxu0 0
        %896 = vmatpush2.bf16.msra.mxu0 0
        %897 = vmatprep.subr.bf16.mxu0 0
        %898 = vmatpush2.bf16.msra.mxu0 0
        %899 = vmatprep.subr.bf16.mxu0 0
        %900 = vmatpush2.bf16.msra.mxu0 0
        %901 = vmatprep.subr.bf16.mxu0 0
        %902 = vmatpush2.bf16.msra.mxu0 0
        %903 = vmatprep.subr.bf16.mxu0 0
        %904 = vmatpush2.bf16.msra.mxu0 0
        %905 = vmatprep.mubr.bf16.mxu0 0
        %906 = vmatmul.mubr.bf16.gmra.mxu0 %v760
        %v907 = vpop.f32.mrf.mxu0
        %v908 = vadd.f32 0.0, %v907
        %v909 = vpop.f32.mrf.mxu0
        %v910 = vpop.f32.mrf.mxu0
        %v911 = vadd.f32 0.0, %v910
        %v912 = vpop.f32.mrf.mxu0
        %913 = vmatprep.mubr.bf16.mxu0 0
        %914 = vmatmul.mubr.bf16.gmra.mxu0 %v768
        %v915 = vpop.f32.mrf.mxu0
        %v916 = vadd.f32 0.0, %v915
        %v917 = vpop.f32.mrf.mxu0
        %v918 = vpop.f32.mrf.mxu0
        %v919 = vadd.f32 0.0, %v918
        %v920 = vpop.f32.mrf.mxu0
        %921 = vmatprep.mubr.bf16.mxu0 0
        %922 = vmatmul.mubr.bf16.gmra.mxu0 %v776
        %v923 = vpop.f32.mrf.mxu0
        %v924 = vadd.f32 0.0, %v923
        %v925 = vpop.f32.mrf.mxu0
        %v926 = vpop.f32.mrf.mxu0
        %v927 = vadd.f32 0.0, %v926
        %v928 = vpop.f32.mrf.mxu0
        %929 = vmatprep.mubr.bf16.mxu0 0
        %930 = vmatmul.mubr.bf16.gmra.mxu0 %v784
        %v931 = vpop.f32.mrf.mxu0
        %v932 = vadd.f32 0.0, %v931
        %v933 = vpop.f32.mrf.mxu0
        %v934 = vpop.f32.mrf.mxu0
        %v935 = vadd.f32 0.0, %v934
        %v936 = vpop.f32.mrf.mxu0
        %937 = vmatprep.mubr.bf16.mxu0 0
        %938 = vmatmul.mubr.bf16.gmra.mxu0 %v792
        %v939 = vpop.f32.mrf.mxu0
        %v940 = vadd.f32 0.0, %v939
        %v941 = vpop.f32.mrf.mxu0
        %v942 = vpop.f32.mrf.mxu0
        %v943 = vadd.f32 0.0, %v942
        %v944 = vpop.f32.mrf.mxu0
        %945 = vmatprep.mubr.bf16.mxu0 0
        %946 = vmatmul.mubr.bf16.gmra.mxu0 %v800
        %v947 = vpop.f32.mrf.mxu0
        %v948 = vadd.f32 0.0, %v947
        %v949 = vpop.f32.mrf.mxu0
        %v950 = vpop.f32.mrf.mxu0
        %v951 = vadd.f32 0.0, %v950
        %v952 = vpop.f32.mrf.mxu0
        %953 = vmatprep.mubr.bf16.mxu0 0
        %954 = vmatmul.mubr.bf16.gmra.mxu0 %v808
        %v955 = vpop.f32.mrf.mxu0
        %v956 = vadd.f32 0.0, %v955
        %v957 = vpop.f32.mrf.mxu0
        %v958 = vpop.f32.mrf.mxu0
        %v959 = vadd.f32 0.0, %v958
        %v960 = vpop.f32.mrf.mxu0
        %961 = vmatprep.mubr.bf16.mxu0 0
        %962 = vmatmul.mubr.bf16.gmra.mxu0 %v816
        %v963 = vpop.f32.mrf.mxu0
        %v964 = vadd.f32 0.0, %v963
        %v965 = vpop.f32.mrf.mxu0
        %v966 = vpop.f32.mrf.mxu0
        %v967 = vadd.f32 0.0, %v966
        %v968 = vpop.f32.mrf.mxu0
        %969 = vdwg.mxu0
        %v970 = vadd.f32 %v655, %v908
        %v971 = vadd.f32 %v656, %v911
        %v972 = vadd.f32 %v657, %v916
        %v973 = vadd.f32 %v658, %v919
        %v974 = vadd.f32 %v659, %v924
        %v975 = vadd.f32 %v660, %v927
        %v976 = vadd.f32 %v661, %v932
        %v977 = vadd.f32 %v662, %v935
        %v978 = vadd.f32 %v663, %v940
        %v979 = vadd.f32 %v664, %v943
        %v980 = vadd.f32 %v665, %v948
        %v981 = vadd.f32 %v666, %v951
        %v982 = vadd.f32 %v667, %v956
        %v983 = vadd.f32 %v668, %v959
        %v984 = vadd.f32 %v669, %v964
        %v985 = vadd.f32 %v670, %v967
        %v986 = vld [vmem:[#allocation2] sm:$0xe]
        %s987 = scalar_lea.vmem [#allocation8], 128
        %v988 = vld [vmem:[%s987] sm:$0xf]
        %v989 = vld [vmem:[%s987 + $0x4] sm:$0xf]
        %v990 = vld [vmem:[%s987 + $0x8] sm:$0xf]
        %v991 = vld [vmem:[%s987 + $0xc] sm:$0xf]
        %v992 = vld [vmem:[%s987 + $0x10] sm:$0xf]
        %v993 = vld [vmem:[%s987 + $0x14] sm:$0xf]
        %v994 = vld [vmem:[%s987 + $0x18] sm:$0xf]
        %v995 = vld [vmem:[%s987 + $0x1c] sm:$0xf]
        %v996 = vld [vmem:[%s987 + $0x20] sm:$0xf]
        %v997 = vld [vmem:[%s987 + $0x24] sm:$0xf]
        %v998 = vld [vmem:[%s987 + $0x28] sm:$0xf]
        %v999 = vld [vmem:[%s987 + $0x2c] sm:$0xf]
        %v1000 = vld [vmem:[%s987 + $0x30] sm:$0xf]
        %v1001 = vld [vmem:[%s987 + $0x34] sm:$0xf]
        %v1002 = vld [vmem:[%s987 + $0x38] sm:$0xf]
        %v1003 = vld [vmem:[%s987 + $0x3c] sm:$0xf]
        %v1005 = vunpack.c.l.b16 %v986
        %v1006 = vpack.c.b16 %v723, %v1005
        %vm1007 = vcmask 1046528
        %v1008 = vrot.slane %v1006, 1
        %v1009 = vrot.slane %v740, 1
        %v1010 = vsel %vm1007, %v1008, %v1009
        %v1011 = vrot.slane %v741, 1
        %v1012 = vsel %vm1007, %v1009, %v1011
        %v1013 = vrot.slane %v742, 1
        %v1014 = vsel %vm1007, %v1011, %v1013
        %v1015 = vrot.slane %v743, 1
        %v1016 = vsel %vm1007, %v1013, %v1015
        %v1017 = vrot.slane %v744, 1
        %v1018 = vsel %vm1007, %v1015, %v1017
        %v1019 = vrot.slane %v745, 1
        %v1020 = vsel %vm1007, %v1017, %v1019
        %v1021 = vrot.slane %v746, 1
        %v1022 = vsel %vm1007, %v1019, %v1021
        %v1023 = vrot.slane %v747, 1
        %v1024 = vsel %vm1007, %v1021, %v1023
        %v1049 = vunpack.c.l.b16 %v988
        %v1050 = vunpack.c.l.b16 %v989
        %v1051 = vunpack.c.l.b16 %v990
        %v1052 = vunpack.c.l.b16 %v991
        %v1053 = vunpack.c.l.b16 %v992
        %v1054 = vunpack.c.l.b16 %v993
        %v1055 = vunpack.c.l.b16 %v994
        %v1056 = vunpack.c.l.b16 %v995
        %v1057 = vunpack.c.l.b16 %v996
        %v1058 = vunpack.c.l.b16 %v997
        %v1059 = vunpack.c.l.b16 %v998
        %v1060 = vunpack.c.l.b16 %v999
        %v1061 = vunpack.c.l.b16 %v1000
        %v1062 = vunpack.c.l.b16 %v1001
        %v1063 = vunpack.c.l.b16 %v1002
        %v1064 = vunpack.c.l.b16 %v1003
        %v1065 = vpack.c.b16 %v1050, %v1049
        %v1066 = vpack.c.b16 %v1052, %v1051
        %v1067 = vpack.c.b16 %v1054, %v1053
        %v1068 = vpack.c.b16 %v1056, %v1055
        %v1069 = vpack.c.b16 %v1058, %v1057
        %v1070 = vpack.c.b16 %v1060, %v1059
        %v1071 = vpack.c.b16 %v1062, %v1061
        %v1072 = vpack.c.b16 %v1064, %v1063
        %1081 = vmatprep.subr.bf16.mxu0 0
        %1082 = vmatpush1.bf16.msra.mxu0 %v1072
        %1083 = vmatprep.subr.bf16.mxu0 0
        %1084 = vmatpush1.bf16.msra.mxu0 %v1071
        %1085 = vmatprep.subr.bf16.mxu0 0
        %1086 = vmatpush1.bf16.msra.mxu0 %v1070
        %1087 = vmatprep.subr.bf16.mxu0 0
        %1088 = vmatpush1.bf16.msra.mxu0 %v1069
        %1089 = vmatprep.subr.bf16.mxu0 0
        %1090 = vmatpush1.bf16.msra.mxu0 %v1068
        %1091 = vmatprep.subr.bf16.mxu0 0
        %1092 = vmatpush1.bf16.msra.mxu0 %v1067
        %1093 = vmatprep.subr.bf16.mxu0 0
        %1094 = vmatpush1.bf16.msra.mxu0 %v1066
        %1095 = vmatprep.subr.bf16.mxu0 0
        %1096 = vmatpush1.bf16.msra.mxu0 %v1065
        %1097 = vmatprep.subr.bf16.mxu0 0
        %1098 = vmatpush2.bf16.msra.mxu0 0
        %1099 = vmatprep.subr.bf16.mxu0 0
        %1100 = vmatpush2.bf16.msra.mxu0 0
        %1101 = vmatprep.subr.bf16.mxu0 0
        %1102 = vmatpush2.bf16.msra.mxu0 0
        %1103 = vmatprep.subr.bf16.mxu0 0
        %1104 = vmatpush2.bf16.msra.mxu0 0
        %1105 = vmatprep.subr.bf16.mxu0 0
        %1106 = vmatpush2.bf16.msra.mxu0 0
        %1107 = vmatprep.subr.bf16.mxu0 0
        %1108 = vmatpush2.bf16.msra.mxu0 0
        %1109 = vmatprep.subr.bf16.mxu0 0
        %1110 = vmatpush2.bf16.msra.mxu0 0
        %1111 = vmatprep.subr.bf16.mxu0 0
        %1112 = vmatpush2.bf16.msra.mxu0 0
        %1113 = vmatprep.mubr.bf16.mxu0 0
        %1114 = vmatmul.mubr.bf16.gmra.mxu0 %v1010
        %v1115 = vpop.f32.mrf.mxu0
        %v1116 = vadd.f32 0.0, %v1115
        %v1117 = vpop.f32.mrf.mxu0
        %v1118 = vpop.f32.mrf.mxu0
        %v1119 = vadd.f32 0.0, %v1118
        %v1120 = vpop.f32.mrf.mxu0
        %1121 = vmatprep.mubr.bf16.mxu0 0
        %1122 = vmatmul.mubr.bf16.gmra.mxu0 %v1012
        %v1123 = vpop.f32.mrf.mxu0
        %v1124 = vadd.f32 0.0, %v1123
        %v1125 = vpop.f32.mrf.mxu0
        %v1126 = vpop.f32.mrf.mxu0
        %v1127 = vadd.f32 0.0, %v1126
        %v1128 = vpop.f32.mrf.mxu0
        %1129 = vmatprep.mubr.bf16.mxu0 0
        %1130 = vmatmul.mubr.bf16.gmra.mxu0 %v1014
        %v1131 = vpop.f32.mrf.mxu0
        %v1132 = vadd.f32 0.0, %v1131
        %v1133 = vpop.f32.mrf.mxu0
        %v1134 = vpop.f32.mrf.mxu0
        %v1135 = vadd.f32 0.0, %v1134
        %v1136 = vpop.f32.mrf.mxu0
        %1137 = vmatprep.mubr.bf16.mxu0 0
        %1138 = vmatmul.mubr.bf16.gmra.mxu0 %v1016
        %v1139 = vpop.f32.mrf.mxu0
        %v1140 = vadd.f32 0.0, %v1139
        %v1141 = vpop.f32.mrf.mxu0
        %v1142 = vpop.f32.mrf.mxu0
        %v1143 = vadd.f32 0.0, %v1142
        %v1144 = vpop.f32.mrf.mxu0
        %1145 = vmatprep.mubr.bf16.mxu0 0
        %1146 = vmatmul.mubr.bf16.gmra.mxu0 %v1018
        %v1147 = vpop.f32.mrf.mxu0
        %v1148 = vadd.f32 0.0, %v1147
        %v1149 = vpop.f32.mrf.mxu0
        %v1150 = vpop.f32.mrf.mxu0
        %v1151 = vadd.f32 0.0, %v1150
        %v1152 = vpop.f32.mrf.mxu0
        %1153 = vmatprep.mubr.bf16.mxu0 0
        %1154 = vmatmul.mubr.bf16.gmra.mxu0 %v1020
        %v1155 = vpop.f32.mrf.mxu0
        %v1156 = vadd.f32 0.0, %v1155
        %v1157 = vpop.f32.mrf.mxu0
        %v1158 = vpop.f32.mrf.mxu0
        %v1159 = vadd.f32 0.0, %v1158
        %v1160 = vpop.f32.mrf.mxu0
        %1161 = vmatprep.mubr.bf16.mxu0 0
        %1162 = vmatmul.mubr.bf16.gmra.mxu0 %v1022
        %v1163 = vpop.f32.mrf.mxu0
        %v1164 = vadd.f32 0.0, %v1163
        %v1165 = vpop.f32.mrf.mxu0
        %v1166 = vpop.f32.mrf.mxu0
        %v1167 = vadd.f32 0.0, %v1166
        %v1168 = vpop.f32.mrf.mxu0
        %1169 = vmatprep.mubr.bf16.mxu0 0
        %1170 = vmatmul.mubr.bf16.gmra.mxu0 %v1024
        %v1171 = vpop.f32.mrf.mxu0
        %v1172 = vadd.f32 0.0, %v1171
        %v1173 = vpop.f32.mrf.mxu0
        %v1174 = vpop.f32.mrf.mxu0
        %v1175 = vadd.f32 0.0, %v1174
        %v1176 = vpop.f32.mrf.mxu0
        %1177 = vdwg.mxu0
        %v1178 = vadd.f32 %v970, %v1116
        %v1179 = vadd.f32 %v971, %v1119
        %v1180 = vadd.f32 %v972, %v1124
        %v1181 = vadd.f32 %v973, %v1127
        %v1182 = vadd.f32 %v974, %v1132
        %v1183 = vadd.f32 %v975, %v1135
        %v1184 = vadd.f32 %v976, %v1140
        %v1185 = vadd.f32 %v977, %v1143
        %v1186 = vadd.f32 %v978, %v1148
        %v1187 = vadd.f32 %v979, %v1151
        %v1188 = vadd.f32 %v980, %v1156
        %v1189 = vadd.f32 %v981, %v1159
        %v1190 = vadd.f32 %v982, %v1164
        %v1191 = vadd.f32 %v983, %v1167
        %v1192 = vadd.f32 %v984, %v1172
        %v1193 = vadd.f32 %v985, %v1175
        %v1194 = vld [vmem:[#allocation2 + $0xc] sm:$0xf]
        %v1195 = vld [vmem:[#allocation2 + $0x10] sm:$0xf]
        %v1196 = vld [vmem:[#allocation2 + $0x14] sm:$0xf]
        %v1197 = vld [vmem:[#allocation2 + $0x18] sm:$0xf]
        %v1198 = vld [vmem:[#allocation2 + $0x1c] sm:$0xf]
        %v1199 = vld [vmem:[#allocation2 + $0x20] sm:$0xf]
        %v1200 = vld [vmem:[#allocation2 + $0x24] sm:$0xf]
        %v1201 = vld [vmem:[#allocation2 + $0x28] sm:$0xf]
        %v1202 = vld [vmem:[#allocation2 + $0x2c] sm:$0xf]
        %v1203 = vld [vmem:[#allocation2 + $0x30] sm:$0xf]
        %v1204 = vld [vmem:[#allocation2 + $0x34] sm:$0xf]
        %v1205 = vld [vmem:[#allocation2 + $0x38] sm:$0xf]
        %v1206 = vld [vmem:[#allocation2 + $0x3c] sm:$0xf]
        %v1207 = vld [vmem:[#allocation2 + $0x40] sm:$0xf]
        %v1208 = vld [vmem:[#allocation2 + $0x44] sm:$0xf]
        %v1209 = vld [vmem:[#allocation2 + $0x48] sm:$0xf]
        %s1210 = scalar_lea.vmem [#allocation8], 192
        %v1211 = vld [vmem:[%s1210] sm:$0xf]
        %v1212 = vld [vmem:[%s1210 + $0x4] sm:$0xf]
        %v1213 = vld [vmem:[%s1210 + $0x8] sm:$0xf]
        %v1214 = vld [vmem:[%s1210 + $0xc] sm:$0xf]
        %v1215 = vld [vmem:[%s1210 + $0x10] sm:$0xf]
        %v1216 = vld [vmem:[%s1210 + $0x14] sm:$0xf]
        %v1217 = vld [vmem:[%s1210 + $0x18] sm:$0xf]
        %v1218 = vld [vmem:[%s1210 + $0x1c] sm:$0xf]
        %v1219 = vld [vmem:[%s1210 + $0x20] sm:$0xf]
        %v1220 = vld [vmem:[%s1210 + $0x24] sm:$0xf]
        %v1221 = vld [vmem:[%s1210 + $0x28] sm:$0xf]
        %v1222 = vld [vmem:[%s1210 + $0x2c] sm:$0xf]
        %v1223 = vld [vmem:[%s1210 + $0x30] sm:$0xf]
        %v1224 = vld [vmem:[%s1210 + $0x34] sm:$0xf]
        %v1225 = vld [vmem:[%s1210 + $0x38] sm:$0xf]
        %v1226 = vld [vmem:[%s1210 + $0x3c] sm:$0xf]
        %v1243 = vunpack.c.l.b16 %v1194
        %v1244 = vunpack.c.l.b16 %v1195
        %v1245 = vunpack.c.l.b16 %v1196
        %v1246 = vunpack.c.l.b16 %v1197
        %v1247 = vunpack.c.l.b16 %v1198
        %v1248 = vunpack.c.l.b16 %v1199
        %v1249 = vunpack.c.l.b16 %v1200
        %v1250 = vunpack.c.l.b16 %v1201
        %v1251 = vunpack.c.l.b16 %v1202
        %v1252 = vunpack.c.l.b16 %v1203
        %v1253 = vunpack.c.l.b16 %v1204
        %v1254 = vunpack.c.l.b16 %v1205
        %v1255 = vunpack.c.l.b16 %v1206
        %v1256 = vunpack.c.l.b16 %v1207
        %v1257 = vunpack.c.l.b16 %v1208
        %v1258 = vunpack.c.l.b16 %v1209
        %v1259 = vpack.c.b16 %v1244, %v1243
        %v1260 = vpack.c.b16 %v1246, %v1245
        %v1261 = vpack.c.b16 %v1248, %v1247
        %v1262 = vpack.c.b16 %v1250, %v1249
        %v1263 = vpack.c.b16 %v1252, %v1251
        %v1264 = vpack.c.b16 %v1254, %v1253
        %v1265 = vpack.c.b16 %v1256, %v1255
        %v1266 = vpack.c.b16 %v1258, %v1257
        %v1291 = vunpack.c.l.b16 %v1211
        %v1292 = vunpack.c.l.b16 %v1212
        %v1293 = vunpack.c.l.b16 %v1213
        %v1294 = vunpack.c.l.b16 %v1214
        %v1295 = vunpack.c.l.b16 %v1215
        %v1296 = vunpack.c.l.b16 %v1216
        %v1297 = vunpack.c.l.b16 %v1217
        %v1298 = vunpack.c.l.b16 %v1218
        %v1299 = vunpack.c.l.b16 %v1219
        %v1300 = vunpack.c.l.b16 %v1220
        %v1301 = vunpack.c.l.b16 %v1221
        %v1302 = vunpack.c.l.b16 %v1222
        %v1303 = vunpack.c.l.b16 %v1223
        %v1304 = vunpack.c.l.b16 %v1224
        %v1305 = vunpack.c.l.b16 %v1225
        %v1306 = vunpack.c.l.b16 %v1226
        %v1307 = vpack.c.b16 %v1292, %v1291
        %v1308 = vpack.c.b16 %v1294, %v1293
        %v1309 = vpack.c.b16 %v1296, %v1295
        %v1310 = vpack.c.b16 %v1298, %v1297
        %v1311 = vpack.c.b16 %v1300, %v1299
        %v1312 = vpack.c.b16 %v1302, %v1301
        %v1313 = vpack.c.b16 %v1304, %v1303
        %v1314 = vpack.c.b16 %v1306, %v1305
        %1323 = vmatprep.subr.bf16.mxu0 0
        %1324 = vmatpush1.bf16.msra.mxu0 %v1314
        %1325 = vmatprep.subr.bf16.mxu0 0
        %1326 = vmatpush1.bf16.msra.mxu0 %v1313
        %1327 = vmatprep.subr.bf16.mxu0 0
        %1328 = vmatpush1.bf16.msra.mxu0 %v1312
        %1329 = vmatprep.subr.bf16.mxu0 0
        %1330 = vmatpush1.bf16.msra.mxu0 %v1311
        %1331 = vmatprep.subr.bf16.mxu0 0
        %1332 = vmatpush1.bf16.msra.mxu0 %v1310
        %1333 = vmatprep.subr.bf16.mxu0 0
        %1334 = vmatpush1.bf16.msra.mxu0 %v1309
        %1335 = vmatprep.subr.bf16.mxu0 0
        %1336 = vmatpush1.bf16.msra.mxu0 %v1308
        %1337 = vmatprep.subr.bf16.mxu0 0
        %1338 = vmatpush1.bf16.msra.mxu0 %v1307
        %1339 = vmatprep.subr.bf16.mxu0 0
        %1340 = vmatpush2.bf16.msra.mxu0 0
        %1341 = vmatprep.subr.bf16.mxu0 0
        %1342 = vmatpush2.bf16.msra.mxu0 0
        %1343 = vmatprep.subr.bf16.mxu0 0
        %1344 = vmatpush2.bf16.msra.mxu0 0
        %1345 = vmatprep.subr.bf16.mxu0 0
        %1346 = vmatpush2.bf16.msra.mxu0 0
        %1347 = vmatprep.subr.bf16.mxu0 0
        %1348 = vmatpush2.bf16.msra.mxu0 0
        %1349 = vmatprep.subr.bf16.mxu0 0
        %1350 = vmatpush2.bf16.msra.mxu0 0
        %1351 = vmatprep.subr.bf16.mxu0 0
        %1352 = vmatpush2.bf16.msra.mxu0 0
        %1353 = vmatprep.subr.bf16.mxu0 0
        %1354 = vmatpush2.bf16.msra.mxu0 0
        %1355 = vmatprep.mubr.bf16.mxu0 0
        %1356 = vmatmul.mubr.bf16.gmra.mxu0 %v1259
        %v1357 = vpop.f32.mrf.mxu0
        %v1358 = vadd.f32 0.0, %v1357
        %v1359 = vpop.f32.mrf.mxu0
        %v1360 = vpop.f32.mrf.mxu0
        %v1361 = vadd.f32 0.0, %v1360
        %v1362 = vpop.f32.mrf.mxu0
        %1363 = vmatprep.mubr.bf16.mxu0 0
        %1364 = vmatmul.mubr.bf16.gmra.mxu0 %v1260
        %v1365 = vpop.f32.mrf.mxu0
        %v1366 = vadd.f32 0.0, %v1365
        %v1367 = vpop.f32.mrf.mxu0
        %v1368 = vpop.f32.mrf.mxu0
        %v1369 = vadd.f32 0.0, %v1368
        %v1370 = vpop.f32.mrf.mxu0
        %1371 = vmatprep.mubr.bf16.mxu0 0
        %1372 = vmatmul.mubr.bf16.gmra.mxu0 %v1261
        %v1373 = vpop.f32.mrf.mxu0
        %v1374 = vadd.f32 0.0, %v1373
        %v1375 = vpop.f32.mrf.mxu0
        %v1376 = vpop.f32.mrf.mxu0
        %v1377 = vadd.f32 0.0, %v1376
        %v1378 = vpop.f32.mrf.mxu0
        %1379 = vmatprep.mubr.bf16.mxu0 0
        %1380 = vmatmul.mubr.bf16.gmra.mxu0 %v1262
        %v1381 = vpop.f32.mrf.mxu0
        %v1382 = vadd.f32 0.0, %v1381
        %v1383 = vpop.f32.mrf.mxu0
        %v1384 = vpop.f32.mrf.mxu0
        %v1385 = vadd.f32 0.0, %v1384
        %v1386 = vpop.f32.mrf.mxu0
        %1387 = vmatprep.mubr.bf16.mxu0 0
        %1388 = vmatmul.mubr.bf16.gmra.mxu0 %v1263
        %v1389 = vpop.f32.mrf.mxu0
        %v1390 = vadd.f32 0.0, %v1389
        %v1391 = vpop.f32.mrf.mxu0
        %v1392 = vpop.f32.mrf.mxu0
        %v1393 = vadd.f32 0.0, %v1392
        %v1394 = vpop.f32.mrf.mxu0
        %1395 = vmatprep.mubr.bf16.mxu0 0
        %1396 = vmatmul.mubr.bf16.gmra.mxu0 %v1264
        %v1397 = vpop.f32.mrf.mxu0
        %v1398 = vadd.f32 0.0, %v1397
        %v1399 = vpop.f32.mrf.mxu0
        %v1400 = vpop.f32.mrf.mxu0
        %v1401 = vadd.f32 0.0, %v1400
        %v1402 = vpop.f32.mrf.mxu0
        %1403 = vmatprep.mubr.bf16.mxu0 0
        %1404 = vmatmul.mubr.bf16.gmra.mxu0 %v1265
        %v1405 = vpop.f32.mrf.mxu0
        %v1406 = vadd.f32 0.0, %v1405
        %v1407 = vpop.f32.mrf.mxu0
        %v1408 = vpop.f32.mrf.mxu0
        %v1409 = vadd.f32 0.0, %v1408
        %v1410 = vpop.f32.mrf.mxu0
        %1411 = vmatprep.mubr.bf16.mxu0 0
        %1412 = vmatmul.mubr.bf16.gmra.mxu0 %v1266
        %v1413 = vpop.f32.mrf.mxu0
        %v1414 = vadd.f32 0.0, %v1413
        %v1415 = vpop.f32.mrf.mxu0
        %v1416 = vpop.f32.mrf.mxu0
        %v1417 = vadd.f32 0.0, %v1416
        %v1418 = vpop.f32.mrf.mxu0
        %1419 = vdwg.mxu0
        %v1420 = vadd.f32 %v1178, %v1358
        %v1421 = vadd.f32 %v1179, %v1361
        %v1422 = vadd.f32 %v1180, %v1366
        %v1423 = vadd.f32 %v1181, %v1369
        %v1424 = vadd.f32 %v1182, %v1374
        %v1425 = vadd.f32 %v1183, %v1377
        %v1426 = vadd.f32 %v1184, %v1382
        %v1427 = vadd.f32 %v1185, %v1385
        %v1428 = vadd.f32 %v1186, %v1390
        %v1429 = vadd.f32 %v1187, %v1393
        %v1430 = vadd.f32 %v1188, %v1398
        %v1431 = vadd.f32 %v1189, %v1401
        %v1432 = vadd.f32 %v1190, %v1406
        %v1433 = vadd.f32 %v1191, %v1409
        %v1434 = vadd.f32 %v1192, %v1414
        %v1435 = vadd.f32 %v1193, %v1417
        %v1436 = vld [vmem:[#allocation2 + $0xc] sm:$0xf]
        %v1437 = vld [vmem:[#allocation2 + $0x10] sm:$0xf]
        %v1438 = vld [vmem:[#allocation2 + $0x14] sm:$0xf]
        %v1439 = vld [vmem:[#allocation2 + $0x18] sm:$0xf]
        %v1440 = vld [vmem:[#allocation2 + $0x1c] sm:$0xf]
        %v1441 = vld [vmem:[#allocation2 + $0x20] sm:$0xf]
        %v1442 = vld [vmem:[#allocation2 + $0x24] sm:$0xf]
        %v1443 = vld [vmem:[#allocation2 + $0x28] sm:$0xf]
        %v1444 = vld [vmem:[#allocation2 + $0x2c] sm:$0xf]
        %v1445 = vld [vmem:[#allocation2 + $0x30] sm:$0xf]
        %v1446 = vld [vmem:[#allocation2 + $0x34] sm:$0xf]
        %v1447 = vld [vmem:[#allocation2 + $0x38] sm:$0xf]
        %v1448 = vld [vmem:[#allocation2 + $0x3c] sm:$0xf]
        %v1449 = vld [vmem:[#allocation2 + $0x40] sm:$0xf]
        %v1450 = vld [vmem:[#allocation2 + $0x44] sm:$0xf]
        %v1451 = vld [vmem:[#allocation2 + $0x48] sm:$0xf]
        %v1452 = vld [vmem:[#allocation2 + $0x4c] sm:$0x1]
        %s1453 = scalar_lea.vmem [#allocation8], 256
        %v1454 = vld [vmem:[%s1453] sm:$0xf]
        %v1455 = vld [vmem:[%s1453 + $0x4] sm:$0xf]
        %v1456 = vld [vmem:[%s1453 + $0x8] sm:$0xf]
        %v1457 = vld [vmem:[%s1453 + $0xc] sm:$0xf]
        %v1458 = vld [vmem:[%s1453 + $0x10] sm:$0xf]
        %v1459 = vld [vmem:[%s1453 + $0x14] sm:$0xf]
        %v1460 = vld [vmem:[%s1453 + $0x18] sm:$0xf]
        %v1461 = vld [vmem:[%s1453 + $0x1c] sm:$0xf]
        %v1462 = vld [vmem:[%s1453 + $0x20] sm:$0xf]
        %v1463 = vld [vmem:[%s1453 + $0x24] sm:$0xf]
        %v1464 = vld [vmem:[%s1453 + $0x28] sm:$0xf]
        %v1465 = vld [vmem:[%s1453 + $0x2c] sm:$0xf]
        %v1466 = vld [vmem:[%s1453 + $0x30] sm:$0xf]
        %v1467 = vld [vmem:[%s1453 + $0x34] sm:$0xf]
        %v1468 = vld [vmem:[%s1453 + $0x38] sm:$0xf]
        %v1469 = vld [vmem:[%s1453 + $0x3c] sm:$0xf]
        %v1487 = vunpack.c.l.b16 %v1436
        %v1488 = vunpack.c.l.b16 %v1437
        %v1489 = vunpack.c.l.b16 %v1438
        %v1490 = vunpack.c.l.b16 %v1439
        %v1491 = vunpack.c.l.b16 %v1440
        %v1492 = vunpack.c.l.b16 %v1441
        %v1493 = vunpack.c.l.b16 %v1442
        %v1494 = vunpack.c.l.b16 %v1443
        %v1495 = vunpack.c.l.b16 %v1444
        %v1496 = vunpack.c.l.b16 %v1445
        %v1497 = vunpack.c.l.b16 %v1446
        %v1498 = vunpack.c.l.b16 %v1447
        %v1499 = vunpack.c.l.b16 %v1448
        %v1500 = vunpack.c.l.b16 %v1449
        %v1501 = vunpack.c.l.b16 %v1450
        %v1502 = vunpack.c.l.b16 %v1451
        %v1503 = vunpack.c.l.b16 %v1452
        %v1504 = vpack.c.b16 %v1488, %v1487
        %v1505 = vpack.c.b16 %v1490, %v1489
        %v1506 = vpack.c.b16 %v1492, %v1491
        %v1507 = vpack.c.b16 %v1494, %v1493
        %v1508 = vpack.c.b16 %v1496, %v1495
        %v1509 = vpack.c.b16 %v1498, %v1497
        %v1510 = vpack.c.b16 %v1500, %v1499
        %v1511 = vpack.c.b16 %v1502, %v1501
        %v1512 = vpack.c.b16 %v1503, %v1503
        %v1514 = vshrl.u32 %v1504, 16
        %v1516 = vshll.u32 %v1504, 16
        %v1518 = vrot.slane %v1516, 1
        %v1519 = vor.u32 %v1514, %v1518
        %v1521 = vshll.u32 %v1505, 16
        %v1523 = vrot.slane %v1521, 1
        %v1524 = vsel %vm748, %v1519, %v1523
        %v1525 = vshrl.u32 %v1505, 16
        %v1527 = vor.u32 %v1525, %v1523
        %v1529 = vshll.u32 %v1506, 16
        %v1531 = vrot.slane %v1529, 1
        %v1532 = vsel %vm748, %v1527, %v1531
        %v1533 = vshrl.u32 %v1506, 16
        %v1535 = vor.u32 %v1533, %v1531
        %v1537 = vshll.u32 %v1507, 16
        %v1539 = vrot.slane %v1537, 1
        %v1540 = vsel %vm748, %v1535, %v1539
        %v1541 = vshrl.u32 %v1507, 16
        %v1543 = vor.u32 %v1541, %v1539
        %v1545 = vshll.u32 %v1508, 16
        %v1547 = vrot.slane %v1545, 1
        %v1548 = vsel %vm748, %v1543, %v1547
        %v1549 = vshrl.u32 %v1508, 16
        %v1551 = vor.u32 %v1549, %v1547
        %v1553 = vshll.u32 %v1509, 16
        %v1555 = vrot.slane %v1553, 1
        %v1556 = vsel %vm748, %v1551, %v1555
        %v1557 = vshrl.u32 %v1509, 16
        %v1559 = vor.u32 %v1557, %v1555
        %v1561 = vshll.u32 %v1510, 16
        %v1563 = vrot.slane %v1561, 1
        %v1564 = vsel %vm748, %v1559, %v1563
        %v1565 = vshrl.u32 %v1510, 16
        %v1567 = vor.u32 %v1565, %v1563
        %v1569 = vshll.u32 %v1511, 16
        %v1571 = vrot.slane %v1569, 1
        %v1572 = vsel %vm748, %v1567, %v1571
        %v1573 = vshrl.u32 %v1511, 16
        %v1575 = vor.u32 %v1573, %v1571
        %v1577 = vshll.u32 %v1512, 16
        %v1579 = vrot.slane %v1577, 1
        %v1580 = vsel %vm748, %v1575, %v1579
        %v1605 = vunpack.c.l.b16 %v1454
        %v1606 = vunpack.c.l.b16 %v1455
        %v1607 = vunpack.c.l.b16 %v1456
        %v1608 = vunpack.c.l.b16 %v1457
        %v1609 = vunpack.c.l.b16 %v1458
        %v1610 = vunpack.c.l.b16 %v1459
        %v1611 = vunpack.c.l.b16 %v1460
        %v1612 = vunpack.c.l.b16 %v1461
        %v1613 = vunpack.c.l.b16 %v1462
        %v1614 = vunpack.c.l.b16 %v1463
        %v1615 = vunpack.c.l.b16 %v1464
        %v1616 = vunpack.c.l.b16 %v1465
        %v1617 = vunpack.c.l.b16 %v1466
        %v1618 = vunpack.c.l.b16 %v1467
        %v1619 = vunpack.c.l.b16 %v1468
        %v1620 = vunpack.c.l.b16 %v1469
        %v1621 = vpack.c.b16 %v1606, %v1605
        %v1622 = vpack.c.b16 %v1608, %v1607
        %v1623 = vpack.c.b16 %v1610, %v1609
        %v1624 = vpack.c.b16 %v1612, %v1611
        %v1625 = vpack.c.b16 %v1614, %v1613
        %v1626 = vpack.c.b16 %v1616, %v1615
        %v1627 = vpack.c.b16 %v1618, %v1617
        %v1628 = vpack.c.b16 %v1620, %v1619
        %1637 = vmatprep.subr.bf16.mxu0 0
        %1638 = vmatpush1.bf16.msra.mxu0 %v1628
        %1639 = vmatprep.subr.bf16.mxu0 0
        %1640 = vmatpush1.bf16.msra.mxu0 %v1627
        %1641 = vmatprep.subr.bf16.mxu0 0
        %1642 = vmatpush1.bf16.msra.mxu0 %v1626
        %1643 = vmatprep.subr.bf16.mxu0 0
        %1644 = vmatpush1.bf16.msra.mxu0 %v1625
        %1645 = vmatprep.subr.bf16.mxu0 0
        %1646 = vmatpush1.bf16.msra.mxu0 %v1624
        %1647 = vmatprep.subr.bf16.mxu0 0
        %1648 = vmatpush1.bf16.msra.mxu0 %v1623
        %1649 = vmatprep.subr.bf16.mxu0 0
        %1650 = vmatpush1.bf16.msra.mxu0 %v1622
        %1651 = vmatprep.subr.bf16.mxu0 0
        %1652 = vmatpush1.bf16.msra.mxu0 %v1621
        %1653 = vmatprep.subr.bf16.mxu0 0
        %1654 = vmatpush2.bf16.msra.mxu0 0
        %1655 = vmatprep.subr.bf16.mxu0 0
        %1656 = vmatpush2.bf16.msra.mxu0 0
        %1657 = vmatprep.subr.bf16.mxu0 0
        %1658 = vmatpush2.bf16.msra.mxu0 0
        %1659 = vmatprep.subr.bf16.mxu0 0
        %1660 = vmatpush2.bf16.msra.mxu0 0
        %1661 = vmatprep.subr.bf16.mxu0 0
        %1662 = vmatpush2.bf16.msra.mxu0 0
        %1663 = vmatprep.subr.bf16.mxu0 0
        %1664 = vmatpush2.bf16.msra.mxu0 0
        %1665 = vmatprep.subr.bf16.mxu0 0
        %1666 = vmatpush2.bf16.msra.mxu0 0
        %1667 = vmatprep.subr.bf16.mxu0 0
        %1668 = vmatpush2.bf16.msra.mxu0 0
        %1669 = vmatprep.mubr.bf16.mxu0 0
        %1670 = vmatmul.mubr.bf16.gmra.mxu0 %v1524
        %v1671 = vpop.f32.mrf.mxu0
        %v1672 = vadd.f32 0.0, %v1671
        %v1673 = vpop.f32.mrf.mxu0
        %v1674 = vpop.f32.mrf.mxu0
        %v1675 = vadd.f32 0.0, %v1674
        %v1676 = vpop.f32.mrf.mxu0
        %1677 = vmatprep.mubr.bf16.mxu0 0
        %1678 = vmatmul.mubr.bf16.gmra.mxu0 %v1532
        %v1679 = vpop.f32.mrf.mxu0
        %v1680 = vadd.f32 0.0, %v1679
        %v1681 = vpop.f32.mrf.mxu0
        %v1682 = vpop.f32.mrf.mxu0
        %v1683 = vadd.f32 0.0, %v1682
        %v1684 = vpop.f32.mrf.mxu0
        %1685 = vmatprep.mubr.bf16.mxu0 0
        %1686 = vmatmul.mubr.bf16.gmra.mxu0 %v1540
        %v1687 = vpop.f32.mrf.mxu0
        %v1688 = vadd.f32 0.0, %v1687
        %v1689 = vpop.f32.mrf.mxu0
        %v1690 = vpop.f32.mrf.mxu0
        %v1691 = vadd.f32 0.0, %v1690
        %v1692 = vpop.f32.mrf.mxu0
        %1693 = vmatprep.mubr.bf16.mxu0 0
        %1694 = vmatmul.mubr.bf16.gmra.mxu0 %v1548
        %v1695 = vpop.f32.mrf.mxu0
        %v1696 = vadd.f32 0.0, %v1695
        %v1697 = vpop.f32.mrf.mxu0
        %v1698 = vpop.f32.mrf.mxu0
        %v1699 = vadd.f32 0.0, %v1698
        %v1700 = vpop.f32.mrf.mxu0
        %1701 = vmatprep.mubr.bf16.mxu0 0
        %1702 = vmatmul.mubr.bf16.gmra.mxu0 %v1556
        %v1703 = vpop.f32.mrf.mxu0
        %v1704 = vadd.f32 0.0, %v1703
        %v1705 = vpop.f32.mrf.mxu0
        %v1706 = vpop.f32.mrf.mxu0
        %v1707 = vadd.f32 0.0, %v1706
        %v1708 = vpop.f32.mrf.mxu0
        %1709 = vmatprep.mubr.bf16.mxu0 0
        %1710 = vmatmul.mubr.bf16.gmra.mxu0 %v1564
        %v1711 = vpop.f32.mrf.mxu0
        %v1712 = vadd.f32 0.0, %v1711
        %v1713 = vpop.f32.mrf.mxu0
        %v1714 = vpop.f32.mrf.mxu0
        %v1715 = vadd.f32 0.0, %v1714
        %v1716 = vpop.f32.mrf.mxu0
        %1717 = vmatprep.mubr.bf16.mxu0 0
        %1718 = vmatmul.mubr.bf16.gmra.mxu0 %v1572
        %v1719 = vpop.f32.mrf.mxu0
        %v1720 = vadd.f32 0.0, %v1719
        %v1721 = vpop.f32.mrf.mxu0
        %v1722 = vpop.f32.mrf.mxu0
        %v1723 = vadd.f32 0.0, %v1722
        %v1724 = vpop.f32.mrf.mxu0
        %1725 = vmatprep.mubr.bf16.mxu0 0
        %1726 = vmatmul.mubr.bf16.gmra.mxu0 %v1580
        %v1727 = vpop.f32.mrf.mxu0
        %v1728 = vadd.f32 0.0, %v1727
        %v1729 = vpop.f32.mrf.mxu0
        %v1730 = vpop.f32.mrf.mxu0
        %v1731 = vadd.f32 0.0, %v1730
        %v1732 = vpop.f32.mrf.mxu0
        %1733 = vdwg.mxu0
        %v1734 = vadd.f32 %v1420, %v1672
        %v1735 = vadd.f32 %v1421, %v1675
        %v1736 = vadd.f32 %v1422, %v1680
        %v1737 = vadd.f32 %v1423, %v1683
        %v1738 = vadd.f32 %v1424, %v1688
        %v1739 = vadd.f32 %v1425, %v1691
        %v1740 = vadd.f32 %v1426, %v1696
        %v1741 = vadd.f32 %v1427, %v1699
        %v1742 = vadd.f32 %v1428, %v1704
        %v1743 = vadd.f32 %v1429, %v1707
        %v1744 = vadd.f32 %v1430, %v1712
        %v1745 = vadd.f32 %v1431, %v1715
        %v1746 = vadd.f32 %v1432, %v1720
        %v1747 = vadd.f32 %v1433, %v1723
        %v1748 = vadd.f32 %v1434, %v1728
        %v1749 = vadd.f32 %v1435, %v1731
        %v1750 = vld [vmem:[#allocation2 + $0xc] sm:$0xe]
        %s1751 = scalar_lea.vmem [#allocation8], 320
        %v1752 = vld [vmem:[%s1751] sm:$0xf]
        %v1753 = vld [vmem:[%s1751 + $0x4] sm:$0xf]
        %v1754 = vld [vmem:[%s1751 + $0x8] sm:$0xf]
        %v1755 = vld [vmem:[%s1751 + $0xc] sm:$0xf]
        %v1756 = vld [vmem:[%s1751 + $0x10] sm:$0xf]
        %v1757 = vld [vmem:[%s1751 + $0x14] sm:$0xf]
        %v1758 = vld [vmem:[%s1751 + $0x18] sm:$0xf]
        %v1759 = vld [vmem:[%s1751 + $0x1c] sm:$0xf]
        %v1760 = vld [vmem:[%s1751 + $0x20] sm:$0xf]
        %v1761 = vld [vmem:[%s1751 + $0x24] sm:$0xf]
        %v1762 = vld [vmem:[%s1751 + $0x28] sm:$0xf]
        %v1763 = vld [vmem:[%s1751 + $0x2c] sm:$0xf]
        %v1764 = vld [vmem:[%s1751 + $0x30] sm:$0xf]
        %v1765 = vld [vmem:[%s1751 + $0x34] sm:$0xf]
        %v1766 = vld [vmem:[%s1751 + $0x38] sm:$0xf]
        %v1767 = vld [vmem:[%s1751 + $0x3c] sm:$0xf]
        %v1769 = vunpack.c.l.b16 %v1750
        %v1770 = vpack.c.b16 %v1488, %v1769
        %v1771 = vrot.slane %v1770, 1
        %v1772 = vrot.slane %v1505, 1
        %v1773 = vsel %vm1007, %v1771, %v1772
        %v1774 = vrot.slane %v1506, 1
        %v1775 = vsel %vm1007, %v1772, %v1774
        %v1776 = vrot.slane %v1507, 1
        %v1777 = vsel %vm1007, %v1774, %v1776
        %v1778 = vrot.slane %v1508, 1
        %v1779 = vsel %vm1007, %v1776, %v1778
        %v1780 = vrot.slane %v1509, 1
        %v1781 = vsel %vm1007, %v1778, %v1780
        %v1782 = vrot.slane %v1510, 1
        %v1783 = vsel %vm1007, %v1780, %v1782
        %v1784 = vrot.slane %v1511, 1
        %v1785 = vsel %vm1007, %v1782, %v1784
        %v1786 = vrot.slane %v1512, 1
        %v1787 = vsel %vm1007, %v1784, %v1786
        %v1812 = vunpack.c.l.b16 %v1752
        %v1813 = vunpack.c.l.b16 %v1753
        %v1814 = vunpack.c.l.b16 %v1754
        %v1815 = vunpack.c.l.b16 %v1755
        %v1816 = vunpack.c.l.b16 %v1756
        %v1817 = vunpack.c.l.b16 %v1757
        %v1818 = vunpack.c.l.b16 %v1758
        %v1819 = vunpack.c.l.b16 %v1759
        %v1820 = vunpack.c.l.b16 %v1760
        %v1821 = vunpack.c.l.b16 %v1761
        %v1822 = vunpack.c.l.b16 %v1762
        %v1823 = vunpack.c.l.b16 %v1763
        %v1824 = vunpack.c.l.b16 %v1764
        %v1825 = vunpack.c.l.b16 %v1765
        %v1826 = vunpack.c.l.b16 %v1766
        %v1827 = vunpack.c.l.b16 %v1767
        %v1828 = vpack.c.b16 %v1813, %v1812
        %v1829 = vpack.c.b16 %v1815, %v1814
        %v1830 = vpack.c.b16 %v1817, %v1816
        %v1831 = vpack.c.b16 %v1819, %v1818
        %v1832 = vpack.c.b16 %v1821, %v1820
        %v1833 = vpack.c.b16 %v1823, %v1822
        %v1834 = vpack.c.b16 %v1825, %v1824
        %v1835 = vpack.c.b16 %v1827, %v1826
        %1844 = vmatprep.subr.bf16.mxu0 0
        %1845 = vmatpush1.bf16.msra.mxu0 %v1835
        %1846 = vmatprep.subr.bf16.mxu0 0
        %1847 = vmatpush1.bf16.msra.mxu0 %v1834
        %1848 = vmatprep.subr.bf16.mxu0 0
        %1849 = vmatpush1.bf16.msra.mxu0 %v1833
        %1850 = vmatprep.subr.bf16.mxu0 0
        %1851 = vmatpush1.bf16.msra.mxu0 %v1832
        %1852 = vmatprep.subr.bf16.mxu0 0
        %1853 = vmatpush1.bf16.msra.mxu0 %v1831
        %1854 = vmatprep.subr.bf16.mxu0 0
        %1855 = vmatpush1.bf16.msra.mxu0 %v1830
        %1856 = vmatprep.subr.bf16.mxu0 0
        %1857 = vmatpush1.bf16.msra.mxu0 %v1829
        %1858 = vmatprep.subr.bf16.mxu0 0
        %1859 = vmatpush1.bf16.msra.mxu0 %v1828
        %1860 = vmatprep.subr.bf16.mxu0 0
        %1861 = vmatpush2.bf16.msra.mxu0 0
        %1862 = vmatprep.subr.bf16.mxu0 0
        %1863 = vmatpush2.bf16.msra.mxu0 0
        %1864 = vmatprep.subr.bf16.mxu0 0
        %1865 = vmatpush2.bf16.msra.mxu0 0
        %1866 = vmatprep.subr.bf16.mxu0 0
        %1867 = vmatpush2.bf16.msra.mxu0 0
        %1868 = vmatprep.subr.bf16.mxu0 0
        %1869 = vmatpush2.bf16.msra.mxu0 0
        %1870 = vmatprep.subr.bf16.mxu0 0
        %1871 = vmatpush2.bf16.msra.mxu0 0
        %1872 = vmatprep.subr.bf16.mxu0 0
        %1873 = vmatpush2.bf16.msra.mxu0 0
        %1874 = vmatprep.subr.bf16.mxu0 0
        %1875 = vmatpush2.bf16.msra.mxu0 0
        %1876 = vmatprep.mubr.bf16.mxu0 0
        %1877 = vmatmul.mubr.bf16.gmra.mxu0 %v1773
        %v1878 = vpop.f32.mrf.mxu0
        %v1879 = vadd.f32 0.0, %v1878
        %v1880 = vpop.f32.mrf.mxu0
        %v1881 = vpop.f32.mrf.mxu0
        %v1882 = vadd.f32 0.0, %v1881
        %v1883 = vpop.f32.mrf.mxu0
        %1884 = vmatprep.mubr.bf16.mxu0 0
        %1885 = vmatmul.mubr.bf16.gmra.mxu0 %v1775
        %v1886 = vpop.f32.mrf.mxu0
        %v1887 = vadd.f32 0.0, %v1886
        %v1888 = vpop.f32.mrf.mxu0
        %v1889 = vpop.f32.mrf.mxu0
        %v1890 = vadd.f32 0.0, %v1889
        %v1891 = vpop.f32.mrf.mxu0
        %1892 = vmatprep.mubr.bf16.mxu0 0
        %1893 = vmatmul.mubr.bf16.gmra.mxu0 %v1777
        %v1894 = vpop.f32.mrf.mxu0
        %v1895 = vadd.f32 0.0, %v1894
        %v1896 = vpop.f32.mrf.mxu0
        %v1897 = vpop.f32.mrf.mxu0
        %v1898 = vadd.f32 0.0, %v1897
        %v1899 = vpop.f32.mrf.mxu0
        %1900 = vmatprep.mubr.bf16.mxu0 0
        %1901 = vmatmul.mubr.bf16.gmra.mxu0 %v1779
        %v1902 = vpop.f32.mrf.mxu0
        %v1903 = vadd.f32 0.0, %v1902
        %v1904 = vpop.f32.mrf.mxu0
        %v1905 = vpop.f32.mrf.mxu0
        %v1906 = vadd.f32 0.0, %v1905
        %v1907 = vpop.f32.mrf.mxu0
        %1908 = vmatprep.mubr.bf16.mxu0 0
        %1909 = vmatmul.mubr.bf16.gmra.mxu0 %v1781
        %v1910 = vpop.f32.mrf.mxu0
        %v1911 = vadd.f32 0.0, %v1910
        %v1912 = vpop.f32.mrf.mxu0
        %v1913 = vpop.f32.mrf.mxu0
        %v1914 = vadd.f32 0.0, %v1913
        %v1915 = vpop.f32.mrf.mxu0
        %1916 = vmatprep.mubr.bf16.mxu0 0
        %1917 = vmatmul.mubr.bf16.gmra.mxu0 %v1783
        %v1918 = vpop.f32.mrf.mxu0
        %v1919 = vadd.f32 0.0, %v1918
        %v1920 = vpop.f32.mrf.mxu0
        %v1921 = vpop.f32.mrf.mxu0
        %v1922 = vadd.f32 0.0, %v1921
        %v1923 = vpop.f32.mrf.mxu0
        %1924 = vmatprep.mubr.bf16.mxu0 0
        %1925 = vmatmul.mubr.bf16.gmra.mxu0 %v1785
        %v1926 = vpop.f32.mrf.mxu0
        %v1927 = vadd.f32 0.0, %v1926
        %v1928 = vpop.f32.mrf.mxu0
        %v1929 = vpop.f32.mrf.mxu0
        %v1930 = vadd.f32 0.0, %v1929
        %v1931 = vpop.f32.mrf.mxu0
        %1932 = vmatprep.mubr.bf16.mxu0 0
        %1933 = vmatmul.mubr.bf16.gmra.mxu0 %v1787
        %v1934 = vpop.f32.mrf.mxu0
        %v1935 = vadd.f32 0.0, %v1934
        %v1936 = vpop.f32.mrf.mxu0
        %v1937 = vpop.f32.mrf.mxu0
        %v1938 = vadd.f32 0.0, %v1937
        %v1939 = vpop.f32.mrf.mxu0
        %1940 = vdwg.mxu0
        %v1941 = vadd.f32 %v1734, %v1879
        %v1942 = vadd.f32 %v1735, %v1882
        %v1943 = vadd.f32 %v1736, %v1887
        %v1944 = vadd.f32 %v1737, %v1890
        %v1945 = vadd.f32 %v1738, %v1895
        %v1946 = vadd.f32 %v1739, %v1898
        %v1947 = vadd.f32 %v1740, %v1903
        %v1948 = vadd.f32 %v1741, %v1906
        %v1949 = vadd.f32 %v1742, %v1911
        %v1950 = vadd.f32 %v1743, %v1914
        %v1951 = vadd.f32 %v1744, %v1919
        %v1952 = vadd.f32 %v1745, %v1922
        %v1953 = vadd.f32 %v1746, %v1927
        %v1954 = vadd.f32 %v1747, %v1930
        %v1955 = vadd.f32 %v1748, %v1935
        %v1956 = vadd.f32 %v1749, %v1938
        %v1957 = vld [vmem:[#allocation2 + $0x18] sm:$0xf]
        %v1958 = vld [vmem:[#allocation2 + $0x1c] sm:$0xf]
        %v1959 = vld [vmem:[#allocation2 + $0x20] sm:$0xf]
        %v1960 = vld [vmem:[#allocation2 + $0x24] sm:$0xf]
        %v1961 = vld [vmem:[#allocation2 + $0x28] sm:$0xf]
        %v1962 = vld [vmem:[#allocation2 + $0x2c] sm:$0xf]
        %v1963 = vld [vmem:[#allocation2 + $0x30] sm:$0xf]
        %v1964 = vld [vmem:[#allocation2 + $0x34] sm:$0xf]
        %v1965 = vld [vmem:[#allocation2 + $0x38] sm:$0xf]
        %v1966 = vld [vmem:[#allocation2 + $0x3c] sm:$0xf]
        %v1967 = vld [vmem:[#allocation2 + $0x40] sm:$0xf]
        %v1968 = vld [vmem:[#allocation2 + $0x44] sm:$0xf]
        %v1969 = vld [vmem:[#allocation2 + $0x48] sm:$0xf]
        %v1970 = vld [vmem:[#allocation2 + $0x4c] sm:$0xf]
        %v1971 = vld [vmem:[#allocation2 + $0x50] sm:$0xf]
        %v1972 = vld [vmem:[#allocation2 + $0x54] sm:$0xf]
        %s1973 = scalar_lea.vmem [#allocation8], 384
        %v1974 = vld [vmem:[%s1973] sm:$0xf]
        %v1975 = vld [vmem:[%s1973 + $0x4] sm:$0xf]
        %v1976 = vld [vmem:[%s1973 + $0x8] sm:$0xf]
        %v1977 = vld [vmem:[%s1973 + $0xc] sm:$0xf]
        %v1978 = vld [vmem:[%s1973 + $0x10] sm:$0xf]
        %v1979 = vld [vmem:[%s1973 + $0x14] sm:$0xf]
        %v1980 = vld [vmem:[%s1973 + $0x18] sm:$0xf]
        %v1981 = vld [vmem:[%s1973 + $0x1c] sm:$0xf]
        %v1982 = vld [vmem:[%s1973 + $0x20] sm:$0xf]
        %v1983 = vld [vmem:[%s1973 + $0x24] sm:$0xf]
        %v1984 = vld [vmem:[%s1973 + $0x28] sm:$0xf]
        %v1985 = vld [vmem:[%s1973 + $0x2c] sm:$0xf]
        %v1986 = vld [vmem:[%s1973 + $0x30] sm:$0xf]
        %v1987 = vld [vmem:[%s1973 + $0x34] sm:$0xf]
        %v1988 = vld [vmem:[%s1973 + $0x38] sm:$0xf]
        %v1989 = vld [vmem:[%s1973 + $0x3c] sm:$0xf]
        %v2006 = vunpack.c.l.b16 %v1957
        %v2007 = vunpack.c.l.b16 %v1958
        %v2008 = vunpack.c.l.b16 %v1959
        %v2009 = vunpack.c.l.b16 %v1960
        %v2010 = vunpack.c.l.b16 %v1961
        %v2011 = vunpack.c.l.b16 %v1962
        %v2012 = vunpack.c.l.b16 %v1963
        %v2013 = vunpack.c.l.b16 %v1964
        %v2014 = vunpack.c.l.b16 %v1965
        %v2015 = vunpack.c.l.b16 %v1966
        %v2016 = vunpack.c.l.b16 %v1967
        %v2017 = vunpack.c.l.b16 %v1968
        %v2018 = vunpack.c.l.b16 %v1969
        %v2019 = vunpack.c.l.b16 %v1970
        %v2020 = vunpack.c.l.b16 %v1971
        %v2021 = vunpack.c.l.b16 %v1972
        %v2022 = vpack.c.b16 %v2007, %v2006
        %v2023 = vpack.c.b16 %v2009, %v2008
        %v2024 = vpack.c.b16 %v2011, %v2010
        %v2025 = vpack.c.b16 %v2013, %v2012
        %v2026 = vpack.c.b16 %v2015, %v2014
        %v2027 = vpack.c.b16 %v2017, %v2016
        %v2028 = vpack.c.b16 %v2019, %v2018
        %v2029 = vpack.c.b16 %v2021, %v2020
        %v2054 = vunpack.c.l.b16 %v1974
        %v2055 = vunpack.c.l.b16 %v1975
        %v2056 = vunpack.c.l.b16 %v1976
        %v2057 = vunpack.c.l.b16 %v1977
        %v2058 = vunpack.c.l.b16 %v1978
        %v2059 = vunpack.c.l.b16 %v1979
        %v2060 = vunpack.c.l.b16 %v1980
        %v2061 = vunpack.c.l.b16 %v1981
        %v2062 = vunpack.c.l.b16 %v1982
        %v2063 = vunpack.c.l.b16 %v1983
        %v2064 = vunpack.c.l.b16 %v1984
        %v2065 = vunpack.c.l.b16 %v1985
        %v2066 = vunpack.c.l.b16 %v1986
        %v2067 = vunpack.c.l.b16 %v1987
        %v2068 = vunpack.c.l.b16 %v1988
        %v2069 = vunpack.c.l.b16 %v1989
        %v2070 = vpack.c.b16 %v2055, %v2054
        %v2071 = vpack.c.b16 %v2057, %v2056
        %v2072 = vpack.c.b16 %v2059, %v2058
        %v2073 = vpack.c.b16 %v2061, %v2060
        %v2074 = vpack.c.b16 %v2063, %v2062
        %v2075 = vpack.c.b16 %v2065, %v2064
        %v2076 = vpack.c.b16 %v2067, %v2066
        %v2077 = vpack.c.b16 %v2069, %v2068
        %2086 = vmatprep.subr.bf16.mxu0 0
        %2087 = vmatpush1.bf16.msra.mxu0 %v2077
        %2088 = vmatprep.subr.bf16.mxu0 0
        %2089 = vmatpush1.bf16.msra.mxu0 %v2076
        %2090 = vmatprep.subr.bf16.mxu0 0
        %2091 = vmatpush1.bf16.msra.mxu0 %v2075
        %2092 = vmatprep.subr.bf16.mxu0 0
        %2093 = vmatpush1.bf16.msra.mxu0 %v2074
        %2094 = vmatprep.subr.bf16.mxu0 0
        %2095 = vmatpush1.bf16.msra.mxu0 %v2073
        %2096 = vmatprep.subr.bf16.mxu0 0
        %2097 = vmatpush1.bf16.msra.mxu0 %v2072
        %2098 = vmatprep.subr.bf16.mxu0 0
        %2099 = vmatpush1.bf16.msra.mxu0 %v2071
        %2100 = vmatprep.subr.bf16.mxu0 0
        %2101 = vmatpush1.bf16.msra.mxu0 %v2070
        %2102 = vmatprep.subr.bf16.mxu0 0
        %2103 = vmatpush2.bf16.msra.mxu0 0
        %2104 = vmatprep.subr.bf16.mxu0 0
        %2105 = vmatpush2.bf16.msra.mxu0 0
        %2106 = vmatprep.subr.bf16.mxu0 0
        %2107 = vmatpush2.bf16.msra.mxu0 0
        %2108 = vmatprep.subr.bf16.mxu0 0
        %2109 = vmatpush2.bf16.msra.mxu0 0
        %2110 = vmatprep.subr.bf16.mxu0 0
        %2111 = vmatpush2.bf16.msra.mxu0 0
        %2112 = vmatprep.subr.bf16.mxu0 0
        %2113 = vmatpush2.bf16.msra.mxu0 0
        %2114 = vmatprep.subr.bf16.mxu0 0
        %2115 = vmatpush2.bf16.msra.mxu0 0
        %2116 = vmatprep.subr.bf16.mxu0 0
        %2117 = vmatpush2.bf16.msra.mxu0 0
        %2118 = vmatprep.mubr.bf16.mxu0 0
        %2119 = vmatmul.mubr.bf16.gmra.mxu0 %v2022
        %v2120 = vpop.f32.mrf.mxu0
        %v2121 = vadd.f32 0.0, %v2120
        %v2122 = vpop.f32.mrf.mxu0
        %v2123 = vpop.f32.mrf.mxu0
        %v2124 = vadd.f32 0.0, %v2123
        %v2125 = vpop.f32.mrf.mxu0
        %2126 = vmatprep.mubr.bf16.mxu0 0
        %2127 = vmatmul.mubr.bf16.gmra.mxu0 %v2023
        %v2128 = vpop.f32.mrf.mxu0
        %v2129 = vadd.f32 0.0, %v2128
        %v2130 = vpop.f32.mrf.mxu0
        %v2131 = vpop.f32.mrf.mxu0
        %v2132 = vadd.f32 0.0, %v2131
        %v2133 = vpop.f32.mrf.mxu0
        %2134 = vmatprep.mubr.bf16.mxu0 0
        %2135 = vmatmul.mubr.bf16.gmra.mxu0 %v2024
        %v2136 = vpop.f32.mrf.mxu0
        %v2137 = vadd.f32 0.0, %v2136
        %v2138 = vpop.f32.mrf.mxu0
        %v2139 = vpop.f32.mrf.mxu0
        %v2140 = vadd.f32 0.0, %v2139
        %v2141 = vpop.f32.mrf.mxu0
        %2142 = vmatprep.mubr.bf16.mxu0 0
        %2143 = vmatmul.mubr.bf16.gmra.mxu0 %v2025
        %v2144 = vpop.f32.mrf.mxu0
        %v2145 = vadd.f32 0.0, %v2144
        %v2146 = vpop.f32.mrf.mxu0
        %v2147 = vpop.f32.mrf.mxu0
        %v2148 = vadd.f32 0.0, %v2147
        %v2149 = vpop.f32.mrf.mxu0
        %2150 = vmatprep.mubr.bf16.mxu0 0
        %2151 = vmatmul.mubr.bf16.gmra.mxu0 %v2026
        %v2152 = vpop.f32.mrf.mxu0
        %v2153 = vadd.f32 0.0, %v2152
        %v2154 = vpop.f32.mrf.mxu0
        %v2155 = vpop.f32.mrf.mxu0
        %v2156 = vadd.f32 0.0, %v2155
        %v2157 = vpop.f32.mrf.mxu0
        %2158 = vmatprep.mubr.bf16.mxu0 0
        %2159 = vmatmul.mubr.bf16.gmra.mxu0 %v2027
        %v2160 = vpop.f32.mrf.mxu0
        %v2161 = vadd.f32 0.0, %v2160
        %v2162 = vpop.f32.mrf.mxu0
        %v2163 = vpop.f32.mrf.mxu0
        %v2164 = vadd.f32 0.0, %v2163
        %v2165 = vpop.f32.mrf.mxu0
        %2166 = vmatprep.mubr.bf16.mxu0 0
        %2167 = vmatmul.mubr.bf16.gmra.mxu0 %v2028
        %v2168 = vpop.f32.mrf.mxu0
        %v2169 = vadd.f32 0.0, %v2168
        %v2170 = vpop.f32.mrf.mxu0
        %v2171 = vpop.f32.mrf.mxu0
        %v2172 = vadd.f32 0.0, %v2171
        %v2173 = vpop.f32.mrf.mxu0
        %2174 = vmatprep.mubr.bf16.mxu0 0
        %2175 = vmatmul.mubr.bf16.gmra.mxu0 %v2029
        %v2176 = vpop.f32.mrf.mxu0
        %v2177 = vadd.f32 0.0, %v2176
        %v2178 = vpop.f32.mrf.mxu0
        %v2179 = vpop.f32.mrf.mxu0
        %v2180 = vadd.f32 0.0, %v2179
        %v2181 = vpop.f32.mrf.mxu0
        %2182 = vdwg.mxu0
        %v2183 = vadd.f32 %v1941, %v2121
        %v2184 = vadd.f32 %v1942, %v2124
        %v2185 = vadd.f32 %v1943, %v2129
        %v2186 = vadd.f32 %v1944, %v2132
        %v2187 = vadd.f32 %v1945, %v2137
        %v2188 = vadd.f32 %v1946, %v2140
        %v2189 = vadd.f32 %v1947, %v2145
        %v2190 = vadd.f32 %v1948, %v2148
        %v2191 = vadd.f32 %v1949, %v2153
        %v2192 = vadd.f32 %v1950, %v2156
        %v2193 = vadd.f32 %v1951, %v2161
        %v2194 = vadd.f32 %v1952, %v2164
        %v2195 = vadd.f32 %v1953, %v2169
        %v2196 = vadd.f32 %v1954, %v2172
        %v2197 = vadd.f32 %v1955, %v2177
        %v2198 = vadd.f32 %v1956, %v2180
        %v2199 = vld [vmem:[#allocation2 + $0x18] sm:$0xf]
        %v2200 = vld [vmem:[#allocation2 + $0x1c] sm:$0xf]
        %v2201 = vld [vmem:[#allocation2 + $0x20] sm:$0xf]
        %v2202 = vld [vmem:[#allocation2 + $0x24] sm:$0xf]
        %v2203 = vld [vmem:[#allocation2 + $0x28] sm:$0xf]
        %v2204 = vld [vmem:[#allocation2 + $0x2c] sm:$0xf]
        %v2205 = vld [vmem:[#allocation2 + $0x30] sm:$0xf]
        %v2206 = vld [vmem:[#allocation2 + $0x34] sm:$0xf]
        %v2207 = vld [vmem:[#allocation2 + $0x38] sm:$0xf]
        %v2208 = vld [vmem:[#allocation2 + $0x3c] sm:$0xf]
        %v2209 = vld [vmem:[#allocation2 + $0x40] sm:$0xf]
        %v2210 = vld [vmem:[#allocation2 + $0x44] sm:$0xf]
        %v2211 = vld [vmem:[#allocation2 + $0x48] sm:$0xf]
        %v2212 = vld [vmem:[#allocation2 + $0x4c] sm:$0xf]
        %v2213 = vld [vmem:[#allocation2 + $0x50] sm:$0xf]
        %v2214 = vld [vmem:[#allocation2 + $0x54] sm:$0xf]
        %v2215 = vld [vmem:[#allocation2 + $0x58] sm:$0x1]
        %s2216 = scalar_lea.vmem [#allocation8], 448
        %v2217 = vld [vmem:[%s2216] sm:$0xf]
        %v2218 = vld [vmem:[%s2216 + $0x4] sm:$0xf]
        %v2219 = vld [vmem:[%s2216 + $0x8] sm:$0xf]
        %v2220 = vld [vmem:[%s2216 + $0xc] sm:$0xf]
        %v2221 = vld [vmem:[%s2216 + $0x10] sm:$0xf]
        %v2222 = vld [vmem:[%s2216 + $0x14] sm:$0xf]
        %v2223 = vld [vmem:[%s2216 + $0x18] sm:$0xf]
        %v2224 = vld [vmem:[%s2216 + $0x1c] sm:$0xf]
        %v2225 = vld [vmem:[%s2216 + $0x20] sm:$0xf]
        %v2226 = vld [vmem:[%s2216 + $0x24] sm:$0xf]
        %v2227 = vld [vmem:[%s2216 + $0x28] sm:$0xf]
        %v2228 = vld [vmem:[%s2216 + $0x2c] sm:$0xf]
        %v2229 = vld [vmem:[%s2216 + $0x30] sm:$0xf]
        %v2230 = vld [vmem:[%s2216 + $0x34] sm:$0xf]
        %v2231 = vld [vmem:[%s2216 + $0x38] sm:$0xf]
        %v2232 = vld [vmem:[%s2216 + $0x3c] sm:$0xf]
        %v2250 = vunpack.c.l.b16 %v2199
        %v2251 = vunpack.c.l.b16 %v2200
        %v2252 = vunpack.c.l.b16 %v2201
        %v2253 = vunpack.c.l.b16 %v2202
        %v2254 = vunpack.c.l.b16 %v2203
        %v2255 = vunpack.c.l.b16 %v2204
        %v2256 = vunpack.c.l.b16 %v2205
        %v2257 = vunpack.c.l.b16 %v2206
        %v2258 = vunpack.c.l.b16 %v2207
        %v2259 = vunpack.c.l.b16 %v2208
        %v2260 = vunpack.c.l.b16 %v2209
        %v2261 = vunpack.c.l.b16 %v2210
        %v2262 = vunpack.c.l.b16 %v2211
        %v2263 = vunpack.c.l.b16 %v2212
        %v2264 = vunpack.c.l.b16 %v2213
        %v2265 = vunpack.c.l.b16 %v2214
        %v2266 = vunpack.c.l.b16 %v2215
        %v2267 = vpack.c.b16 %v2251, %v2250
        %v2268 = vpack.c.b16 %v2253, %v2252
        %v2269 = vpack.c.b16 %v2255, %v2254
        %v2270 = vpack.c.b16 %v2257, %v2256
        %v2271 = vpack.c.b16 %v2259, %v2258
        %v2272 = vpack.c.b16 %v2261, %v2260
        %v2273 = vpack.c.b16 %v2263, %v2262
        %v2274 = vpack.c.b16 %v2265, %v2264
        %v2275 = vpack.c.b16 %v2266, %v2266
        %v2277 = vshrl.u32 %v2267, 16
        %v2279 = vshll.u32 %v2267, 16
        %v2281 = vrot.slane %v2279, 1
        %v2282 = vor.u32 %v2277, %v2281
        %v2284 = vshll.u32 %v2268, 16
        %v2286 = vrot.slane %v2284, 1
        %v2287 = vsel %vm748, %v2282, %v2286
        %v2288 = vshrl.u32 %v2268, 16
        %v2290 = vor.u32 %v2288, %v2286
        %v2292 = vshll.u32 %v2269, 16
        %v2294 = vrot.slane %v2292, 1
        %v2295 = vsel %vm748, %v2290, %v2294
        %v2296 = vshrl.u32 %v2269, 16
        %v2298 = vor.u32 %v2296, %v2294
        %v2300 = vshll.u32 %v2270, 16
        %v2302 = vrot.slane %v2300, 1
        %v2303 = vsel %vm748, %v2298, %v2302
        %v2304 = vshrl.u32 %v2270, 16
        %v2306 = vor.u32 %v2304, %v2302
        %v2308 = vshll.u32 %v2271, 16
        %v2310 = vrot.slane %v2308, 1
        %v2311 = vsel %vm748, %v2306, %v2310
        %v2312 = vshrl.u32 %v2271, 16
        %v2314 = vor.u32 %v2312, %v2310
        %v2316 = vshll.u32 %v2272, 16
        %v2318 = vrot.slane %v2316, 1
        %v2319 = vsel %vm748, %v2314, %v2318
        %v2320 = vshrl.u32 %v2272, 16
        %v2322 = vor.u32 %v2320, %v2318
        %v2324 = vshll.u32 %v2273, 16
        %v2326 = vrot.slane %v2324, 1
        %v2327 = vsel %vm748, %v2322, %v2326
        %v2328 = vshrl.u32 %v2273, 16
        %v2330 = vor.u32 %v2328, %v2326
        %v2332 = vshll.u32 %v2274, 16
        %v2334 = vrot.slane %v2332, 1
        %v2335 = vsel %vm748, %v2330, %v2334
        %v2336 = vshrl.u32 %v2274, 16
        %v2338 = vor.u32 %v2336, %v2334
        %v2340 = vshll.u32 %v2275, 16
        %v2342 = vrot.slane %v2340, 1
        %v2343 = vsel %vm748, %v2338, %v2342
        %v2368 = vunpack.c.l.b16 %v2217
        %v2369 = vunpack.c.l.b16 %v2218
        %v2370 = vunpack.c.l.b16 %v2219
        %v2371 = vunpack.c.l.b16 %v2220
        %v2372 = vunpack.c.l.b16 %v2221
        %v2373 = vunpack.c.l.b16 %v2222
        %v2374 = vunpack.c.l.b16 %v2223
        %v2375 = vunpack.c.l.b16 %v2224
        %v2376 = vunpack.c.l.b16 %v2225
        %v2377 = vunpack.c.l.b16 %v2226
        %v2378 = vunpack.c.l.b16 %v2227
        %v2379 = vunpack.c.l.b16 %v2228
        %v2380 = vunpack.c.l.b16 %v2229
        %v2381 = vunpack.c.l.b16 %v2230
        %v2382 = vunpack.c.l.b16 %v2231
        %v2383 = vunpack.c.l.b16 %v2232
        %v2384 = vpack.c.b16 %v2369, %v2368
        %v2385 = vpack.c.b16 %v2371, %v2370
        %v2386 = vpack.c.b16 %v2373, %v2372
        %v2387 = vpack.c.b16 %v2375, %v2374
        %v2388 = vpack.c.b16 %v2377, %v2376
        %v2389 = vpack.c.b16 %v2379, %v2378
        %v2390 = vpack.c.b16 %v2381, %v2380
        %v2391 = vpack.c.b16 %v2383, %v2382
        %2400 = vmatprep.subr.bf16.mxu0 0
        %2401 = vmatpush1.bf16.msra.mxu0 %v2391
        %2402 = vmatprep.subr.bf16.mxu0 0
        %2403 = vmatpush1.bf16.msra.mxu0 %v2390
        %2404 = vmatprep.subr.bf16.mxu0 0
        %2405 = vmatpush1.bf16.msra.mxu0 %v2389
        %2406 = vmatprep.subr.bf16.mxu0 0
        %2407 = vmatpush1.bf16.msra.mxu0 %v2388
        %2408 = vmatprep.subr.bf16.mxu0 0
        %2409 = vmatpush1.bf16.msra.mxu0 %v2387
        %2410 = vmatprep.subr.bf16.mxu0 0
        %2411 = vmatpush1.bf16.msra.mxu0 %v2386
        %2412 = vmatprep.subr.bf16.mxu0 0
        %2413 = vmatpush1.bf16.msra.mxu0 %v2385
        %2414 = vmatprep.subr.bf16.mxu0 0
        %2415 = vmatpush1.bf16.msra.mxu0 %v2384
        %2416 = vmatprep.subr.bf16.mxu0 0
        %2417 = vmatpush2.bf16.msra.mxu0 0
        %2418 = vmatprep.subr.bf16.mxu0 0
        %2419 = vmatpush2.bf16.msra.mxu0 0
        %2420 = vmatprep.subr.bf16.mxu0 0
        %2421 = vmatpush2.bf16.msra.mxu0 0
        %2422 = vmatprep.subr.bf16.mxu0 0
        %2423 = vmatpush2.bf16.msra.mxu0 0
        %2424 = vmatprep.subr.bf16.mxu0 0
        %2425 = vmatpush2.bf16.msra.mxu0 0
        %2426 = vmatprep.subr.bf16.mxu0 0
        %2427 = vmatpush2.bf16.msra.mxu0 0
        %2428 = vmatprep.subr.bf16.mxu0 0
        %2429 = vmatpush2.bf16.msra.mxu0 0
        %2430 = vmatprep.subr.bf16.mxu0 0
        %2431 = vmatpush2.bf16.msra.mxu0 0
        %2432 = vmatprep.mubr.bf16.mxu0 0
        %2433 = vmatmul.mubr.bf16.gmra.mxu0 %v2287
        %v2434 = vpop.f32.mrf.mxu0
        %v2435 = vadd.f32 0.0, %v2434
        %v2436 = vpop.f32.mrf.mxu0
        %v2437 = vpop.f32.mrf.mxu0
        %v2438 = vadd.f32 0.0, %v2437
        %v2439 = vpop.f32.mrf.mxu0
        %2440 = vmatprep.mubr.bf16.mxu0 0
        %2441 = vmatmul.mubr.bf16.gmra.mxu0 %v2295
        %v2442 = vpop.f32.mrf.mxu0
        %v2443 = vadd.f32 0.0, %v2442
        %v2444 = vpop.f32.mrf.mxu0
        %v2445 = vpop.f32.mrf.mxu0
        %v2446 = vadd.f32 0.0, %v2445
        %v2447 = vpop.f32.mrf.mxu0
        %2448 = vmatprep.mubr.bf16.mxu0 0
        %2449 = vmatmul.mubr.bf16.gmra.mxu0 %v2303
        %v2450 = vpop.f32.mrf.mxu0
        %v2451 = vadd.f32 0.0, %v2450
        %v2452 = vpop.f32.mrf.mxu0
        %v2453 = vpop.f32.mrf.mxu0
        %v2454 = vadd.f32 0.0, %v2453
        %v2455 = vpop.f32.mrf.mxu0
        %2456 = vmatprep.mubr.bf16.mxu0 0
        %2457 = vmatmul.mubr.bf16.gmra.mxu0 %v2311
        %v2458 = vpop.f32.mrf.mxu0
        %v2459 = vadd.f32 0.0, %v2458
        %v2460 = vpop.f32.mrf.mxu0
        %v2461 = vpop.f32.mrf.mxu0
        %v2462 = vadd.f32 0.0, %v2461
        %v2463 = vpop.f32.mrf.mxu0
        %2464 = vmatprep.mubr.bf16.mxu0 0
        %2465 = vmatmul.mubr.bf16.gmra.mxu0 %v2319
        %v2466 = vpop.f32.mrf.mxu0
        %v2467 = vadd.f32 0.0, %v2466
        %v2468 = vpop.f32.mrf.mxu0
        %v2469 = vpop.f32.mrf.mxu0
        %v2470 = vadd.f32 0.0, %v2469
        %v2471 = vpop.f32.mrf.mxu0
        %2472 = vmatprep.mubr.bf16.mxu0 0
        %2473 = vmatmul.mubr.bf16.gmra.mxu0 %v2327
        %v2474 = vpop.f32.mrf.mxu0
        %v2475 = vadd.f32 0.0, %v2474
        %v2476 = vpop.f32.mrf.mxu0
        %v2477 = vpop.f32.mrf.mxu0
        %v2478 = vadd.f32 0.0, %v2477
        %v2479 = vpop.f32.mrf.mxu0
        %2480 = vmatprep.mubr.bf16.mxu0 0
        %2481 = vmatmul.mubr.bf16.gmra.mxu0 %v2335
        %v2482 = vpop.f32.mrf.mxu0
        %v2483 = vadd.f32 0.0, %v2482
        %v2484 = vpop.f32.mrf.mxu0
        %v2485 = vpop.f32.mrf.mxu0
        %v2486 = vadd.f32 0.0, %v2485
        %v2487 = vpop.f32.mrf.mxu0
        %2488 = vmatprep.mubr.bf16.mxu0 0
        %2489 = vmatmul.mubr.bf16.gmra.mxu0 %v2343
        %v2490 = vpop.f32.mrf.mxu0
        %v2491 = vadd.f32 0.0, %v2490
        %v2492 = vpop.f32.mrf.mxu0
        %v2493 = vpop.f32.mrf.mxu0
        %v2494 = vadd.f32 0.0, %v2493
        %v2495 = vpop.f32.mrf.mxu0
        %2496 = vdwg.mxu0
        %v2497 = vadd.f32 %v2183, %v2435
        %v2498 = vadd.f32 %v2184, %v2438
        %v2499 = vadd.f32 %v2185, %v2443
        %v2500 = vadd.f32 %v2186, %v2446
        %v2501 = vadd.f32 %v2187, %v2451
        %v2502 = vadd.f32 %v2188, %v2454
        %v2503 = vadd.f32 %v2189, %v2459
        %v2504 = vadd.f32 %v2190, %v2462
        %v2505 = vadd.f32 %v2191, %v2467
        %v2506 = vadd.f32 %v2192, %v2470
        %v2507 = vadd.f32 %v2193, %v2475
        %v2508 = vadd.f32 %v2194, %v2478
        %v2509 = vadd.f32 %v2195, %v2483
        %v2510 = vadd.f32 %v2196, %v2486
        %v2511 = vadd.f32 %v2197, %v2491
        %v2512 = vadd.f32 %v2198, %v2494
        %v2513 = vld [vmem:[#allocation2 + $0x18] sm:$0xe]
        %s2514 = scalar_lea.vmem [#allocation8], 512
        %v2515 = vld [vmem:[%s2514] sm:$0xf]
        %v2516 = vld [vmem:[%s2514 + $0x4] sm:$0xf]
        %v2517 = vld [vmem:[%s2514 + $0x8] sm:$0xf]
        %v2518 = vld [vmem:[%s2514 + $0xc] sm:$0xf]
        %v2519 = vld [vmem:[%s2514 + $0x10] sm:$0xf]
        %v2520 = vld [vmem:[%s2514 + $0x14] sm:$0xf]
        %v2521 = vld [vmem:[%s2514 + $0x18] sm:$0xf]
        %v2522 = vld [vmem:[%s2514 + $0x1c] sm:$0xf]
        %v2523 = vld [vmem:[%s2514 + $0x20] sm:$0xf]
        %v2524 = vld [vmem:[%s2514 + $0x24] sm:$0xf]
        %v2525 = vld [vmem:[%s2514 + $0x28] sm:$0xf]
        %v2526 = vld [vmem:[%s2514 + $0x2c] sm:$0xf]
        %v2527 = vld [vmem:[%s2514 + $0x30] sm:$0xf]
        %v2528 = vld [vmem:[%s2514 + $0x34] sm:$0xf]
        %v2529 = vld [vmem:[%s2514 + $0x38] sm:$0xf]
        %v2530 = vld [vmem:[%s2514 + $0x3c] sm:$0xf]
        %v2532 = vunpack.c.l.b16 %v2513
        %v2533 = vpack.c.b16 %v2251, %v2532
        %v2534 = vrot.slane %v2533, 1
        %v2535 = vrot.slane %v2268, 1
        %v2536 = vsel %vm1007, %v2534, %v2535
        %v2537 = vrot.slane %v2269, 1
        %v2538 = vsel %vm1007, %v2535, %v2537
        %v2539 = vrot.slane %v2270, 1
        %v2540 = vsel %vm1007, %v2537, %v2539
        %v2541 = vrot.slane %v2271, 1
        %v2542 = vsel %vm1007, %v2539, %v2541
        %v2543 = vrot.slane %v2272, 1
        %v2544 = vsel %vm1007, %v2541, %v2543
        %v2545 = vrot.slane %v2273, 1
        %v2546 = vsel %vm1007, %v2543, %v2545
        %v2547 = vrot.slane %v2274, 1
        %v2548 = vsel %vm1007, %v2545, %v2547
        %v2549 = vrot.slane %v2275, 1
        %v2550 = vsel %vm1007, %v2547, %v2549
        %v2575 = vunpack.c.l.b16 %v2515
        %v2576 = vunpack.c.l.b16 %v2516
        %v2577 = vunpack.c.l.b16 %v2517
        %v2578 = vunpack.c.l.b16 %v2518
        %v2579 = vunpack.c.l.b16 %v2519
        %v2580 = vunpack.c.l.b16 %v2520
        %v2581 = vunpack.c.l.b16 %v2521
        %v2582 = vunpack.c.l.b16 %v2522
        %v2583 = vunpack.c.l.b16 %v2523
        %v2584 = vunpack.c.l.b16 %v2524
        %v2585 = vunpack.c.l.b16 %v2525
        %v2586 = vunpack.c.l.b16 %v2526
        %v2587 = vunpack.c.l.b16 %v2527
        %v2588 = vunpack.c.l.b16 %v2528
        %v2589 = vunpack.c.l.b16 %v2529
        %v2590 = vunpack.c.l.b16 %v2530
        %v2591 = vpack.c.b16 %v2576, %v2575
        %v2592 = vpack.c.b16 %v2578, %v2577
        %v2593 = vpack.c.b16 %v2580, %v2579
        %v2594 = vpack.c.b16 %v2582, %v2581
        %v2595 = vpack.c.b16 %v2584, %v2583
        %v2596 = vpack.c.b16 %v2586, %v2585
        %v2597 = vpack.c.b16 %v2588, %v2587
        %v2598 = vpack.c.b16 %v2590, %v2589
        %2607 = vmatprep.subr.bf16.mxu0 0
        %2608 = vmatpush1.bf16.msra.mxu0 %v2598
        %2609 = vmatprep.subr.bf16.mxu0 0
        %2610 = vmatpush1.bf16.msra.mxu0 %v2597
        %2611 = vmatprep.subr.bf16.mxu0 0
        %2612 = vmatpush1.bf16.msra.mxu0 %v2596
        %2613 = vmatprep.subr.bf16.mxu0 0
        %2614 = vmatpush1.bf16.msra.mxu0 %v2595
        %2615 = vmatprep.subr.bf16.mxu0 0
        %2616 = vmatpush1.bf16.msra.mxu0 %v2594
        %2617 = vmatprep.subr.bf16.mxu0 0
        %2618 = vmatpush1.bf16.msra.mxu0 %v2593
        %2619 = vmatprep.subr.bf16.mxu0 0
        %2620 = vmatpush1.bf16.msra.mxu0 %v2592
        %2621 = vmatprep.subr.bf16.mxu0 0
        %2622 = vmatpush1.bf16.msra.mxu0 %v2591
        %2623 = vmatprep.subr.bf16.mxu0 0
        %2624 = vmatpush2.bf16.msra.mxu0 0
        %2625 = vmatprep.subr.bf16.mxu0 0
        %2626 = vmatpush2.bf16.msra.mxu0 0
        %2627 = vmatprep.subr.bf16.mxu0 0
        %2628 = vmatpush2.bf16.msra.mxu0 0
        %2629 = vmatprep.subr.bf16.mxu0 0
        %2630 = vmatpush2.bf16.msra.mxu0 0
        %2631 = vmatprep.subr.bf16.mxu0 0
        %2632 = vmatpush2.bf16.msra.mxu0 0
        %2633 = vmatprep.subr.bf16.mxu0 0
        %2634 = vmatpush2.bf16.msra.mxu0 0
        %2635 = vmatprep.subr.bf16.mxu0 0
        %2636 = vmatpush2.bf16.msra.mxu0 0
        %2637 = vmatprep.subr.bf16.mxu0 0
        %2638 = vmatpush2.bf16.msra.mxu0 0
        %2639 = vmatprep.mubr.bf16.mxu0 0
        %2640 = vmatmul.mubr.bf16.gmra.mxu0 %v2536
        %v2641 = vpop.f32.mrf.mxu0
        %v2642 = vadd.f32 0.0, %v2641
        %v2643 = vpop.f32.mrf.mxu0
        %v2644 = vpop.f32.mrf.mxu0
        %v2645 = vadd.f32 0.0, %v2644
        %v2646 = vpop.f32.mrf.mxu0
        %2647 = vmatprep.mubr.bf16.mxu0 0
        %2648 = vmatmul.mubr.bf16.gmra.mxu0 %v2538
        %v2649 = vpop.f32.mrf.mxu0
        %v2650 = vadd.f32 0.0, %v2649
        %v2651 = vpop.f32.mrf.mxu0
        %v2652 = vpop.f32.mrf.mxu0
        %v2653 = vadd.f32 0.0, %v2652
        %v2654 = vpop.f32.mrf.mxu0
        %2655 = vmatprep.mubr.bf16.mxu0 0
        %2656 = vmatmul.mubr.bf16.gmra.mxu0 %v2540
        %v2657 = vpop.f32.mrf.mxu0
        %v2658 = vadd.f32 0.0, %v2657
        %v2659 = vpop.f32.mrf.mxu0
        %v2660 = vpop.f32.mrf.mxu0
        %v2661 = vadd.f32 0.0, %v2660
        %v2662 = vpop.f32.mrf.mxu0
        %2663 = vmatprep.mubr.bf16.mxu0 0
        %2664 = vmatmul.mubr.bf16.gmra.mxu0 %v2542
        %v2665 = vpop.f32.mrf.mxu0
        %v2666 = vadd.f32 0.0, %v2665
        %v2667 = vpop.f32.mrf.mxu0
        %v2668 = vpop.f32.mrf.mxu0
        %v2669 = vadd.f32 0.0, %v2668
        %v2670 = vpop.f32.mrf.mxu0
        %2671 = vmatprep.mubr.bf16.mxu0 0
        %2672 = vmatmul.mubr.bf16.gmra.mxu0 %v2544
        %v2673 = vpop.f32.mrf.mxu0
        %v2674 = vadd.f32 0.0, %v2673
        %v2675 = vpop.f32.mrf.mxu0
        %v2676 = vpop.f32.mrf.mxu0
        %v2677 = vadd.f32 0.0, %v2676
        %v2678 = vpop.f32.mrf.mxu0
        %2679 = vmatprep.mubr.bf16.mxu0 0
        %2680 = vmatmul.mubr.bf16.gmra.mxu0 %v2546
        %v2681 = vpop.f32.mrf.mxu0
        %v2682 = vadd.f32 0.0, %v2681
        %v2683 = vpop.f32.mrf.mxu0
        %v2684 = vpop.f32.mrf.mxu0
        %v2685 = vadd.f32 0.0, %v2684
        %v2686 = vpop.f32.mrf.mxu0
        %2687 = vmatprep.mubr.bf16.mxu0 0
        %2688 = vmatmul.mubr.bf16.gmra.mxu0 %v2548
        %v2689 = vpop.f32.mrf.mxu0
        %v2690 = vadd.f32 0.0, %v2689
        %v2691 = vpop.f32.mrf.mxu0
        %v2692 = vpop.f32.mrf.mxu0
        %v2693 = vadd.f32 0.0, %v2692
        %v2694 = vpop.f32.mrf.mxu0
        %2695 = vmatprep.mubr.bf16.mxu0 0
        %2696 = vmatmul.mubr.bf16.gmra.mxu0 %v2550
        %v2697 = vpop.f32.mrf.mxu0
        %v2698 = vadd.f32 0.0, %v2697
        %v2699 = vpop.f32.mrf.mxu0
        %v2700 = vpop.f32.mrf.mxu0
        %v2701 = vadd.f32 0.0, %v2700
        %v2702 = vpop.f32.mrf.mxu0
        %2703 = vdwg.mxu0
        %v2704 = vadd.f32 %v2497, %v2642
        %v2705 = vadd.f32 %v2498, %v2645
        %v2706 = vadd.f32 %v2499, %v2650
        %v2707 = vadd.f32 %v2500, %v2653
        %v2708 = vadd.f32 %v2501, %v2658
        %v2709 = vadd.f32 %v2502, %v2661
        %v2710 = vadd.f32 %v2503, %v2666
        %v2711 = vadd.f32 %v2504, %v2669
        %v2712 = vadd.f32 %v2505, %v2674
        %v2713 = vadd.f32 %v2506, %v2677
        %v2714 = vadd.f32 %v2507, %v2682
        %v2715 = vadd.f32 %v2508, %v2685
        %v2716 = vadd.f32 %v2509, %v2690
        %v2717 = vadd.f32 %v2510, %v2693
        %v2718 = vadd.f32 %v2511, %v2698
        %v2719 = vadd.f32 %v2512, %v2701
        %v2720 = vmax.f32 %v2704, 0.0
        %v2721 = vmax.f32 %v2705, 0.0
        %v2722 = vmax.f32 %v2706, 0.0
        %v2723 = vmax.f32 %v2707, 0.0
        %v2724 = vmax.f32 %v2708, 0.0
        %v2725 = vmax.f32 %v2709, 0.0
        %v2726 = vmax.f32 %v2710, 0.0
        %v2727 = vmax.f32 %v2711, 0.0
        %v2728 = vmax.f32 %v2712, 0.0
        %v2729 = vmax.f32 %v2713, 0.0
        %v2730 = vmax.f32 %v2714, 0.0
        %v2731 = vmax.f32 %v2715, 0.0
        %v2732 = vmax.f32 %v2716, 0.0
        %v2733 = vmax.f32 %v2717, 0.0
        %v2734 = vmax.f32 %v2718, 0.0
        %v2735 = vmax.f32 %v2719, 0.0
        %2736 = vst [vmem:[%s303] sm:$0xff] %v2720
        %2737 = vst [vmem:[%s303 + $0x8] sm:$0xff] %v2721
        %2738 = vst [vmem:[%s303 + $0x10] sm:$0xff] %v2722
        %2739 = vst [vmem:[%s303 + $0x18] sm:$0xff] %v2723
        %2740 = vst [vmem:[%s303 + $0x20] sm:$0xff] %v2724
        %2741 = vst [vmem:[%s303 + $0x28] sm:$0xff] %v2725
        %2742 = vst [vmem:[%s303 + $0x30] sm:$0xff] %v2726
        %2743 = vst [vmem:[%s303 + $0x38] sm:$0xff] %v2727
        %2744 = vst [vmem:[%s303 + $0x40] sm:$0xff] %v2728
        %2745 = vst [vmem:[%s303 + $0x48] sm:$0xff] %v2729
        %2746 = vst [vmem:[%s303 + $0x50] sm:$0xff] %v2730
        %2747 = vst [vmem:[%s303 + $0x58] sm:$0xff] %v2731
        %2748 = vst [vmem:[%s303 + $0x60] sm:$0xff] %v2732
        %2749 = vst [vmem:[%s303 + $0x68] sm:$0xff] %v2733
        %2750 = vst [vmem:[%s303 + $0x70] sm:$0xff] %v2734
        %2751 = vst [vmem:[%s303 + $0x78] sm:$0xff] %v2735
        %v2752 = vld [vmem:[#allocation2 + $0x40] sm:$0xf]
        %v2753 = vld [vmem:[#allocation2 + $0x44] sm:$0xf]
        %v2754 = vld [vmem:[#allocation2 + $0x48] sm:$0xf]
        %v2755 = vld [vmem:[#allocation2 + $0x4c] sm:$0xf]
        %v2756 = vld [vmem:[#allocation2 + $0x50] sm:$0xf]
        %v2757 = vld [vmem:[#allocation2 + $0x54] sm:$0xf]
        %v2758 = vld [vmem:[#allocation2 + $0x58] sm:$0xf]
        %v2759 = vld [vmem:[#allocation2 + $0x5c] sm:$0xf]
        %v2760 = vld [vmem:[#allocation2 + $0x60] sm:$0xf]
        %v2761 = vld [vmem:[#allocation2 + $0x64] sm:$0xf]
        %v2762 = vld [vmem:[#allocation2 + $0x68] sm:$0xf]
        %v2763 = vld [vmem:[#allocation2 + $0x6c] sm:$0xf]
        %v2764 = vld [vmem:[#allocation2 + $0x70] sm:$0xf]
        %v2765 = vld [vmem:[#allocation2 + $0x74] sm:$0xf]
        %v2766 = vld [vmem:[#allocation2 + $0x78] sm:$0xf]
        %v2767 = vld [vmem:[#allocation2 + $0x7c] sm:$0xf]
        %v2768 = vld [vmem:[#allocation8] sm:$0xf]
        %v2769 = vld [vmem:[#allocation8 + $0x4] sm:$0xf]
        %v2770 = vld [vmem:[#allocation8 + $0x8] sm:$0xf]
        %v2771 = vld [vmem:[#allocation8 + $0xc] sm:$0xf]
        %v2772 = vld [vmem:[#allocation8 + $0x10] sm:$0xf]
        %v2773 = vld [vmem:[#allocation8 + $0x14] sm:$0xf]
        %v2774 = vld [vmem:[#allocation8 + $0x18] sm:$0xf]
        %v2775 = vld [vmem:[#allocation8 + $0x1c] sm:$0xf]
        %v2776 = vld [vmem:[#allocation8 + $0x20] sm:$0xf]
        %v2777 = vld [vmem:[#allocation8 + $0x24] sm:$0xf]
        %v2778 = vld [vmem:[#allocation8 + $0x28] sm:$0xf]
        %v2779 = vld [vmem:[#allocation8 + $0x2c] sm:$0xf]
        %v2780 = vld [vmem:[#allocation8 + $0x30] sm:$0xf]
        %v2781 = vld [vmem:[#allocation8 + $0x34] sm:$0xf]
        %v2782 = vld [vmem:[#allocation8 + $0x38] sm:$0xf]
        %v2783 = vld [vmem:[#allocation8 + $0x3c] sm:$0xf]
        %v2800 = vunpack.c.l.b16 %v2752
        %v2801 = vunpack.c.l.b16 %v2753
        %v2802 = vunpack.c.l.b16 %v2754
        %v2803 = vunpack.c.l.b16 %v2755
        %v2804 = vunpack.c.l.b16 %v2756
        %v2805 = vunpack.c.l.b16 %v2757
        %v2806 = vunpack.c.l.b16 %v2758
        %v2807 = vunpack.c.l.b16 %v2759
        %v2808 = vunpack.c.l.b16 %v2760
        %v2809 = vunpack.c.l.b16 %v2761
        %v2810 = vunpack.c.l.b16 %v2762
        %v2811 = vunpack.c.l.b16 %v2763
        %v2812 = vunpack.c.l.b16 %v2764
        %v2813 = vunpack.c.l.b16 %v2765
        %v2814 = vunpack.c.l.b16 %v2766
        %v2815 = vunpack.c.l.b16 %v2767
        %v2816 = vpack.c.b16 %v2801, %v2800
        %v2817 = vpack.c.b16 %v2803, %v2802
        %v2818 = vpack.c.b16 %v2805, %v2804
        %v2819 = vpack.c.b16 %v2807, %v2806
        %v2820 = vpack.c.b16 %v2809, %v2808
        %v2821 = vpack.c.b16 %v2811, %v2810
        %v2822 = vpack.c.b16 %v2813, %v2812
        %v2823 = vpack.c.b16 %v2815, %v2814
        %v2848 = vunpack.c.l.b16 %v2768
        %v2849 = vunpack.c.l.b16 %v2769
        %v2850 = vunpack.c.l.b16 %v2770
        %v2851 = vunpack.c.l.b16 %v2771
        %v2852 = vunpack.c.l.b16 %v2772
        %v2853 = vunpack.c.l.b16 %v2773
        %v2854 = vunpack.c.l.b16 %v2774
        %v2855 = vunpack.c.l.b16 %v2775
        %v2856 = vunpack.c.l.b16 %v2776
        %v2857 = vunpack.c.l.b16 %v2777
        %v2858 = vunpack.c.l.b16 %v2778
        %v2859 = vunpack.c.l.b16 %v2779
        %v2860 = vunpack.c.l.b16 %v2780
        %v2861 = vunpack.c.l.b16 %v2781
        %v2862 = vunpack.c.l.b16 %v2782
        %v2863 = vunpack.c.l.b16 %v2783
        %v2864 = vpack.c.b16 %v2849, %v2848
        %v2865 = vpack.c.b16 %v2851, %v2850
        %v2866 = vpack.c.b16 %v2853, %v2852
        %v2867 = vpack.c.b16 %v2855, %v2854
        %v2868 = vpack.c.b16 %v2857, %v2856
        %v2869 = vpack.c.b16 %v2859, %v2858
        %v2870 = vpack.c.b16 %v2861, %v2860
        %v2871 = vpack.c.b16 %v2863, %v2862
        %2880 = vmatprep.subr.bf16.mxu0 0
        %2881 = vmatpush1.bf16.msra.mxu0 %v2871
        %2882 = vmatprep.subr.bf16.mxu0 0
        %2883 = vmatpush1.bf16.msra.mxu0 %v2870
        %2884 = vmatprep.subr.bf16.mxu0 0
        %2885 = vmatpush1.bf16.msra.mxu0 %v2869
        %2886 = vmatprep.subr.bf16.mxu0 0
        %2887 = vmatpush1.bf16.msra.mxu0 %v2868
        %2888 = vmatprep.subr.bf16.mxu0 0
        %2889 = vmatpush1.bf16.msra.mxu0 %v2867
        %2890 = vmatprep.subr.bf16.mxu0 0
        %2891 = vmatpush1.bf16.msra.mxu0 %v2866
        %2892 = vmatprep.subr.bf16.mxu0 0
        %2893 = vmatpush1.bf16.msra.mxu0 %v2865
        %2894 = vmatprep.subr.bf16.mxu0 0
        %2895 = vmatpush1.bf16.msra.mxu0 %v2864
        %2896 = vmatprep.subr.bf16.mxu0 0
        %2897 = vmatpush2.bf16.msra.mxu0 0
        %2898 = vmatprep.subr.bf16.mxu0 0
        %2899 = vmatpush2.bf16.msra.mxu0 0
        %2900 = vmatprep.subr.bf16.mxu0 0
        %2901 = vmatpush2.bf16.msra.mxu0 0
        %2902 = vmatprep.subr.bf16.mxu0 0
        %2903 = vmatpush2.bf16.msra.mxu0 0
        %2904 = vmatprep.subr.bf16.mxu0 0
        %2905 = vmatpush2.bf16.msra.mxu0 0
        %2906 = vmatprep.subr.bf16.mxu0 0
        %2907 = vmatpush2.bf16.msra.mxu0 0
        %2908 = vmatprep.subr.bf16.mxu0 0
        %2909 = vmatpush2.bf16.msra.mxu0 0
        %2910 = vmatprep.subr.bf16.mxu0 0
        %2911 = vmatpush2.bf16.msra.mxu0 0
        %2912 = vmatprep.mubr.bf16.mxu0 0
        %2913 = vmatmul.mubr.bf16.gmra.mxu0 %v2816
        %v2914 = vpop.f32.mrf.mxu0
        %v2915 = vadd.f32 0.0, %v2914
        %v2916 = vpop.f32.mrf.mxu0
        %v2917 = vpop.f32.mrf.mxu0
        %v2918 = vadd.f32 0.0, %v2917
        %v2919 = vpop.f32.mrf.mxu0
        %2920 = vmatprep.mubr.bf16.mxu0 0
        %2921 = vmatmul.mubr.bf16.gmra.mxu0 %v2817
        %v2922 = vpop.f32.mrf.mxu0
        %v2923 = vadd.f32 0.0, %v2922
        %v2924 = vpop.f32.mrf.mxu0
        %v2925 = vpop.f32.mrf.mxu0
        %v2926 = vadd.f32 0.0, %v2925
        %v2927 = vpop.f32.mrf.mxu0
        %2928 = vmatprep.mubr.bf16.mxu0 0
        %2929 = vmatmul.mubr.bf16.gmra.mxu0 %v2818
        %v2930 = vpop.f32.mrf.mxu0
        %v2931 = vadd.f32 0.0, %v2930
        %v2932 = vpop.f32.mrf.mxu0
        %v2933 = vpop.f32.mrf.mxu0
        %v2934 = vadd.f32 0.0, %v2933
        %v2935 = vpop.f32.mrf.mxu0
        %2936 = vmatprep.mubr.bf16.mxu0 0
        %2937 = vmatmul.mubr.bf16.gmra.mxu0 %v2819
        %v2938 = vpop.f32.mrf.mxu0
        %v2939 = vadd.f32 0.0, %v2938
        %v2940 = vpop.f32.mrf.mxu0
        %v2941 = vpop.f32.mrf.mxu0
        %v2942 = vadd.f32 0.0, %v2941
        %v2943 = vpop.f32.mrf.mxu0
        %2944 = vmatprep.mubr.bf16.mxu0 0
        %2945 = vmatmul.mubr.bf16.gmra.mxu0 %v2820
        %v2946 = vpop.f32.mrf.mxu0
        %v2947 = vadd.f32 0.0, %v2946
        %v2948 = vpop.f32.mrf.mxu0
        %v2949 = vpop.f32.mrf.mxu0
        %v2950 = vadd.f32 0.0, %v2949
        %v2951 = vpop.f32.mrf.mxu0
        %2952 = vmatprep.mubr.bf16.mxu0 0
        %2953 = vmatmul.mubr.bf16.gmra.mxu0 %v2821
        %v2954 = vpop.f32.mrf.mxu0
        %v2955 = vadd.f32 0.0, %v2954
        %v2956 = vpop.f32.mrf.mxu0
        %v2957 = vpop.f32.mrf.mxu0
        %v2958 = vadd.f32 0.0, %v2957
        %v2959 = vpop.f32.mrf.mxu0
        %2960 = vmatprep.mubr.bf16.mxu0 0
        %2961 = vmatmul.mubr.bf16.gmra.mxu0 %v2822
        %v2962 = vpop.f32.mrf.mxu0
        %v2963 = vadd.f32 0.0, %v2962
        %v2964 = vpop.f32.mrf.mxu0
        %v2965 = vpop.f32.mrf.mxu0
        %v2966 = vadd.f32 0.0, %v2965
        %v2967 = vpop.f32.mrf.mxu0
        %2968 = vmatprep.mubr.bf16.mxu0 0
        %2969 = vmatmul.mubr.bf16.gmra.mxu0 %v2823
        %v2970 = vpop.f32.mrf.mxu0
        %v2971 = vadd.f32 0.0, %v2970
        %v2972 = vpop.f32.mrf.mxu0
        %v2973 = vpop.f32.mrf.mxu0
        %v2974 = vadd.f32 0.0, %v2973
        %v2975 = vpop.f32.mrf.mxu0
        %2976 = vdwg.mxu0
        %v2977 = vadd.f32 %v428, %v2915
        %v2978 = vadd.f32 %v428, %v2918
        %v2979 = vadd.f32 %v428, %v2923
        %v2980 = vadd.f32 %v428, %v2926
        %v2981 = vadd.f32 %v428, %v2931
        %v2982 = vadd.f32 %v428, %v2934
        %v2983 = vadd.f32 %v428, %v2939
        %v2984 = vadd.f32 %v428, %v2942
        %v2985 = vadd.f32 %v428, %v2947
        %v2986 = vadd.f32 %v428, %v2950
        %v2987 = vadd.f32 %v428, %v2955
        %v2988 = vadd.f32 %v428, %v2958
        %v2989 = vadd.f32 %v428, %v2963
        %v2990 = vadd.f32 %v428, %v2966
        %v2991 = vadd.f32 %v428, %v2971
        %v2992 = vadd.f32 %v428, %v2974
        %v2993 = vld [vmem:[#allocation2 + $0x40] sm:$0xf]
        %v2994 = vld [vmem:[#allocation2 + $0x44] sm:$0xf]
        %v2995 = vld [vmem:[#allocation2 + $0x48] sm:$0xf]
        %v2996 = vld [vmem:[#allocation2 + $0x4c] sm:$0xf]
        %v2997 = vld [vmem:[#allocation2 + $0x50] sm:$0xf]
        %v2998 = vld [vmem:[#allocation2 + $0x54] sm:$0xf]
        %v2999 = vld [vmem:[#allocation2 + $0x58] sm:$0xf]
        %v3000 = vld [vmem:[#allocation2 + $0x5c] sm:$0xf]
        %v3001 = vld [vmem:[#allocation2 + $0x60] sm:$0xf]
        %v3002 = vld [vmem:[#allocation2 + $0x64] sm:$0xf]
        %v3003 = vld [vmem:[#allocation2 + $0x68] sm:$0xf]
        %v3004 = vld [vmem:[#allocation2 + $0x6c] sm:$0xf]
        %v3005 = vld [vmem:[#allocation2 + $0x70] sm:$0xf]
        %v3006 = vld [vmem:[#allocation2 + $0x74] sm:$0xf]
        %v3007 = vld [vmem:[#allocation2 + $0x78] sm:$0xf]
        %v3008 = vld [vmem:[#allocation2 + $0x7c] sm:$0xf]
        %v3009 = vld [vmem:[#allocation2 + $0x80] sm:$0x1]
        %v3010 = vld [vmem:[%s688] sm:$0xf]
        %v3011 = vld [vmem:[%s688 + $0x4] sm:$0xf]
        %v3012 = vld [vmem:[%s688 + $0x8] sm:$0xf]
        %v3013 = vld [vmem:[%s688 + $0xc] sm:$0xf]
        %v3014 = vld [vmem:[%s688 + $0x10] sm:$0xf]
        %v3015 = vld [vmem:[%s688 + $0x14] sm:$0xf]
        %v3016 = vld [vmem:[%s688 + $0x18] sm:$0xf]
        %v3017 = vld [vmem:[%s688 + $0x1c] sm:$0xf]
        %v3018 = vld [vmem:[%s688 + $0x20] sm:$0xf]
        %v3019 = vld [vmem:[%s688 + $0x24] sm:$0xf]
        %v3020 = vld [vmem:[%s688 + $0x28] sm:$0xf]
        %v3021 = vld [vmem:[%s688 + $0x2c] sm:$0xf]
        %v3022 = vld [vmem:[%s688 + $0x30] sm:$0xf]
        %v3023 = vld [vmem:[%s688 + $0x34] sm:$0xf]
        %v3024 = vld [vmem:[%s688 + $0x38] sm:$0xf]
        %v3025 = vld [vmem:[%s688 + $0x3c] sm:$0xf]
        %v3043 = vunpack.c.l.b16 %v2993
        %v3044 = vunpack.c.l.b16 %v2994
        %v3045 = vunpack.c.l.b16 %v2995
        %v3046 = vunpack.c.l.b16 %v2996
        %v3047 = vunpack.c.l.b16 %v2997
        %v3048 = vunpack.c.l.b16 %v2998
        %v3049 = vunpack.c.l.b16 %v2999
        %v3050 = vunpack.c.l.b16 %v3000
        %v3051 = vunpack.c.l.b16 %v3001
        %v3052 = vunpack.c.l.b16 %v3002
        %v3053 = vunpack.c.l.b16 %v3003
        %v3054 = vunpack.c.l.b16 %v3004
        %v3055 = vunpack.c.l.b16 %v3005
        %v3056 = vunpack.c.l.b16 %v3006
        %v3057 = vunpack.c.l.b16 %v3007
        %v3058 = vunpack.c.l.b16 %v3008
        %v3059 = vunpack.c.l.b16 %v3009
        %v3060 = vpack.c.b16 %v3044, %v3043
        %v3061 = vpack.c.b16 %v3046, %v3045
        %v3062 = vpack.c.b16 %v3048, %v3047
        %v3063 = vpack.c.b16 %v3050, %v3049
        %v3064 = vpack.c.b16 %v3052, %v3051
        %v3065 = vpack.c.b16 %v3054, %v3053
        %v3066 = vpack.c.b16 %v3056, %v3055
        %v3067 = vpack.c.b16 %v3058, %v3057
        %v3068 = vpack.c.b16 %v3059, %v3059
        %v3070 = vshrl.u32 %v3060, 16
        %v3072 = vshll.u32 %v3060, 16
        %v3074 = vrot.slane %v3072, 1
        %v3075 = vor.u32 %v3070, %v3074
        %v3077 = vshll.u32 %v3061, 16
        %v3079 = vrot.slane %v3077, 1
        %v3080 = vsel %vm748, %v3075, %v3079
        %v3081 = vshrl.u32 %v3061, 16
        %v3083 = vor.u32 %v3081, %v3079
        %v3085 = vshll.u32 %v3062, 16
        %v3087 = vrot.slane %v3085, 1
        %v3088 = vsel %vm748, %v3083, %v3087
        %v3089 = vshrl.u32 %v3062, 16
        %v3091 = vor.u32 %v3089, %v3087
        %v3093 = vshll.u32 %v3063, 16
        %v3095 = vrot.slane %v3093, 1
        %v3096 = vsel %vm748, %v3091, %v3095
        %v3097 = vshrl.u32 %v3063, 16
        %v3099 = vor.u32 %v3097, %v3095
        %v3101 = vshll.u32 %v3064, 16
        %v3103 = vrot.slane %v3101, 1
        %v3104 = vsel %vm748, %v3099, %v3103
        %v3105 = vshrl.u32 %v3064, 16
        %v3107 = vor.u32 %v3105, %v3103
        %v3109 = vshll.u32 %v3065, 16
        %v3111 = vrot.slane %v3109, 1
        %v3112 = vsel %vm748, %v3107, %v3111
        %v3113 = vshrl.u32 %v3065, 16
        %v3115 = vor.u32 %v3113, %v3111
        %v3117 = vshll.u32 %v3066, 16
        %v3119 = vrot.slane %v3117, 1
        %v3120 = vsel %vm748, %v3115, %v3119
        %v3121 = vshrl.u32 %v3066, 16
        %v3123 = vor.u32 %v3121, %v3119
        %v3125 = vshll.u32 %v3067, 16
        %v3127 = vrot.slane %v3125, 1
        %v3128 = vsel %vm748, %v3123, %v3127
        %v3129 = vshrl.u32 %v3067, 16
        %v3131 = vor.u32 %v3129, %v3127
        %v3133 = vshll.u32 %v3068, 16
        %v3135 = vrot.slane %v3133, 1
        %v3136 = vsel %vm748, %v3131, %v3135
        %v3161 = vunpack.c.l.b16 %v3010
        %v3162 = vunpack.c.l.b16 %v3011
        %v3163 = vunpack.c.l.b16 %v3012
        %v3164 = vunpack.c.l.b16 %v3013
        %v3165 = vunpack.c.l.b16 %v3014
        %v3166 = vunpack.c.l.b16 %v3015
        %v3167 = vunpack.c.l.b16 %v3016
        %v3168 = vunpack.c.l.b16 %v3017
        %v3169 = vunpack.c.l.b16 %v3018
        %v3170 = vunpack.c.l.b16 %v3019
        %v3171 = vunpack.c.l.b16 %v3020
        %v3172 = vunpack.c.l.b16 %v3021
        %v3173 = vunpack.c.l.b16 %v3022
        %v3174 = vunpack.c.l.b16 %v3023
        %v3175 = vunpack.c.l.b16 %v3024
        %v3176 = vunpack.c.l.b16 %v3025
        %v3177 = vpack.c.b16 %v3162, %v3161
        %v3178 = vpack.c.b16 %v3164, %v3163
        %v3179 = vpack.c.b16 %v3166, %v3165
        %v3180 = vpack.c.b16 %v3168, %v3167
        %v3181 = vpack.c.b16 %v3170, %v3169
        %v3182 = vpack.c.b16 %v3172, %v3171
        %v3183 = vpack.c.b16 %v3174, %v3173
        %v3184 = vpack.c.b16 %v3176, %v3175
        %3193 = vmatprep.subr.bf16.mxu0 0
        %3194 = vmatpush1.bf16.msra.mxu0 %v3184
        %3195 = vmatprep.subr.bf16.mxu0 0
        %3196 = vmatpush1.bf16.msra.mxu0 %v3183
        %3197 = vmatprep.subr.bf16.mxu0 0
        %3198 = vmatpush1.bf16.msra.mxu0 %v3182
        %3199 = vmatprep.subr.bf16.mxu0 0
        %3200 = vmatpush1.bf16.msra.mxu0 %v3181
        %3201 = vmatprep.subr.bf16.mxu0 0
        %3202 = vmatpush1.bf16.msra.mxu0 %v3180
        %3203 = vmatprep.subr.bf16.mxu0 0
        %3204 = vmatpush1.bf16.msra.mxu0 %v3179
        %3205 = vmatprep.subr.bf16.mxu0 0
        %3206 = vmatpush1.bf16.msra.mxu0 %v3178
        %3207 = vmatprep.subr.bf16.mxu0 0
        %3208 = vmatpush1.bf16.msra.mxu0 %v3177
        %3209 = vmatprep.subr.bf16.mxu0 0
        %3210 = vmatpush2.bf16.msra.mxu0 0
        %3211 = vmatprep.subr.bf16.mxu0 0
        %3212 = vmatpush2.bf16.msra.mxu0 0
        %3213 = vmatprep.subr.bf16.mxu0 0
        %3214 = vmatpush2.bf16.msra.mxu0 0
        %3215 = vmatprep.subr.bf16.mxu0 0
        %3216 = vmatpush2.bf16.msra.mxu0 0
        %3217 = vmatprep.subr.bf16.mxu0 0
        %3218 = vmatpush2.bf16.msra.mxu0 0
        %3219 = vmatprep.subr.bf16.mxu0 0
        %3220 = vmatpush2.bf16.msra.mxu0 0
        %3221 = vmatprep.subr.bf16.mxu0 0
        %3222 = vmatpush2.bf16.msra.mxu0 0
        %3223 = vmatprep.subr.bf16.mxu0 0
        %3224 = vmatpush2.bf16.msra.mxu0 0
        %3225 = vmatprep.mubr.bf16.mxu0 0
        %3226 = vmatmul.mubr.bf16.gmra.mxu0 %v3080
        %v3227 = vpop.f32.mrf.mxu0
        %v3228 = vadd.f32 0.0, %v3227
        %v3229 = vpop.f32.mrf.mxu0
        %v3230 = vpop.f32.mrf.mxu0
        %v3231 = vadd.f32 0.0, %v3230
        %v3232 = vpop.f32.mrf.mxu0
        %3233 = vmatprep.mubr.bf16.mxu0 0
        %3234 = vmatmul.mubr.bf16.gmra.mxu0 %v3088
        %v3235 = vpop.f32.mrf.mxu0
        %v3236 = vadd.f32 0.0, %v3235
        %v3237 = vpop.f32.mrf.mxu0
        %v3238 = vpop.f32.mrf.mxu0
        %v3239 = vadd.f32 0.0, %v3238
        %v3240 = vpop.f32.mrf.mxu0
        %3241 = vmatprep.mubr.bf16.mxu0 0
        %3242 = vmatmul.mubr.bf16.gmra.mxu0 %v3096
        %v3243 = vpop.f32.mrf.mxu0
        %v3244 = vadd.f32 0.0, %v3243
        %v3245 = vpop.f32.mrf.mxu0
        %v3246 = vpop.f32.mrf.mxu0
        %v3247 = vadd.f32 0.0, %v3246
        %v3248 = vpop.f32.mrf.mxu0
        %3249 = vmatprep.mubr.bf16.mxu0 0
        %3250 = vmatmul.mubr.bf16.gmra.mxu0 %v3104
        %v3251 = vpop.f32.mrf.mxu0
        %v3252 = vadd.f32 0.0, %v3251
        %v3253 = vpop.f32.mrf.mxu0
        %v3254 = vpop.f32.mrf.mxu0
        %v3255 = vadd.f32 0.0, %v3254
        %v3256 = vpop.f32.mrf.mxu0
        %3257 = vmatprep.mubr.bf16.mxu0 0
        %3258 = vmatmul.mubr.bf16.gmra.mxu0 %v3112
        %v3259 = vpop.f32.mrf.mxu0
        %v3260 = vadd.f32 0.0, %v3259
        %v3261 = vpop.f32.mrf.mxu0
        %v3262 = vpop.f32.mrf.mxu0
        %v3263 = vadd.f32 0.0, %v3262
        %v3264 = vpop.f32.mrf.mxu0
        %3265 = vmatprep.mubr.bf16.mxu0 0
        %3266 = vmatmul.mubr.bf16.gmra.mxu0 %v3120
        %v3267 = vpop.f32.mrf.mxu0
        %v3268 = vadd.f32 0.0, %v3267
        %v3269 = vpop.f32.mrf.mxu0
        %v3270 = vpop.f32.mrf.mxu0
        %v3271 = vadd.f32 0.0, %v3270
        %v3272 = vpop.f32.mrf.mxu0
        %3273 = vmatprep.mubr.bf16.mxu0 0
        %3274 = vmatmul.mubr.bf16.gmra.mxu0 %v3128
        %v3275 = vpop.f32.mrf.mxu0
        %v3276 = vadd.f32 0.0, %v3275
        %v3277 = vpop.f32.mrf.mxu0
        %v3278 = vpop.f32.mrf.mxu0
        %v3279 = vadd.f32 0.0, %v3278
        %v3280 = vpop.f32.mrf.mxu0
        %3281 = vmatprep.mubr.bf16.mxu0 0
        %3282 = vmatmul.mubr.bf16.gmra.mxu0 %v3136
        %v3283 = vpop.f32.mrf.mxu0
        %v3284 = vadd.f32 0.0, %v3283
        %v3285 = vpop.f32.mrf.mxu0
        %v3286 = vpop.f32.mrf.mxu0
        %v3287 = vadd.f32 0.0, %v3286
        %v3288 = vpop.f32.mrf.mxu0
        %3289 = vdwg.mxu0
        %v3290 = vadd.f32 %v2977, %v3228
        %v3291 = vadd.f32 %v2978, %v3231
        %v3292 = vadd.f32 %v2979, %v3236
        %v3293 = vadd.f32 %v2980, %v3239
        %v3294 = vadd.f32 %v2981, %v3244
        %v3295 = vadd.f32 %v2982, %v3247
        %v3296 = vadd.f32 %v2983, %v3252
        %v3297 = vadd.f32 %v2984, %v3255
        %v3298 = vadd.f32 %v2985, %v3260
        %v3299 = vadd.f32 %v2986, %v3263
        %v3300 = vadd.f32 %v2987, %v3268
        %v3301 = vadd.f32 %v2988, %v3271
        %v3302 = vadd.f32 %v2989, %v3276
        %v3303 = vadd.f32 %v2990, %v3279
        %v3304 = vadd.f32 %v2991, %v3284
        %v3305 = vadd.f32 %v2992, %v3287
        %v3306 = vld [vmem:[#allocation2 + $0x40] sm:$0xe]
        %v3307 = vld [vmem:[%s987] sm:$0xf]
        %v3308 = vld [vmem:[%s987 + $0x4] sm:$0xf]
        %v3309 = vld [vmem:[%s987 + $0x8] sm:$0xf]
        %v3310 = vld [vmem:[%s987 + $0xc] sm:$0xf]
        %v3311 = vld [vmem:[%s987 + $0x10] sm:$0xf]
        %v3312 = vld [vmem:[%s987 + $0x14] sm:$0xf]
        %v3313 = vld [vmem:[%s987 + $0x18] sm:$0xf]
        %v3314 = vld [vmem:[%s987 + $0x1c] sm:$0xf]
        %v3315 = vld [vmem:[%s987 + $0x20] sm:$0xf]
        %v3316 = vld [vmem:[%s987 + $0x24] sm:$0xf]
        %v3317 = vld [vmem:[%s987 + $0x28] sm:$0xf]
        %v3318 = vld [vmem:[%s987 + $0x2c] sm:$0xf]
        %v3319 = vld [vmem:[%s987 + $0x30] sm:$0xf]
        %v3320 = vld [vmem:[%s987 + $0x34] sm:$0xf]
        %v3321 = vld [vmem:[%s987 + $0x38] sm:$0xf]
        %v3322 = vld [vmem:[%s987 + $0x3c] sm:$0xf]
        %v3324 = vunpack.c.l.b16 %v3306
        %v3325 = vpack.c.b16 %v3044, %v3324
        %v3326 = vrot.slane %v3325, 1
        %v3327 = vrot.slane %v3061, 1
        %v3328 = vsel %vm1007, %v3326, %v3327
        %v3329 = vrot.slane %v3062, 1
        %v3330 = vsel %vm1007, %v3327, %v3329
        %v3331 = vrot.slane %v3063, 1
        %v3332 = vsel %vm1007, %v3329, %v3331
        %v3333 = vrot.slane %v3064, 1
        %v3334 = vsel %vm1007, %v3331, %v3333
        %v3335 = vrot.slane %v3065, 1
        %v3336 = vsel %vm1007, %v3333, %v3335
        %v3337 = vrot.slane %v3066, 1
        %v3338 = vsel %vm1007, %v3335, %v3337
        %v3339 = vrot.slane %v3067, 1
        %v3340 = vsel %vm1007, %v3337, %v3339
        %v3341 = vrot.slane %v3068, 1
        %v3342 = vsel %vm1007, %v3339, %v3341
        %v3367 = vunpack.c.l.b16 %v3307
        %v3368 = vunpack.c.l.b16 %v3308
        %v3369 = vunpack.c.l.b16 %v3309
        %v3370 = vunpack.c.l.b16 %v3310
        %v3371 = vunpack.c.l.b16 %v3311
        %v3372 = vunpack.c.l.b16 %v3312
        %v3373 = vunpack.c.l.b16 %v3313
        %v3374 = vunpack.c.l.b16 %v3314
        %v3375 = vunpack.c.l.b16 %v3315
        %v3376 = vunpack.c.l.b16 %v3316
        %v3377 = vunpack.c.l.b16 %v3317
        %v3378 = vunpack.c.l.b16 %v3318
        %v3379 = vunpack.c.l.b16 %v3319
        %v3380 = vunpack.c.l.b16 %v3320
        %v3381 = vunpack.c.l.b16 %v3321
        %v3382 = vunpack.c.l.b16 %v3322
        %v3383 = vpack.c.b16 %v3368, %v3367
        %v3384 = vpack.c.b16 %v3370, %v3369
        %v3385 = vpack.c.b16 %v3372, %v3371
        %v3386 = vpack.c.b16 %v3374, %v3373
        %v3387 = vpack.c.b16 %v3376, %v3375
        %v3388 = vpack.c.b16 %v3378, %v3377
        %v3389 = vpack.c.b16 %v3380, %v3379
        %v3390 = vpack.c.b16 %v3382, %v3381
        %3399 = vmatprep.subr.bf16.mxu0 0
        %3400 = vmatpush1.bf16.msra.mxu0 %v3390
        %3401 = vmatprep.subr.bf16.mxu0 0
        %3402 = vmatpush1.bf16.msra.mxu0 %v3389
        %3403 = vmatprep.subr.bf16.mxu0 0
        %3404 = vmatpush1.bf16.msra.mxu0 %v3388
        %3405 = vmatprep.subr.bf16.mxu0 0
        %3406 = vmatpush1.bf16.msra.mxu0 %v3387
        %3407 = vmatprep.subr.bf16.mxu0 0
        %3408 = vmatpush1.bf16.msra.mxu0 %v3386
        %3409 = vmatprep.subr.bf16.mxu0 0
        %3410 = vmatpush1.bf16.msra.mxu0 %v3385
        %3411 = vmatprep.subr.bf16.mxu0 0
        %3412 = vmatpush1.bf16.msra.mxu0 %v3384
        %3413 = vmatprep.subr.bf16.mxu0 0
        %3414 = vmatpush1.bf16.msra.mxu0 %v3383
        %3415 = vmatprep.subr.bf16.mxu0 0
        %3416 = vmatpush2.bf16.msra.mxu0 0
        %3417 = vmatprep.subr.bf16.mxu0 0
        %3418 = vmatpush2.bf16.msra.mxu0 0
        %3419 = vmatprep.subr.bf16.mxu0 0
        %3420 = vmatpush2.bf16.msra.mxu0 0
        %3421 = vmatprep.subr.bf16.mxu0 0
        %3422 = vmatpush2.bf16.msra.mxu0 0
        %3423 = vmatprep.subr.bf16.mxu0 0
        %3424 = vmatpush2.bf16.msra.mxu0 0
        %3425 = vmatprep.subr.bf16.mxu0 0
        %3426 = vmatpush2.bf16.msra.mxu0 0
        %3427 = vmatprep.subr.bf16.mxu0 0
        %3428 = vmatpush2.bf16.msra.mxu0 0
        %3429 = vmatprep.subr.bf16.mxu0 0
        %3430 = vmatpush2.bf16.msra.mxu0 0
        %3431 = vmatprep.mubr.bf16.mxu0 0
        %3432 = vmatmul.mubr.bf16.gmra.mxu0 %v3328
        %v3433 = vpop.f32.mrf.mxu0
        %v3434 = vadd.f32 0.0, %v3433
        %v3435 = vpop.f32.mrf.mxu0
        %v3436 = vpop.f32.mrf.mxu0
        %v3437 = vadd.f32 0.0, %v3436
        %v3438 = vpop.f32.mrf.mxu0
        %3439 = vmatprep.mubr.bf16.mxu0 0
        %3440 = vmatmul.mubr.bf16.gmra.mxu0 %v3330
        %v3441 = vpop.f32.mrf.mxu0
        %v3442 = vadd.f32 0.0, %v3441
        %v3443 = vpop.f32.mrf.mxu0
        %v3444 = vpop.f32.mrf.mxu0
        %v3445 = vadd.f32 0.0, %v3444
        %v3446 = vpop.f32.mrf.mxu0
        %3447 = vmatprep.mubr.bf16.mxu0 0
        %3448 = vmatmul.mubr.bf16.gmra.mxu0 %v3332
        %v3449 = vpop.f32.mrf.mxu0
        %v3450 = vadd.f32 0.0, %v3449
        %v3451 = vpop.f32.mrf.mxu0
        %v3452 = vpop.f32.mrf.mxu0
        %v3453 = vadd.f32 0.0, %v3452
        %v3454 = vpop.f32.mrf.mxu0
        %3455 = vmatprep.mubr.bf16.mxu0 0
        %3456 = vmatmul.mubr.bf16.gmra.mxu0 %v3334
        %v3457 = vpop.f32.mrf.mxu0
        %v3458 = vadd.f32 0.0, %v3457
        %v3459 = vpop.f32.mrf.mxu0
        %v3460 = vpop.f32.mrf.mxu0
        %v3461 = vadd.f32 0.0, %v3460
        %v3462 = vpop.f32.mrf.mxu0
        %3463 = vmatprep.mubr.bf16.mxu0 0
        %3464 = vmatmul.mubr.bf16.gmra.mxu0 %v3336
        %v3465 = vpop.f32.mrf.mxu0
        %v3466 = vadd.f32 0.0, %v3465
        %v3467 = vpop.f32.mrf.mxu0
        %v3468 = vpop.f32.mrf.mxu0
        %v3469 = vadd.f32 0.0, %v3468
        %v3470 = vpop.f32.mrf.mxu0
        %3471 = vmatprep.mubr.bf16.mxu0 0
        %3472 = vmatmul.mubr.bf16.gmra.mxu0 %v3338
        %v3473 = vpop.f32.mrf.mxu0
        %v3474 = vadd.f32 0.0, %v3473
        %v3475 = vpop.f32.mrf.mxu0
        %v3476 = vpop.f32.mrf.mxu0
        %v3477 = vadd.f32 0.0, %v3476
        %v3478 = vpop.f32.mrf.mxu0
        %3479 = vmatprep.mubr.bf16.mxu0 0
        %3480 = vmatmul.mubr.bf16.gmra.mxu0 %v3340
        %v3481 = vpop.f32.mrf.mxu0
        %v3482 = vadd.f32 0.0, %v3481
        %v3483 = vpop.f32.mrf.mxu0
        %v3484 = vpop.f32.mrf.mxu0
        %v3485 = vadd.f32 0.0, %v3484
        %v3486 = vpop.f32.mrf.mxu0
        %3487 = vmatprep.mubr.bf16.mxu0 0
        %3488 = vmatmul.mubr.bf16.gmra.mxu0 %v3342
        %v3489 = vpop.f32.mrf.mxu0
        %v3490 = vadd.f32 0.0, %v3489
        %v3491 = vpop.f32.mrf.mxu0
        %v3492 = vpop.f32.mrf.mxu0
        %v3493 = vadd.f32 0.0, %v3492
        %v3494 = vpop.f32.mrf.mxu0
        %3495 = vdwg.mxu0
        %v3496 = vadd.f32 %v3290, %v3434
        %v3497 = vadd.f32 %v3291, %v3437
        %v3498 = vadd.f32 %v3292, %v3442
        %v3499 = vadd.f32 %v3293, %v3445
        %v3500 = vadd.f32 %v3294, %v3450
        %v3501 = vadd.f32 %v3295, %v3453
        %v3502 = vadd.f32 %v3296, %v3458
        %v3503 = vadd.f32 %v3297, %v3461
        %v3504 = vadd.f32 %v3298, %v3466
        %v3505 = vadd.f32 %v3299, %v3469
        %v3506 = vadd.f32 %v3300, %v3474
        %v3507 = vadd.f32 %v3301, %v3477
        %v3508 = vadd.f32 %v3302, %v3482
        %v3509 = vadd.f32 %v3303, %v3485
        %v3510 = vadd.f32 %v3304, %v3490
        %v3511 = vadd.f32 %v3305, %v3493
        %v3512 = vld [vmem:[#allocation2 + $0x4c] sm:$0xf]
        %v3513 = vld [vmem:[#allocation2 + $0x50] sm:$0xf]
        %v3514 = vld [vmem:[#allocation2 + $0x54] sm:$0xf]
        %v3515 = vld [vmem:[#allocation2 + $0x58] sm:$0xf]
        %v3516 = vld [vmem:[#allocation2 + $0x5c] sm:$0xf]
        %v3517 = vld [vmem:[#allocation2 + $0x60] sm:$0xf]
        %v3518 = vld [vmem:[#allocation2 + $0x64] sm:$0xf]
        %v3519 = vld [vmem:[#allocation2 + $0x68] sm:$0xf]
        %v3520 = vld [vmem:[#allocation2 + $0x6c] sm:$0xf]
        %v3521 = vld [vmem:[#allocation2 + $0x70] sm:$0xf]
        %v3522 = vld [vmem:[#allocation2 + $0x74] sm:$0xf]
        %v3523 = vld [vmem:[#allocation2 + $0x78] sm:$0xf]
        %v3524 = vld [vmem:[#allocation2 + $0x7c] sm:$0xf]
        %v3525 = vld [vmem:[#allocation2 + $0x80] sm:$0xf]
        %v3526 = vld [vmem:[#allocation2 + $0x84] sm:$0xf]
        %v3527 = vld [vmem:[#allocation2 + $0x88] sm:$0xf]
        %v3528 = vld [vmem:[%s1210] sm:$0xf]
        %v3529 = vld [vmem:[%s1210 + $0x4] sm:$0xf]
        %v3530 = vld [vmem:[%s1210 + $0x8] sm:$0xf]
        %v3531 = vld [vmem:[%s1210 + $0xc] sm:$0xf]
        %v3532 = vld [vmem:[%s1210 + $0x10] sm:$0xf]
        %v3533 = vld [vmem:[%s1210 + $0x14] sm:$0xf]
        %v3534 = vld [vmem:[%s1210 + $0x18] sm:$0xf]
        %v3535 = vld [vmem:[%s1210 + $0x1c] sm:$0xf]
        %v3536 = vld [vmem:[%s1210 + $0x20] sm:$0xf]
        %v3537 = vld [vmem:[%s1210 + $0x24] sm:$0xf]
        %v3538 = vld [vmem:[%s1210 + $0x28] sm:$0xf]
        %v3539 = vld [vmem:[%s1210 + $0x2c] sm:$0xf]
        %v3540 = vld [vmem:[%s1210 + $0x30] sm:$0xf]
        %v3541 = vld [vmem:[%s1210 + $0x34] sm:$0xf]
        %v3542 = vld [vmem:[%s1210 + $0x38] sm:$0xf]
        %v3543 = vld [vmem:[%s1210 + $0x3c] sm:$0xf]
        %v3560 = vunpack.c.l.b16 %v3512
        %v3561 = vunpack.c.l.b16 %v3513
        %v3562 = vunpack.c.l.b16 %v3514
        %v3563 = vunpack.c.l.b16 %v3515
        %v3564 = vunpack.c.l.b16 %v3516
        %v3565 = vunpack.c.l.b16 %v3517
        %v3566 = vunpack.c.l.b16 %v3518
        %v3567 = vunpack.c.l.b16 %v3519
        %v3568 = vunpack.c.l.b16 %v3520
        %v3569 = vunpack.c.l.b16 %v3521
        %v3570 = vunpack.c.l.b16 %v3522
        %v3571 = vunpack.c.l.b16 %v3523
        %v3572 = vunpack.c.l.b16 %v3524
        %v3573 = vunpack.c.l.b16 %v3525
        %v3574 = vunpack.c.l.b16 %v3526
        %v3575 = vunpack.c.l.b16 %v3527
        %v3576 = vpack.c.b16 %v3561, %v3560
        %v3577 = vpack.c.b16 %v3563, %v3562
        %v3578 = vpack.c.b16 %v3565, %v3564
        %v3579 = vpack.c.b16 %v3567, %v3566
        %v3580 = vpack.c.b16 %v3569, %v3568
        %v3581 = vpack.c.b16 %v3571, %v3570
        %v3582 = vpack.c.b16 %v3573, %v3572
        %v3583 = vpack.c.b16 %v3575, %v3574
        %v3608 = vunpack.c.l.b16 %v3528
        %v3609 = vunpack.c.l.b16 %v3529
        %v3610 = vunpack.c.l.b16 %v3530
        %v3611 = vunpack.c.l.b16 %v3531
        %v3612 = vunpack.c.l.b16 %v3532
        %v3613 = vunpack.c.l.b16 %v3533
        %v3614 = vunpack.c.l.b16 %v3534
        %v3615 = vunpack.c.l.b16 %v3535
        %v3616 = vunpack.c.l.b16 %v3536
        %v3617 = vunpack.c.l.b16 %v3537
        %v3618 = vunpack.c.l.b16 %v3538
        %v3619 = vunpack.c.l.b16 %v3539
        %v3620 = vunpack.c.l.b16 %v3540
        %v3621 = vunpack.c.l.b16 %v3541
        %v3622 = vunpack.c.l.b16 %v3542
        %v3623 = vunpack.c.l.b16 %v3543
        %v3624 = vpack.c.b16 %v3609, %v3608
        %v3625 = vpack.c.b16 %v3611, %v3610
        %v3626 = vpack.c.b16 %v3613, %v3612
        %v3627 = vpack.c.b16 %v3615, %v3614
        %v3628 = vpack.c.b16 %v3617, %v3616
        %v3629 = vpack.c.b16 %v3619, %v3618
        %v3630 = vpack.c.b16 %v3621, %v3620
        %v3631 = vpack.c.b16 %v3623, %v3622
        %3640 = vmatprep.subr.bf16.mxu0 0
        %3641 = vmatpush1.bf16.msra.mxu0 %v3631
        %3642 = vmatprep.subr.bf16.mxu0 0
        %3643 = vmatpush1.bf16.msra.mxu0 %v3630
        %3644 = vmatprep.subr.bf16.mxu0 0
        %3645 = vmatpush1.bf16.msra.mxu0 %v3629
        %3646 = vmatprep.subr.bf16.mxu0 0
        %3647 = vmatpush1.bf16.msra.mxu0 %v3628
        %3648 = vmatprep.subr.bf16.mxu0 0
        %3649 = vmatpush1.bf16.msra.mxu0 %v3627
        %3650 = vmatprep.subr.bf16.mxu0 0
        %3651 = vmatpush1.bf16.msra.mxu0 %v3626
        %3652 = vmatprep.subr.bf16.mxu0 0
        %3653 = vmatpush1.bf16.msra.mxu0 %v3625
        %3654 = vmatprep.subr.bf16.mxu0 0
        %3655 = vmatpush1.bf16.msra.mxu0 %v3624
        %3656 = vmatprep.subr.bf16.mxu0 0
        %3657 = vmatpush2.bf16.msra.mxu0 0
        %3658 = vmatprep.subr.bf16.mxu0 0
        %3659 = vmatpush2.bf16.msra.mxu0 0
        %3660 = vmatprep.subr.bf16.mxu0 0
        %3661 = vmatpush2.bf16.msra.mxu0 0
        %3662 = vmatprep.subr.bf16.mxu0 0
        %3663 = vmatpush2.bf16.msra.mxu0 0
        %3664 = vmatprep.subr.bf16.mxu0 0
        %3665 = vmatpush2.bf16.msra.mxu0 0
        %3666 = vmatprep.subr.bf16.mxu0 0
        %3667 = vmatpush2.bf16.msra.mxu0 0
        %3668 = vmatprep.subr.bf16.mxu0 0
        %3669 = vmatpush2.bf16.msra.mxu0 0
        %3670 = vmatprep.subr.bf16.mxu0 0
        %3671 = vmatpush2.bf16.msra.mxu0 0
        %3672 = vmatprep.mubr.bf16.mxu0 0
        %3673 = vmatmul.mubr.bf16.gmra.mxu0 %v3576
        %v3674 = vpop.f32.mrf.mxu0
        %v3675 = vadd.f32 0.0, %v3674
        %v3676 = vpop.f32.mrf.mxu0
        %v3677 = vpop.f32.mrf.mxu0
        %v3678 = vadd.f32 0.0, %v3677
        %v3679 = vpop.f32.mrf.mxu0
        %3680 = vmatprep.mubr.bf16.mxu0 0
        %3681 = vmatmul.mubr.bf16.gmra.mxu0 %v3577
        %v3682 = vpop.f32.mrf.mxu0
        %v3683 = vadd.f32 0.0, %v3682
        %v3684 = vpop.f32.mrf.mxu0
        %v3685 = vpop.f32.mrf.mxu0
        %v3686 = vadd.f32 0.0, %v3685
        %v3687 = vpop.f32.mrf.mxu0
        %3688 = vmatprep.mubr.bf16.mxu0 0
        %3689 = vmatmul.mubr.bf16.gmra.mxu0 %v3578
        %v3690 = vpop.f32.mrf.mxu0
        %v3691 = vadd.f32 0.0, %v3690
        %v3692 = vpop.f32.mrf.mxu0
        %v3693 = vpop.f32.mrf.mxu0
        %v3694 = vadd.f32 0.0, %v3693
        %v3695 = vpop.f32.mrf.mxu0
        %3696 = vmatprep.mubr.bf16.mxu0 0
        %3697 = vmatmul.mubr.bf16.gmra.mxu0 %v3579
        %v3698 = vpop.f32.mrf.mxu0
        %v3699 = vadd.f32 0.0, %v3698
        %v3700 = vpop.f32.mrf.mxu0
        %v3701 = vpop.f32.mrf.mxu0
        %v3702 = vadd.f32 0.0, %v3701
        %v3703 = vpop.f32.mrf.mxu0
        %3704 = vmatprep.mubr.bf16.mxu0 0
        %3705 = vmatmul.mubr.bf16.gmra.mxu0 %v3580
        %v3706 = vpop.f32.mrf.mxu0
        %v3707 = vadd.f32 0.0, %v3706
        %v3708 = vpop.f32.mrf.mxu0
        %v3709 = vpop.f32.mrf.mxu0
        %v3710 = vadd.f32 0.0, %v3709
        %v3711 = vpop.f32.mrf.mxu0
        %3712 = vmatprep.mubr.bf16.mxu0 0
        %3713 = vmatmul.mubr.bf16.gmra.mxu0 %v3581
        %v3714 = vpop.f32.mrf.mxu0
        %v3715 = vadd.f32 0.0, %v3714
        %v3716 = vpop.f32.mrf.mxu0
        %v3717 = vpop.f32.mrf.mxu0
        %v3718 = vadd.f32 0.0, %v3717
        %v3719 = vpop.f32.mrf.mxu0
        %3720 = vmatprep.mubr.bf16.mxu0 0
        %3721 = vmatmul.mubr.bf16.gmra.mxu0 %v3582
        %v3722 = vpop.f32.mrf.mxu0
        %v3723 = vadd.f32 0.0, %v3722
        %v3724 = vpop.f32.mrf.mxu0
        %v3725 = vpop.f32.mrf.mxu0
        %v3726 = vadd.f32 0.0, %v3725
        %v3727 = vpop.f32.mrf.mxu0
        %3728 = vmatprep.mubr.bf16.mxu0 0
        %3729 = vmatmul.mubr.bf16.gmra.mxu0 %v3583
        %v3730 = vpop.f32.mrf.mxu0
        %v3731 = vadd.f32 0.0, %v3730
        %v3732 = vpop.f32.mrf.mxu0
        %v3733 = vpop.f32.mrf.mxu0
        %v3734 = vadd.f32 0.0, %v3733
        %v3735 = vpop.f32.mrf.mxu0
        %3736 = vdwg.mxu0
        %v3737 = vadd.f32 %v3496, %v3675
        %v3738 = vadd.f32 %v3497, %v3678
        %v3739 = vadd.f32 %v3498, %v3683
        %v3740 = vadd.f32 %v3499, %v3686
        %v3741 = vadd.f32 %v3500, %v3691
        %v3742 = vadd.f32 %v3501, %v3694
        %v3743 = vadd.f32 %v3502, %v3699
        %v3744 = vadd.f32 %v3503, %v3702
        %v3745 = vadd.f32 %v3504, %v3707
        %v3746 = vadd.f32 %v3505, %v3710
        %v3747 = vadd.f32 %v3506, %v3715
        %v3748 = vadd.f32 %v3507, %v3718
        %v3749 = vadd.f32 %v3508, %v3723
        %v3750 = vadd.f32 %v3509, %v3726
        %v3751 = vadd.f32 %v3510, %v3731
        %v3752 = vadd.f32 %v3511, %v3734
        %v3753 = vld [vmem:[#allocation2 + $0x4c] sm:$0xf]
        %v3754 = vld [vmem:[#allocation2 + $0x50] sm:$0xf]
        %v3755 = vld [vmem:[#allocation2 + $0x54] sm:$0xf]
        %v3756 = vld [vmem:[#allocation2 + $0x58] sm:$0xf]
        %v3757 = vld [vmem:[#allocation2 + $0x5c] sm:$0xf]
        %v3758 = vld [vmem:[#allocation2 + $0x60] sm:$0xf]
        %v3759 = vld [vmem:[#allocation2 + $0x64] sm:$0xf]
        %v3760 = vld [vmem:[#allocation2 + $0x68] sm:$0xf]
        %v3761 = vld [vmem:[#allocation2 + $0x6c] sm:$0xf]
        %v3762 = vld [vmem:[#allocation2 + $0x70] sm:$0xf]
        %v3763 = vld [vmem:[#allocation2 + $0x74] sm:$0xf]
        %v3764 = vld [vmem:[#allocation2 + $0x78] sm:$0xf]
        %v3765 = vld [vmem:[#allocation2 + $0x7c] sm:$0xf]
        %v3766 = vld [vmem:[#allocation2 + $0x80] sm:$0xf]
        %v3767 = vld [vmem:[#allocation2 + $0x84] sm:$0xf]
        %v3768 = vld [vmem:[#allocation2 + $0x88] sm:$0xf]
        %v3769 = vld [vmem:[#allocation2 + $0x8c] sm:$0x1]
        %v3770 = vld [vmem:[%s1453] sm:$0xf]
        %v3771 = vld [vmem:[%s1453 + $0x4] sm:$0xf]
        %v3772 = vld [vmem:[%s1453 + $0x8] sm:$0xf]
        %v3773 = vld [vmem:[%s1453 + $0xc] sm:$0xf]
        %v3774 = vld [vmem:[%s1453 + $0x10] sm:$0xf]
        %v3775 = vld [vmem:[%s1453 + $0x14] sm:$0xf]
        %v3776 = vld [vmem:[%s1453 + $0x18] sm:$0xf]
        %v3777 = vld [vmem:[%s1453 + $0x1c] sm:$0xf]
        %v3778 = vld [vmem:[%s1453 + $0x20] sm:$0xf]
        %v3779 = vld [vmem:[%s1453 + $0x24] sm:$0xf]
        %v3780 = vld [vmem:[%s1453 + $0x28] sm:$0xf]
        %v3781 = vld [vmem:[%s1453 + $0x2c] sm:$0xf]
        %v3782 = vld [vmem:[%s1453 + $0x30] sm:$0xf]
        %v3783 = vld [vmem:[%s1453 + $0x34] sm:$0xf]
        %v3784 = vld [vmem:[%s1453 + $0x38] sm:$0xf]
        %v3785 = vld [vmem:[%s1453 + $0x3c] sm:$0xf]
        %v3803 = vunpack.c.l.b16 %v3753
        %v3804 = vunpack.c.l.b16 %v3754
        %v3805 = vunpack.c.l.b16 %v3755
        %v3806 = vunpack.c.l.b16 %v3756
        %v3807 = vunpack.c.l.b16 %v3757
        %v3808 = vunpack.c.l.b16 %v3758
        %v3809 = vunpack.c.l.b16 %v3759
        %v3810 = vunpack.c.l.b16 %v3760
        %v3811 = vunpack.c.l.b16 %v3761
        %v3812 = vunpack.c.l.b16 %v3762
        %v3813 = vunpack.c.l.b16 %v3763
        %v3814 = vunpack.c.l.b16 %v3764
        %v3815 = vunpack.c.l.b16 %v3765
        %v3816 = vunpack.c.l.b16 %v3766
        %v3817 = vunpack.c.l.b16 %v3767
        %v3818 = vunpack.c.l.b16 %v3768
        %v3819 = vunpack.c.l.b16 %v3769
        %v3820 = vpack.c.b16 %v3804, %v3803
        %v3821 = vpack.c.b16 %v3806, %v3805
        %v3822 = vpack.c.b16 %v3808, %v3807
        %v3823 = vpack.c.b16 %v3810, %v3809
        %v3824 = vpack.c.b16 %v3812, %v3811
        %v3825 = vpack.c.b16 %v3814, %v3813
        %v3826 = vpack.c.b16 %v3816, %v3815
        %v3827 = vpack.c.b16 %v3818, %v3817
        %v3828 = vpack.c.b16 %v3819, %v3819
        %v3830 = vshrl.u32 %v3820, 16
        %v3832 = vshll.u32 %v3820, 16
        %v3834 = vrot.slane %v3832, 1
        %v3835 = vor.u32 %v3830, %v3834
        %v3837 = vshll.u32 %v3821, 16
        %v3839 = vrot.slane %v3837, 1
        %v3840 = vsel %vm748, %v3835, %v3839
        %v3841 = vshrl.u32 %v3821, 16
        %v3843 = vor.u32 %v3841, %v3839
        %v3845 = vshll.u32 %v3822, 16
        %v3847 = vrot.slane %v3845, 1
        %v3848 = vsel %vm748, %v3843, %v3847
        %v3849 = vshrl.u32 %v3822, 16
        %v3851 = vor.u32 %v3849, %v3847
        %v3853 = vshll.u32 %v3823, 16
        %v3855 = vrot.slane %v3853, 1
        %v3856 = vsel %vm748, %v3851, %v3855
        %v3857 = vshrl.u32 %v3823, 16
        %v3859 = vor.u32 %v3857, %v3855
        %v3861 = vshll.u32 %v3824, 16
        %v3863 = vrot.slane %v3861, 1
        %v3864 = vsel %vm748, %v3859, %v3863
        %v3865 = vshrl.u32 %v3824, 16
        %v3867 = vor.u32 %v3865, %v3863
        %v3869 = vshll.u32 %v3825, 16
        %v3871 = vrot.slane %v3869, 1
        %v3872 = vsel %vm748, %v3867, %v3871
        %v3873 = vshrl.u32 %v3825, 16
        %v3875 = vor.u32 %v3873, %v3871
        %v3877 = vshll.u32 %v3826, 16
        %v3879 = vrot.slane %v3877, 1
        %v3880 = vsel %vm748, %v3875, %v3879
        %v3881 = vshrl.u32 %v3826, 16
        %v3883 = vor.u32 %v3881, %v3879
        %v3885 = vshll.u32 %v3827, 16
        %v3887 = vrot.slane %v3885, 1
        %v3888 = vsel %vm748, %v3883, %v3887
        %v3889 = vshrl.u32 %v3827, 16
        %v3891 = vor.u32 %v3889, %v3887
        %v3893 = vshll.u32 %v3828, 16
        %v3895 = vrot.slane %v3893, 1
        %v3896 = vsel %vm748, %v3891, %v3895
        %v3921 = vunpack.c.l.b16 %v3770
        %v3922 = vunpack.c.l.b16 %v3771
        %v3923 = vunpack.c.l.b16 %v3772
        %v3924 = vunpack.c.l.b16 %v3773
        %v3925 = vunpack.c.l.b16 %v3774
        %v3926 = vunpack.c.l.b16 %v3775
        %v3927 = vunpack.c.l.b16 %v3776
        %v3928 = vunpack.c.l.b16 %v3777
        %v3929 = vunpack.c.l.b16 %v3778
        %v3930 = vunpack.c.l.b16 %v3779
        %v3931 = vunpack.c.l.b16 %v3780
        %v3932 = vunpack.c.l.b16 %v3781
        %v3933 = vunpack.c.l.b16 %v3782
        %v3934 = vunpack.c.l.b16 %v3783
        %v3935 = vunpack.c.l.b16 %v3784
        %v3936 = vunpack.c.l.b16 %v3785
        %v3937 = vpack.c.b16 %v3922, %v3921
        %v3938 = vpack.c.b16 %v3924, %v3923
        %v3939 = vpack.c.b16 %v3926, %v3925
        %v3940 = vpack.c.b16 %v3928, %v3927
        %v3941 = vpack.c.b16 %v3930, %v3929
        %v3942 = vpack.c.b16 %v3932, %v3931
        %v3943 = vpack.c.b16 %v3934, %v3933
        %v3944 = vpack.c.b16 %v3936, %v3935
        %3953 = vmatprep.subr.bf16.mxu0 0
        %3954 = vmatpush1.bf16.msra.mxu0 %v3944
        %3955 = vmatprep.subr.bf16.mxu0 0
        %3956 = vmatpush1.bf16.msra.mxu0 %v3943
        %3957 = vmatprep.subr.bf16.mxu0 0
        %3958 = vmatpush1.bf16.msra.mxu0 %v3942
        %3959 = vmatprep.subr.bf16.mxu0 0
        %3960 = vmatpush1.bf16.msra.mxu0 %v3941
        %3961 = vmatprep.subr.bf16.mxu0 0
        %3962 = vmatpush1.bf16.msra.mxu0 %v3940
        %3963 = vmatprep.subr.bf16.mxu0 0
        %3964 = vmatpush1.bf16.msra.mxu0 %v3939
        %3965 = vmatprep.subr.bf16.mxu0 0
        %3966 = vmatpush1.bf16.msra.mxu0 %v3938
        %3967 = vmatprep.subr.bf16.mxu0 0
        %3968 = vmatpush1.bf16.msra.mxu0 %v3937
        %3969 = vmatprep.subr.bf16.mxu0 0
        %3970 = vmatpush2.bf16.msra.mxu0 0
        %3971 = vmatprep.subr.bf16.mxu0 0
        %3972 = vmatpush2.bf16.msra.mxu0 0
        %3973 = vmatprep.subr.bf16.mxu0 0
        %3974 = vmatpush2.bf16.msra.mxu0 0
        %3975 = vmatprep.subr.bf16.mxu0 0
        %3976 = vmatpush2.bf16.msra.mxu0 0
        %3977 = vmatprep.subr.bf16.mxu0 0
        %3978 = vmatpush2.bf16.msra.mxu0 0
        %3979 = vmatprep.subr.bf16.mxu0 0
        %3980 = vmatpush2.bf16.msra.mxu0 0
        %3981 = vmatprep.subr.bf16.mxu0 0
        %3982 = vmatpush2.bf16.msra.mxu0 0
        %3983 = vmatprep.subr.bf16.mxu0 0
        %3984 = vmatpush2.bf16.msra.mxu0 0
        %3985 = vmatprep.mubr.bf16.mxu0 0
        %3986 = vmatmul.mubr.bf16.gmra.mxu0 %v3840
        %v3987 = vpop.f32.mrf.mxu0
        %v3988 = vadd.f32 0.0, %v3987
        %v3989 = vpop.f32.mrf.mxu0
        %v3990 = vpop.f32.mrf.mxu0
        %v3991 = vadd.f32 0.0, %v3990
        %v3992 = vpop.f32.mrf.mxu0
        %3993 = vmatprep.mubr.bf16.mxu0 0
        %3994 = vmatmul.mubr.bf16.gmra.mxu0 %v3848
        %v3995 = vpop.f32.mrf.mxu0
        %v3996 = vadd.f32 0.0, %v3995
        %v3997 = vpop.f32.mrf.mxu0
        %v3998 = vpop.f32.mrf.mxu0
        %v3999 = vadd.f32 0.0, %v3998
        %v4000 = vpop.f32.mrf.mxu0
        %4001 = vmatprep.mubr.bf16.mxu0 0
        %4002 = vmatmul.mubr.bf16.gmra.mxu0 %v3856
        %v4003 = vpop.f32.mrf.mxu0
        %v4004 = vadd.f32 0.0, %v4003
        %v4005 = vpop.f32.mrf.mxu0
        %v4006 = vpop.f32.mrf.mxu0
        %v4007 = vadd.f32 0.0, %v4006
        %v4008 = vpop.f32.mrf.mxu0
        %4009 = vmatprep.mubr.bf16.mxu0 0
        %4010 = vmatmul.mubr.bf16.gmra.mxu0 %v3864
        %v4011 = vpop.f32.mrf.mxu0
        %v4012 = vadd.f32 0.0, %v4011
        %v4013 = vpop.f32.mrf.mxu0
        %v4014 = vpop.f32.mrf.mxu0
        %v4015 = vadd.f32 0.0, %v4014
        %v4016 = vpop.f32.mrf.mxu0
        %4017 = vmatprep.mubr.bf16.mxu0 0
        %4018 = vmatmul.mubr.bf16.gmra.mxu0 %v3872
        %v4019 = vpop.f32.mrf.mxu0
        %v4020 = vadd.f32 0.0, %v4019
        %v4021 = vpop.f32.mrf.mxu0
        %v4022 = vpop.f32.mrf.mxu0
        %v4023 = vadd.f32 0.0, %v4022
        %v4024 = vpop.f32.mrf.mxu0
        %4025 = vmatprep.mubr.bf16.mxu0 0
        %4026 = vmatmul.mubr.bf16.gmra.mxu0 %v3880
        %v4027 = vpop.f32.mrf.mxu0
        %v4028 = vadd.f32 0.0, %v4027
        %v4029 = vpop.f32.mrf.mxu0
        %v4030 = vpop.f32.mrf.mxu0
        %v4031 = vadd.f32 0.0, %v4030
        %v4032 = vpop.f32.mrf.mxu0
        %4033 = vmatprep.mubr.bf16.mxu0 0
        %4034 = vmatmul.mubr.bf16.gmra.mxu0 %v3888
        %v4035 = vpop.f32.mrf.mxu0
        %v4036 = vadd.f32 0.0, %v4035
        %v4037 = vpop.f32.mrf.mxu0
        %v4038 = vpop.f32.mrf.mxu0
        %v4039 = vadd.f32 0.0, %v4038
        %v4040 = vpop.f32.mrf.mxu0
        %4041 = vmatprep.mubr.bf16.mxu0 0
        %4042 = vmatmul.mubr.bf16.gmra.mxu0 %v3896
        %v4043 = vpop.f32.mrf.mxu0
        %v4044 = vadd.f32 0.0, %v4043
        %v4045 = vpop.f32.mrf.mxu0
        %v4046 = vpop.f32.mrf.mxu0
        %v4047 = vadd.f32 0.0, %v4046
        %v4048 = vpop.f32.mrf.mxu0
        %4049 = vdwg.mxu0
        %v4050 = vadd.f32 %v3737, %v3988
        %v4051 = vadd.f32 %v3738, %v3991
        %v4052 = vadd.f32 %v3739, %v3996
        %v4053 = vadd.f32 %v3740, %v3999
        %v4054 = vadd.f32 %v3741, %v4004
        %v4055 = vadd.f32 %v3742, %v4007
        %v4056 = vadd.f32 %v3743, %v4012
        %v4057 = vadd.f32 %v3744, %v4015
        %v4058 = vadd.f32 %v3745, %v4020
        %v4059 = vadd.f32 %v3746, %v4023
        %v4060 = vadd.f32 %v3747, %v4028
        %v4061 = vadd.f32 %v3748, %v4031
        %v4062 = vadd.f32 %v3749, %v4036
        %v4063 = vadd.f32 %v3750, %v4039
        %v4064 = vadd.f32 %v3751, %v4044
        %v4065 = vadd.f32 %v3752, %v4047
        %v4066 = vld [vmem:[#allocation2 + $0x4c] sm:$0xe]
        %v4067 = vld [vmem:[%s1751] sm:$0xf]
        %v4068 = vld [vmem:[%s1751 + $0x4] sm:$0xf]
        %v4069 = vld [vmem:[%s1751 + $0x8] sm:$0xf]
        %v4070 = vld [vmem:[%s1751 + $0xc] sm:$0xf]
        %v4071 = vld [vmem:[%s1751 + $0x10] sm:$0xf]
        %v4072 = vld [vmem:[%s1751 + $0x14] sm:$0xf]
        %v4073 = vld [vmem:[%s1751 + $0x18] sm:$0xf]
        %v4074 = vld [vmem:[%s1751 + $0x1c] sm:$0xf]
        %v4075 = vld [vmem:[%s1751 + $0x20] sm:$0xf]
        %v4076 = vld [vmem:[%s1751 + $0x24] sm:$0xf]
        %v4077 = vld [vmem:[%s1751 + $0x28] sm:$0xf]
        %v4078 = vld [vmem:[%s1751 + $0x2c] sm:$0xf]
        %v4079 = vld [vmem:[%s1751 + $0x30] sm:$0xf]
        %v4080 = vld [vmem:[%s1751 + $0x34] sm:$0xf]
        %v4081 = vld [vmem:[%s1751 + $0x38] sm:$0xf]
        %v4082 = vld [vmem:[%s1751 + $0x3c] sm:$0xf]
        %v4084 = vunpack.c.l.b16 %v4066
        %v4085 = vpack.c.b16 %v3804, %v4084
        %v4086 = vrot.slane %v4085, 1
        %v4087 = vrot.slane %v3821, 1
        %v4088 = vsel %vm1007, %v4086, %v4087
        %v4089 = vrot.slane %v3822, 1
        %v4090 = vsel %vm1007, %v4087, %v4089
        %v4091 = vrot.slane %v3823, 1
        %v4092 = vsel %vm1007, %v4089, %v4091
        %v4093 = vrot.slane %v3824, 1
        %v4094 = vsel %vm1007, %v4091, %v4093
        %v4095 = vrot.slane %v3825, 1
        %v4096 = vsel %vm1007, %v4093, %v4095
        %v4097 = vrot.slane %v3826, 1
        %v4098 = vsel %vm1007, %v4095, %v4097
        %v4099 = vrot.slane %v3827, 1
        %v4100 = vsel %vm1007, %v4097, %v4099
        %v4101 = vrot.slane %v3828, 1
        %v4102 = vsel %vm1007, %v4099, %v4101
        %v4127 = vunpack.c.l.b16 %v4067
        %v4128 = vunpack.c.l.b16 %v4068
        %v4129 = vunpack.c.l.b16 %v4069
        %v4130 = vunpack.c.l.b16 %v4070
        %v4131 = vunpack.c.l.b16 %v4071
        %v4132 = vunpack.c.l.b16 %v4072
        %v4133 = vunpack.c.l.b16 %v4073
        %v4134 = vunpack.c.l.b16 %v4074
        %v4135 = vunpack.c.l.b16 %v4075
        %v4136 = vunpack.c.l.b16 %v4076
        %v4137 = vunpack.c.l.b16 %v4077
        %v4138 = vunpack.c.l.b16 %v4078
        %v4139 = vunpack.c.l.b16 %v4079
        %v4140 = vunpack.c.l.b16 %v4080
        %v4141 = vunpack.c.l.b16 %v4081
        %v4142 = vunpack.c.l.b16 %v4082
        %v4143 = vpack.c.b16 %v4128, %v4127
        %v4144 = vpack.c.b16 %v4130, %v4129
        %v4145 = vpack.c.b16 %v4132, %v4131
        %v4146 = vpack.c.b16 %v4134, %v4133
        %v4147 = vpack.c.b16 %v4136, %v4135
        %v4148 = vpack.c.b16 %v4138, %v4137
        %v4149 = vpack.c.b16 %v4140, %v4139
        %v4150 = vpack.c.b16 %v4142, %v4141
        %4159 = vmatprep.subr.bf16.mxu0 0
        %4160 = vmatpush1.bf16.msra.mxu0 %v4150
        %4161 = vmatprep.subr.bf16.mxu0 0
        %4162 = vmatpush1.bf16.msra.mxu0 %v4149
        %4163 = vmatprep.subr.bf16.mxu0 0
        %4164 = vmatpush1.bf16.msra.mxu0 %v4148
        %4165 = vmatprep.subr.bf16.mxu0 0
        %4166 = vmatpush1.bf16.msra.mxu0 %v4147
        %4167 = vmatprep.subr.bf16.mxu0 0
        %4168 = vmatpush1.bf16.msra.mxu0 %v4146
        %4169 = vmatprep.subr.bf16.mxu0 0
        %4170 = vmatpush1.bf16.msra.mxu0 %v4145
        %4171 = vmatprep.subr.bf16.mxu0 0
        %4172 = vmatpush1.bf16.msra.mxu0 %v4144
        %4173 = vmatprep.subr.bf16.mxu0 0
        %4174 = vmatpush1.bf16.msra.mxu0 %v4143
        %4175 = vmatprep.subr.bf16.mxu0 0
        %4176 = vmatpush2.bf16.msra.mxu0 0
        %4177 = vmatprep.subr.bf16.mxu0 0
        %4178 = vmatpush2.bf16.msra.mxu0 0
        %4179 = vmatprep.subr.bf16.mxu0 0
        %4180 = vmatpush2.bf16.msra.mxu0 0
        %4181 = vmatprep.subr.bf16.mxu0 0
        %4182 = vmatpush2.bf16.msra.mxu0 0
        %4183 = vmatprep.subr.bf16.mxu0 0
        %4184 = vmatpush2.bf16.msra.mxu0 0
        %4185 = vmatprep.subr.bf16.mxu0 0
        %4186 = vmatpush2.bf16.msra.mxu0 0
        %4187 = vmatprep.subr.bf16.mxu0 0
        %4188 = vmatpush2.bf16.msra.mxu0 0
        %4189 = vmatprep.subr.bf16.mxu0 0
        %4190 = vmatpush2.bf16.msra.mxu0 0
        %4191 = vmatprep.mubr.bf16.mxu0 0
        %4192 = vmatmul.mubr.bf16.gmra.mxu0 %v4088
        %v4193 = vpop.f32.mrf.mxu0
        %v4194 = vadd.f32 0.0, %v4193
        %v4195 = vpop.f32.mrf.mxu0
        %v4196 = vpop.f32.mrf.mxu0
        %v4197 = vadd.f32 0.0, %v4196
        %v4198 = vpop.f32.mrf.mxu0
        %4199 = vmatprep.mubr.bf16.mxu0 0
        %4200 = vmatmul.mubr.bf16.gmra.mxu0 %v4090
        %v4201 = vpop.f32.mrf.mxu0
        %v4202 = vadd.f32 0.0, %v4201
        %v4203 = vpop.f32.mrf.mxu0
        %v4204 = vpop.f32.mrf.mxu0
        %v4205 = vadd.f32 0.0, %v4204
        %v4206 = vpop.f32.mrf.mxu0
        %4207 = vmatprep.mubr.bf16.mxu0 0
        %4208 = vmatmul.mubr.bf16.gmra.mxu0 %v4092
        %v4209 = vpop.f32.mrf.mxu0
        %v4210 = vadd.f32 0.0, %v4209
        %v4211 = vpop.f32.mrf.mxu0
        %v4212 = vpop.f32.mrf.mxu0
        %v4213 = vadd.f32 0.0, %v4212
        %v4214 = vpop.f32.mrf.mxu0
        %4215 = vmatprep.mubr.bf16.mxu0 0
        %4216 = vmatmul.mubr.bf16.gmra.mxu0 %v4094
        %v4217 = vpop.f32.mrf.mxu0
        %v4218 = vadd.f32 0.0, %v4217
        %v4219 = vpop.f32.mrf.mxu0
        %v4220 = vpop.f32.mrf.mxu0
        %v4221 = vadd.f32 0.0, %v4220
        %v4222 = vpop.f32.mrf.mxu0
        %4223 = vmatprep.mubr.bf16.mxu0 0
        %4224 = vmatmul.mubr.bf16.gmra.mxu0 %v4096
        %v4225 = vpop.f32.mrf.mxu0
        %v4226 = vadd.f32 0.0, %v4225
        %v4227 = vpop.f32.mrf.mxu0
        %v4228 = vpop.f32.mrf.mxu0
        %v4229 = vadd.f32 0.0, %v4228
        %v4230 = vpop.f32.mrf.mxu0
        %4231 = vmatprep.mubr.bf16.mxu0 0
        %4232 = vmatmul.mubr.bf16.gmra.mxu0 %v4098
        %v4233 = vpop.f32.mrf.mxu0
        %v4234 = vadd.f32 0.0, %v4233
        %v4235 = vpop.f32.mrf.mxu0
        %v4236 = vpop.f32.mrf.mxu0
        %v4237 = vadd.f32 0.0, %v4236
        %v4238 = vpop.f32.mrf.mxu0
        %4239 = vmatprep.mubr.bf16.mxu0 0
        %4240 = vmatmul.mubr.bf16.gmra.mxu0 %v4100
        %v4241 = vpop.f32.mrf.mxu0
        %v4242 = vadd.f32 0.0, %v4241
        %v4243 = vpop.f32.mrf.mxu0
        %v4244 = vpop.f32.mrf.mxu0
        %v4245 = vadd.f32 0.0, %v4244
        %v4246 = vpop.f32.mrf.mxu0
        %4247 = vmatprep.mubr.bf16.mxu0 0
        %4248 = vmatmul.mubr.bf16.gmra.mxu0 %v4102
        %v4249 = vpop.f32.mrf.mxu0
        %v4250 = vadd.f32 0.0, %v4249
        %v4251 = vpop.f32.mrf.mxu0
        %v4252 = vpop.f32.mrf.mxu0
        %v4253 = vadd.f32 0.0, %v4252
        %v4254 = vpop.f32.mrf.mxu0
        %4255 = vdwg.mxu0
        %v4256 = vadd.f32 %v4050, %v4194
        %v4257 = vadd.f32 %v4051, %v4197
        %v4258 = vadd.f32 %v4052, %v4202
        %v4259 = vadd.f32 %v4053, %v4205
        %v4260 = vadd.f32 %v4054, %v4210
        %v4261 = vadd.f32 %v4055, %v4213
        %v4262 = vadd.f32 %v4056, %v4218
        %v4263 = vadd.f32 %v4057, %v4221
        %v4264 = vadd.f32 %v4058, %v4226
        %v4265 = vadd.f32 %v4059, %v4229
        %v4266 = vadd.f32 %v4060, %v4234
        %v4267 = vadd.f32 %v4061, %v4237
        %v4268 = vadd.f32 %v4062, %v4242
        %v4269 = vadd.f32 %v4063, %v4245
        %v4270 = vadd.f32 %v4064, %v4250
        %v4271 = vadd.f32 %v4065, %v4253
        %v4272 = vld [vmem:[#allocation2 + $0x58] sm:$0xf]
        %v4273 = vld [vmem:[#allocation2 + $0x5c] sm:$0xf]
        %v4274 = vld [vmem:[#allocation2 + $0x60] sm:$0xf]
        %v4275 = vld [vmem:[#allocation2 + $0x64] sm:$0xf]
        %v4276 = vld [vmem:[#allocation2 + $0x68] sm:$0xf]
        %v4277 = vld [vmem:[#allocation2 + $0x6c] sm:$0xf]
        %v4278 = vld [vmem:[#allocation2 + $0x70] sm:$0xf]
        %v4279 = vld [vmem:[#allocation2 + $0x74] sm:$0xf]
        %v4280 = vld [vmem:[#allocation2 + $0x78] sm:$0xf]
        %v4281 = vld [vmem:[#allocation2 + $0x7c] sm:$0xf]
        %v4282 = vld [vmem:[#allocation2 + $0x80] sm:$0xf]
        %v4283 = vld [vmem:[#allocation2 + $0x84] sm:$0xf]
        %v4284 = vld [vmem:[#allocation2 + $0x88] sm:$0xf]
        %v4285 = vld [vmem:[#allocation2 + $0x8c] sm:$0xf]
        %v4286 = vld [vmem:[#allocation2 + $0x90] sm:$0xf]
        %v4287 = vld [vmem:[#allocation2 + $0x94] sm:$0xf]
        %v4288 = vld [vmem:[%s1973] sm:$0xf]
        %v4289 = vld [vmem:[%s1973 + $0x4] sm:$0xf]
        %v4290 = vld [vmem:[%s1973 + $0x8] sm:$0xf]
        %v4291 = vld [vmem:[%s1973 + $0xc] sm:$0xf]
        %v4292 = vld [vmem:[%s1973 + $0x10] sm:$0xf]
        %v4293 = vld [vmem:[%s1973 + $0x14] sm:$0xf]
        %v4294 = vld [vmem:[%s1973 + $0x18] sm:$0xf]
        %v4295 = vld [vmem:[%s1973 + $0x1c] sm:$0xf]
        %v4296 = vld [vmem:[%s1973 + $0x20] sm:$0xf]
        %v4297 = vld [vmem:[%s1973 + $0x24] sm:$0xf]
        %v4298 = vld [vmem:[%s1973 + $0x28] sm:$0xf]
        %v4299 = vld [vmem:[%s1973 + $0x2c] sm:$0xf]
        %v4300 = vld [vmem:[%s1973 + $0x30] sm:$0xf]
        %v4301 = vld [vmem:[%s1973 + $0x34] sm:$0xf]
        %v4302 = vld [vmem:[%s1973 + $0x38] sm:$0xf]
        %v4303 = vld [vmem:[%s1973 + $0x3c] sm:$0xf]
        %v4320 = vunpack.c.l.b16 %v4272
        %v4321 = vunpack.c.l.b16 %v4273
        %v4322 = vunpack.c.l.b16 %v4274
        %v4323 = vunpack.c.l.b16 %v4275
        %v4324 = vunpack.c.l.b16 %v4276
        %v4325 = vunpack.c.l.b16 %v4277
        %v4326 = vunpack.c.l.b16 %v4278
        %v4327 = vunpack.c.l.b16 %v4279
        %v4328 = vunpack.c.l.b16 %v4280
        %v4329 = vunpack.c.l.b16 %v4281
        %v4330 = vunpack.c.l.b16 %v4282
        %v4331 = vunpack.c.l.b16 %v4283
        %v4332 = vunpack.c.l.b16 %v4284
        %v4333 = vunpack.c.l.b16 %v4285
        %v4334 = vunpack.c.l.b16 %v4286
        %v4335 = vunpack.c.l.b16 %v4287
        %v4336 = vpack.c.b16 %v4321, %v4320
        %v4337 = vpack.c.b16 %v4323, %v4322
        %v4338 = vpack.c.b16 %v4325, %v4324
        %v4339 = vpack.c.b16 %v4327, %v4326
        %v4340 = vpack.c.b16 %v4329, %v4328
        %v4341 = vpack.c.b16 %v4331, %v4330
        %v4342 = vpack.c.b16 %v4333, %v4332
        %v4343 = vpack.c.b16 %v4335, %v4334
        %v4368 = vunpack.c.l.b16 %v4288
        %v4369 = vunpack.c.l.b16 %v4289
        %v4370 = vunpack.c.l.b16 %v4290
        %v4371 = vunpack.c.l.b16 %v4291
        %v4372 = vunpack.c.l.b16 %v4292
        %v4373 = vunpack.c.l.b16 %v4293
        %v4374 = vunpack.c.l.b16 %v4294
        %v4375 = vunpack.c.l.b16 %v4295
        %v4376 = vunpack.c.l.b16 %v4296
        %v4377 = vunpack.c.l.b16 %v4297
        %v4378 = vunpack.c.l.b16 %v4298
        %v4379 = vunpack.c.l.b16 %v4299
        %v4380 = vunpack.c.l.b16 %v4300
        %v4381 = vunpack.c.l.b16 %v4301
        %v4382 = vunpack.c.l.b16 %v4302
        %v4383 = vunpack.c.l.b16 %v4303
        %v4384 = vpack.c.b16 %v4369, %v4368
        %v4385 = vpack.c.b16 %v4371, %v4370
        %v4386 = vpack.c.b16 %v4373, %v4372
        %v4387 = vpack.c.b16 %v4375, %v4374
        %v4388 = vpack.c.b16 %v4377, %v4376
        %v4389 = vpack.c.b16 %v4379, %v4378
        %v4390 = vpack.c.b16 %v4381, %v4380
        %v4391 = vpack.c.b16 %v4383, %v4382
        %4400 = vmatprep.subr.bf16.mxu0 0
        %4401 = vmatpush1.bf16.msra.mxu0 %v4391
        %4402 = vmatprep.subr.bf16.mxu0 0
        %4403 = vmatpush1.bf16.msra.mxu0 %v4390
        %4404 = vmatprep.subr.bf16.mxu0 0
        %4405 = vmatpush1.bf16.msra.mxu0 %v4389
        %4406 = vmatprep.subr.bf16.mxu0 0
        %4407 = vmatpush1.bf16.msra.mxu0 %v4388
        %4408 = vmatprep.subr.bf16.mxu0 0
        %4409 = vmatpush1.bf16.msra.mxu0 %v4387
        %4410 = vmatprep.subr.bf16.mxu0 0
        %4411 = vmatpush1.bf16.msra.mxu0 %v4386
        %4412 = vmatprep.subr.bf16.mxu0 0
        %4413 = vmatpush1.bf16.msra.mxu0 %v4385
        %4414 = vmatprep.subr.bf16.mxu0 0
        %4415 = vmatpush1.bf16.msra.mxu0 %v4384
        %4416 = vmatprep.subr.bf16.mxu0 0
        %4417 = vmatpush2.bf16.msra.mxu0 0
        %4418 = vmatprep.subr.bf16.mxu0 0
        %4419 = vmatpush2.bf16.msra.mxu0 0
        %4420 = vmatprep.subr.bf16.mxu0 0
        %4421 = vmatpush2.bf16.msra.mxu0 0
        %4422 = vmatprep.subr.bf16.mxu0 0
        %4423 = vmatpush2.bf16.msra.mxu0 0
        %4424 = vmatprep.subr.bf16.mxu0 0
        %4425 = vmatpush2.bf16.msra.mxu0 0
        %4426 = vmatprep.subr.bf16.mxu0 0
        %4427 = vmatpush2.bf16.msra.mxu0 0
        %4428 = vmatprep.subr.bf16.mxu0 0
        %4429 = vmatpush2.bf16.msra.mxu0 0
        %4430 = vmatprep.subr.bf16.mxu0 0
        %4431 = vmatpush2.bf16.msra.mxu0 0
        %4432 = vmatprep.mubr.bf16.mxu0 0
        %4433 = vmatmul.mubr.bf16.gmra.mxu0 %v4336
        %v4434 = vpop.f32.mrf.mxu0
        %v4435 = vadd.f32 0.0, %v4434
        %v4436 = vpop.f32.mrf.mxu0
        %v4437 = vpop.f32.mrf.mxu0
        %v4438 = vadd.f32 0.0, %v4437
        %v4439 = vpop.f32.mrf.mxu0
        %4440 = vmatprep.mubr.bf16.mxu0 0
        %4441 = vmatmul.mubr.bf16.gmra.mxu0 %v4337
        %v4442 = vpop.f32.mrf.mxu0
        %v4443 = vadd.f32 0.0, %v4442
        %v4444 = vpop.f32.mrf.mxu0
        %v4445 = vpop.f32.mrf.mxu0
        %v4446 = vadd.f32 0.0, %v4445
        %v4447 = vpop.f32.mrf.mxu0
        %4448 = vmatprep.mubr.bf16.mxu0 0
        %4449 = vmatmul.mubr.bf16.gmra.mxu0 %v4338
        %v4450 = vpop.f32.mrf.mxu0
        %v4451 = vadd.f32 0.0, %v4450
        %v4452 = vpop.f32.mrf.mxu0
        %v4453 = vpop.f32.mrf.mxu0
        %v4454 = vadd.f32 0.0, %v4453
        %v4455 = vpop.f32.mrf.mxu0
        %4456 = vmatprep.mubr.bf16.mxu0 0
        %4457 = vmatmul.mubr.bf16.gmra.mxu0 %v4339
        %v4458 = vpop.f32.mrf.mxu0
        %v4459 = vadd.f32 0.0, %v4458
        %v4460 = vpop.f32.mrf.mxu0
        %v4461 = vpop.f32.mrf.mxu0
        %v4462 = vadd.f32 0.0, %v4461
        %v4463 = vpop.f32.mrf.mxu0
        %4464 = vmatprep.mubr.bf16.mxu0 0
        %4465 = vmatmul.mubr.bf16.gmra.mxu0 %v4340
        %v4466 = vpop.f32.mrf.mxu0
        %v4467 = vadd.f32 0.0, %v4466
        %v4468 = vpop.f32.mrf.mxu0
        %v4469 = vpop.f32.mrf.mxu0
        %v4470 = vadd.f32 0.0, %v4469
        %v4471 = vpop.f32.mrf.mxu0
        %4472 = vmatprep.mubr.bf16.mxu0 0
        %4473 = vmatmul.mubr.bf16.gmra.mxu0 %v4341
        %v4474 = vpop.f32.mrf.mxu0
        %v4475 = vadd.f32 0.0, %v4474
        %v4476 = vpop.f32.mrf.mxu0
        %v4477 = vpop.f32.mrf.mxu0
        %v4478 = vadd.f32 0.0, %v4477
        %v4479 = vpop.f32.mrf.mxu0
        %4480 = vmatprep.mubr.bf16.mxu0 0
        %4481 = vmatmul.mubr.bf16.gmra.mxu0 %v4342
        %v4482 = vpop.f32.mrf.mxu0
        %v4483 = vadd.f32 0.0, %v4482
        %v4484 = vpop.f32.mrf.mxu0
        %v4485 = vpop.f32.mrf.mxu0
        %v4486 = vadd.f32 0.0, %v4485
        %v4487 = vpop.f32.mrf.mxu0
        %4488 = vmatprep.mubr.bf16.mxu0 0
        %4489 = vmatmul.mubr.bf16.gmra.mxu0 %v4343
        %v4490 = vpop.f32.mrf.mxu0
        %v4491 = vadd.f32 0.0, %v4490
        %v4492 = vpop.f32.mrf.mxu0
        %v4493 = vpop.f32.mrf.mxu0
        %v4494 = vadd.f32 0.0, %v4493
        %v4495 = vpop.f32.mrf.mxu0
        %4496 = vdwg.mxu0
        %v4497 = vadd.f32 %v4256, %v4435
        %v4498 = vadd.f32 %v4257, %v4438
        %v4499 = vadd.f32 %v4258, %v4443
        %v4500 = vadd.f32 %v4259, %v4446
        %v4501 = vadd.f32 %v4260, %v4451
        %v4502 = vadd.f32 %v4261, %v4454
        %v4503 = vadd.f32 %v4262, %v4459
        %v4504 = vadd.f32 %v4263, %v4462
        %v4505 = vadd.f32 %v4264, %v4467
        %v4506 = vadd.f32 %v4265, %v4470
        %v4507 = vadd.f32 %v4266, %v4475
        %v4508 = vadd.f32 %v4267, %v4478
        %v4509 = vadd.f32 %v4268, %v4483
        %v4510 = vadd.f32 %v4269, %v4486
        %v4511 = vadd.f32 %v4270, %v4491
        %v4512 = vadd.f32 %v4271, %v4494
        %v4513 = vld [vmem:[#allocation2 + $0x58] sm:$0xf]
        %v4514 = vld [vmem:[#allocation2 + $0x5c] sm:$0xf]
        %v4515 = vld [vmem:[#allocation2 + $0x60] sm:$0xf]
        %v4516 = vld [vmem:[#allocation2 + $0x64] sm:$0xf]
        %v4517 = vld [vmem:[#allocation2 + $0x68] sm:$0xf]
        %v4518 = vld [vmem:[#allocation2 + $0x6c] sm:$0xf]
        %v4519 = vld [vmem:[#allocation2 + $0x70] sm:$0xf]
        %v4520 = vld [vmem:[#allocation2 + $0x74] sm:$0xf]
        %v4521 = vld [vmem:[#allocation2 + $0x78] sm:$0xf]
        %v4522 = vld [vmem:[#allocation2 + $0x7c] sm:$0xf]
        %v4523 = vld [vmem:[#allocation2 + $0x80] sm:$0xf]
        %v4524 = vld [vmem:[#allocation2 + $0x84] sm:$0xf]
        %v4525 = vld [vmem:[#allocation2 + $0x88] sm:$0xf]
        %v4526 = vld [vmem:[#allocation2 + $0x8c] sm:$0xf]
        %v4527 = vld [vmem:[#allocation2 + $0x90] sm:$0xf]
        %v4528 = vld [vmem:[#allocation2 + $0x94] sm:$0xf]
        %v4529 = vld [vmem:[#allocation2 + $0x98] sm:$0x1]
        %v4530 = vld [vmem:[%s2216] sm:$0xf]
        %v4531 = vld [vmem:[%s2216 + $0x4] sm:$0xf]
        %v4532 = vld [vmem:[%s2216 + $0x8] sm:$0xf]
        %v4533 = vld [vmem:[%s2216 + $0xc] sm:$0xf]
        %v4534 = vld [vmem:[%s2216 + $0x10] sm:$0xf]
        %v4535 = vld [vmem:[%s2216 + $0x14] sm:$0xf]
        %v4536 = vld [vmem:[%s2216 + $0x18] sm:$0xf]
        %v4537 = vld [vmem:[%s2216 + $0x1c] sm:$0xf]
        %v4538 = vld [vmem:[%s2216 + $0x20] sm:$0xf]
        %v4539 = vld [vmem:[%s2216 + $0x24] sm:$0xf]
        %v4540 = vld [vmem:[%s2216 + $0x28] sm:$0xf]
        %v4541 = vld [vmem:[%s2216 + $0x2c] sm:$0xf]
        %v4542 = vld [vmem:[%s2216 + $0x30] sm:$0xf]
        %v4543 = vld [vmem:[%s2216 + $0x34] sm:$0xf]
        %v4544 = vld [vmem:[%s2216 + $0x38] sm:$0xf]
        %v4545 = vld [vmem:[%s2216 + $0x3c] sm:$0xf]
        %v4563 = vunpack.c.l.b16 %v4513
        %v4564 = vunpack.c.l.b16 %v4514
        %v4565 = vunpack.c.l.b16 %v4515
        %v4566 = vunpack.c.l.b16 %v4516
        %v4567 = vunpack.c.l.b16 %v4517
        %v4568 = vunpack.c.l.b16 %v4518
        %v4569 = vunpack.c.l.b16 %v4519
        %v4570 = vunpack.c.l.b16 %v4520
        %v4571 = vunpack.c.l.b16 %v4521
        %v4572 = vunpack.c.l.b16 %v4522
        %v4573 = vunpack.c.l.b16 %v4523
        %v4574 = vunpack.c.l.b16 %v4524
        %v4575 = vunpack.c.l.b16 %v4525
        %v4576 = vunpack.c.l.b16 %v4526
        %v4577 = vunpack.c.l.b16 %v4527
        %v4578 = vunpack.c.l.b16 %v4528
        %v4579 = vunpack.c.l.b16 %v4529
        %v4580 = vpack.c.b16 %v4564, %v4563
        %v4581 = vpack.c.b16 %v4566, %v4565
        %v4582 = vpack.c.b16 %v4568, %v4567
        %v4583 = vpack.c.b16 %v4570, %v4569
        %v4584 = vpack.c.b16 %v4572, %v4571
        %v4585 = vpack.c.b16 %v4574, %v4573
        %v4586 = vpack.c.b16 %v4576, %v4575
        %v4587 = vpack.c.b16 %v4578, %v4577
        %v4588 = vpack.c.b16 %v4579, %v4579
        %v4590 = vshrl.u32 %v4580, 16
        %v4592 = vshll.u32 %v4580, 16
        %v4594 = vrot.slane %v4592, 1
        %v4595 = vor.u32 %v4590, %v4594
        %v4597 = vshll.u32 %v4581, 16
        %v4599 = vrot.slane %v4597, 1
        %v4600 = vsel %vm748, %v4595, %v4599
        %v4601 = vshrl.u32 %v4581, 16
        %v4603 = vor.u32 %v4601, %v4599
        %v4605 = vshll.u32 %v4582, 16
        %v4607 = vrot.slane %v4605, 1
        %v4608 = vsel %vm748, %v4603, %v4607
        %v4609 = vshrl.u32 %v4582, 16
        %v4611 = vor.u32 %v4609, %v4607
        %v4613 = vshll.u32 %v4583, 16
        %v4615 = vrot.slane %v4613, 1
        %v4616 = vsel %vm748, %v4611, %v4615
        %v4617 = vshrl.u32 %v4583, 16
        %v4619 = vor.u32 %v4617, %v4615
        %v4621 = vshll.u32 %v4584, 16
        %v4623 = vrot.slane %v4621, 1
        %v4624 = vsel %vm748, %v4619, %v4623
        %v4625 = vshrl.u32 %v4584, 16
        %v4627 = vor.u32 %v4625, %v4623
        %v4629 = vshll.u32 %v4585, 16
        %v4631 = vrot.slane %v4629, 1
        %v4632 = vsel %vm748, %v4627, %v4631
        %v4633 = vshrl.u32 %v4585, 16
        %v4635 = vor.u32 %v4633, %v4631
        %v4637 = vshll.u32 %v4586, 16
        %v4639 = vrot.slane %v4637, 1
        %v4640 = vsel %vm748, %v4635, %v4639
        %v4641 = vshrl.u32 %v4586, 16
        %v4643 = vor.u32 %v4641, %v4639
        %v4645 = vshll.u32 %v4587, 16
        %v4647 = vrot.slane %v4645, 1
        %v4648 = vsel %vm748, %v4643, %v4647
        %v4649 = vshrl.u32 %v4587, 16
        %v4651 = vor.u32 %v4649, %v4647
        %v4653 = vshll.u32 %v4588, 16
        %v4655 = vrot.slane %v4653, 1
        %v4656 = vsel %vm748, %v4651, %v4655
        %v4681 = vunpack.c.l.b16 %v4530
        %v4682 = vunpack.c.l.b16 %v4531
        %v4683 = vunpack.c.l.b16 %v4532
        %v4684 = vunpack.c.l.b16 %v4533
        %v4685 = vunpack.c.l.b16 %v4534
        %v4686 = vunpack.c.l.b16 %v4535
        %v4687 = vunpack.c.l.b16 %v4536
        %v4688 = vunpack.c.l.b16 %v4537
        %v4689 = vunpack.c.l.b16 %v4538
        %v4690 = vunpack.c.l.b16 %v4539
        %v4691 = vunpack.c.l.b16 %v4540
        %v4692 = vunpack.c.l.b16 %v4541
        %v4693 = vunpack.c.l.b16 %v4542
        %v4694 = vunpack.c.l.b16 %v4543
        %v4695 = vunpack.c.l.b16 %v4544
        %v4696 = vunpack.c.l.b16 %v4545
        %v4697 = vpack.c.b16 %v4682, %v4681
        %v4698 = vpack.c.b16 %v4684, %v4683
        %v4699 = vpack.c.b16 %v4686, %v4685
        %v4700 = vpack.c.b16 %v4688, %v4687
        %v4701 = vpack.c.b16 %v4690, %v4689
        %v4702 = vpack.c.b16 %v4692, %v4691
        %v4703 = vpack.c.b16 %v4694, %v4693
        %v4704 = vpack.c.b16 %v4696, %v4695
        %4713 = vmatprep.subr.bf16.mxu0 0
        %4714 = vmatpush1.bf16.msra.mxu0 %v4704
        %4715 = vmatprep.subr.bf16.mxu0 0
        %4716 = vmatpush1.bf16.msra.mxu0 %v4703
        %4717 = vmatprep.subr.bf16.mxu0 0
        %4718 = vmatpush1.bf16.msra.mxu0 %v4702
        %4719 = vmatprep.subr.bf16.mxu0 0
        %4720 = vmatpush1.bf16.msra.mxu0 %v4701
        %4721 = vmatprep.subr.bf16.mxu0 0
        %4722 = vmatpush1.bf16.msra.mxu0 %v4700
        %4723 = vmatprep.subr.bf16.mxu0 0
        %4724 = vmatpush1.bf16.msra.mxu0 %v4699
        %4725 = vmatprep.subr.bf16.mxu0 0
        %4726 = vmatpush1.bf16.msra.mxu0 %v4698
        %4727 = vmatprep.subr.bf16.mxu0 0
        %4728 = vmatpush1.bf16.msra.mxu0 %v4697
        %4729 = vmatprep.subr.bf16.mxu0 0
        %4730 = vmatpush2.bf16.msra.mxu0 0
        %4731 = vmatprep.subr.bf16.mxu0 0
        %4732 = vmatpush2.bf16.msra.mxu0 0
        %4733 = vmatprep.subr.bf16.mxu0 0
        %4734 = vmatpush2.bf16.msra.mxu0 0
        %4735 = vmatprep.subr.bf16.mxu0 0
        %4736 = vmatpush2.bf16.msra.mxu0 0
        %4737 = vmatprep.subr.bf16.mxu0 0
        %4738 = vmatpush2.bf16.msra.mxu0 0
        %4739 = vmatprep.subr.bf16.mxu0 0
        %4740 = vmatpush2.bf16.msra.mxu0 0
        %4741 = vmatprep.subr.bf16.mxu0 0
        %4742 = vmatpush2.bf16.msra.mxu0 0
        %4743 = vmatprep.subr.bf16.mxu0 0
        %4744 = vmatpush2.bf16.msra.mxu0 0
        %4745 = vmatprep.mubr.bf16.mxu0 0
        %4746 = vmatmul.mubr.bf16.gmra.mxu0 %v4600
        %v4747 = vpop.f32.mrf.mxu0
        %v4748 = vadd.f32 0.0, %v4747
        %v4749 = vpop.f32.mrf.mxu0
        %v4750 = vpop.f32.mrf.mxu0
        %v4751 = vadd.f32 0.0, %v4750
        %v4752 = vpop.f32.mrf.mxu0
        %4753 = vmatprep.mubr.bf16.mxu0 0
        %4754 = vmatmul.mubr.bf16.gmra.mxu0 %v4608
        %v4755 = vpop.f32.mrf.mxu0
        %v4756 = vadd.f32 0.0, %v4755
        %v4757 = vpop.f32.mrf.mxu0
        %v4758 = vpop.f32.mrf.mxu0
        %v4759 = vadd.f32 0.0, %v4758
        %v4760 = vpop.f32.mrf.mxu0
        %4761 = vmatprep.mubr.bf16.mxu0 0
        %4762 = vmatmul.mubr.bf16.gmra.mxu0 %v4616
        %v4763 = vpop.f32.mrf.mxu0
        %v4764 = vadd.f32 0.0, %v4763
        %v4765 = vpop.f32.mrf.mxu0
        %v4766 = vpop.f32.mrf.mxu0
        %v4767 = vadd.f32 0.0, %v4766
        %v4768 = vpop.f32.mrf.mxu0
        %4769 = vmatprep.mubr.bf16.mxu0 0
        %4770 = vmatmul.mubr.bf16.gmra.mxu0 %v4624
        %v4771 = vpop.f32.mrf.mxu0
        %v4772 = vadd.f32 0.0, %v4771
        %v4773 = vpop.f32.mrf.mxu0
        %v4774 = vpop.f32.mrf.mxu0
        %v4775 = vadd.f32 0.0, %v4774
        %v4776 = vpop.f32.mrf.mxu0
        %4777 = vmatprep.mubr.bf16.mxu0 0
        %4778 = vmatmul.mubr.bf16.gmra.mxu0 %v4632
        %v4779 = vpop.f32.mrf.mxu0
        %v4780 = vadd.f32 0.0, %v4779
        %v4781 = vpop.f32.mrf.mxu0
        %v4782 = vpop.f32.mrf.mxu0
        %v4783 = vadd.f32 0.0, %v4782
        %v4784 = vpop.f32.mrf.mxu0
        %4785 = vmatprep.mubr.bf16.mxu0 0
        %4786 = vmatmul.mubr.bf16.gmra.mxu0 %v4640
        %v4787 = vpop.f32.mrf.mxu0
        %v4788 = vadd.f32 0.0, %v4787
        %v4789 = vpop.f32.mrf.mxu0
        %v4790 = vpop.f32.mrf.mxu0
        %v4791 = vadd.f32 0.0, %v4790
        %v4792 = vpop.f32.mrf.mxu0
        %4793 = vmatprep.mubr.bf16.mxu0 0
        %4794 = vmatmul.mubr.bf16.gmra.mxu0 %v4648
        %v4795 = vpop.f32.mrf.mxu0
        %v4796 = vadd.f32 0.0, %v4795
        %v4797 = vpop.f32.mrf.mxu0
        %v4798 = vpop.f32.mrf.mxu0
        %v4799 = vadd.f32 0.0, %v4798
        %v4800 = vpop.f32.mrf.mxu0
        %4801 = vmatprep.mubr.bf16.mxu0 0
        %4802 = vmatmul.mubr.bf16.gmra.mxu0 %v4656
        %v4803 = vpop.f32.mrf.mxu0
        %v4804 = vadd.f32 0.0, %v4803
        %v4805 = vpop.f32.mrf.mxu0
        %v4806 = vpop.f32.mrf.mxu0
        %v4807 = vadd.f32 0.0, %v4806
        %v4808 = vpop.f32.mrf.mxu0
        %4809 = vdwg.mxu0
        %v4810 = vadd.f32 %v4497, %v4748
        %v4811 = vadd.f32 %v4498, %v4751
        %v4812 = vadd.f32 %v4499, %v4756
        %v4813 = vadd.f32 %v4500, %v4759
        %v4814 = vadd.f32 %v4501, %v4764
        %v4815 = vadd.f32 %v4502, %v4767
        %v4816 = vadd.f32 %v4503, %v4772
        %v4817 = vadd.f32 %v4504, %v4775
        %v4818 = vadd.f32 %v4505, %v4780
        %v4819 = vadd.f32 %v4506, %v4783
        %v4820 = vadd.f32 %v4507, %v4788
        %v4821 = vadd.f32 %v4508, %v4791
        %v4822 = vadd.f32 %v4509, %v4796
        %v4823 = vadd.f32 %v4510, %v4799
        %v4824 = vadd.f32 %v4511, %v4804
        %v4825 = vadd.f32 %v4512, %v4807
        %v4826 = vld [vmem:[#allocation2 + $0x58] sm:$0xe]
        %v4827 = vld [vmem:[%s2514] sm:$0xf]
        %v4828 = vld [vmem:[%s2514 + $0x4] sm:$0xf]
        %v4829 = vld [vmem:[%s2514 + $0x8] sm:$0xf]
        %v4830 = vld [vmem:[%s2514 + $0xc] sm:$0xf]
        %v4831 = vld [vmem:[%s2514 + $0x10] sm:$0xf]
        %v4832 = vld [vmem:[%s2514 + $0x14] sm:$0xf]
        %v4833 = vld [vmem:[%s2514 + $0x18] sm:$0xf]
        %v4834 = vld [vmem:[%s2514 + $0x1c] sm:$0xf]
        %v4835 = vld [vmem:[%s2514 + $0x20] sm:$0xf]
        %v4836 = vld [vmem:[%s2514 + $0x24] sm:$0xf]
        %v4837 = vld [vmem:[%s2514 + $0x28] sm:$0xf]
        %v4838 = vld [vmem:[%s2514 + $0x2c] sm:$0xf]
        %v4839 = vld [vmem:[%s2514 + $0x30] sm:$0xf]
        %v4840 = vld [vmem:[%s2514 + $0x34] sm:$0xf]
        %v4841 = vld [vmem:[%s2514 + $0x38] sm:$0xf]
        %v4842 = vld [vmem:[%s2514 + $0x3c] sm:$0xf]
        %v4844 = vunpack.c.l.b16 %v4826
        %v4845 = vpack.c.b16 %v4564, %v4844
        %v4846 = vrot.slane %v4845, 1
        %v4847 = vrot.slane %v4581, 1
        %v4848 = vsel %vm1007, %v4846, %v4847
        %v4849 = vrot.slane %v4582, 1
        %v4850 = vsel %vm1007, %v4847, %v4849
        %v4851 = vrot.slane %v4583, 1
        %v4852 = vsel %vm1007, %v4849, %v4851
        %v4853 = vrot.slane %v4584, 1
        %v4854 = vsel %vm1007, %v4851, %v4853
        %v4855 = vrot.slane %v4585, 1
        %v4856 = vsel %vm1007, %v4853, %v4855
        %v4857 = vrot.slane %v4586, 1
        %v4858 = vsel %vm1007, %v4855, %v4857
        %v4859 = vrot.slane %v4587, 1
        %v4860 = vsel %vm1007, %v4857, %v4859
        %v4861 = vrot.slane %v4588, 1
        %v4862 = vsel %vm1007, %v4859, %v4861
        %v4887 = vunpack.c.l.b16 %v4827
        %v4888 = vunpack.c.l.b16 %v4828
        %v4889 = vunpack.c.l.b16 %v4829
        %v4890 = vunpack.c.l.b16 %v4830
        %v4891 = vunpack.c.l.b16 %v4831
        %v4892 = vunpack.c.l.b16 %v4832
        %v4893 = vunpack.c.l.b16 %v4833
        %v4894 = vunpack.c.l.b16 %v4834
        %v4895 = vunpack.c.l.b16 %v4835
        %v4896 = vunpack.c.l.b16 %v4836
        %v4897 = vunpack.c.l.b16 %v4837
        %v4898 = vunpack.c.l.b16 %v4838
        %v4899 = vunpack.c.l.b16 %v4839
        %v4900 = vunpack.c.l.b16 %v4840
        %v4901 = vunpack.c.l.b16 %v4841
        %v4902 = vunpack.c.l.b16 %v4842
        %v4903 = vpack.c.b16 %v4888, %v4887
        %v4904 = vpack.c.b16 %v4890, %v4889
        %v4905 = vpack.c.b16 %v4892, %v4891
        %v4906 = vpack.c.b16 %v4894, %v4893
        %v4907 = vpack.c.b16 %v4896, %v4895
        %v4908 = vpack.c.b16 %v4898, %v4897
        %v4909 = vpack.c.b16 %v4900, %v4899
        %v4910 = vpack.c.b16 %v4902, %v4901
        %4919 = vmatprep.subr.bf16.mxu0 0
        %4920 = vmatpush1.bf16.msra.mxu0 %v4910
        %4921 = vmatprep.subr.bf16.mxu0 0
        %4922 = vmatpush1.bf16.msra.mxu0 %v4909
        %4923 = vmatprep.subr.bf16.mxu0 0
        %4924 = vmatpush1.bf16.msra.mxu0 %v4908
        %4925 = vmatprep.subr.bf16.mxu0 0
        %4926 = vmatpush1.bf16.msra.mxu0 %v4907
        %4927 = vmatprep.subr.bf16.mxu0 0
        %4928 = vmatpush1.bf16.msra.mxu0 %v4906
        %4929 = vmatprep.subr.bf16.mxu0 0
        %4930 = vmatpush1.bf16.msra.mxu0 %v4905
        %4931 = vmatprep.subr.bf16.mxu0 0
        %4932 = vmatpush1.bf16.msra.mxu0 %v4904
        %4933 = vmatprep.subr.bf16.mxu0 0
        %4934 = vmatpush1.bf16.msra.mxu0 %v4903
        %4935 = vmatprep.subr.bf16.mxu0 0
        %4936 = vmatpush2.bf16.msra.mxu0 0
        %4937 = vmatprep.subr.bf16.mxu0 0
        %4938 = vmatpush2.bf16.msra.mxu0 0
        %4939 = vmatprep.subr.bf16.mxu0 0
        %4940 = vmatpush2.bf16.msra.mxu0 0
        %4941 = vmatprep.subr.bf16.mxu0 0
        %4942 = vmatpush2.bf16.msra.mxu0 0
        %4943 = vmatprep.subr.bf16.mxu0 0
        %4944 = vmatpush2.bf16.msra.mxu0 0
        %4945 = vmatprep.subr.bf16.mxu0 0
        %4946 = vmatpush2.bf16.msra.mxu0 0
        %4947 = vmatprep.subr.bf16.mxu0 0
        %4948 = vmatpush2.bf16.msra.mxu0 0
        %4949 = vmatprep.subr.bf16.mxu0 0
        %4950 = vmatpush2.bf16.msra.mxu0 0
        %4951 = vmatprep.mubr.bf16.mxu0 0
        %4952 = vmatmul.mubr.bf16.gmra.mxu0 %v4848
        %v4953 = vpop.f32.mrf.mxu0
        %v4954 = vadd.f32 0.0, %v4953
        %v4955 = vpop.f32.mrf.mxu0
        %v4956 = vpop.f32.mrf.mxu0
        %v4957 = vadd.f32 0.0, %v4956
        %v4958 = vpop.f32.mrf.mxu0
        %4959 = vmatprep.mubr.bf16.mxu0 0
        %4960 = vmatmul.mubr.bf16.gmra.mxu0 %v4850
        %v4961 = vpop.f32.mrf.mxu0
        %v4962 = vadd.f32 0.0, %v4961
        %v4963 = vpop.f32.mrf.mxu0
        %v4964 = vpop.f32.mrf.mxu0
        %v4965 = vadd.f32 0.0, %v4964
        %v4966 = vpop.f32.mrf.mxu0
        %4967 = vmatprep.mubr.bf16.mxu0 0
        %4968 = vmatmul.mubr.bf16.gmra.mxu0 %v4852
        %v4969 = vpop.f32.mrf.mxu0
        %v4970 = vadd.f32 0.0, %v4969
        %v4971 = vpop.f32.mrf.mxu0
        %v4972 = vpop.f32.mrf.mxu0
        %v4973 = vadd.f32 0.0, %v4972
        %v4974 = vpop.f32.mrf.mxu0
        %4975 = vmatprep.mubr.bf16.mxu0 0
        %4976 = vmatmul.mubr.bf16.gmra.mxu0 %v4854
        %v4977 = vpop.f32.mrf.mxu0
        %v4978 = vadd.f32 0.0, %v4977
        %v4979 = vpop.f32.mrf.mxu0
        %v4980 = vpop.f32.mrf.mxu0
        %v4981 = vadd.f32 0.0, %v4980
        %v4982 = vpop.f32.mrf.mxu0
        %4983 = vmatprep.mubr.bf16.mxu0 0
        %4984 = vmatmul.mubr.bf16.gmra.mxu0 %v4856
        %v4985 = vpop.f32.mrf.mxu0
        %v4986 = vadd.f32 0.0, %v4985
        %v4987 = vpop.f32.mrf.mxu0
        %v4988 = vpop.f32.mrf.mxu0
        %v4989 = vadd.f32 0.0, %v4988
        %v4990 = vpop.f32.mrf.mxu0
        %4991 = vmatprep.mubr.bf16.mxu0 0
        %4992 = vmatmul.mubr.bf16.gmra.mxu0 %v4858
        %v4993 = vpop.f32.mrf.mxu0
        %v4994 = vadd.f32 0.0, %v4993
        %v4995 = vpop.f32.mrf.mxu0
        %v4996 = vpop.f32.mrf.mxu0
        %v4997 = vadd.f32 0.0, %v4996
        %v4998 = vpop.f32.mrf.mxu0
        %4999 = vmatprep.mubr.bf16.mxu0 0
        %5000 = vmatmul.mubr.bf16.gmra.mxu0 %v4860
        %v5001 = vpop.f32.mrf.mxu0
        %v5002 = vadd.f32 0.0, %v5001
        %v5003 = vpop.f32.mrf.mxu0
        %v5004 = vpop.f32.mrf.mxu0
        %v5005 = vadd.f32 0.0, %v5004
        %v5006 = vpop.f32.mrf.mxu0
        %5007 = vmatprep.mubr.bf16.mxu0 0
        %5008 = vmatmul.mubr.bf16.gmra.mxu0 %v4862
        %v5009 = vpop.f32.mrf.mxu0
        %v5010 = vadd.f32 0.0, %v5009
        %v5011 = vpop.f32.mrf.mxu0
        %v5012 = vpop.f32.mrf.mxu0
        %v5013 = vadd.f32 0.0, %v5012
        %v5014 = vpop.f32.mrf.mxu0
        %5015 = vdwg.mxu0
        %v5016 = vadd.f32 %v4810, %v4954
        %v5017 = vadd.f32 %v4811, %v4957
        %v5018 = vadd.f32 %v4812, %v4962
        %v5019 = vadd.f32 %v4813, %v4965
        %v5020 = vadd.f32 %v4814, %v4970
        %v5021 = vadd.f32 %v4815, %v4973
        %v5022 = vadd.f32 %v4816, %v4978
        %v5023 = vadd.f32 %v4817, %v4981
        %v5024 = vadd.f32 %v4818, %v4986
        %v5025 = vadd.f32 %v4819, %v4989
        %v5026 = vadd.f32 %v4820, %v4994
        %v5027 = vadd.f32 %v4821, %v4997
        %v5028 = vadd.f32 %v4822, %v5002
        %v5029 = vadd.f32 %v4823, %v5005
        %v5030 = vadd.f32 %v4824, %v5010
        %v5031 = vadd.f32 %v4825, %v5013
        %v5032 = vmax.f32 %v5016, 0.0
        %v5033 = vmax.f32 %v5017, 0.0
        %v5034 = vmax.f32 %v5018, 0.0
        %v5035 = vmax.f32 %v5019, 0.0
        %v5036 = vmax.f32 %v5020, 0.0
        %v5037 = vmax.f32 %v5021, 0.0
        %v5038 = vmax.f32 %v5022, 0.0
        %v5039 = vmax.f32 %v5023, 0.0
        %v5040 = vmax.f32 %v5024, 0.0
        %v5041 = vmax.f32 %v5025, 0.0
        %v5042 = vmax.f32 %v5026, 0.0
        %v5043 = vmax.f32 %v5027, 0.0
        %v5044 = vmax.f32 %v5028, 0.0
        %v5045 = vmax.f32 %v5029, 0.0
        %v5046 = vmax.f32 %v5030, 0.0
        %v5047 = vmax.f32 %v5031, 0.0
        %5048 = vst [vmem:[%s303 + $0x80] sm:$0xff] %v5032
        %5049 = vst [vmem:[%s303 + $0x88] sm:$0xff] %v5033
        %5050 = vst [vmem:[%s303 + $0x90] sm:$0xff] %v5034
        %5051 = vst [vmem:[%s303 + $0x98] sm:$0xff] %v5035
        %5052 = vst [vmem:[%s303 + $0xa0] sm:$0xff] %v5036
        %5053 = vst [vmem:[%s303 + $0xa8] sm:$0xff] %v5037
        %5054 = vst [vmem:[%s303 + $0xb0] sm:$0xff] %v5038
        %5055 = vst [vmem:[%s303 + $0xb8] sm:$0xff] %v5039
        %5056 = vst [vmem:[%s303 + $0xc0] sm:$0xff] %v5040
        %5057 = vst [vmem:[%s303 + $0xc8] sm:$0xff] %v5041
        %5058 = vst [vmem:[%s303 + $0xd0] sm:$0xff] %v5042
        %5059 = vst [vmem:[%s303 + $0xd8] sm:$0xff] %v5043
        %5060 = vst [vmem:[%s303 + $0xe0] sm:$0xff] %v5044
        %5061 = vst [vmem:[%s303 + $0xe8] sm:$0xff] %v5045
        %5062 = vst [vmem:[%s303 + $0xf0] sm:$0xff] %v5046
        %5063 = vst [vmem:[%s303 + $0xf8] sm:$0xff] %v5047
        %v5064 = vld [vmem:[#allocation2 + $0x80] sm:$0xf]
        %v5065 = vld [vmem:[#allocation2 + $0x84] sm:$0xf]
        %v5066 = vld [vmem:[#allocation2 + $0x88] sm:$0xf]
        %v5067 = vld [vmem:[#allocation2 + $0x8c] sm:$0xf]
        %v5068 = vld [vmem:[#allocation2 + $0x90] sm:$0xf]
        %v5069 = vld [vmem:[#allocation2 + $0x94] sm:$0xf]
        %v5070 = vld [vmem:[#allocation2 + $0x98] sm:$0xf]
        %v5071 = vld [vmem:[#allocation2 + $0x9c] sm:$0xf]
        %v5072 = vld [vmem:[#allocation2 + $0xa0] sm:$0xf]
        %v5073 = vld [vmem:[#allocation2 + $0xa4] sm:$0xf]
        %v5074 = vld [vmem:[#allocation2 + $0xa8] sm:$0xf]
        %v5075 = vld [vmem:[#allocation2 + $0xac] sm:$0xf]
        %v5076 = vld [vmem:[#allocation2 + $0xb0] sm:$0xf]
        %v5077 = vld [vmem:[#allocation2 + $0xb4] sm:$0xf]
        %v5078 = vld [vmem:[#allocation2 + $0xb8] sm:$0xf]
        %v5079 = vld [vmem:[#allocation2 + $0xbc] sm:$0xf]
        %v5080 = vld [vmem:[#allocation8] sm:$0xf]
        %v5081 = vld [vmem:[#allocation8 + $0x4] sm:$0xf]
        %v5082 = vld [vmem:[#allocation8 + $0x8] sm:$0xf]
        %v5083 = vld [vmem:[#allocation8 + $0xc] sm:$0xf]
        %v5084 = vld [vmem:[#allocation8 + $0x10] sm:$0xf]
        %v5085 = vld [vmem:[#allocation8 + $0x14] sm:$0xf]
        %v5086 = vld [vmem:[#allocation8 + $0x18] sm:$0xf]
        %v5087 = vld [vmem:[#allocation8 + $0x1c] sm:$0xf]
        %v5088 = vld [vmem:[#allocation8 + $0x20] sm:$0xf]
        %v5089 = vld [vmem:[#allocation8 + $0x24] sm:$0xf]
        %v5090 = vld [vmem:[#allocation8 + $0x28] sm:$0xf]
        %v5091 = vld [vmem:[#allocation8 + $0x2c] sm:$0xf]
        %v5092 = vld [vmem:[#allocation8 + $0x30] sm:$0xf]
        %v5093 = vld [vmem:[#allocation8 + $0x34] sm:$0xf]
        %v5094 = vld [vmem:[#allocation8 + $0x38] sm:$0xf]
        %v5095 = vld [vmem:[#allocation8 + $0x3c] sm:$0xf]
        %v5112 = vunpack.c.l.b16 %v5064
        %v5113 = vunpack.c.l.b16 %v5065
        %v5114 = vunpack.c.l.b16 %v5066
        %v5115 = vunpack.c.l.b16 %v5067
        %v5116 = vunpack.c.l.b16 %v5068
        %v5117 = vunpack.c.l.b16 %v5069
        %v5118 = vunpack.c.l.b16 %v5070
        %v5119 = vunpack.c.l.b16 %v5071
        %v5120 = vunpack.c.l.b16 %v5072
        %v5121 = vunpack.c.l.b16 %v5073
        %v5122 = vunpack.c.l.b16 %v5074
        %v5123 = vunpack.c.l.b16 %v5075
        %v5124 = vunpack.c.l.b16 %v5076
        %v5125 = vunpack.c.l.b16 %v5077
        %v5126 = vunpack.c.l.b16 %v5078
        %v5127 = vunpack.c.l.b16 %v5079
        %v5128 = vpack.c.b16 %v5113, %v5112
        %v5129 = vpack.c.b16 %v5115, %v5114
        %v5130 = vpack.c.b16 %v5117, %v5116
        %v5131 = vpack.c.b16 %v5119, %v5118
        %v5132 = vpack.c.b16 %v5121, %v5120
        %v5133 = vpack.c.b16 %v5123, %v5122
        %v5134 = vpack.c.b16 %v5125, %v5124
        %v5135 = vpack.c.b16 %v5127, %v5126
        %v5160 = vunpack.c.l.b16 %v5080
        %v5161 = vunpack.c.l.b16 %v5081
        %v5162 = vunpack.c.l.b16 %v5082
        %v5163 = vunpack.c.l.b16 %v5083
        %v5164 = vunpack.c.l.b16 %v5084
        %v5165 = vunpack.c.l.b16 %v5085
        %v5166 = vunpack.c.l.b16 %v5086
        %v5167 = vunpack.c.l.b16 %v5087
        %v5168 = vunpack.c.l.b16 %v5088
        %v5169 = vunpack.c.l.b16 %v5089
        %v5170 = vunpack.c.l.b16 %v5090
        %v5171 = vunpack.c.l.b16 %v5091
        %v5172 = vunpack.c.l.b16 %v5092
        %v5173 = vunpack.c.l.b16 %v5093
        %v5174 = vunpack.c.l.b16 %v5094
        %v5175 = vunpack.c.l.b16 %v5095
        %v5176 = vpack.c.b16 %v5161, %v5160
        %v5177 = vpack.c.b16 %v5163, %v5162
        %v5178 = vpack.c.b16 %v5165, %v5164
        %v5179 = vpack.c.b16 %v5167, %v5166
        %v5180 = vpack.c.b16 %v5169, %v5168
        %v5181 = vpack.c.b16 %v5171, %v5170
        %v5182 = vpack.c.b16 %v5173, %v5172
        %v5183 = vpack.c.b16 %v5175, %v5174
        %5192 = vmatprep.subr.bf16.mxu0 0
        %5193 = vmatpush1.bf16.msra.mxu0 %v5183
        %5194 = vmatprep.subr.bf16.mxu0 0
        %5195 = vmatpush1.bf16.msra.mxu0 %v5182
        %5196 = vmatprep.subr.bf16.mxu0 0
        %5197 = vmatpush1.bf16.msra.mxu0 %v5181
        %5198 = vmatprep.subr.bf16.mxu0 0
        %5199 = vmatpush1.bf16.msra.mxu0 %v5180
        %5200 = vmatprep.subr.bf16.mxu0 0
        %5201 = vmatpush1.bf16.msra.mxu0 %v5179
        %5202 = vmatprep.subr.bf16.mxu0 0
        %5203 = vmatpush1.bf16.msra.mxu0 %v5178
        %5204 = vmatprep.subr.bf16.mxu0 0
        %5205 = vmatpush1.bf16.msra.mxu0 %v5177
        %5206 = vmatprep.subr.bf16.mxu0 0
        %5207 = vmatpush1.bf16.msra.mxu0 %v5176
        %5208 = vmatprep.subr.bf16.mxu0 0
        %5209 = vmatpush2.bf16.msra.mxu0 0
        %5210 = vmatprep.subr.bf16.mxu0 0
        %5211 = vmatpush2.bf16.msra.mxu0 0
        %5212 = vmatprep.subr.bf16.mxu0 0
        %5213 = vmatpush2.bf16.msra.mxu0 0
        %5214 = vmatprep.subr.bf16.mxu0 0
        %5215 = vmatpush2.bf16.msra.mxu0 0
        %5216 = vmatprep.subr.bf16.mxu0 0
        %5217 = vmatpush2.bf16.msra.mxu0 0
        %5218 = vmatprep.subr.bf16.mxu0 0
        %5219 = vmatpush2.bf16.msra.mxu0 0
        %5220 = vmatprep.subr.bf16.mxu0 0
        %5221 = vmatpush2.bf16.msra.mxu0 0
        %5222 = vmatprep.subr.bf16.mxu0 0
        %5223 = vmatpush2.bf16.msra.mxu0 0
        %5224 = vmatprep.mubr.bf16.mxu0 0
        %5225 = vmatmul.mubr.bf16.gmra.mxu0 %v5128
        %v5226 = vpop.f32.mrf.mxu0
        %v5227 = vadd.f32 0.0, %v5226
        %v5228 = vpop.f32.mrf.mxu0
        %v5229 = vpop.f32.mrf.mxu0
        %v5230 = vadd.f32 0.0, %v5229
        %v5231 = vpop.f32.mrf.mxu0
        %5232 = vmatprep.mubr.bf16.mxu0 0
        %5233 = vmatmul.mubr.bf16.gmra.mxu0 %v5129
        %v5234 = vpop.f32.mrf.mxu0
        %v5235 = vadd.f32 0.0, %v5234
        %v5236 = vpop.f32.mrf.mxu0
        %v5237 = vpop.f32.mrf.mxu0
        %v5238 = vadd.f32 0.0, %v5237
        %v5239 = vpop.f32.mrf.mxu0
        %5240 = vmatprep.mubr.bf16.mxu0 0
        %5241 = vmatmul.mubr.bf16.gmra.mxu0 %v5130
        %v5242 = vpop.f32.mrf.mxu0
        %v5243 = vadd.f32 0.0, %v5242
        %v5244 = vpop.f32.mrf.mxu0
        %v5245 = vpop.f32.mrf.mxu0
        %v5246 = vadd.f32 0.0, %v5245
        %v5247 = vpop.f32.mrf.mxu0
        %5248 = vmatprep.mubr.bf16.mxu0 0
        %5249 = vmatmul.mubr.bf16.gmra.mxu0 %v5131
        %v5250 = vpop.f32.mrf.mxu0
        %v5251 = vadd.f32 0.0, %v5250
        %v5252 = vpop.f32.mrf.mxu0
        %v5253 = vpop.f32.mrf.mxu0
        %v5254 = vadd.f32 0.0, %v5253
        %v5255 = vpop.f32.mrf.mxu0
        %5256 = vmatprep.mubr.bf16.mxu0 0
        %5257 = vmatmul.mubr.bf16.gmra.mxu0 %v5132
        %v5258 = vpop.f32.mrf.mxu0
        %v5259 = vadd.f32 0.0, %v5258
        %v5260 = vpop.f32.mrf.mxu0
        %v5261 = vpop.f32.mrf.mxu0
        %v5262 = vadd.f32 0.0, %v5261
        %v5263 = vpop.f32.mrf.mxu0
        %5264 = vmatprep.mubr.bf16.mxu0 0
        %5265 = vmatmul.mubr.bf16.gmra.mxu0 %v5133
        %v5266 = vpop.f32.mrf.mxu0
        %v5267 = vadd.f32 0.0, %v5266
        %v5268 = vpop.f32.mrf.mxu0
        %v5269 = vpop.f32.mrf.mxu0
        %v5270 = vadd.f32 0.0, %v5269
        %v5271 = vpop.f32.mrf.mxu0
        %5272 = vmatprep.mubr.bf16.mxu0 0
        %5273 = vmatmul.mubr.bf16.gmra.mxu0 %v5134
        %v5274 = vpop.f32.mrf.mxu0
        %v5275 = vadd.f32 0.0, %v5274
        %v5276 = vpop.f32.mrf.mxu0
        %v5277 = vpop.f32.mrf.mxu0
        %v5278 = vadd.f32 0.0, %v5277
        %v5279 = vpop.f32.mrf.mxu0
        %5280 = vmatprep.mubr.bf16.mxu0 0
        %5281 = vmatmul.mubr.bf16.gmra.mxu0 %v5135
        %v5282 = vpop.f32.mrf.mxu0
        %v5283 = vadd.f32 0.0, %v5282
        %v5284 = vpop.f32.mrf.mxu0
        %v5285 = vpop.f32.mrf.mxu0
        %v5286 = vadd.f32 0.0, %v5285
        %v5287 = vpop.f32.mrf.mxu0
        %5288 = vdwg.mxu0
        %v5289 = vadd.f32 %v428, %v5227
        %v5290 = vadd.f32 %v428, %v5230
        %v5291 = vadd.f32 %v428, %v5235
        %v5292 = vadd.f32 %v428, %v5238
        %v5293 = vadd.f32 %v428, %v5243
        %v5294 = vadd.f32 %v428, %v5246
        %v5295 = vadd.f32 %v428, %v5251
        %v5296 = vadd.f32 %v428, %v5254
        %v5297 = vadd.f32 %v428, %v5259
        %v5298 = vadd.f32 %v428, %v5262
        %v5299 = vadd.f32 %v428, %v5267
        %v5300 = vadd.f32 %v428, %v5270
        %v5301 = vadd.f32 %v428, %v5275
        %v5302 = vadd.f32 %v428, %v5278
        %v5303 = vadd.f32 %v428, %v5283
        %v5304 = vadd.f32 %v428, %v5286
        %v5305 = vld [vmem:[#allocation2 + $0x80] sm:$0xf]
        %v5306 = vld [vmem:[#allocation2 + $0x84] sm:$0xf]
        %v5307 = vld [vmem:[#allocation2 + $0x88] sm:$0xf]
        %v5308 = vld [vmem:[#allocation2 + $0x8c] sm:$0xf]
        %v5309 = vld [vmem:[#allocation2 + $0x90] sm:$0xf]
        %v5310 = vld [vmem:[#allocation2 + $0x94] sm:$0xf]
        %v5311 = vld [vmem:[#allocation2 + $0x98] sm:$0xf]
        %v5312 = vld [vmem:[#allocation2 + $0x9c] sm:$0xf]
        %v5313 = vld [vmem:[#allocation2 + $0xa0] sm:$0xf]
        %v5314 = vld [vmem:[#allocation2 + $0xa4] sm:$0xf]
        %v5315 = vld [vmem:[#allocation2 + $0xa8] sm:$0xf]
        %v5316 = vld [vmem:[#allocation2 + $0xac] sm:$0xf]
        %v5317 = vld [vmem:[#allocation2 + $0xb0] sm:$0xf]
        %v5318 = vld [vmem:[#allocation2 + $0xb4] sm:$0xf]
        %v5319 = vld [vmem:[#allocation2 + $0xb8] sm:$0xf]
        %v5320 = vld [vmem:[#allocation2 + $0xbc] sm:$0xf]
        %v5321 = vld [vmem:[#allocation2 + $0xc0] sm:$0x1]
        %v5322 = vld [vmem:[%s688] sm:$0xf]
        %v5323 = vld [vmem:[%s688 + $0x4] sm:$0xf]
        %v5324 = vld [vmem:[%s688 + $0x8] sm:$0xf]
        %v5325 = vld [vmem:[%s688 + $0xc] sm:$0xf]
        %v5326 = vld [vmem:[%s688 + $0x10] sm:$0xf]
        %v5327 = vld [vmem:[%s688 + $0x14] sm:$0xf]
        %v5328 = vld [vmem:[%s688 + $0x18] sm:$0xf]
        %v5329 = vld [vmem:[%s688 + $0x1c] sm:$0xf]
        %v5330 = vld [vmem:[%s688 + $0x20] sm:$0xf]
        %v5331 = vld [vmem:[%s688 + $0x24] sm:$0xf]
        %v5332 = vld [vmem:[%s688 + $0x28] sm:$0xf]
        %v5333 = vld [vmem:[%s688 + $0x2c] sm:$0xf]
        %v5334 = vld [vmem:[%s688 + $0x30] sm:$0xf]
        %v5335 = vld [vmem:[%s688 + $0x34] sm:$0xf]
        %v5336 = vld [vmem:[%s688 + $0x38] sm:$0xf]
        %v5337 = vld [vmem:[%s688 + $0x3c] sm:$0xf]
        %v5355 = vunpack.c.l.b16 %v5305
        %v5356 = vunpack.c.l.b16 %v5306
        %v5357 = vunpack.c.l.b16 %v5307
        %v5358 = vunpack.c.l.b16 %v5308
        %v5359 = vunpack.c.l.b16 %v5309
        %v5360 = vunpack.c.l.b16 %v5310
        %v5361 = vunpack.c.l.b16 %v5311
        %v5362 = vunpack.c.l.b16 %v5312
        %v5363 = vunpack.c.l.b16 %v5313
        %v5364 = vunpack.c.l.b16 %v5314
        %v5365 = vunpack.c.l.b16 %v5315
        %v5366 = vunpack.c.l.b16 %v5316
        %v5367 = vunpack.c.l.b16 %v5317
        %v5368 = vunpack.c.l.b16 %v5318
        %v5369 = vunpack.c.l.b16 %v5319
        %v5370 = vunpack.c.l.b16 %v5320
        %v5371 = vunpack.c.l.b16 %v5321
        %v5372 = vpack.c.b16 %v5356, %v5355
        %v5373 = vpack.c.b16 %v5358, %v5357
        %v5374 = vpack.c.b16 %v5360, %v5359
        %v5375 = vpack.c.b16 %v5362, %v5361
        %v5376 = vpack.c.b16 %v5364, %v5363
        %v5377 = vpack.c.b16 %v5366, %v5365
        %v5378 = vpack.c.b16 %v5368, %v5367
        %v5379 = vpack.c.b16 %v5370, %v5369
        %v5380 = vpack.c.b16 %v5371, %v5371
        %v5382 = vshrl.u32 %v5372, 16
        %v5384 = vshll.u32 %v5372, 16
        %v5386 = vrot.slane %v5384, 1
        %v5387 = vor.u32 %v5382, %v5386
        %v5389 = vshll.u32 %v5373, 16
        %v5391 = vrot.slane %v5389, 1
        %v5392 = vsel %vm748, %v5387, %v5391
        %v5393 = vshrl.u32 %v5373, 16
        %v5395 = vor.u32 %v5393, %v5391
        %v5397 = vshll.u32 %v5374, 16
        %v5399 = vrot.slane %v5397, 1
        %v5400 = vsel %vm748, %v5395, %v5399
        %v5401 = vshrl.u32 %v5374, 16
        %v5403 = vor.u32 %v5401, %v5399
        %v5405 = vshll.u32 %v5375, 16
        %v5407 = vrot.slane %v5405, 1
        %v5408 = vsel %vm748, %v5403, %v5407
        %v5409 = vshrl.u32 %v5375, 16
        %v5411 = vor.u32 %v5409, %v5407
        %v5413 = vshll.u32 %v5376, 16
        %v5415 = vrot.slane %v5413, 1
        %v5416 = vsel %vm748, %v5411, %v5415
        %v5417 = vshrl.u32 %v5376, 16
        %v5419 = vor.u32 %v5417, %v5415
        %v5421 = vshll.u32 %v5377, 16
        %v5423 = vrot.slane %v5421, 1
        %v5424 = vsel %vm748, %v5419, %v5423
        %v5425 = vshrl.u32 %v5377, 16
        %v5427 = vor.u32 %v5425, %v5423
        %v5429 = vshll.u32 %v5378, 16
        %v5431 = vrot.slane %v5429, 1
        %v5432 = vsel %vm748, %v5427, %v5431
        %v5433 = vshrl.u32 %v5378, 16
        %v5435 = vor.u32 %v5433, %v5431
        %v5437 = vshll.u32 %v5379, 16
        %v5439 = vrot.slane %v5437, 1
        %v5440 = vsel %vm748, %v5435, %v5439
        %v5441 = vshrl.u32 %v5379, 16
        %v5443 = vor.u32 %v5441, %v5439
        %v5445 = vshll.u32 %v5380, 16
        %v5447 = vrot.slane %v5445, 1
        %v5448 = vsel %vm748, %v5443, %v5447
        %v5473 = vunpack.c.l.b16 %v5322
        %v5474 = vunpack.c.l.b16 %v5323
        %v5475 = vunpack.c.l.b16 %v5324
        %v5476 = vunpack.c.l.b16 %v5325
        %v5477 = vunpack.c.l.b16 %v5326
        %v5478 = vunpack.c.l.b16 %v5327
        %v5479 = vunpack.c.l.b16 %v5328
        %v5480 = vunpack.c.l.b16 %v5329
        %v5481 = vunpack.c.l.b16 %v5330
        %v5482 = vunpack.c.l.b16 %v5331
        %v5483 = vunpack.c.l.b16 %v5332
        %v5484 = vunpack.c.l.b16 %v5333
        %v5485 = vunpack.c.l.b16 %v5334
        %v5486 = vunpack.c.l.b16 %v5335
        %v5487 = vunpack.c.l.b16 %v5336
        %v5488 = vunpack.c.l.b16 %v5337
        %v5489 = vpack.c.b16 %v5474, %v5473
        %v5490 = vpack.c.b16 %v5476, %v5475
        %v5491 = vpack.c.b16 %v5478, %v5477
        %v5492 = vpack.c.b16 %v5480, %v5479
        %v5493 = vpack.c.b16 %v5482, %v5481
        %v5494 = vpack.c.b16 %v5484, %v5483
        %v5495 = vpack.c.b16 %v5486, %v5485
        %v5496 = vpack.c.b16 %v5488, %v5487
        %5505 = vmatprep.subr.bf16.mxu0 0
        %5506 = vmatpush1.bf16.msra.mxu0 %v5496
        %5507 = vmatprep.subr.bf16.mxu0 0
        %5508 = vmatpush1.bf16.msra.mxu0 %v5495
        %5509 = vmatprep.subr.bf16.mxu0 0
        %5510 = vmatpush1.bf16.msra.mxu0 %v5494
        %5511 = vmatprep.subr.bf16.mxu0 0
        %5512 = vmatpush1.bf16.msra.mxu0 %v5493
        %5513 = vmatprep.subr.bf16.mxu0 0
        %5514 = vmatpush1.bf16.msra.mxu0 %v5492
        %5515 = vmatprep.subr.bf16.mxu0 0
        %5516 = vmatpush1.bf16.msra.mxu0 %v5491
        %5517 = vmatprep.subr.bf16.mxu0 0
        %5518 = vmatpush1.bf16.msra.mxu0 %v5490
        %5519 = vmatprep.subr.bf16.mxu0 0
        %5520 = vmatpush1.bf16.msra.mxu0 %v5489
        %5521 = vmatprep.subr.bf16.mxu0 0
        %5522 = vmatpush2.bf16.msra.mxu0 0
        %5523 = vmatprep.subr.bf16.mxu0 0
        %5524 = vmatpush2.bf16.msra.mxu0 0
        %5525 = vmatprep.subr.bf16.mxu0 0
        %5526 = vmatpush2.bf16.msra.mxu0 0
        %5527 = vmatprep.subr.bf16.mxu0 0
        %5528 = vmatpush2.bf16.msra.mxu0 0
        %5529 = vmatprep.subr.bf16.mxu0 0
        %5530 = vmatpush2.bf16.msra.mxu0 0
        %5531 = vmatprep.subr.bf16.mxu0 0
        %5532 = vmatpush2.bf16.msra.mxu0 0
        %5533 = vmatprep.subr.bf16.mxu0 0
        %5534 = vmatpush2.bf16.msra.mxu0 0
        %5535 = vmatprep.subr.bf16.mxu0 0
        %5536 = vmatpush2.bf16.msra.mxu0 0
        %5537 = vmatprep.mubr.bf16.mxu0 0
        %5538 = vmatmul.mubr.bf16.gmra.mxu0 %v5392
        %v5539 = vpop.f32.mrf.mxu0
        %v5540 = vadd.f32 0.0, %v5539
        %v5541 = vpop.f32.mrf.mxu0
        %v5542 = vpop.f32.mrf.mxu0
        %v5543 = vadd.f32 0.0, %v5542
        %v5544 = vpop.f32.mrf.mxu0
        %5545 = vmatprep.mubr.bf16.mxu0 0
        %5546 = vmatmul.mubr.bf16.gmra.mxu0 %v5400
        %v5547 = vpop.f32.mrf.mxu0
        %v5548 = vadd.f32 0.0, %v5547
        %v5549 = vpop.f32.mrf.mxu0
        %v5550 = vpop.f32.mrf.mxu0
        %v5551 = vadd.f32 0.0, %v5550
        %v5552 = vpop.f32.mrf.mxu0
        %5553 = vmatprep.mubr.bf16.mxu0 0
        %5554 = vmatmul.mubr.bf16.gmra.mxu0 %v5408
        %v5555 = vpop.f32.mrf.mxu0
        %v5556 = vadd.f32 0.0, %v5555
        %v5557 = vpop.f32.mrf.mxu0
        %v5558 = vpop.f32.mrf.mxu0
        %v5559 = vadd.f32 0.0, %v5558
        %v5560 = vpop.f32.mrf.mxu0
        %5561 = vmatprep.mubr.bf16.mxu0 0
        %5562 = vmatmul.mubr.bf16.gmra.mxu0 %v5416
        %v5563 = vpop.f32.mrf.mxu0
        %v5564 = vadd.f32 0.0, %v5563
        %v5565 = vpop.f32.mrf.mxu0
        %v5566 = vpop.f32.mrf.mxu0
        %v5567 = vadd.f32 0.0, %v5566
        %v5568 = vpop.f32.mrf.mxu0
        %5569 = vmatprep.mubr.bf16.mxu0 0
        %5570 = vmatmul.mubr.bf16.gmra.mxu0 %v5424
        %v5571 = vpop.f32.mrf.mxu0
        %v5572 = vadd.f32 0.0, %v5571
        %v5573 = vpop.f32.mrf.mxu0
        %v5574 = vpop.f32.mrf.mxu0
        %v5575 = vadd.f32 0.0, %v5574
        %v5576 = vpop.f32.mrf.mxu0
        %5577 = vmatprep.mubr.bf16.mxu0 0
        %5578 = vmatmul.mubr.bf16.gmra.mxu0 %v5432
        %v5579 = vpop.f32.mrf.mxu0
        %v5580 = vadd.f32 0.0, %v5579
        %v5581 = vpop.f32.mrf.mxu0
        %v5582 = vpop.f32.mrf.mxu0
        %v5583 = vadd.f32 0.0, %v5582
        %v5584 = vpop.f32.mrf.mxu0
        %5585 = vmatprep.mubr.bf16.mxu0 0
        %5586 = vmatmul.mubr.bf16.gmra.mxu0 %v5440
        %v5587 = vpop.f32.mrf.mxu0
        %v5588 = vadd.f32 0.0, %v5587
        %v5589 = vpop.f32.mrf.mxu0
        %v5590 = vpop.f32.mrf.mxu0
        %v5591 = vadd.f32 0.0, %v5590
        %v5592 = vpop.f32.mrf.mxu0
        %5593 = vmatprep.mubr.bf16.mxu0 0
        %5594 = vmatmul.mubr.bf16.gmra.mxu0 %v5448
        %v5595 = vpop.f32.mrf.mxu0
        %v5596 = vadd.f32 0.0, %v5595
        %v5597 = vpop.f32.mrf.mxu0
        %v5598 = vpop.f32.mrf.mxu0
        %v5599 = vadd.f32 0.0, %v5598
        %v5600 = vpop.f32.mrf.mxu0
        %5601 = vdwg.mxu0
        %v5602 = vadd.f32 %v5289, %v5540
        %v5603 = vadd.f32 %v5290, %v5543
        %v5604 = vadd.f32 %v5291, %v5548
        %v5605 = vadd.f32 %v5292, %v5551
        %v5606 = vadd.f32 %v5293, %v5556
        %v5607 = vadd.f32 %v5294, %v5559
        %v5608 = vadd.f32 %v5295, %v5564
        %v5609 = vadd.f32 %v5296, %v5567
        %v5610 = vadd.f32 %v5297, %v5572
        %v5611 = vadd.f32 %v5298, %v5575
        %v5612 = vadd.f32 %v5299, %v5580
        %v5613 = vadd.f32 %v5300, %v5583
        %v5614 = vadd.f32 %v5301, %v5588
        %v5615 = vadd.f32 %v5302, %v5591
        %v5616 = vadd.f32 %v5303, %v5596
        %v5617 = vadd.f32 %v5304, %v5599
        %v5618 = vld [vmem:[#allocation2 + $0x80] sm:$0xe]
        %v5619 = vld [vmem:[%s987] sm:$0xf]
        %v5620 = vld [vmem:[%s987 + $0x4] sm:$0xf]
        %v5621 = vld [vmem:[%s987 + $0x8] sm:$0xf]
        %v5622 = vld [vmem:[%s987 + $0xc] sm:$0xf]
        %v5623 = vld [vmem:[%s987 + $0x10] sm:$0xf]
        %v5624 = vld [vmem:[%s987 + $0x14] sm:$0xf]
        %v5625 = vld [vmem:[%s987 + $0x18] sm:$0xf]
        %v5626 = vld [vmem:[%s987 + $0x1c] sm:$0xf]
        %v5627 = vld [vmem:[%s987 + $0x20] sm:$0xf]
        %v5628 = vld [vmem:[%s987 + $0x24] sm:$0xf]
        %v5629 = vld [vmem:[%s987 + $0x28] sm:$0xf]
        %v5630 = vld [vmem:[%s987 + $0x2c] sm:$0xf]
        %v5631 = vld [vmem:[%s987 + $0x30] sm:$0xf]
        %v5632 = vld [vmem:[%s987 + $0x34] sm:$0xf]
        %v5633 = vld [vmem:[%s987 + $0x38] sm:$0xf]
        %v5634 = vld [vmem:[%s987 + $0x3c] sm:$0xf]
        %v5636 = vunpack.c.l.b16 %v5618
        %v5637 = vpack.c.b16 %v5356, %v5636
        %v5638 = vrot.slane %v5637, 1
        %v5639 = vrot.slane %v5373, 1
        %v5640 = vsel %vm1007, %v5638, %v5639
        %v5641 = vrot.slane %v5374, 1
        %v5642 = vsel %vm1007, %v5639, %v5641
        %v5643 = vrot.slane %v5375, 1
        %v5644 = vsel %vm1007, %v5641, %v5643
        %v5645 = vrot.slane %v5376, 1
        %v5646 = vsel %vm1007, %v5643, %v5645
        %v5647 = vrot.slane %v5377, 1
        %v5648 = vsel %vm1007, %v5645, %v5647
        %v5649 = vrot.slane %v5378, 1
        %v5650 = vsel %vm1007, %v5647, %v5649
        %v5651 = vrot.slane %v5379, 1
        %v5652 = vsel %vm1007, %v5649, %v5651
        %v5653 = vrot.slane %v5380, 1
        %v5654 = vsel %vm1007, %v5651, %v5653
        %v5679 = vunpack.c.l.b16 %v5619
        %v5680 = vunpack.c.l.b16 %v5620
        %v5681 = vunpack.c.l.b16 %v5621
        %v5682 = vunpack.c.l.b16 %v5622
        %v5683 = vunpack.c.l.b16 %v5623
        %v5684 = vunpack.c.l.b16 %v5624
        %v5685 = vunpack.c.l.b16 %v5625
        %v5686 = vunpack.c.l.b16 %v5626
        %v5687 = vunpack.c.l.b16 %v5627
        %v5688 = vunpack.c.l.b16 %v5628
        %v5689 = vunpack.c.l.b16 %v5629
        %v5690 = vunpack.c.l.b16 %v5630
        %v5691 = vunpack.c.l.b16 %v5631
        %v5692 = vunpack.c.l.b16 %v5632
        %v5693 = vunpack.c.l.b16 %v5633
        %v5694 = vunpack.c.l.b16 %v5634
        %v5695 = vpack.c.b16 %v5680, %v5679
        %v5696 = vpack.c.b16 %v5682, %v5681
        %v5697 = vpack.c.b16 %v5684, %v5683
        %v5698 = vpack.c.b16 %v5686, %v5685
        %v5699 = vpack.c.b16 %v5688, %v5687
        %v5700 = vpack.c.b16 %v5690, %v5689
        %v5701 = vpack.c.b16 %v5692, %v5691
        %v5702 = vpack.c.b16 %v5694, %v5693
        %5711 = vmatprep.subr.bf16.mxu0 0
        %5712 = vmatpush1.bf16.msra.mxu0 %v5702
        %5713 = vmatprep.subr.bf16.mxu0 0
        %5714 = vmatpush1.bf16.msra.mxu0 %v5701
        %5715 = vmatprep.subr.bf16.mxu0 0
        %5716 = vmatpush1.bf16.msra.mxu0 %v5700
        %5717 = vmatprep.subr.bf16.mxu0 0
        %5718 = vmatpush1.bf16.msra.mxu0 %v5699
        %5719 = vmatprep.subr.bf16.mxu0 0
        %5720 = vmatpush1.bf16.msra.mxu0 %v5698
        %5721 = vmatprep.subr.bf16.mxu0 0
        %5722 = vmatpush1.bf16.msra.mxu0 %v5697
        %5723 = vmatprep.subr.bf16.mxu0 0
        %5724 = vmatpush1.bf16.msra.mxu0 %v5696
        %5725 = vmatprep.subr.bf16.mxu0 0
        %5726 = vmatpush1.bf16.msra.mxu0 %v5695
        %5727 = vmatprep.subr.bf16.mxu0 0
        %5728 = vmatpush2.bf16.msra.mxu0 0
        %5729 = vmatprep.subr.bf16.mxu0 0
        %5730 = vmatpush2.bf16.msra.mxu0 0
        %5731 = vmatprep.subr.bf16.mxu0 0
        %5732 = vmatpush2.bf16.msra.mxu0 0
        %5733 = vmatprep.subr.bf16.mxu0 0
        %5734 = vmatpush2.bf16.msra.mxu0 0
        %5735 = vmatprep.subr.bf16.mxu0 0
        %5736 = vmatpush2.bf16.msra.mxu0 0
        %5737 = vmatprep.subr.bf16.mxu0 0
        %5738 = vmatpush2.bf16.msra.mxu0 0
        %5739 = vmatprep.subr.bf16.mxu0 0
        %5740 = vmatpush2.bf16.msra.mxu0 0
        %5741 = vmatprep.subr.bf16.mxu0 0
        %5742 = vmatpush2.bf16.msra.mxu0 0
        %5743 = vmatprep.mubr.bf16.mxu0 0
        %5744 = vmatmul.mubr.bf16.gmra.mxu0 %v5640
        %v5745 = vpop.f32.mrf.mxu0
        %v5746 = vadd.f32 0.0, %v5745
        %v5747 = vpop.f32.mrf.mxu0
        %v5748 = vpop.f32.mrf.mxu0
        %v5749 = vadd.f32 0.0, %v5748
        %v5750 = vpop.f32.mrf.mxu0
        %5751 = vmatprep.mubr.bf16.mxu0 0
        %5752 = vmatmul.mubr.bf16.gmra.mxu0 %v5642
        %v5753 = vpop.f32.mrf.mxu0
        %v5754 = vadd.f32 0.0, %v5753
        %v5755 = vpop.f32.mrf.mxu0
        %v5756 = vpop.f32.mrf.mxu0
        %v5757 = vadd.f32 0.0, %v5756
        %v5758 = vpop.f32.mrf.mxu0
        %5759 = vmatprep.mubr.bf16.mxu0 0
        %5760 = vmatmul.mubr.bf16.gmra.mxu0 %v5644
        %v5761 = vpop.f32.mrf.mxu0
        %v5762 = vadd.f32 0.0, %v5761
        %v5763 = vpop.f32.mrf.mxu0
        %v5764 = vpop.f32.mrf.mxu0
        %v5765 = vadd.f32 0.0, %v5764
        %v5766 = vpop.f32.mrf.mxu0
        %5767 = vmatprep.mubr.bf16.mxu0 0
        %5768 = vmatmul.mubr.bf16.gmra.mxu0 %v5646
        %v5769 = vpop.f32.mrf.mxu0
        %v5770 = vadd.f32 0.0, %v5769
        %v5771 = vpop.f32.mrf.mxu0
        %v5772 = vpop.f32.mrf.mxu0
        %v5773 = vadd.f32 0.0, %v5772
        %v5774 = vpop.f32.mrf.mxu0
        %5775 = vmatprep.mubr.bf16.mxu0 0
        %5776 = vmatmul.mubr.bf16.gmra.mxu0 %v5648
        %v5777 = vpop.f32.mrf.mxu0
        %v5778 = vadd.f32 0.0, %v5777
        %v5779 = vpop.f32.mrf.mxu0
        %v5780 = vpop.f32.mrf.mxu0
        %v5781 = vadd.f32 0.0, %v5780
        %v5782 = vpop.f32.mrf.mxu0
        %5783 = vmatprep.mubr.bf16.mxu0 0
        %5784 = vmatmul.mubr.bf16.gmra.mxu0 %v5650
        %v5785 = vpop.f32.mrf.mxu0
        %v5786 = vadd.f32 0.0, %v5785
        %v5787 = vpop.f32.mrf.mxu0
        %v5788 = vpop.f32.mrf.mxu0
        %v5789 = vadd.f32 0.0, %v5788
        %v5790 = vpop.f32.mrf.mxu0
        %5791 = vmatprep.mubr.bf16.mxu0 0
        %5792 = vmatmul.mubr.bf16.gmra.mxu0 %v5652
        %v5793 = vpop.f32.mrf.mxu0
        %v5794 = vadd.f32 0.0, %v5793
        %v5795 = vpop.f32.mrf.mxu0
        %v5796 = vpop.f32.mrf.mxu0
        %v5797 = vadd.f32 0.0, %v5796
        %v5798 = vpop.f32.mrf.mxu0
        %5799 = vmatprep.mubr.bf16.mxu0 0
        %5800 = vmatmul.mubr.bf16.gmra.mxu0 %v5654
        %v5801 = vpop.f32.mrf.mxu0
        %v5802 = vadd.f32 0.0, %v5801
        %v5803 = vpop.f32.mrf.mxu0
        %v5804 = vpop.f32.mrf.mxu0
        %v5805 = vadd.f32 0.0, %v5804
        %v5806 = vpop.f32.mrf.mxu0
        %5807 = vdwg.mxu0
        %v5808 = vadd.f32 %v5602, %v5746
        %v5809 = vadd.f32 %v5603, %v5749
        %v5810 = vadd.f32 %v5604, %v5754
        %v5811 = vadd.f32 %v5605, %v5757
        %v5812 = vadd.f32 %v5606, %v5762
        %v5813 = vadd.f32 %v5607, %v5765
        %v5814 = vadd.f32 %v5608, %v5770
        %v5815 = vadd.f32 %v5609, %v5773
        %v5816 = vadd.f32 %v5610, %v5778
        %v5817 = vadd.f32 %v5611, %v5781
        %v5818 = vadd.f32 %v5612, %v5786
        %v5819 = vadd.f32 %v5613, %v5789
        %v5820 = vadd.f32 %v5614, %v5794
        %v5821 = vadd.f32 %v5615, %v5797
        %v5822 = vadd.f32 %v5616, %v5802
        %v5823 = vadd.f32 %v5617, %v5805
        %v5824 = vld [vmem:[#allocation2 + $0x8c] sm:$0xf]
        %v5825 = vld [vmem:[#allocation2 + $0x90] sm:$0xf]
        %v5826 = vld [vmem:[#allocation2 + $0x94] sm:$0xf]
        %v5827 = vld [vmem:[#allocation2 + $0x98] sm:$0xf]
        %v5828 = vld [vmem:[#allocation2 + $0x9c] sm:$0xf]
        %v5829 = vld [vmem:[#allocation2 + $0xa0] sm:$0xf]
        %v5830 = vld [vmem:[#allocation2 + $0xa4] sm:$0xf]
        %v5831 = vld [vmem:[#allocation2 + $0xa8] sm:$0xf]
        %v5832 = vld [vmem:[#allocation2 + $0xac] sm:$0xf]
        %v5833 = vld [vmem:[#allocation2 + $0xb0] sm:$0xf]
        %v5834 = vld [vmem:[#allocation2 + $0xb4] sm:$0xf]
        %v5835 = vld [vmem:[#allocation2 + $0xb8] sm:$0xf]
        %v5836 = vld [vmem:[#allocation2 + $0xbc] sm:$0xf]
        %v5837 = vld [vmem:[#allocation2 + $0xc0] sm:$0xf]
        %v5838 = vld [vmem:[#allocation2 + $0xc4] sm:$0xf]
        %v5839 = vld [vmem:[#allocation2 + $0xc8] sm:$0xf]
        %v5840 = vld [vmem:[%s1210] sm:$0xf]
        %v5841 = vld [vmem:[%s1210 + $0x4] sm:$0xf]
        %v5842 = vld [vmem:[%s1210 + $0x8] sm:$0xf]
        %v5843 = vld [vmem:[%s1210 + $0xc] sm:$0xf]
        %v5844 = vld [vmem:[%s1210 + $0x10] sm:$0xf]
        %v5845 = vld [vmem:[%s1210 + $0x14] sm:$0xf]
        %v5846 = vld [vmem:[%s1210 + $0x18] sm:$0xf]
        %v5847 = vld [vmem:[%s1210 + $0x1c] sm:$0xf]
        %v5848 = vld [vmem:[%s1210 + $0x20] sm:$0xf]
        %v5849 = vld [vmem:[%s1210 + $0x24] sm:$0xf]
        %v5850 = vld [vmem:[%s1210 + $0x28] sm:$0xf]
        %v5851 = vld [vmem:[%s1210 + $0x2c] sm:$0xf]
        %v5852 = vld [vmem:[%s1210 + $0x30] sm:$0xf]
        %v5853 = vld [vmem:[%s1210 + $0x34] sm:$0xf]
        %v5854 = vld [vmem:[%s1210 + $0x38] sm:$0xf]
        %v5855 = vld [vmem:[%s1210 + $0x3c] sm:$0xf]
        %v5872 = vunpack.c.l.b16 %v5824
        %v5873 = vunpack.c.l.b16 %v5825
        %v5874 = vunpack.c.l.b16 %v5826
        %v5875 = vunpack.c.l.b16 %v5827
        %v5876 = vunpack.c.l.b16 %v5828
        %v5877 = vunpack.c.l.b16 %v5829
        %v5878 = vunpack.c.l.b16 %v5830
        %v5879 = vunpack.c.l.b16 %v5831
        %v5880 = vunpack.c.l.b16 %v5832
        %v5881 = vunpack.c.l.b16 %v5833
        %v5882 = vunpack.c.l.b16 %v5834
        %v5883 = vunpack.c.l.b16 %v5835
        %v5884 = vunpack.c.l.b16 %v5836
        %v5885 = vunpack.c.l.b16 %v5837
        %v5886 = vunpack.c.l.b16 %v5838
        %v5887 = vunpack.c.l.b16 %v5839
        %v5888 = vpack.c.b16 %v5873, %v5872
        %v5889 = vpack.c.b16 %v5875, %v5874
        %v5890 = vpack.c.b16 %v5877, %v5876
        %v5891 = vpack.c.b16 %v5879, %v5878
        %v5892 = vpack.c.b16 %v5881, %v5880
        %v5893 = vpack.c.b16 %v5883, %v5882
        %v5894 = vpack.c.b16 %v5885, %v5884
        %v5895 = vpack.c.b16 %v5887, %v5886
        %v5920 = vunpack.c.l.b16 %v5840
        %v5921 = vunpack.c.l.b16 %v5841
        %v5922 = vunpack.c.l.b16 %v5842
        %v5923 = vunpack.c.l.b16 %v5843
        %v5924 = vunpack.c.l.b16 %v5844
        %v5925 = vunpack.c.l.b16 %v5845
        %v5926 = vunpack.c.l.b16 %v5846
        %v5927 = vunpack.c.l.b16 %v5847
        %v5928 = vunpack.c.l.b16 %v5848
        %v5929 = vunpack.c.l.b16 %v5849
        %v5930 = vunpack.c.l.b16 %v5850
        %v5931 = vunpack.c.l.b16 %v5851
        %v5932 = vunpack.c.l.b16 %v5852
        %v5933 = vunpack.c.l.b16 %v5853
        %v5934 = vunpack.c.l.b16 %v5854
        %v5935 = vunpack.c.l.b16 %v5855
        %v5936 = vpack.c.b16 %v5921, %v5920
        %v5937 = vpack.c.b16 %v5923, %v5922
        %v5938 = vpack.c.b16 %v5925, %v5924
        %v5939 = vpack.c.b16 %v5927, %v5926
        %v5940 = vpack.c.b16 %v5929, %v5928
        %v5941 = vpack.c.b16 %v5931, %v5930
        %v5942 = vpack.c.b16 %v5933, %v5932
        %v5943 = vpack.c.b16 %v5935, %v5934
        %5952 = vmatprep.subr.bf16.mxu0 0
        %5953 = vmatpush1.bf16.msra.mxu0 %v5943
        %5954 = vmatprep.subr.bf16.mxu0 0
        %5955 = vmatpush1.bf16.msra.mxu0 %v5942
        %5956 = vmatprep.subr.bf16.mxu0 0
        %5957 = vmatpush1.bf16.msra.mxu0 %v5941
        %5958 = vmatprep.subr.bf16.mxu0 0
        %5959 = vmatpush1.bf16.msra.mxu0 %v5940
        %5960 = vmatprep.subr.bf16.mxu0 0
        %5961 = vmatpush1.bf16.msra.mxu0 %v5939
        %5962 = vmatprep.subr.bf16.mxu0 0
        %5963 = vmatpush1.bf16.msra.mxu0 %v5938
        %5964 = vmatprep.subr.bf16.mxu0 0
        %5965 = vmatpush1.bf16.msra.mxu0 %v5937
        %5966 = vmatprep.subr.bf16.mxu0 0
        %5967 = vmatpush1.bf16.msra.mxu0 %v5936
        %5968 = vmatprep.subr.bf16.mxu0 0
        %5969 = vmatpush2.bf16.msra.mxu0 0
        %5970 = vmatprep.subr.bf16.mxu0 0
        %5971 = vmatpush2.bf16.msra.mxu0 0
        %5972 = vmatprep.subr.bf16.mxu0 0
        %5973 = vmatpush2.bf16.msra.mxu0 0
        %5974 = vmatprep.subr.bf16.mxu0 0
        %5975 = vmatpush2.bf16.msra.mxu0 0
        %5976 = vmatprep.subr.bf16.mxu0 0
        %5977 = vmatpush2.bf16.msra.mxu0 0
        %5978 = vmatprep.subr.bf16.mxu0 0
        %5979 = vmatpush2.bf16.msra.mxu0 0
        %5980 = vmatprep.subr.bf16.mxu0 0
        %5981 = vmatpush2.bf16.msra.mxu0 0
        %5982 = vmatprep.subr.bf16.mxu0 0
        %5983 = vmatpush2.bf16.msra.mxu0 0
        %5984 = vmatprep.mubr.bf16.mxu0 0
        %5985 = vmatmul.mubr.bf16.gmra.mxu0 %v5888
        %v5986 = vpop.f32.mrf.mxu0
        %v5987 = vadd.f32 0.0, %v5986
        %v5988 = vpop.f32.mrf.mxu0
        %v5989 = vpop.f32.mrf.mxu0
        %v5990 = vadd.f32 0.0, %v5989
        %v5991 = vpop.f32.mrf.mxu0
        %5992 = vmatprep.mubr.bf16.mxu0 0
        %5993 = vmatmul.mubr.bf16.gmra.mxu0 %v5889
        %v5994 = vpop.f32.mrf.mxu0
        %v5995 = vadd.f32 0.0, %v5994
        %v5996 = vpop.f32.mrf.mxu0
        %v5997 = vpop.f32.mrf.mxu0
        %v5998 = vadd.f32 0.0, %v5997
        %v5999 = vpop.f32.mrf.mxu0
        %6000 = vmatprep.mubr.bf16.mxu0 0
        %6001 = vmatmul.mubr.bf16.gmra.mxu0 %v5890
        %v6002 = vpop.f32.mrf.mxu0
        %v6003 = vadd.f32 0.0, %v6002
        %v6004 = vpop.f32.mrf.mxu0
        %v6005 = vpop.f32.mrf.mxu0
        %v6006 = vadd.f32 0.0, %v6005
        %v6007 = vpop.f32.mrf.mxu0
        %6008 = vmatprep.mubr.bf16.mxu0 0
        %6009 = vmatmul.mubr.bf16.gmra.mxu0 %v5891
        %v6010 = vpop.f32.mrf.mxu0
        %v6011 = vadd.f32 0.0, %v6010
        %v6012 = vpop.f32.mrf.mxu0
        %v6013 = vpop.f32.mrf.mxu0
        %v6014 = vadd.f32 0.0, %v6013
        %v6015 = vpop.f32.mrf.mxu0
        %6016 = vmatprep.mubr.bf16.mxu0 0
        %6017 = vmatmul.mubr.bf16.gmra.mxu0 %v5892
        %v6018 = vpop.f32.mrf.mxu0
        %v6019 = vadd.f32 0.0, %v6018
        %v6020 = vpop.f32.mrf.mxu0
        %v6021 = vpop.f32.mrf.mxu0
        %v6022 = vadd.f32 0.0, %v6021
        %v6023 = vpop.f32.mrf.mxu0
        %6024 = vmatprep.mubr.bf16.mxu0 0
        %6025 = vmatmul.mubr.bf16.gmra.mxu0 %v5893
        %v6026 = vpop.f32.mrf.mxu0
        %v6027 = vadd.f32 0.0, %v6026
        %v6028 = vpop.f32.mrf.mxu0
        %v6029 = vpop.f32.mrf.mxu0
        %v6030 = vadd.f32 0.0, %v6029
        %v6031 = vpop.f32.mrf.mxu0
        %6032 = vmatprep.mubr.bf16.mxu0 0
        %6033 = vmatmul.mubr.bf16.gmra.mxu0 %v5894
        %v6034 = vpop.f32.mrf.mxu0
        %v6035 = vadd.f32 0.0, %v6034
        %v6036 = vpop.f32.mrf.mxu0
        %v6037 = vpop.f32.mrf.mxu0
        %v6038 = vadd.f32 0.0, %v6037
        %v6039 = vpop.f32.mrf.mxu0
        %6040 = vmatprep.mubr.bf16.mxu0 0
        %6041 = vmatmul.mubr.bf16.gmra.mxu0 %v5895
        %v6042 = vpop.f32.mrf.mxu0
        %v6043 = vadd.f32 0.0, %v6042
        %v6044 = vpop.f32.mrf.mxu0
        %v6045 = vpop.f32.mrf.mxu0
        %v6046 = vadd.f32 0.0, %v6045
        %v6047 = vpop.f32.mrf.mxu0
        %6048 = vdwg.mxu0
        %v6049 = vadd.f32 %v5808, %v5987
        %v6050 = vadd.f32 %v5809, %v5990
        %v6051 = vadd.f32 %v5810, %v5995
        %v6052 = vadd.f32 %v5811, %v5998
        %v6053 = vadd.f32 %v5812, %v6003
        %v6054 = vadd.f32 %v5813, %v6006
        %v6055 = vadd.f32 %v5814, %v6011
        %v6056 = vadd.f32 %v5815, %v6014
        %v6057 = vadd.f32 %v5816, %v6019
        %v6058 = vadd.f32 %v5817, %v6022
        %v6059 = vadd.f32 %v5818, %v6027
        %v6060 = vadd.f32 %v5819, %v6030
        %v6061 = vadd.f32 %v5820, %v6035
        %v6062 = vadd.f32 %v5821, %v6038
        %v6063 = vadd.f32 %v5822, %v6043
        %v6064 = vadd.f32 %v5823, %v6046
        %v6065 = vld [vmem:[#allocation2 + $0x8c] sm:$0xf]
        %v6066 = vld [vmem:[#allocation2 + $0x90] sm:$0xf]
        %v6067 = vld [vmem:[#allocation2 + $0x94] sm:$0xf]
        %v6068 = vld [vmem:[#allocation2 + $0x98] sm:$0xf]
        %v6069 = vld [vmem:[#allocation2 + $0x9c] sm:$0xf]
        %v6070 = vld [vmem:[#allocation2 + $0xa0] sm:$0xf]
        %v6071 = vld [vmem:[#allocation2 + $0xa4] sm:$0xf]
        %v6072 = vld [vmem:[#allocation2 + $0xa8] sm:$0xf]
        %v6073 = vld [vmem:[#allocation2 + $0xac] sm:$0xf]
        %v6074 = vld [vmem:[#allocation2 + $0xb0] sm:$0xf]
        %v6075 = vld [vmem:[#allocation2 + $0xb4] sm:$0xf]
        %v6076 = vld [vmem:[#allocation2 + $0xb8] sm:$0xf]
        %v6077 = vld [vmem:[#allocation2 + $0xbc] sm:$0xf]
        %v6078 = vld [vmem:[#allocation2 + $0xc0] sm:$0xf]
        %v6079 = vld [vmem:[#allocation2 + $0xc4] sm:$0xf]
        %v6080 = vld [vmem:[#allocation2 + $0xc8] sm:$0xf]
        %v6081 = vld [vmem:[#allocation2 + $0xcc] sm:$0x1]
        %v6082 = vld [vmem:[%s1453] sm:$0xf]
        %v6083 = vld [vmem:[%s1453 + $0x4] sm:$0xf]
        %v6084 = vld [vmem:[%s1453 + $0x8] sm:$0xf]
        %v6085 = vld [vmem:[%s1453 + $0xc] sm:$0xf]
        %v6086 = vld [vmem:[%s1453 + $0x10] sm:$0xf]
        %v6087 = vld [vmem:[%s1453 + $0x14] sm:$0xf]
        %v6088 = vld [vmem:[%s1453 + $0x18] sm:$0xf]
        %v6089 = vld [vmem:[%s1453 + $0x1c] sm:$0xf]
        %v6090 = vld [vmem:[%s1453 + $0x20] sm:$0xf]
        %v6091 = vld [vmem:[%s1453 + $0x24] sm:$0xf]
        %v6092 = vld [vmem:[%s1453 + $0x28] sm:$0xf]
        %v6093 = vld [vmem:[%s1453 + $0x2c] sm:$0xf]
        %v6094 = vld [vmem:[%s1453 + $0x30] sm:$0xf]
        %v6095 = vld [vmem:[%s1453 + $0x34] sm:$0xf]
        %v6096 = vld [vmem:[%s1453 + $0x38] sm:$0xf]
        %v6097 = vld [vmem:[%s1453 + $0x3c] sm:$0xf]
        %v6115 = vunpack.c.l.b16 %v6065
        %v6116 = vunpack.c.l.b16 %v6066
        %v6117 = vunpack.c.l.b16 %v6067
        %v6118 = vunpack.c.l.b16 %v6068
        %v6119 = vunpack.c.l.b16 %v6069
        %v6120 = vunpack.c.l.b16 %v6070
        %v6121 = vunpack.c.l.b16 %v6071
        %v6122 = vunpack.c.l.b16 %v6072
        %v6123 = vunpack.c.l.b16 %v6073
        %v6124 = vunpack.c.l.b16 %v6074
        %v6125 = vunpack.c.l.b16 %v6075
        %v6126 = vunpack.c.l.b16 %v6076
        %v6127 = vunpack.c.l.b16 %v6077
        %v6128 = vunpack.c.l.b16 %v6078
        %v6129 = vunpack.c.l.b16 %v6079
        %v6130 = vunpack.c.l.b16 %v6080
        %v6131 = vunpack.c.l.b16 %v6081
        %v6132 = vpack.c.b16 %v6116, %v6115
        %v6133 = vpack.c.b16 %v6118, %v6117
        %v6134 = vpack.c.b16 %v6120, %v6119
        %v6135 = vpack.c.b16 %v6122, %v6121
        %v6136 = vpack.c.b16 %v6124, %v6123
        %v6137 = vpack.c.b16 %v6126, %v6125
        %v6138 = vpack.c.b16 %v6128, %v6127
        %v6139 = vpack.c.b16 %v6130, %v6129
        %v6140 = vpack.c.b16 %v6131, %v6131
        %v6142 = vshrl.u32 %v6132, 16
        %v6144 = vshll.u32 %v6132, 16
        %v6146 = vrot.slane %v6144, 1
        %v6147 = vor.u32 %v6142, %v6146
        %v6149 = vshll.u32 %v6133, 16
        %v6151 = vrot.slane %v6149, 1
        %v6152 = vsel %vm748, %v6147, %v6151
        %v6153 = vshrl.u32 %v6133, 16
        %v6155 = vor.u32 %v6153, %v6151
        %v6157 = vshll.u32 %v6134, 16
        %v6159 = vrot.slane %v6157, 1
        %v6160 = vsel %vm748, %v6155, %v6159
        %v6161 = vshrl.u32 %v6134, 16
        %v6163 = vor.u32 %v6161, %v6159
        %v6165 = vshll.u32 %v6135, 16
        %v6167 = vrot.slane %v6165, 1
        %v6168 = vsel %vm748, %v6163, %v6167
        %v6169 = vshrl.u32 %v6135, 16
        %v6171 = vor.u32 %v6169, %v6167
        %v6173 = vshll.u32 %v6136, 16
        %v6175 = vrot.slane %v6173, 1
        %v6176 = vsel %vm748, %v6171, %v6175
        %v6177 = vshrl.u32 %v6136, 16
        %v6179 = vor.u32 %v6177, %v6175
        %v6181 = vshll.u32 %v6137, 16
        %v6183 = vrot.slane %v6181, 1
        %v6184 = vsel %vm748, %v6179, %v6183
        %v6185 = vshrl.u32 %v6137, 16
        %v6187 = vor.u32 %v6185, %v6183
        %v6189 = vshll.u32 %v6138, 16
        %v6191 = vrot.slane %v6189, 1
        %v6192 = vsel %vm748, %v6187, %v6191
        %v6193 = vshrl.u32 %v6138, 16
        %v6195 = vor.u32 %v6193, %v6191
        %v6197 = vshll.u32 %v6139, 16
        %v6199 = vrot.slane %v6197, 1
        %v6200 = vsel %vm748, %v6195, %v6199
        %v6201 = vshrl.u32 %v6139, 16
        %v6203 = vor.u32 %v6201, %v6199
        %v6205 = vshll.u32 %v6140, 16
        %v6207 = vrot.slane %v6205, 1
        %v6208 = vsel %vm748, %v6203, %v6207
        %v6233 = vunpack.c.l.b16 %v6082
        %v6234 = vunpack.c.l.b16 %v6083
        %v6235 = vunpack.c.l.b16 %v6084
        %v6236 = vunpack.c.l.b16 %v6085
        %v6237 = vunpack.c.l.b16 %v6086
        %v6238 = vunpack.c.l.b16 %v6087
        %v6239 = vunpack.c.l.b16 %v6088
        %v6240 = vunpack.c.l.b16 %v6089
        %v6241 = vunpack.c.l.b16 %v6090
        %v6242 = vunpack.c.l.b16 %v6091
        %v6243 = vunpack.c.l.b16 %v6092
        %v6244 = vunpack.c.l.b16 %v6093
        %v6245 = vunpack.c.l.b16 %v6094
        %v6246 = vunpack.c.l.b16 %v6095
        %v6247 = vunpack.c.l.b16 %v6096
        %v6248 = vunpack.c.l.b16 %v6097
        %v6249 = vpack.c.b16 %v6234, %v6233
        %v6250 = vpack.c.b16 %v6236, %v6235
        %v6251 = vpack.c.b16 %v6238, %v6237
        %v6252 = vpack.c.b16 %v6240, %v6239
        %v6253 = vpack.c.b16 %v6242, %v6241
        %v6254 = vpack.c.b16 %v6244, %v6243
        %v6255 = vpack.c.b16 %v6246, %v6245
        %v6256 = vpack.c.b16 %v6248, %v6247
        %6265 = vmatprep.subr.bf16.mxu0 0
        %6266 = vmatpush1.bf16.msra.mxu0 %v6256
        %6267 = vmatprep.subr.bf16.mxu0 0
        %6268 = vmatpush1.bf16.msra.mxu0 %v6255
        %6269 = vmatprep.subr.bf16.mxu0 0
        %6270 = vmatpush1.bf16.msra.mxu0 %v6254
        %6271 = vmatprep.subr.bf16.mxu0 0
        %6272 = vmatpush1.bf16.msra.mxu0 %v6253
        %6273 = vmatprep.subr.bf16.mxu0 0
        %6274 = vmatpush1.bf16.msra.mxu0 %v6252
        %6275 = vmatprep.subr.bf16.mxu0 0
        %6276 = vmatpush1.bf16.msra.mxu0 %v6251
        %6277 = vmatprep.subr.bf16.mxu0 0
        %6278 = vmatpush1.bf16.msra.mxu0 %v6250
        %6279 = vmatprep.subr.bf16.mxu0 0
        %6280 = vmatpush1.bf16.msra.mxu0 %v6249
        %6281 = vmatprep.subr.bf16.mxu0 0
        %6282 = vmatpush2.bf16.msra.mxu0 0
        %6283 = vmatprep.subr.bf16.mxu0 0
        %6284 = vmatpush2.bf16.msra.mxu0 0
        %6285 = vmatprep.subr.bf16.mxu0 0
        %6286 = vmatpush2.bf16.msra.mxu0 0
        %6287 = vmatprep.subr.bf16.mxu0 0
        %6288 = vmatpush2.bf16.msra.mxu0 0
        %6289 = vmatprep.subr.bf16.mxu0 0
        %6290 = vmatpush2.bf16.msra.mxu0 0
        %6291 = vmatprep.subr.bf16.mxu0 0
        %6292 = vmatpush2.bf16.msra.mxu0 0
        %6293 = vmatprep.subr.bf16.mxu0 0
        %6294 = vmatpush2.bf16.msra.mxu0 0
        %6295 = vmatprep.subr.bf16.mxu0 0
        %6296 = vmatpush2.bf16.msra.mxu0 0
        %6297 = vmatprep.mubr.bf16.mxu0 0
        %6298 = vmatmul.mubr.bf16.gmra.mxu0 %v6152
        %v6299 = vpop.f32.mrf.mxu0
        %v6300 = vadd.f32 0.0, %v6299
        %v6301 = vpop.f32.mrf.mxu0
        %v6302 = vpop.f32.mrf.mxu0
        %v6303 = vadd.f32 0.0, %v6302
        %v6304 = vpop.f32.mrf.mxu0
        %6305 = vmatprep.mubr.bf16.mxu0 0
        %6306 = vmatmul.mubr.bf16.gmra.mxu0 %v6160
        %v6307 = vpop.f32.mrf.mxu0
        %v6308 = vadd.f32 0.0, %v6307
        %v6309 = vpop.f32.mrf.mxu0
        %v6310 = vpop.f32.mrf.mxu0
        %v6311 = vadd.f32 0.0, %v6310
        %v6312 = vpop.f32.mrf.mxu0
        %6313 = vmatprep.mubr.bf16.mxu0 0
        %6314 = vmatmul.mubr.bf16.gmra.mxu0 %v6168
        %v6315 = vpop.f32.mrf.mxu0
        %v6316 = vadd.f32 0.0, %v6315
        %v6317 = vpop.f32.mrf.mxu0
        %v6318 = vpop.f32.mrf.mxu0
        %v6319 = vadd.f32 0.0, %v6318
        %v6320 = vpop.f32.mrf.mxu0
        %6321 = vmatprep.mubr.bf16.mxu0 0
        %6322 = vmatmul.mubr.bf16.gmra.mxu0 %v6176
        %v6323 = vpop.f32.mrf.mxu0
        %v6324 = vadd.f32 0.0, %v6323
        %v6325 = vpop.f32.mrf.mxu0
        %v6326 = vpop.f32.mrf.mxu0
        %v6327 = vadd.f32 0.0, %v6326
        %v6328 = vpop.f32.mrf.mxu0
        %6329 = vmatprep.mubr.bf16.mxu0 0
        %6330 = vmatmul.mubr.bf16.gmra.mxu0 %v6184
        %v6331 = vpop.f32.mrf.mxu0
        %v6332 = vadd.f32 0.0, %v6331
        %v6333 = vpop.f32.mrf.mxu0
        %v6334 = vpop.f32.mrf.mxu0
        %v6335 = vadd.f32 0.0, %v6334
        %v6336 = vpop.f32.mrf.mxu0
        %6337 = vmatprep.mubr.bf16.mxu0 0
        %6338 = vmatmul.mubr.bf16.gmra.mxu0 %v6192
        %v6339 = vpop.f32.mrf.mxu0
        %v6340 = vadd.f32 0.0, %v6339
        %v6341 = vpop.f32.mrf.mxu0
        %v6342 = vpop.f32.mrf.mxu0
        %v6343 = vadd.f32 0.0, %v6342
        %v6344 = vpop.f32.mrf.mxu0
        %6345 = vmatprep.mubr.bf16.mxu0 0
        %6346 = vmatmul.mubr.bf16.gmra.mxu0 %v6200
        %v6347 = vpop.f32.mrf.mxu0
        %v6348 = vadd.f32 0.0, %v6347
        %v6349 = vpop.f32.mrf.mxu0
        %v6350 = vpop.f32.mrf.mxu0
        %v6351 = vadd.f32 0.0, %v6350
        %v6352 = vpop.f32.mrf.mxu0
        %6353 = vmatprep.mubr.bf16.mxu0 0
        %6354 = vmatmul.mubr.bf16.gmra.mxu0 %v6208
        %v6355 = vpop.f32.mrf.mxu0
        %v6356 = vadd.f32 0.0, %v6355
        %v6357 = vpop.f32.mrf.mxu0
        %v6358 = vpop.f32.mrf.mxu0
        %v6359 = vadd.f32 0.0, %v6358
        %v6360 = vpop.f32.mrf.mxu0
        %6361 = vdwg.mxu0
        %v6362 = vadd.f32 %v6049, %v6300
        %v6363 = vadd.f32 %v6050, %v6303
        %v6364 = vadd.f32 %v6051, %v6308
        %v6365 = vadd.f32 %v6052, %v6311
        %v6366 = vadd.f32 %v6053, %v6316
        %v6367 = vadd.f32 %v6054, %v6319
        %v6368 = vadd.f32 %v6055, %v6324
        %v6369 = vadd.f32 %v6056, %v6327
        %v6370 = vadd.f32 %v6057, %v6332
        %v6371 = vadd.f32 %v6058, %v6335
        %v6372 = vadd.f32 %v6059, %v6340
        %v6373 = vadd.f32 %v6060, %v6343
        %v6374 = vadd.f32 %v6061, %v6348
        %v6375 = vadd.f32 %v6062, %v6351
        %v6376 = vadd.f32 %v6063, %v6356
        %v6377 = vadd.f32 %v6064, %v6359
        %v6378 = vld [vmem:[#allocation2 + $0x8c] sm:$0xe]
        %v6379 = vld [vmem:[%s1751] sm:$0xf]
        %v6380 = vld [vmem:[%s1751 + $0x4] sm:$0xf]
        %v6381 = vld [vmem:[%s1751 + $0x8] sm:$0xf]
        %v6382 = vld [vmem:[%s1751 + $0xc] sm:$0xf]
        %v6383 = vld [vmem:[%s1751 + $0x10] sm:$0xf]
        %v6384 = vld [vmem:[%s1751 + $0x14] sm:$0xf]
        %v6385 = vld [vmem:[%s1751 + $0x18] sm:$0xf]
        %v6386 = vld [vmem:[%s1751 + $0x1c] sm:$0xf]
        %v6387 = vld [vmem:[%s1751 + $0x20] sm:$0xf]
        %v6388 = vld [vmem:[%s1751 + $0x24] sm:$0xf]
        %v6389 = vld [vmem:[%s1751 + $0x28] sm:$0xf]
        %v6390 = vld [vmem:[%s1751 + $0x2c] sm:$0xf]
        %v6391 = vld [vmem:[%s1751 + $0x30] sm:$0xf]
        %v6392 = vld [vmem:[%s1751 + $0x34] sm:$0xf]
        %v6393 = vld [vmem:[%s1751 + $0x38] sm:$0xf]
        %v6394 = vld [vmem:[%s1751 + $0x3c] sm:$0xf]
        %v6396 = vunpack.c.l.b16 %v6378
        %v6397 = vpack.c.b16 %v6116, %v6396
        %v6398 = vrot.slane %v6397, 1
        %v6399 = vrot.slane %v6133, 1
        %v6400 = vsel %vm1007, %v6398, %v6399
        %v6401 = vrot.slane %v6134, 1
        %v6402 = vsel %vm1007, %v6399, %v6401
        %v6403 = vrot.slane %v6135, 1
        %v6404 = vsel %vm1007, %v6401, %v6403
        %v6405 = vrot.slane %v6136, 1
        %v6406 = vsel %vm1007, %v6403, %v6405
        %v6407 = vrot.slane %v6137, 1
        %v6408 = vsel %vm1007, %v6405, %v6407
        %v6409 = vrot.slane %v6138, 1
        %v6410 = vsel %vm1007, %v6407, %v6409
        %v6411 = vrot.slane %v6139, 1
        %v6412 = vsel %vm1007, %v6409, %v6411
        %v6413 = vrot.slane %v6140, 1
        %v6414 = vsel %vm1007, %v6411, %v6413
        %v6439 = vunpack.c.l.b16 %v6379
        %v6440 = vunpack.c.l.b16 %v6380
        %v6441 = vunpack.c.l.b16 %v6381
        %v6442 = vunpack.c.l.b16 %v6382
        %v6443 = vunpack.c.l.b16 %v6383
        %v6444 = vunpack.c.l.b16 %v6384
        %v6445 = vunpack.c.l.b16 %v6385
        %v6446 = vunpack.c.l.b16 %v6386
        %v6447 = vunpack.c.l.b16 %v6387
        %v6448 = vunpack.c.l.b16 %v6388
        %v6449 = vunpack.c.l.b16 %v6389
        %v6450 = vunpack.c.l.b16 %v6390
        %v6451 = vunpack.c.l.b16 %v6391
        %v6452 = vunpack.c.l.b16 %v6392
        %v6453 = vunpack.c.l.b16 %v6393
        %v6454 = vunpack.c.l.b16 %v6394
        %v6455 = vpack.c.b16 %v6440, %v6439
        %v6456 = vpack.c.b16 %v6442, %v6441
        %v6457 = vpack.c.b16 %v6444, %v6443
        %v6458 = vpack.c.b16 %v6446, %v6445
        %v6459 = vpack.c.b16 %v6448, %v6447
        %v6460 = vpack.c.b16 %v6450, %v6449
        %v6461 = vpack.c.b16 %v6452, %v6451
        %v6462 = vpack.c.b16 %v6454, %v6453
        %6471 = vmatprep.subr.bf16.mxu0 0
        %6472 = vmatpush1.bf16.msra.mxu0 %v6462
        %6473 = vmatprep.subr.bf16.mxu0 0
        %6474 = vmatpush1.bf16.msra.mxu0 %v6461
        %6475 = vmatprep.subr.bf16.mxu0 0
        %6476 = vmatpush1.bf16.msra.mxu0 %v6460
        %6477 = vmatprep.subr.bf16.mxu0 0
        %6478 = vmatpush1.bf16.msra.mxu0 %v6459
        %6479 = vmatprep.subr.bf16.mxu0 0
        %6480 = vmatpush1.bf16.msra.mxu0 %v6458
        %6481 = vmatprep.subr.bf16.mxu0 0
        %6482 = vmatpush1.bf16.msra.mxu0 %v6457
        %6483 = vmatprep.subr.bf16.mxu0 0
        %6484 = vmatpush1.bf16.msra.mxu0 %v6456
        %6485 = vmatprep.subr.bf16.mxu0 0
        %6486 = vmatpush1.bf16.msra.mxu0 %v6455
        %6487 = vmatprep.subr.bf16.mxu0 0
        %6488 = vmatpush2.bf16.msra.mxu0 0
        %6489 = vmatprep.subr.bf16.mxu0 0
        %6490 = vmatpush2.bf16.msra.mxu0 0
        %6491 = vmatprep.subr.bf16.mxu0 0
        %6492 = vmatpush2.bf16.msra.mxu0 0
        %6493 = vmatprep.subr.bf16.mxu0 0
        %6494 = vmatpush2.bf16.msra.mxu0 0
        %6495 = vmatprep.subr.bf16.mxu0 0
        %6496 = vmatpush2.bf16.msra.mxu0 0
        %6497 = vmatprep.subr.bf16.mxu0 0
        %6498 = vmatpush2.bf16.msra.mxu0 0
        %6499 = vmatprep.subr.bf16.mxu0 0
        %6500 = vmatpush2.bf16.msra.mxu0 0
        %6501 = vmatprep.subr.bf16.mxu0 0
        %6502 = vmatpush2.bf16.msra.mxu0 0
        %6503 = vmatprep.mubr.bf16.mxu0 0
        %6504 = vmatmul.mubr.bf16.gmra.mxu0 %v6400
        %v6505 = vpop.f32.mrf.mxu0
        %v6506 = vadd.f32 0.0, %v6505
        %v6507 = vpop.f32.mrf.mxu0
        %v6508 = vpop.f32.mrf.mxu0
        %v6509 = vadd.f32 0.0, %v6508
        %v6510 = vpop.f32.mrf.mxu0
        %6511 = vmatprep.mubr.bf16.mxu0 0
        %6512 = vmatmul.mubr.bf16.gmra.mxu0 %v6402
        %v6513 = vpop.f32.mrf.mxu0
        %v6514 = vadd.f32 0.0, %v6513
        %v6515 = vpop.f32.mrf.mxu0
        %v6516 = vpop.f32.mrf.mxu0
        %v6517 = vadd.f32 0.0, %v6516
        %v6518 = vpop.f32.mrf.mxu0
        %6519 = vmatprep.mubr.bf16.mxu0 0
        %6520 = vmatmul.mubr.bf16.gmra.mxu0 %v6404
        %v6521 = vpop.f32.mrf.mxu0
        %v6522 = vadd.f32 0.0, %v6521
        %v6523 = vpop.f32.mrf.mxu0
        %v6524 = vpop.f32.mrf.mxu0
        %v6525 = vadd.f32 0.0, %v6524
        %v6526 = vpop.f32.mrf.mxu0
        %6527 = vmatprep.mubr.bf16.mxu0 0
        %6528 = vmatmul.mubr.bf16.gmra.mxu0 %v6406
        %v6529 = vpop.f32.mrf.mxu0
        %v6530 = vadd.f32 0.0, %v6529
        %v6531 = vpop.f32.mrf.mxu0
        %v6532 = vpop.f32.mrf.mxu0
        %v6533 = vadd.f32 0.0, %v6532
        %v6534 = vpop.f32.mrf.mxu0
        %6535 = vmatprep.mubr.bf16.mxu0 0
        %6536 = vmatmul.mubr.bf16.gmra.mxu0 %v6408
        %v6537 = vpop.f32.mrf.mxu0
        %v6538 = vadd.f32 0.0, %v6537
        %v6539 = vpop.f32.mrf.mxu0
        %v6540 = vpop.f32.mrf.mxu0
        %v6541 = vadd.f32 0.0, %v6540
        %v6542 = vpop.f32.mrf.mxu0
        %6543 = vmatprep.mubr.bf16.mxu0 0
        %6544 = vmatmul.mubr.bf16.gmra.mxu0 %v6410
        %v6545 = vpop.f32.mrf.mxu0
        %v6546 = vadd.f32 0.0, %v6545
        %v6547 = vpop.f32.mrf.mxu0
        %v6548 = vpop.f32.mrf.mxu0
        %v6549 = vadd.f32 0.0, %v6548
        %v6550 = vpop.f32.mrf.mxu0
        %6551 = vmatprep.mubr.bf16.mxu0 0
        %6552 = vmatmul.mubr.bf16.gmra.mxu0 %v6412
        %v6553 = vpop.f32.mrf.mxu0
        %v6554 = vadd.f32 0.0, %v6553
        %v6555 = vpop.f32.mrf.mxu0
        %v6556 = vpop.f32.mrf.mxu0
        %v6557 = vadd.f32 0.0, %v6556
        %v6558 = vpop.f32.mrf.mxu0
        %6559 = vmatprep.mubr.bf16.mxu0 0
        %6560 = vmatmul.mubr.bf16.gmra.mxu0 %v6414
        %v6561 = vpop.f32.mrf.mxu0
        %v6562 = vadd.f32 0.0, %v6561
        %v6563 = vpop.f32.mrf.mxu0
        %v6564 = vpop.f32.mrf.mxu0
        %v6565 = vadd.f32 0.0, %v6564
        %v6566 = vpop.f32.mrf.mxu0
        %6567 = vdwg.mxu0
        %v6568 = vadd.f32 %v6362, %v6506
        %v6569 = vadd.f32 %v6363, %v6509
        %v6570 = vadd.f32 %v6364, %v6514
        %v6571 = vadd.f32 %v6365, %v6517
        %v6572 = vadd.f32 %v6366, %v6522
        %v6573 = vadd.f32 %v6367, %v6525
        %v6574 = vadd.f32 %v6368, %v6530
        %v6575 = vadd.f32 %v6369, %v6533
        %v6576 = vadd.f32 %v6370, %v6538
        %v6577 = vadd.f32 %v6371, %v6541
        %v6578 = vadd.f32 %v6372, %v6546
        %v6579 = vadd.f32 %v6373, %v6549
        %v6580 = vadd.f32 %v6374, %v6554
        %v6581 = vadd.f32 %v6375, %v6557
        %v6582 = vadd.f32 %v6376, %v6562
        %v6583 = vadd.f32 %v6377, %v6565
        %v6584 = vld [vmem:[#allocation2 + $0x98] sm:$0xf]
        %v6585 = vld [vmem:[#allocation2 + $0x9c] sm:$0xf]
        %v6586 = vld [vmem:[#allocation2 + $0xa0] sm:$0xf]
        %v6587 = vld [vmem:[#allocation2 + $0xa4] sm:$0xf]
        %v6588 = vld [vmem:[#allocation2 + $0xa8] sm:$0xf]
        %v6589 = vld [vmem:[#allocation2 + $0xac] sm:$0xf]
        %v6590 = vld [vmem:[#allocation2 + $0xb0] sm:$0xf]
        %v6591 = vld [vmem:[#allocation2 + $0xb4] sm:$0xf]
        %v6592 = vld [vmem:[#allocation2 + $0xb8] sm:$0xf]
        %v6593 = vld [vmem:[#allocation2 + $0xbc] sm:$0xf]
        %v6594 = vld [vmem:[#allocation2 + $0xc0] sm:$0xf]
        %v6595 = vld [vmem:[#allocation2 + $0xc4] sm:$0xf]
        %v6596 = vld [vmem:[#allocation2 + $0xc8] sm:$0xf]
        %v6597 = vld [vmem:[#allocation2 + $0xcc] sm:$0xf]
        %v6598 = vld [vmem:[#allocation2 + $0xd0] sm:$0xf]
        %v6599 = vld [vmem:[#allocation2 + $0xd4] sm:$0xf]
        %v6600 = vld [vmem:[%s1973] sm:$0xf]
        %v6601 = vld [vmem:[%s1973 + $0x4] sm:$0xf]
        %v6602 = vld [vmem:[%s1973 + $0x8] sm:$0xf]
        %v6603 = vld [vmem:[%s1973 + $0xc] sm:$0xf]
        %v6604 = vld [vmem:[%s1973 + $0x10] sm:$0xf]
        %v6605 = vld [vmem:[%s1973 + $0x14] sm:$0xf]
        %v6606 = vld [vmem:[%s1973 + $0x18] sm:$0xf]
        %v6607 = vld [vmem:[%s1973 + $0x1c] sm:$0xf]
        %v6608 = vld [vmem:[%s1973 + $0x20] sm:$0xf]
        %v6609 = vld [vmem:[%s1973 + $0x24] sm:$0xf]
        %v6610 = vld [vmem:[%s1973 + $0x28] sm:$0xf]
        %v6611 = vld [vmem:[%s1973 + $0x2c] sm:$0xf]
        %v6612 = vld [vmem:[%s1973 + $0x30] sm:$0xf]
        %v6613 = vld [vmem:[%s1973 + $0x34] sm:$0xf]
        %v6614 = vld [vmem:[%s1973 + $0x38] sm:$0xf]
        %v6615 = vld [vmem:[%s1973 + $0x3c] sm:$0xf]
        %v6632 = vunpack.c.l.b16 %v6584
        %v6633 = vunpack.c.l.b16 %v6585
        %v6634 = vunpack.c.l.b16 %v6586
        %v6635 = vunpack.c.l.b16 %v6587
        %v6636 = vunpack.c.l.b16 %v6588
        %v6637 = vunpack.c.l.b16 %v6589
        %v6638 = vunpack.c.l.b16 %v6590
        %v6639 = vunpack.c.l.b16 %v6591
        %v6640 = vunpack.c.l.b16 %v6592
        %v6641 = vunpack.c.l.b16 %v6593
        %v6642 = vunpack.c.l.b16 %v6594
        %v6643 = vunpack.c.l.b16 %v6595
        %v6644 = vunpack.c.l.b16 %v6596
        %v6645 = vunpack.c.l.b16 %v6597
        %v6646 = vunpack.c.l.b16 %v6598
        %v6647 = vunpack.c.l.b16 %v6599
        %v6648 = vpack.c.b16 %v6633, %v6632
        %v6649 = vpack.c.b16 %v6635, %v6634
        %v6650 = vpack.c.b16 %v6637, %v6636
        %v6651 = vpack.c.b16 %v6639, %v6638
        %v6652 = vpack.c.b16 %v6641, %v6640
        %v6653 = vpack.c.b16 %v6643, %v6642
        %v6654 = vpack.c.b16 %v6645, %v6644
        %v6655 = vpack.c.b16 %v6647, %v6646
        %v6680 = vunpack.c.l.b16 %v6600
        %v6681 = vunpack.c.l.b16 %v6601
        %v6682 = vunpack.c.l.b16 %v6602
        %v6683 = vunpack.c.l.b16 %v6603
        %v6684 = vunpack.c.l.b16 %v6604
        %v6685 = vunpack.c.l.b16 %v6605
        %v6686 = vunpack.c.l.b16 %v6606
        %v6687 = vunpack.c.l.b16 %v6607
        %v6688 = vunpack.c.l.b16 %v6608
        %v6689 = vunpack.c.l.b16 %v6609
        %v6690 = vunpack.c.l.b16 %v6610
        %v6691 = vunpack.c.l.b16 %v6611
        %v6692 = vunpack.c.l.b16 %v6612
        %v6693 = vunpack.c.l.b16 %v6613
        %v6694 = vunpack.c.l.b16 %v6614
        %v6695 = vunpack.c.l.b16 %v6615
        %v6696 = vpack.c.b16 %v6681, %v6680
        %v6697 = vpack.c.b16 %v6683, %v6682
        %v6698 = vpack.c.b16 %v6685, %v6684
        %v6699 = vpack.c.b16 %v6687, %v6686
        %v6700 = vpack.c.b16 %v6689, %v6688
        %v6701 = vpack.c.b16 %v6691, %v6690
        %v6702 = vpack.c.b16 %v6693, %v6692
        %v6703 = vpack.c.b16 %v6695, %v6694
        %6712 = vmatprep.subr.bf16.mxu0 0
        %6713 = vmatpush1.bf16.msra.mxu0 %v6703
        %6714 = vmatprep.subr.bf16.mxu0 0
        %6715 = vmatpush1.bf16.msra.mxu0 %v6702
        %6716 = vmatprep.subr.bf16.mxu0 0
        %6717 = vmatpush1.bf16.msra.mxu0 %v6701
        %6718 = vmatprep.subr.bf16.mxu0 0
        %6719 = vmatpush1.bf16.msra.mxu0 %v6700
        %6720 = vmatprep.subr.bf16.mxu0 0
        %6721 = vmatpush1.bf16.msra.mxu0 %v6699
        %6722 = vmatprep.subr.bf16.mxu0 0
        %6723 = vmatpush1.bf16.msra.mxu0 %v6698
        %6724 = vmatprep.subr.bf16.mxu0 0
        %6725 = vmatpush1.bf16.msra.mxu0 %v6697
        %6726 = vmatprep.subr.bf16.mxu0 0
        %6727 = vmatpush1.bf16.msra.mxu0 %v6696
        %6728 = vmatprep.subr.bf16.mxu0 0
        %6729 = vmatpush2.bf16.msra.mxu0 0
        %6730 = vmatprep.subr.bf16.mxu0 0
        %6731 = vmatpush2.bf16.msra.mxu0 0
        %6732 = vmatprep.subr.bf16.mxu0 0
        %6733 = vmatpush2.bf16.msra.mxu0 0
        %6734 = vmatprep.subr.bf16.mxu0 0
        %6735 = vmatpush2.bf16.msra.mxu0 0
        %6736 = vmatprep.subr.bf16.mxu0 0
        %6737 = vmatpush2.bf16.msra.mxu0 0
        %6738 = vmatprep.subr.bf16.mxu0 0
        %6739 = vmatpush2.bf16.msra.mxu0 0
        %6740 = vmatprep.subr.bf16.mxu0 0
        %6741 = vmatpush2.bf16.msra.mxu0 0
        %6742 = vmatprep.subr.bf16.mxu0 0
        %6743 = vmatpush2.bf16.msra.mxu0 0
        %6744 = vmatprep.mubr.bf16.mxu0 0
        %6745 = vmatmul.mubr.bf16.gmra.mxu0 %v6648
        %v6746 = vpop.f32.mrf.mxu0
        %v6747 = vadd.f32 0.0, %v6746
        %v6748 = vpop.f32.mrf.mxu0
        %v6749 = vpop.f32.mrf.mxu0
        %v6750 = vadd.f32 0.0, %v6749
        %v6751 = vpop.f32.mrf.mxu0
        %6752 = vmatprep.mubr.bf16.mxu0 0
        %6753 = vmatmul.mubr.bf16.gmra.mxu0 %v6649
        %v6754 = vpop.f32.mrf.mxu0
        %v6755 = vadd.f32 0.0, %v6754
        %v6756 = vpop.f32.mrf.mxu0
        %v6757 = vpop.f32.mrf.mxu0
        %v6758 = vadd.f32 0.0, %v6757
        %v6759 = vpop.f32.mrf.mxu0
        %6760 = vmatprep.mubr.bf16.mxu0 0
        %6761 = vmatmul.mubr.bf16.gmra.mxu0 %v6650
        %v6762 = vpop.f32.mrf.mxu0
        %v6763 = vadd.f32 0.0, %v6762
        %v6764 = vpop.f32.mrf.mxu0
        %v6765 = vpop.f32.mrf.mxu0
        %v6766 = vadd.f32 0.0, %v6765
        %v6767 = vpop.f32.mrf.mxu0
        %6768 = vmatprep.mubr.bf16.mxu0 0
        %6769 = vmatmul.mubr.bf16.gmra.mxu0 %v6651
        %v6770 = vpop.f32.mrf.mxu0
        %v6771 = vadd.f32 0.0, %v6770
        %v6772 = vpop.f32.mrf.mxu0
        %v6773 = vpop.f32.mrf.mxu0
        %v6774 = vadd.f32 0.0, %v6773
        %v6775 = vpop.f32.mrf.mxu0
        %6776 = vmatprep.mubr.bf16.mxu0 0
        %6777 = vmatmul.mubr.bf16.gmra.mxu0 %v6652
        %v6778 = vpop.f32.mrf.mxu0
        %v6779 = vadd.f32 0.0, %v6778
        %v6780 = vpop.f32.mrf.mxu0
        %v6781 = vpop.f32.mrf.mxu0
        %v6782 = vadd.f32 0.0, %v6781
        %v6783 = vpop.f32.mrf.mxu0
        %6784 = vmatprep.mubr.bf16.mxu0 0
        %6785 = vmatmul.mubr.bf16.gmra.mxu0 %v6653
        %v6786 = vpop.f32.mrf.mxu0
        %v6787 = vadd.f32 0.0, %v6786
        %v6788 = vpop.f32.mrf.mxu0
        %v6789 = vpop.f32.mrf.mxu0
        %v6790 = vadd.f32 0.0, %v6789
        %v6791 = vpop.f32.mrf.mxu0
        %6792 = vmatprep.mubr.bf16.mxu0 0
        %6793 = vmatmul.mubr.bf16.gmra.mxu0 %v6654
        %v6794 = vpop.f32.mrf.mxu0
        %v6795 = vadd.f32 0.0, %v6794
        %v6796 = vpop.f32.mrf.mxu0
        %v6797 = vpop.f32.mrf.mxu0
        %v6798 = vadd.f32 0.0, %v6797
        %v6799 = vpop.f32.mrf.mxu0
        %6800 = vmatprep.mubr.bf16.mxu0 0
        %6801 = vmatmul.mubr.bf16.gmra.mxu0 %v6655
        %v6802 = vpop.f32.mrf.mxu0
        %v6803 = vadd.f32 0.0, %v6802
        %v6804 = vpop.f32.mrf.mxu0
        %v6805 = vpop.f32.mrf.mxu0
        %v6806 = vadd.f32 0.0, %v6805
        %v6807 = vpop.f32.mrf.mxu0
        %6808 = vdwg.mxu0
        %v6809 = vadd.f32 %v6568, %v6747
        %v6810 = vadd.f32 %v6569, %v6750
        %v6811 = vadd.f32 %v6570, %v6755
        %v6812 = vadd.f32 %v6571, %v6758
        %v6813 = vadd.f32 %v6572, %v6763
        %v6814 = vadd.f32 %v6573, %v6766
        %v6815 = vadd.f32 %v6574, %v6771
        %v6816 = vadd.f32 %v6575, %v6774
        %v6817 = vadd.f32 %v6576, %v6779
        %v6818 = vadd.f32 %v6577, %v6782
        %v6819 = vadd.f32 %v6578, %v6787
        %v6820 = vadd.f32 %v6579, %v6790
        %v6821 = vadd.f32 %v6580, %v6795
        %v6822 = vadd.f32 %v6581, %v6798
        %v6823 = vadd.f32 %v6582, %v6803
        %v6824 = vadd.f32 %v6583, %v6806
        %v6825 = vld [vmem:[#allocation2 + $0x98] sm:$0xf]
        %v6826 = vld [vmem:[#allocation2 + $0x9c] sm:$0xf]
        %v6827 = vld [vmem:[#allocation2 + $0xa0] sm:$0xf]
        %v6828 = vld [vmem:[#allocation2 + $0xa4] sm:$0xf]
        %v6829 = vld [vmem:[#allocation2 + $0xa8] sm:$0xf]
        %v6830 = vld [vmem:[#allocation2 + $0xac] sm:$0xf]
        %v6831 = vld [vmem:[#allocation2 + $0xb0] sm:$0xf]
        %v6832 = vld [vmem:[#allocation2 + $0xb4] sm:$0xf]
        %v6833 = vld [vmem:[#allocation2 + $0xb8] sm:$0xf]
        %v6834 = vld [vmem:[#allocation2 + $0xbc] sm:$0xf]
        %v6835 = vld [vmem:[#allocation2 + $0xc0] sm:$0xf]
        %v6836 = vld [vmem:[#allocation2 + $0xc4] sm:$0xf]
        %v6837 = vld [vmem:[#allocation2 + $0xc8] sm:$0xf]
        %v6838 = vld [vmem:[#allocation2 + $0xcc] sm:$0xf]
        %v6839 = vld [vmem:[#allocation2 + $0xd0] sm:$0xf]
        %v6840 = vld [vmem:[#allocation2 + $0xd4] sm:$0xf]
        %v6841 = vld [vmem:[#allocation2 + $0xd8] sm:$0x1]
        %v6842 = vld [vmem:[%s2216] sm:$0xf]
        %v6843 = vld [vmem:[%s2216 + $0x4] sm:$0xf]
        %v6844 = vld [vmem:[%s2216 + $0x8] sm:$0xf]
        %v6845 = vld [vmem:[%s2216 + $0xc] sm:$0xf]
        %v6846 = vld [vmem:[%s2216 + $0x10] sm:$0xf]
        %v6847 = vld [vmem:[%s2216 + $0x14] sm:$0xf]
        %v6848 = vld [vmem:[%s2216 + $0x18] sm:$0xf]
        %v6849 = vld [vmem:[%s2216 + $0x1c] sm:$0xf]
        %v6850 = vld [vmem:[%s2216 + $0x20] sm:$0xf]
        %v6851 = vld [vmem:[%s2216 + $0x24] sm:$0xf]
        %v6852 = vld [vmem:[%s2216 + $0x28] sm:$0xf]
        %v6853 = vld [vmem:[%s2216 + $0x2c] sm:$0xf]
        %v6854 = vld [vmem:[%s2216 + $0x30] sm:$0xf]
        %v6855 = vld [vmem:[%s2216 + $0x34] sm:$0xf]
        %v6856 = vld [vmem:[%s2216 + $0x38] sm:$0xf]
        %v6857 = vld [vmem:[%s2216 + $0x3c] sm:$0xf]
        %v6875 = vunpack.c.l.b16 %v6825
        %v6876 = vunpack.c.l.b16 %v6826
        %v6877 = vunpack.c.l.b16 %v6827
        %v6878 = vunpack.c.l.b16 %v6828
        %v6879 = vunpack.c.l.b16 %v6829
        %v6880 = vunpack.c.l.b16 %v6830
        %v6881 = vunpack.c.l.b16 %v6831
        %v6882 = vunpack.c.l.b16 %v6832
        %v6883 = vunpack.c.l.b16 %v6833
        %v6884 = vunpack.c.l.b16 %v6834
        %v6885 = vunpack.c.l.b16 %v6835
        %v6886 = vunpack.c.l.b16 %v6836
        %v6887 = vunpack.c.l.b16 %v6837
        %v6888 = vunpack.c.l.b16 %v6838
        %v6889 = vunpack.c.l.b16 %v6839
        %v6890 = vunpack.c.l.b16 %v6840
        %v6891 = vunpack.c.l.b16 %v6841
        %v6892 = vpack.c.b16 %v6876, %v6875
        %v6893 = vpack.c.b16 %v6878, %v6877
        %v6894 = vpack.c.b16 %v6880, %v6879
        %v6895 = vpack.c.b16 %v6882, %v6881
        %v6896 = vpack.c.b16 %v6884, %v6883
        %v6897 = vpack.c.b16 %v6886, %v6885
        %v6898 = vpack.c.b16 %v6888, %v6887
        %v6899 = vpack.c.b16 %v6890, %v6889
        %v6900 = vpack.c.b16 %v6891, %v6891
        %v6902 = vshrl.u32 %v6892, 16
        %v6904 = vshll.u32 %v6892, 16
        %v6906 = vrot.slane %v6904, 1
        %v6907 = vor.u32 %v6902, %v6906
        %v6909 = vshll.u32 %v6893, 16
        %v6911 = vrot.slane %v6909, 1
        %v6912 = vsel %vm748, %v6907, %v6911
        %v6913 = vshrl.u32 %v6893, 16
        %v6915 = vor.u32 %v6913, %v6911
        %v6917 = vshll.u32 %v6894, 16
        %v6919 = vrot.slane %v6917, 1
        %v6920 = vsel %vm748, %v6915, %v6919
        %v6921 = vshrl.u32 %v6894, 16
        %v6923 = vor.u32 %v6921, %v6919
        %v6925 = vshll.u32 %v6895, 16
        %v6927 = vrot.slane %v6925, 1
        %v6928 = vsel %vm748, %v6923, %v6927
        %v6929 = vshrl.u32 %v6895, 16
        %v6931 = vor.u32 %v6929, %v6927
        %v6933 = vshll.u32 %v6896, 16
        %v6935 = vrot.slane %v6933, 1
        %v6936 = vsel %vm748, %v6931, %v6935
        %v6937 = vshrl.u32 %v6896, 16
        %v6939 = vor.u32 %v6937, %v6935
        %v6941 = vshll.u32 %v6897, 16
        %v6943 = vrot.slane %v6941, 1
        %v6944 = vsel %vm748, %v6939, %v6943
        %v6945 = vshrl.u32 %v6897, 16
        %v6947 = vor.u32 %v6945, %v6943
        %v6949 = vshll.u32 %v6898, 16
        %v6951 = vrot.slane %v6949, 1
        %v6952 = vsel %vm748, %v6947, %v6951
        %v6953 = vshrl.u32 %v6898, 16
        %v6955 = vor.u32 %v6953, %v6951
        %v6957 = vshll.u32 %v6899, 16
        %v6959 = vrot.slane %v6957, 1
        %v6960 = vsel %vm748, %v6955, %v6959
        %v6961 = vshrl.u32 %v6899, 16
        %v6963 = vor.u32 %v6961, %v6959
        %v6965 = vshll.u32 %v6900, 16
        %v6967 = vrot.slane %v6965, 1
        %v6968 = vsel %vm748, %v6963, %v6967
        %v6993 = vunpack.c.l.b16 %v6842
        %v6994 = vunpack.c.l.b16 %v6843
        %v6995 = vunpack.c.l.b16 %v6844
        %v6996 = vunpack.c.l.b16 %v6845
        %v6997 = vunpack.c.l.b16 %v6846
        %v6998 = vunpack.c.l.b16 %v6847
        %v6999 = vunpack.c.l.b16 %v6848
        %v7000 = vunpack.c.l.b16 %v6849
        %v7001 = vunpack.c.l.b16 %v6850
        %v7002 = vunpack.c.l.b16 %v6851
        %v7003 = vunpack.c.l.b16 %v6852
        %v7004 = vunpack.c.l.b16 %v6853
        %v7005 = vunpack.c.l.b16 %v6854
        %v7006 = vunpack.c.l.b16 %v6855
        %v7007 = vunpack.c.l.b16 %v6856
        %v7008 = vunpack.c.l.b16 %v6857
        %v7009 = vpack.c.b16 %v6994, %v6993
        %v7010 = vpack.c.b16 %v6996, %v6995
        %v7011 = vpack.c.b16 %v6998, %v6997
        %v7012 = vpack.c.b16 %v7000, %v6999
        %v7013 = vpack.c.b16 %v7002, %v7001
        %v7014 = vpack.c.b16 %v7004, %v7003
        %v7015 = vpack.c.b16 %v7006, %v7005
        %v7016 = vpack.c.b16 %v7008, %v7007
        %7025 = vmatprep.subr.bf16.mxu0 0
        %7026 = vmatpush1.bf16.msra.mxu0 %v7016
        %7027 = vmatprep.subr.bf16.mxu0 0
        %7028 = vmatpush1.bf16.msra.mxu0 %v7015
        %7029 = vmatprep.subr.bf16.mxu0 0
        %7030 = vmatpush1.bf16.msra.mxu0 %v7014
        %7031 = vmatprep.subr.bf16.mxu0 0
        %7032 = vmatpush1.bf16.msra.mxu0 %v7013
        %7033 = vmatprep.subr.bf16.mxu0 0
        %7034 = vmatpush1.bf16.msra.mxu0 %v7012
        %7035 = vmatprep.subr.bf16.mxu0 0
        %7036 = vmatpush1.bf16.msra.mxu0 %v7011
        %7037 = vmatprep.subr.bf16.mxu0 0
        %7038 = vmatpush1.bf16.msra.mxu0 %v7010
        %7039 = vmatprep.subr.bf16.mxu0 0
        %7040 = vmatpush1.bf16.msra.mxu0 %v7009
        %7041 = vmatprep.subr.bf16.mxu0 0
        %7042 = vmatpush2.bf16.msra.mxu0 0
        %7043 = vmatprep.subr.bf16.mxu0 0
        %7044 = vmatpush2.bf16.msra.mxu0 0
        %7045 = vmatprep.subr.bf16.mxu0 0
        %7046 = vmatpush2.bf16.msra.mxu0 0
        %7047 = vmatprep.subr.bf16.mxu0 0
        %7048 = vmatpush2.bf16.msra.mxu0 0
        %7049 = vmatprep.subr.bf16.mxu0 0
        %7050 = vmatpush2.bf16.msra.mxu0 0
        %7051 = vmatprep.subr.bf16.mxu0 0
        %7052 = vmatpush2.bf16.msra.mxu0 0
        %7053 = vmatprep.subr.bf16.mxu0 0
        %7054 = vmatpush2.bf16.msra.mxu0 0
        %7055 = vmatprep.subr.bf16.mxu0 0
        %7056 = vmatpush2.bf16.msra.mxu0 0
        %7057 = vmatprep.mubr.bf16.mxu0 0
        %7058 = vmatmul.mubr.bf16.gmra.mxu0 %v6912
        %v7059 = vpop.f32.mrf.mxu0
        %v7060 = vadd.f32 0.0, %v7059
        %v7061 = vpop.f32.mrf.mxu0
        %v7062 = vpop.f32.mrf.mxu0
        %v7063 = vadd.f32 0.0, %v7062
        %v7064 = vpop.f32.mrf.mxu0
        %7065 = vmatprep.mubr.bf16.mxu0 0
        %7066 = vmatmul.mubr.bf16.gmra.mxu0 %v6920
        %v7067 = vpop.f32.mrf.mxu0
        %v7068 = vadd.f32 0.0, %v7067
        %v7069 = vpop.f32.mrf.mxu0
        %v7070 = vpop.f32.mrf.mxu0
        %v7071 = vadd.f32 0.0, %v7070
        %v7072 = vpop.f32.mrf.mxu0
        %7073 = vmatprep.mubr.bf16.mxu0 0
        %7074 = vmatmul.mubr.bf16.gmra.mxu0 %v6928
        %v7075 = vpop.f32.mrf.mxu0
        %v7076 = vadd.f32 0.0, %v7075
        %v7077 = vpop.f32.mrf.mxu0
        %v7078 = vpop.f32.mrf.mxu0
        %v7079 = vadd.f32 0.0, %v7078
        %v7080 = vpop.f32.mrf.mxu0
        %7081 = vmatprep.mubr.bf16.mxu0 0
        %7082 = vmatmul.mubr.bf16.gmra.mxu0 %v6936
        %v7083 = vpop.f32.mrf.mxu0
        %v7084 = vadd.f32 0.0, %v7083
        %v7085 = vpop.f32.mrf.mxu0
        %v7086 = vpop.f32.mrf.mxu0
        %v7087 = vadd.f32 0.0, %v7086
        %v7088 = vpop.f32.mrf.mxu0
        %7089 = vmatprep.mubr.bf16.mxu0 0
        %7090 = vmatmul.mubr.bf16.gmra.mxu0 %v6944
        %v7091 = vpop.f32.mrf.mxu0
        %v7092 = vadd.f32 0.0, %v7091
        %v7093 = vpop.f32.mrf.mxu0
        %v7094 = vpop.f32.mrf.mxu0
        %v7095 = vadd.f32 0.0, %v7094
        %v7096 = vpop.f32.mrf.mxu0
        %7097 = vmatprep.mubr.bf16.mxu0 0
        %7098 = vmatmul.mubr.bf16.gmra.mxu0 %v6952
        %v7099 = vpop.f32.mrf.mxu0
        %v7100 = vadd.f32 0.0, %v7099
        %v7101 = vpop.f32.mrf.mxu0
        %v7102 = vpop.f32.mrf.mxu0
        %v7103 = vadd.f32 0.0, %v7102
        %v7104 = vpop.f32.mrf.mxu0
        %7105 = vmatprep.mubr.bf16.mxu0 0
        %7106 = vmatmul.mubr.bf16.gmra.mxu0 %v6960
        %v7107 = vpop.f32.mrf.mxu0
        %v7108 = vadd.f32 0.0, %v7107
        %v7109 = vpop.f32.mrf.mxu0
        %v7110 = vpop.f32.mrf.mxu0
        %v7111 = vadd.f32 0.0, %v7110
        %v7112 = vpop.f32.mrf.mxu0
        %7113 = vmatprep.mubr.bf16.mxu0 0
        %7114 = vmatmul.mubr.bf16.gmra.mxu0 %v6968
        %v7115 = vpop.f32.mrf.mxu0
        %v7116 = vadd.f32 0.0, %v7115
        %v7117 = vpop.f32.mrf.mxu0
        %v7118 = vpop.f32.mrf.mxu0
        %v7119 = vadd.f32 0.0, %v7118
        %v7120 = vpop.f32.mrf.mxu0
        %7121 = vdwg.mxu0
        %v7122 = vadd.f32 %v6809, %v7060
        %v7123 = vadd.f32 %v6810, %v7063
        %v7124 = vadd.f32 %v6811, %v7068
        %v7125 = vadd.f32 %v6812, %v7071
        %v7126 = vadd.f32 %v6813, %v7076
        %v7127 = vadd.f32 %v6814, %v7079
        %v7128 = vadd.f32 %v6815, %v7084
        %v7129 = vadd.f32 %v6816, %v7087
        %v7130 = vadd.f32 %v6817, %v7092
        %v7131 = vadd.f32 %v6818, %v7095
        %v7132 = vadd.f32 %v6819, %v7100
        %v7133 = vadd.f32 %v6820, %v7103
        %v7134 = vadd.f32 %v6821, %v7108
        %v7135 = vadd.f32 %v6822, %v7111
        %v7136 = vadd.f32 %v6823, %v7116
        %v7137 = vadd.f32 %v6824, %v7119
        %v7138 = vld [vmem:[#allocation2 + $0x98] sm:$0xe]
        %v7139 = vld [vmem:[%s2514] sm:$0xf]
        %v7140 = vld [vmem:[%s2514 + $0x4] sm:$0xf]
        %v7141 = vld [vmem:[%s2514 + $0x8] sm:$0xf]
        %v7142 = vld [vmem:[%s2514 + $0xc] sm:$0xf]
        %v7143 = vld [vmem:[%s2514 + $0x10] sm:$0xf]
        %v7144 = vld [vmem:[%s2514 + $0x14] sm:$0xf]
        %v7145 = vld [vmem:[%s2514 + $0x18] sm:$0xf]
        %v7146 = vld [vmem:[%s2514 + $0x1c] sm:$0xf]
        %v7147 = vld [vmem:[%s2514 + $0x20] sm:$0xf]
        %v7148 = vld [vmem:[%s2514 + $0x24] sm:$0xf]
        %v7149 = vld [vmem:[%s2514 + $0x28] sm:$0xf]
        %v7150 = vld [vmem:[%s2514 + $0x2c] sm:$0xf]
        %v7151 = vld [vmem:[%s2514 + $0x30] sm:$0xf]
        %v7152 = vld [vmem:[%s2514 + $0x34] sm:$0xf]
        %v7153 = vld [vmem:[%s2514 + $0x38] sm:$0xf]
        %v7154 = vld [vmem:[%s2514 + $0x3c] sm:$0xf]
        %v7156 = vunpack.c.l.b16 %v7138
        %v7157 = vpack.c.b16 %v6876, %v7156
        %v7158 = vrot.slane %v7157, 1
        %v7159 = vrot.slane %v6893, 1
        %v7160 = vsel %vm1007, %v7158, %v7159
        %v7161 = vrot.slane %v6894, 1
        %v7162 = vsel %vm1007, %v7159, %v7161
        %v7163 = vrot.slane %v6895, 1
        %v7164 = vsel %vm1007, %v7161, %v7163
        %v7165 = vrot.slane %v6896, 1
        %v7166 = vsel %vm1007, %v7163, %v7165
        %v7167 = vrot.slane %v6897, 1
        %v7168 = vsel %vm1007, %v7165, %v7167
        %v7169 = vrot.slane %v6898, 1
        %v7170 = vsel %vm1007, %v7167, %v7169
        %v7171 = vrot.slane %v6899, 1
        %v7172 = vsel %vm1007, %v7169, %v7171
        %v7173 = vrot.slane %v6900, 1
        %v7174 = vsel %vm1007, %v7171, %v7173
        %v7199 = vunpack.c.l.b16 %v7139
        %v7200 = vunpack.c.l.b16 %v7140
        %v7201 = vunpack.c.l.b16 %v7141
        %v7202 = vunpack.c.l.b16 %v7142
        %v7203 = vunpack.c.l.b16 %v7143
        %v7204 = vunpack.c.l.b16 %v7144
        %v7205 = vunpack.c.l.b16 %v7145
        %v7206 = vunpack.c.l.b16 %v7146
        %v7207 = vunpack.c.l.b16 %v7147
        %v7208 = vunpack.c.l.b16 %v7148
        %v7209 = vunpack.c.l.b16 %v7149
        %v7210 = vunpack.c.l.b16 %v7150
        %v7211 = vunpack.c.l.b16 %v7151
        %v7212 = vunpack.c.l.b16 %v7152
        %v7213 = vunpack.c.l.b16 %v7153
        %v7214 = vunpack.c.l.b16 %v7154
        %v7215 = vpack.c.b16 %v7200, %v7199
        %v7216 = vpack.c.b16 %v7202, %v7201
        %v7217 = vpack.c.b16 %v7204, %v7203
        %v7218 = vpack.c.b16 %v7206, %v7205
        %v7219 = vpack.c.b16 %v7208, %v7207
        %v7220 = vpack.c.b16 %v7210, %v7209
        %v7221 = vpack.c.b16 %v7212, %v7211
        %v7222 = vpack.c.b16 %v7214, %v7213
        %7231 = vmatprep.subr.bf16.mxu0 0
        %7232 = vmatpush1.bf16.msra.mxu0 %v7222
        %7233 = vmatprep.subr.bf16.mxu0 0
        %7234 = vmatpush1.bf16.msra.mxu0 %v7221
        %7235 = vmatprep.subr.bf16.mxu0 0
        %7236 = vmatpush1.bf16.msra.mxu0 %v7220
        %7237 = vmatprep.subr.bf16.mxu0 0
        %7238 = vmatpush1.bf16.msra.mxu0 %v7219
        %7239 = vmatprep.subr.bf16.mxu0 0
        %7240 = vmatpush1.bf16.msra.mxu0 %v7218
        %7241 = vmatprep.subr.bf16.mxu0 0
        %7242 = vmatpush1.bf16.msra.mxu0 %v7217
        %7243 = vmatprep.subr.bf16.mxu0 0
        %7244 = vmatpush1.bf16.msra.mxu0 %v7216
        %7245 = vmatprep.subr.bf16.mxu0 0
        %7246 = vmatpush1.bf16.msra.mxu0 %v7215
        %7247 = vmatprep.subr.bf16.mxu0 0
        %7248 = vmatpush2.bf16.msra.mxu0 0
        %7249 = vmatprep.subr.bf16.mxu0 0
        %7250 = vmatpush2.bf16.msra.mxu0 0
        %7251 = vmatprep.subr.bf16.mxu0 0
        %7252 = vmatpush2.bf16.msra.mxu0 0
        %7253 = vmatprep.subr.bf16.mxu0 0
        %7254 = vmatpush2.bf16.msra.mxu0 0
        %7255 = vmatprep.subr.bf16.mxu0 0
        %7256 = vmatpush2.bf16.msra.mxu0 0
        %7257 = vmatprep.subr.bf16.mxu0 0
        %7258 = vmatpush2.bf16.msra.mxu0 0
        %7259 = vmatprep.subr.bf16.mxu0 0
        %7260 = vmatpush2.bf16.msra.mxu0 0
        %7261 = vmatprep.subr.bf16.mxu0 0
        %7262 = vmatpush2.bf16.msra.mxu0 0
        %7263 = vmatprep.mubr.bf16.mxu0 0
        %7264 = vmatmul.mubr.bf16.gmra.mxu0 %v7160
        %v7265 = vpop.f32.mrf.mxu0
        %v7266 = vadd.f32 0.0, %v7265
        %v7267 = vpop.f32.mrf.mxu0
        %v7268 = vpop.f32.mrf.mxu0
        %v7269 = vadd.f32 0.0, %v7268
        %v7270 = vpop.f32.mrf.mxu0
        %7271 = vmatprep.mubr.bf16.mxu0 0
        %7272 = vmatmul.mubr.bf16.gmra.mxu0 %v7162
        %v7273 = vpop.f32.mrf.mxu0
        %v7274 = vadd.f32 0.0, %v7273
        %v7275 = vpop.f32.mrf.mxu0
        %v7276 = vpop.f32.mrf.mxu0
        %v7277 = vadd.f32 0.0, %v7276
        %v7278 = vpop.f32.mrf.mxu0
        %7279 = vmatprep.mubr.bf16.mxu0 0
        %7280 = vmatmul.mubr.bf16.gmra.mxu0 %v7164
        %v7281 = vpop.f32.mrf.mxu0
        %v7282 = vadd.f32 0.0, %v7281
        %v7283 = vpop.f32.mrf.mxu0
        %v7284 = vpop.f32.mrf.mxu0
        %v7285 = vadd.f32 0.0, %v7284
        %v7286 = vpop.f32.mrf.mxu0
        %7287 = vmatprep.mubr.bf16.mxu0 0
        %7288 = vmatmul.mubr.bf16.gmra.mxu0 %v7166
        %v7289 = vpop.f32.mrf.mxu0
        %v7290 = vadd.f32 0.0, %v7289
        %v7291 = vpop.f32.mrf.mxu0
        %v7292 = vpop.f32.mrf.mxu0
        %v7293 = vadd.f32 0.0, %v7292
        %v7294 = vpop.f32.mrf.mxu0
        %7295 = vmatprep.mubr.bf16.mxu0 0
        %7296 = vmatmul.mubr.bf16.gmra.mxu0 %v7168
        %v7297 = vpop.f32.mrf.mxu0
        %v7298 = vadd.f32 0.0, %v7297
        %v7299 = vpop.f32.mrf.mxu0
        %v7300 = vpop.f32.mrf.mxu0
        %v7301 = vadd.f32 0.0, %v7300
        %v7302 = vpop.f32.mrf.mxu0
        %7303 = vmatprep.mubr.bf16.mxu0 0
        %7304 = vmatmul.mubr.bf16.gmra.mxu0 %v7170
        %v7305 = vpop.f32.mrf.mxu0
        %v7306 = vadd.f32 0.0, %v7305
        %v7307 = vpop.f32.mrf.mxu0
        %v7308 = vpop.f32.mrf.mxu0
        %v7309 = vadd.f32 0.0, %v7308
        %v7310 = vpop.f32.mrf.mxu0
        %7311 = vmatprep.mubr.bf16.mxu0 0
        %7312 = vmatmul.mubr.bf16.gmra.mxu0 %v7172
        %v7313 = vpop.f32.mrf.mxu0
        %v7314 = vadd.f32 0.0, %v7313
        %v7315 = vpop.f32.mrf.mxu0
        %v7316 = vpop.f32.mrf.mxu0
        %v7317 = vadd.f32 0.0, %v7316
        %v7318 = vpop.f32.mrf.mxu0
        %7319 = vmatprep.mubr.bf16.mxu0 0
        %7320 = vmatmul.mubr.bf16.gmra.mxu0 %v7174
        %v7321 = vpop.f32.mrf.mxu0
        %v7322 = vadd.f32 0.0, %v7321
        %v7323 = vpop.f32.mrf.mxu0
        %v7324 = vpop.f32.mrf.mxu0
        %v7325 = vadd.f32 0.0, %v7324
        %v7326 = vpop.f32.mrf.mxu0
        %7327 = vdwg.mxu0
        %v7328 = vadd.f32 %v7122, %v7266
        %v7329 = vadd.f32 %v7123, %v7269
        %v7330 = vadd.f32 %v7124, %v7274
        %v7331 = vadd.f32 %v7125, %v7277
        %v7332 = vadd.f32 %v7126, %v7282
        %v7333 = vadd.f32 %v7127, %v7285
        %v7334 = vadd.f32 %v7128, %v7290
        %v7335 = vadd.f32 %v7129, %v7293
        %v7336 = vadd.f32 %v7130, %v7298
        %v7337 = vadd.f32 %v7131, %v7301
        %v7338 = vadd.f32 %v7132, %v7306
        %v7339 = vadd.f32 %v7133, %v7309
        %v7340 = vadd.f32 %v7134, %v7314
        %v7341 = vadd.f32 %v7135, %v7317
        %v7342 = vadd.f32 %v7136, %v7322
        %v7343 = vadd.f32 %v7137, %v7325
        %v7344 = vmax.f32 %v7328, 0.0
        %v7345 = vmax.f32 %v7329, 0.0
        %v7346 = vmax.f32 %v7330, 0.0
        %v7347 = vmax.f32 %v7331, 0.0
        %v7348 = vmax.f32 %v7332, 0.0
        %v7349 = vmax.f32 %v7333, 0.0
        %v7350 = vmax.f32 %v7334, 0.0
        %v7351 = vmax.f32 %v7335, 0.0
        %v7352 = vmax.f32 %v7336, 0.0
        %v7353 = vmax.f32 %v7337, 0.0
        %v7354 = vmax.f32 %v7338, 0.0
        %v7355 = vmax.f32 %v7339, 0.0
        %v7356 = vmax.f32 %v7340, 0.0
        %v7357 = vmax.f32 %v7341, 0.0
        %v7358 = vmax.f32 %v7342, 0.0
        %v7359 = vmax.f32 %v7343, 0.0
        %7360 = vst [vmem:[%s303 + $0x100] sm:$0xff] %v7344
        %7361 = vst [vmem:[%s303 + $0x108] sm:$0xff] %v7345
        %7362 = vst [vmem:[%s303 + $0x110] sm:$0xff] %v7346
        %7363 = vst [vmem:[%s303 + $0x118] sm:$0xff] %v7347
        %7364 = vst [vmem:[%s303 + $0x120] sm:$0xff] %v7348
        %7365 = vst [vmem:[%s303 + $0x128] sm:$0xff] %v7349
        %7366 = vst [vmem:[%s303 + $0x130] sm:$0xff] %v7350
        %7367 = vst [vmem:[%s303 + $0x138] sm:$0xff] %v7351
        %7368 = vst [vmem:[%s303 + $0x140] sm:$0xff] %v7352
        %7369 = vst [vmem:[%s303 + $0x148] sm:$0xff] %v7353
        %7370 = vst [vmem:[%s303 + $0x150] sm:$0xff] %v7354
        %7371 = vst [vmem:[%s303 + $0x158] sm:$0xff] %v7355
        %7372 = vst [vmem:[%s303 + $0x160] sm:$0xff] %v7356
        %7373 = vst [vmem:[%s303 + $0x168] sm:$0xff] %v7357
        %7374 = vst [vmem:[%s303 + $0x170] sm:$0xff] %v7358
        %7375 = vst [vmem:[%s303 + $0x178] sm:$0xff] %v7359
        %s7376 = sand.u32 %s148, 1
        %s7377 = scalar_lea.sflag [#allocation5], %s7376
        %s7378 = sand.u32 %s148, 1
        %s7379 = smul.addr %s7378, 384
        %s7380 = scalar_lea.vmem [#allocation9], %s7379
        // Predicated region
        $region49: #{tpu_custom_call.1} parent=35 // pred_check
          %p7381 = pneg %p158
        $region50: #{tpu_custom_call.1} parent=35 // pred_check_branch
          %7383 = sbr.rel (%p7381) target = $region52
        $region51: #{tpu_custom_call.1} parent=35 // pred_region
          %s7384 = smul.u32 48, %s29
          %s7386 = ssub.s32 6144, 6144
          %7387 = vsyncadd %s7377, %s7386
          %s7388 = smul.addr %s28, 48
          %s7389 = sadd.s32 %s7384, %s7388
          %s7390 = smul.addr %s7389, 128
          %s7391 = scalar_lea.hbm %s4, %s7390
          %s7392 = sshll.u32 %s7380, 4
          %s7393 = int_to_ptr.vmem [resolvable:$true] %s7392
          %7398 = dma.vmem_to_hbm [thread:$0]  %s7393, 6144, %s7391, %s7377, 128, 128, 8
        $region52: #{tpu_custom_call.1} parent=35 // pred_fallthru
          _
      $region36: #{tpu_custom_call.1} parent=5 // pred_fallthru
        _
      %p7399 = scmp.le.s32.totalorder 2, %s19
      // Predicated region
      $region53: #{tpu_custom_call.1} parent=5 // pred_check
        %p7400 = pneg %p7399
      $region54: #{tpu_custom_call.1} parent=5 // pred_check_branch
        %7402 = sbr.rel (%p7400) target = $region56
      $region55: #{tpu_custom_call.1} parent=5 // pred_region
        %s7403 = ssub.s32 %s19, 2
        // Predicated region
        $region57: #{tpu_custom_call.1} parent=55 // pred_check
          %p7404 = pneg %p164
        $region58: #{tpu_custom_call.1} parent=55 // pred_check_branch
          %7406 = sbr.rel (%p7404) target = $region60
        $region59: #{tpu_custom_call.1} parent=55 // pred_region
          %s7407 = sand.u32 %s149, 1
          %s7408 = scalar_lea.sflag [#allocation5], %s7407
          %s7409 = sand.u32 %s149, 1
          %s7410 = smul.addr %s7409, 384
          %s7411 = scalar_lea.vmem [#allocation9], %s7410
          %7412 = dma.done %s7408, 6144
        $region60: #{tpu_custom_call.1} parent=55 // pred_fallthru
          _
      $region56: #{tpu_custom_call.1} parent=5 // pred_fallthru
        _
    $region6: #{tpu_custom_call.1} parent=1 // loop_footer
      %s23 = sadd.s32 1, %s19
    $region7: #{tpu_custom_call.1} parent=1 // loop_footer_branch
      %18 = sbr.rel target = $region3
    $region8: #{tpu_custom_call.1} parent=1 // loop_exit
      _
    %7413 = vsyncpa [#allocation4], 1
    %s7414 = scalar_lea.sflag [#allocation4], 1
    %7415 = vsyncpa %s7414, 1
    %7416 = vsyncpa [#allocation7], 1
    %s7417 = scalar_lea.sflag [#allocation7], 1
    %7418 = vsyncpa %s7417, 1
    %7419 = vsyncpa [#allocation5], 1
    %s7420 = scalar_lea.sflag [#allocation5], 1
    %7421 = vsyncpa %s7420, 1

</llo_original>
